<compile_context>
chip_gen: v7x
topology: tpu7x:2x2x1
jax: 0.10.0
libtpu: 0.0.40
codegen_flags: <defaults>
</compile_context>

<pallas_src>
import functools

import jax
import jax.numpy as jnp
from jax import lax
from jax.experimental import pallas as pl
from jax.experimental.pallas import tpu as pltpu


def _gelu_exact(x):
    # PyTorch nn.GELU() default: 0.5 * x * (1 + erf(x / sqrt(2)))
    return 0.5 * x * (1.0 + lax.erf(x * 0.7071067811865476))


def _avg_self_attn_kernel(w_ref, x_ref, mask_ref, rep_ref, scores_ref,
                          glog_ref, m_ref, l_ref, acc_ref, *, num_seq_blocks):
    # w_ref:      (1, H)
    # x_ref:      (tb, ts, H)        -- native dtype, fed straight to the MXU
    # mask_ref:   (tb, 1, ts) or (1, 1, ts)
    # rep_ref:    (tb, 1, H)         -- resident across the sequence grid axis
    # scores_ref: (tb, 1, S)         -- resident across the sequence grid axis
    # glog_ref:   (nk, tb, 1, ts) f32 scratch: masked-GELU logits, full sequence
    # m_ref/l_ref:(tb, 1, 1) f32 scratch: running max / running sum of exp
    # acc_ref:    (tb, 1, H) f32 scratch: unnormalized weighted-sum accumulator
    k = pl.program_id(1)

    @pl.when(k == 0)
    def _init():
        m_ref[...] = jnp.full(m_ref.shape, -jnp.inf, dtype=m_ref.dtype)
        l_ref[...] = jnp.zeros(l_ref.shape, dtype=l_ref.dtype)
        acc_ref[...] = jnp.zeros(acc_ref.shape, dtype=acc_ref.dtype)

    x = x_ref[...]                                     # (tb, ts, H), native dtype
    tb, ts, h = x.shape
    w_b = jnp.broadcast_to(w_ref[...].astype(x.dtype)[:, None, :], (tb, 1, h))

    # logits[b, 0, s] = sum_h w[h] * x[b, s, h]   -- MXU, f32 accumulation
    logits = jnp.einsum(
        "buh,bsh->bus", w_b, x,
        preferred_element_type=jnp.float32,
        precision=lax.Precision.HIGHEST)               # (tb, 1, ts) f32

    # GELU + optional additive mask (mask broadcasts over tb if (1, 1, ts))
    g = _gelu_exact(logits) + mask_ref[...].astype(jnp.float32)

    # Stash this block's masked-GELU logits so the final softmax over the whole
    # sequence can be emitted exactly at the last step (tiny: tb*ts f32 scalars).
    glog_ref[k] = g

    # Online-softmax update (flash-style rescaling of the running accumulators).
    m_prev = m_ref[...]                                # (tb, 1, 1)
    m_new = jnp.maximum(m_prev, jnp.max(g, axis=-1, keepdims=True))
    alpha = jnp.exp(m_prev - m_new)                    # (tb, 1, 1)
    p = jnp.exp(g - m_new)                             # (tb, 1, ts)
    l_ref[...] = alpha * l_ref[...] + jnp.sum(p, axis=-1, keepdims=True)

    # acc[b, 0, h] += sum_s p[b, 0, s] * x[b, s, h]   -- MXU, f32 accumulation
    part = jnp.einsum(
        "bus,bsh->buh", p.astype(x.dtype), x,
        preferred_element_type=jnp.float32,
        precision=lax.Precision.HIGHEST)               # (tb, 1, H) f32
    acc_ref[...] = alpha * acc_ref[...] + part
    m_ref[...] = m_new

    @pl.when(k == num_seq_blocks - 1)
    def _finalize():
        inv_l = 1.0 / l_ref[...]                       # (tb, 1, 1)
        m_fin = m_ref[...]                             # (tb, 1, 1)
        # Static, 128-aligned lane slices — one clean store per sequence block.
        for j in range(num_seq_blocks):
            blk = jnp.exp(glog_ref[j] - m_fin) * inv_l
            scores_ref[:, :, j * ts:(j + 1) * ts] = blk.astype(scores_ref.dtype)
        rep_ref[...] = (acc_ref[...] * inv_l).astype(rep_ref.dtype)


def _choose_blocks(B, S, H, itemsize, *, max_batch_block=None, max_seq_block=None,
                   block_bytes=4 * 1024 * 1024):
    """Pick (tb, ts): batch / sequence block sizes for the (tb, ts, H) input tile."""
    row_bytes = max(1, H * itemsize)

    # --- sequence block: prefer the whole sequence, else a 128-multiple divisor.
    seq_cap = S if max_seq_block is None else max(1, min(S, max_seq_block))
    if S * row_bytes <= block_bytes and seq_cap >= S:
        ts = S
    else:
        limit = min(seq_cap, max(128, block_bytes // row_bytes))
        ts = None
        t = (int(limit) // 128) * 128
        while t >= 128:
            if S % t == 0:
                ts = t
                break
            t -= 128
        if ts is None:
            ts = S  # TODO(synk): no clean 128-multiple divisor; take the whole sequence.

    # --- batch block: largest divisor of B whose input tile fits the budget.
    blk_b = max(1, ts * row_bytes)
    cap = max(1, block_bytes // blk_b)
    # Keep the full-sequence logits scratch ((nk, tb, 1, ts) f32, sublane-padded) modest.
    cap = min(cap, max(1, (4 * 1024 * 1024) // max(1, 8 * S * 4)))
    if max_batch_block is not None:
        cap = min(cap, max_batch_block)
    cap = min(cap, B)
    tb = 1
    for t in range(int(cap), 0, -1):
        if B % t == 0:
            tb = t
            break
    return tb, ts


@functools.partial(jax.jit,
                   static_argnames=("max_batch_block", "max_seq_block", "block_bytes"))
def average_self_attention(inputs, attention_weights, attention_mask=None, *,
                           max_batch_block=None, max_seq_block=None,
                           block_bytes=4 * 1024 * 1024):
    """inputs: (B, S, H); attention_weights: (H,); attention_mask: (B, S) or None."""
    B, S, H = inputs.shape
    dt = inputs.dtype
    tb, ts = _choose_blocks(B, S, H, jnp.dtype(dt).itemsize,
                            max_batch_block=max_batch_block,
                            max_seq_block=max_seq_block,
                            block_bytes=block_bytes)
    nb, nk = B // tb, S // ts

    w2d = attention_weights.reshape(1, H)

    if attention_mask is None:
        # Single zero row, broadcast to every grid step — no (B, S) HBM traffic.
        mask3 = jnp.zeros((1, 1, S), dtype=jnp.float32)
        mask_spec = pl.BlockSpec((1, 1, ts), lambda i, k: (0, 0, k))
    else:
        mask3 = attention_mask.reshape(B, 1, S)
        mask_spec = pl.BlockSpec((tb, 1, ts), lambda i, k: (i, 0, k))

    kernel = functools.partial(_avg_self_attn_kernel, num_seq_blocks=nk)

    rep3, scores3 = pl.pallas_call(
        kernel,
        out_shape=(
            jax.ShapeDtypeStruct((B, 1, H), dt),   # representations
            jax.ShapeDtypeStruct((B, 1, S), dt),   # scores
        ),
        grid_spec=pltpu.PrefetchScalarGridSpec(
            num_scalar_prefetch=0,
            grid=(nb, nk),
            in_specs=[
                pl.BlockSpec((1, H), lambda i, k: (0, 0)),         # weights (shared)
                pl.BlockSpec((tb, ts, H), lambda i, k: (i, k, 0)),  # inputs
                mask_spec,                                          # mask
            ],
            out_specs=[
                pl.BlockSpec((tb, 1, H), lambda i, k: (i, 0, 0)),   # representations
                pl.BlockSpec((tb, 1, S), lambda i, k: (i, 0, 0)),   # scores
            ],
            scratch_shapes=[
                pltpu.VMEM((nk, tb, 1, ts), jnp.float32),  # masked-GELU logits
                pltpu.VMEM((tb, 1, 1), jnp.float32),       # running max
                pltpu.VMEM((tb, 1, 1), jnp.float32),       # running sum of exp
                pltpu.VMEM((tb, 1, H), jnp.float32),       # weighted-sum accumulator
            ],
        ),
        compiler_params=pltpu.CompilerParams(
            dimension_semantics=("parallel", "arbitrary"),
            vmem_limit_bytes=48 * 1024 * 1024,
        ),
    )(w2d, inputs, mask3)

    return rep3.reshape(B, H), scores3.reshape(B, S)


def _reference(inputs, w, mask=None):
    # Pure-JAX reference mirroring the PyTorch forward (exact f32 elementwise math).
    x = inputs.astype(jnp.float32)
    logits = jnp.sum(x * w.astype(jnp.float32)[None, None, :], axis=-1)
    scores = _gelu_exact(logits)
    if mask is not None:
        scores = scores + mask.astype(jnp.float32)
    scores = jax.nn.softmax(scores, axis=-1)
    rep = jnp.sum(x * scores[..., None], axis=1)
    return rep.astype(inputs.dtype), scores.astype(inputs.dtype)


if __name__ == "__main__":
    key = jax.random.PRNGKey(0)
    k_w, k_x1, k_m1, k_x2, k_x3, k_m3 = jax.random.split(key, 6)

    H = 256  # attention_size

    # nn.init.normal_(w, std=0.02)
    attention_weights = 0.02 * jax.random.normal(k_w, (H,), dtype=jnp.float32)

    # --- Config 1: small lane-aligned shapes, with an additive mask -------------
    B1, S1 = 4, 128
    x1 = jax.random.normal(k_x1, (B1, S1, H), dtype=jnp.float32)
    mask1 = jnp.where(jax.random.uniform(k_m1, (B1, S1)) > 0.2, 0.0, -1e9)
    mask1 = mask1.astype(jnp.float32)

    rep1, sc1 = average_self_attention(x1, attention_weights, mask1)
    jax.block_until_ready((rep1, sc1))
    rep1_ref, sc1_ref = _reference(x1, attention_weights, mask1)
    assert jnp.allclose(rep1, rep1_ref, atol=1e-4, rtol=1e-4), "representations mismatch"
    assert jnp.allclose(sc1, sc1_ref, atol=1e-4, rtol=1e-4), "scores mismatch"

    # --- Config 2: larger batch, no mask, forced into 2 batch blocks ------------
    B2, S2 = 16, 128
    x2 = jax.random.normal(k_x2, (B2, S2, H), dtype=jnp.float32)
    rep2, sc2 = average_self_attention(x2, attention_weights, None, max_batch_block=8)
    jax.block_until_ready((rep2, sc2))
    rep2_ref, sc2_ref = _reference(x2, attention_weights, None)
    assert jnp.allclose(rep2, rep2_ref, atol=1e-4, rtol=1e-4), "representations mismatch (no mask)"
    assert jnp.allclose(sc2, sc2_ref, atol=1e-4, rtol=1e-4), "scores mismatch (no mask)"

    # --- Config 3: sequence tiling forced (online-softmax path), with mask ------
    B3, S3 = 2, 256
    x3 = jax.random.normal(k_x3, (B3, S3, H), dtype=jnp.float32)
    mask3 = jnp.where(jax.random.uniform(k_m3, (B3, S3)) > 0.3, 0.0, -1e9)
    mask3 = mask3.astype(jnp.float32)
    rep3, sc3 = average_self_attention(x3, attention_weights, mask3, max_seq_block=128)
    jax.block_until_ready((rep3, sc3))
    rep3_ref, sc3_ref = _reference(x3, attention_weights, mask3)
    assert jnp.allclose(rep3, rep3_ref, atol=1e-4, rtol=1e-4), "representations mismatch (seq-tiled)"
    assert jnp.allclose(sc3, sc3_ref, atol=1e-4, rtol=1e-4), "scores mismatch (seq-tiled)"

    print("KERNEL_OK")
</pallas_src>

<mosaic_0001>
module attributes {stable_mosaic.version = 11 : i64} {
  func.func @_avg_self_attn_kernel(%arg0: i32, %arg1: i32, %arg2: memref<1x256xf32, #tpu.memory_space<vmem>>, %arg3: memref<4x128x256xf32, #tpu.memory_space<vmem>>, %arg4: memref<4x1x128xf32, #tpu.memory_space<vmem>>, %arg5: memref<4x1x256xf32, #tpu.memory_space<vmem>>, %arg6: memref<4x1x128xf32, #tpu.memory_space<vmem>>, %arg7: memref<1x4x1x128xf32, #tpu.memory_space<vmem>>, %arg8: memref<4x1x1xf32, #tpu.memory_space<vmem>>, %arg9: memref<4x1x1xf32, #tpu.memory_space<vmem>>, %arg10: memref<4x1x256xf32, #tpu.memory_space<vmem>>) attributes {dimension_semantics = [#tpu.dimension_semantics<parallel>, #tpu.dimension_semantics<arbitrary>], iteration_bounds = array<i64: 1, 1>, scalar_prefetch = 0 : i64, scratch_operands = 4 : i64, tpu.core_type = #tpu.core_type<tc>, window_params = [{pipeline_mode = #tpu.pipeline_mode<synchronous>, transform_indices = @transform_0, window_bounds = array<i64: 1, 256>}, {transform_indices = @transform_1, window_bounds = array<i64: 4, 128, 256>}, {transform_indices = @transform_2, window_bounds = array<i64: 4, 1, 128>}, {transform_indices = @transform_3, window_bounds = array<i64: 4, 1, 256>}, {transform_indices = @transform_4, window_bounds = array<i64: 4, 1, 128>}]} {
    %c0_i32 = arith.constant 0 : i32
    %0 = arith.cmpi eq, %arg1, %c0_i32 : i32
    %1 = arith.extui %0 : i1 to i32
    %c0_i32_0 = arith.constant 0 : i32
    %2 = arith.cmpi ne, %1, %c0_i32_0 : i32
    scf.if %2 {
      %cst_37 = arith.constant 0xFF800000 : f32
      %48 = vector.broadcast %cst_37 : f32 to vector<4x1x1xf32>
      %c0_38 = arith.constant 0 : index
      %c0_39 = arith.constant 0 : index
      %c0_40 = arith.constant 0 : index
      %49 = vector.load %arg8[%c0_38, %c0_39, %c0_40] : memref<4x1x1xf32, #tpu.memory_space<vmem>>, vector<4x1x1xf32>
      tpu.vector_store %arg8[%c0_38, %c0_39, %c0_40], %48 {strides = array<i32>} : memref<4x1x1xf32, #tpu.memory_space<vmem>>, vector<4x1x1xf32>,
      %cst_41 = arith.constant 0.000000e+00 : f32
      %50 = vector.broadcast %cst_41 : f32 to vector<4x1x1xf32>
      %c0_42 = arith.constant 0 : index
      %c0_43 = arith.constant 0 : index
      %c0_44 = arith.constant 0 : index
      %51 = vector.load %arg9[%c0_42, %c0_43, %c0_44] : memref<4x1x1xf32, #tpu.memory_space<vmem>>, vector<4x1x1xf32>
      tpu.vector_store %arg9[%c0_42, %c0_43, %c0_44], %50 {strides = array<i32>} : memref<4x1x1xf32, #tpu.memory_space<vmem>>, vector<4x1x1xf32>,
      %cst_45 = arith.constant 0.000000e+00 : f32
      %52 = vector.broadcast %cst_45 : f32 to vector<4x1x256xf32>
      %c0_46 = arith.constant 0 : index
      %c0_47 = arith.constant 0 : index
      %c0_48 = arith.constant 0 : index
      %53 = vector.load %arg10[%c0_46, %c0_47, %c0_48] : memref<4x1x256xf32, #tpu.memory_space<vmem>>, vector<4x1x256xf32>
      tpu.vector_store %arg10[%c0_46, %c0_47, %c0_48], %52 {strides = array<i32>} : memref<4x1x256xf32, #tpu.memory_space<vmem>>, vector<4x1x256xf32>,
    } else {
    }
    %c0 = arith.constant 0 : index
    %c0_1 = arith.constant 0 : index
    %c0_2 = arith.constant 0 : index
    %3 = vector.load %arg3[%c0, %c0_1, %c0_2] : memref<4x128x256xf32, #tpu.memory_space<vmem>>, vector<4x128x256xf32>
    %c0_3 = arith.constant 0 : index
    %c0_4 = arith.constant 0 : index
    %4 = vector.load %arg2[%c0_3, %c0_4] : memref<1x256xf32, #tpu.memory_space<vmem>>, vector<1x256xf32>
    %5 = vector.shape_cast %4 : vector<1x256xf32> to vector<1x1x256xf32>
    %6 = vector.shape_cast %5 : vector<1x1x256xf32> to vector<1x1x256xf32>
    %7 = vector.broadcast %6 : vector<1x1x256xf32> to vector<4x1x256xf32>
    "tpu.trace_start"() <{level = 10 : i32, message = "buh,bsh->bus"}> : () -> ()
    %cst = arith.constant dense<0.000000e+00> : vector<4x1x128xf32>
    %8 = tpu.matmul %7, %3, %cst {dimension_numbers = #tpu.dot_dimension_numbers<[2], [2], [1], [1], [0, 0, 0, 1, 1, 1], [0], [0]>, precision = #tpu.contract_precision<fp32>} : vector<4x1x256xf32>, vector<4x128x256xf32>, vector<4x1x128xf32> -> vector<4x1x128xf32>
    "tpu.trace_stop"() : () -> ()
    %cst_5 = arith.constant 5.000000e-01 : f32
    %9 = vector.broadcast %cst_5 : f32 to vector<4x1x128xf32>
    %10 = arith.mulf %9, %8 : vector<4x1x128xf32>
    %cst_6 = arith.constant 0.707106769 : f32
    %11 = vector.broadcast %cst_6 : f32 to vector<4x1x128xf32>
    %12 = arith.mulf %8, %11 : vector<4x1x128xf32>
    %13 = math.erf %12 : vector<4x1x128xf32>
    %cst_7 = arith.constant 1.000000e+00 : f32
    %14 = vector.broadcast %cst_7 : f32 to vector<4x1x128xf32>
    %15 = arith.addf %14, %13 : vector<4x1x128xf32>
    %16 = arith.mulf %10, %15 : vector<4x1x128xf32>
    %c0_8 = arith.constant 0 : index
    %c0_9 = arith.constant 0 : index
    %c0_10 = arith.constant 0 : index
    %17 = vector.load %arg4[%c0_8, %c0_9, %c0_10] : memref<4x1x128xf32, #tpu.memory_space<vmem>>, vector<4x1x128xf32>
    %18 = arith.addf %16, %17 : vector<4x1x128xf32>
    %19 = arith.index_cast %arg1 : i32 to index
    %c0_11 = arith.constant 0 : index
    %c0_12 = arith.constant 0 : index
    %c0_13 = arith.constant 0 : index
    %20 = vector.load %arg7[%19, %c0_11, %c0_12, %c0_13] : memref<1x4x1x128xf32, #tpu.memory_space<vmem>>, vector<1x4x1x128xf32>
    %21 = vector.shape_cast %20 : vector<1x4x1x128xf32> to vector<4x1x128xf32>
    %22 = vector.shape_cast %18 : vector<4x1x128xf32> to vector<1x4x1x128xf32>
    tpu.vector_store %arg7[%19, %c0_11, %c0_12, %c0_13], %22 {strides = array<i32>} : memref<1x4x1x128xf32, #tpu.memory_space<vmem>>, vector<1x4x1x128xf32>,
    %c0_14 = arith.constant 0 : index
    %c0_15 = arith.constant 0 : index
    %c0_16 = arith.constant 0 : index
    %23 = vector.load %arg8[%c0_14, %c0_15, %c0_16] : memref<4x1x1xf32, #tpu.memory_space<vmem>>, vector<4x1x1xf32>
    %cst_17 = arith.constant dense<0xFF800000> : vector<4x1xf32>
    %24 = vector.multi_reduction <maximumf>, %18, %cst_17 [2] : vector<4x1x128xf32> to vector<4x1xf32>
    %25 = vector.shape_cast %24 : vector<4x1xf32> to vector<4x1x1xf32>
    %26 = arith.maximumf %23, %25 : vector<4x1x1xf32>
    %27 = arith.subf %23, %26 : vector<4x1x1xf32>
    %28 = math.exp %27 : vector<4x1x1xf32>
    %29 = vector.broadcast %26 : vector<4x1x1xf32> to vector<4x1x128xf32>
    %30 = arith.subf %18, %29 : vector<4x1x128xf32>
    %31 = math.exp %30 : vector<4x1x128xf32>
    %c0_18 = arith.constant 0 : index
    %c0_19 = arith.constant 0 : index
    %c0_20 = arith.constant 0 : index
    %32 = vector.load %arg9[%c0_18, %c0_19, %c0_20] : memref<4x1x1xf32, #tpu.memory_space<vmem>>, vector<4x1x1xf32>
    %33 = arith.mulf %28, %32 : vector<4x1x1xf32>
    %cst_21 = arith.constant dense<0.000000e+00> : vector<4x1xf32>
    %34 = vector.multi_reduction <add>, %31, %cst_21 [2] : vector<4x1x128xf32> to vector<4x1xf32>
    %35 = vector.shape_cast %34 : vector<4x1xf32> to vector<4x1x1xf32>
    %36 = arith.addf %33, %35 : vector<4x1x1xf32>
    %c0_22 = arith.constant 0 : index
    %c0_23 = arith.constant 0 : index
    %c0_24 = arith.constant 0 : index
    %37 = vector.load %arg9[%c0_22, %c0_23, %c0_24] : memref<4x1x1xf32, #tpu.memory_space<vmem>>, vector<4x1x1xf32>
    tpu.vector_store %arg9[%c0_22, %c0_23, %c0_24], %36 {strides = array<i32>} : memref<4x1x1xf32, #tpu.memory_space<vmem>>, vector<4x1x1xf32>,
    "tpu.trace_start"() <{level = 10 : i32, message = "bus,bsh->buh"}> : () -> ()
    %cst_25 = arith.constant dense<0.000000e+00> : vector<4x1x256xf32>
    %38 = tpu.matmul %31, %3, %cst_25 {dimension_numbers = #tpu.dot_dimension_numbers<[2], [1], [1], [2], [0, 0, 0, 1, 1, 2], [0], [0]>, precision = #tpu.contract_precision<fp32>} : vector<4x1x128xf32>, vector<4x128x256xf32>, vector<4x1x256xf32> -> vector<4x1x256xf32>
    "tpu.trace_stop"() : () -> ()
    %c0_26 = arith.constant 0 : index
    %c0_27 = arith.constant 0 : index
    %c0_28 = arith.constant 0 : index
    %39 = vector.load %arg10[%c0_26, %c0_27, %c0_28] : memref<4x1x256xf32, #tpu.memory_space<vmem>>, vector<4x1x256xf32>
    %40 = vector.broadcast %28 : vector<4x1x1xf32> to vector<4x1x256xf32>
    %41 = arith.mulf %40, %39 : vector<4x1x256xf32>
    %42 = arith.addf %41, %38 : vector<4x1x256xf32>
    %c0_29 = arith.constant 0 : index
    %c0_30 = arith.constant 0 : index
    %c0_31 = arith.constant 0 : index
    %43 = vector.load %arg10[%c0_29, %c0_30, %c0_31] : memref<4x1x256xf32, #tpu.memory_space<vmem>>, vector<4x1x256xf32>
    tpu.vector_store %arg10[%c0_29, %c0_30, %c0_31], %42 {strides = array<i32>} : memref<4x1x256xf32, #tpu.memory_space<vmem>>, vector<4x1x256xf32>,
    %c0_32 = arith.constant 0 : index
    %c0_33 = arith.constant 0 : index
    %c0_34 = arith.constant 0 : index
    %44 = vector.load %arg8[%c0_32, %c0_33, %c0_34] : memref<4x1x1xf32, #tpu.memory_space<vmem>>, vector<4x1x1xf32>
    tpu.vector_store %arg8[%c0_32, %c0_33, %c0_34], %26 {strides = array<i32>} : memref<4x1x1xf32, #tpu.memory_space<vmem>>, vector<4x1x1xf32>,
    %c0_i32_35 = arith.constant 0 : i32
    %45 = arith.cmpi eq, %arg1, %c0_i32_35 : i32
    %46 = arith.extui %45 : i1 to i32
    %c0_i32_36 = arith.constant 0 : i32
    %47 = arith.cmpi ne, %46, %c0_i32_36 : i32
    scf.if %47 {
      %c0_37 = arith.constant 0 : index
      %c0_38 = arith.constant 0 : index
      %c0_39 = arith.constant 0 : index
      %48 = vector.load %arg9[%c0_37, %c0_38, %c0_39] : memref<4x1x1xf32, #tpu.memory_space<vmem>>, vector<4x1x1xf32>
      %cst_40 = arith.constant 1.000000e+00 : f32
      %49 = vector.broadcast %cst_40 : f32 to vector<4x1x1xf32>
      %50 = arith.divf %49, %48 : vector<4x1x1xf32>
      %c0_41 = arith.constant 0 : index
      %c0_42 = arith.constant 0 : index
      %c0_43 = arith.constant 0 : index
      %51 = vector.load %arg8[%c0_41, %c0_42, %c0_43] : memref<4x1x1xf32, #tpu.memory_space<vmem>>, vector<4x1x1xf32>
      %c0_44 = arith.constant 0 : index
      %c0_45 = arith.constant 0 : index
      %c0_46 = arith.constant 0 : index
      %c0_47 = arith.constant 0 : index
      %52 = vector.load %arg7[%c0_44, %c0_45, %c0_46, %c0_47] : memref<1x4x1x128xf32, #tpu.memory_space<vmem>>, vector<1x4x1x128xf32>
      %53 = vector.shape_cast %52 : vector<1x4x1x128xf32> to vector<4x1x128xf32>
      %54 = vector.broadcast %51 : vector<4x1x1xf32> to vector<4x1x128xf32>
      %55 = arith.subf %53, %54 : vector<4x1x128xf32>
      %56 = math.exp %55 : vector<4x1x128xf32>
      %57 = vector.broadcast %50 : vector<4x1x1xf32> to vector<4x1x128xf32>
      %58 = arith.mulf %56, %57 : vector<4x1x128xf32>
      %c0_48 = arith.constant 0 : index
      %c0_49 = arith.constant 0 : index
      %c0_50 = arith.constant 0 : index
      %59 = vector.load %arg6[%c0_48, %c0_49, %c0_50] : memref<4x1x128xf32, #tpu.memory_space<vmem>>, vector<4x1x128xf32>
      tpu.vector_store %arg6[%c0_48, %c0_49, %c0_50], %58 {strides = array<i32>} : memref<4x1x128xf32, #tpu.memory_space<vmem>>, vector<4x1x128xf32>,
      %c0_51 = arith.constant 0 : index
      %c0_52 = arith.constant 0 : index
      %c0_53 = arith.constant 0 : index
      %60 = vector.load %arg10[%c0_51, %c0_52, %c0_53] : memref<4x1x256xf32, #tpu.memory_space<vmem>>, vector<4x1x256xf32>
      %61 = vector.broadcast %50 : vector<4x1x1xf32> to vector<4x1x256xf32>
      %62 = arith.mulf %60, %61 : vector<4x1x256xf32>
      %c0_54 = arith.constant 0 : index
      %c0_55 = arith.constant 0 : index
      %c0_56 = arith.constant 0 : index
      %63 = vector.load %arg5[%c0_54, %c0_55, %c0_56] : memref<4x1x256xf32, #tpu.memory_space<vmem>>, vector<4x1x256xf32>
      tpu.vector_store %arg5[%c0_54, %c0_55, %c0_56], %62 {strides = array<i32>} : memref<4x1x256xf32, #tpu.memory_space<vmem>>, vector<4x1x256xf32>,
    } else {
    }
    return
  }
  func.func @transform_0(%arg0: i32, %arg1: i32) -> (i32, i32) {
    %c0_i32 = arith.constant 0 : i32
    %c0_i32_0 = arith.constant 0 : i32
    %c0_i32_1 = arith.constant 0 : i32
    return %c0_i32, %c0_i32_0 : i32, i32
  }
  func.func @transform_1(%arg0: i32, %arg1: i32) -> (i32, i32, i32) {
    %c0_i32 = arith.constant 0 : i32
    %c0_i32_0 = arith.constant 0 : i32
    return %arg0, %arg1, %c0_i32 : i32, i32, i32
  }
  func.func @transform_2(%arg0: i32, %arg1: i32) -> (i32, i32, i32) {
    %c0_i32 = arith.constant 0 : i32
    %c0_i32_0 = arith.constant 0 : i32
    return %arg0, %c0_i32, %arg1 : i32, i32, i32
  }
  func.func @transform_3(%arg0: i32, %arg1: i32) -> (i32, i32, i32) {
    %c0_i32 = arith.constant 0 : i32
    %c0_i32_0 = arith.constant 0 : i32
    %c0_i32_1 = arith.constant 0 : i32
    return %arg0, %c0_i32, %c0_i32_0 : i32, i32, i32
  }
  func.func @transform_4(%arg0: i32, %arg1: i32) -> (i32, i32, i32) {
    %c0_i32 = arith.constant 0 : i32
    %c0_i32_0 = arith.constant 0 : i32
    %c0_i32_1 = arith.constant 0 : i32
    return %arg0, %c0_i32, %c0_i32_0 : i32, i32, i32
  }
}

</mosaic_0001>

<llo_original>
// kernel: average_self_attention.1
$region0: #{average_self_attention.1}
  #allocation0 [shape = 'u32[]', space=smem, size = 0x4, offset = 0x4, fixed_abs, tag = 'smem constant byte address 0x4 - core index']
  #allocation1 [shape = 'u32[144,128]{1,0:T(1,128)}', space=vmem, size = 0x12000, scoped, tag = 'internal scratch']
  #allocation2 [shape = 'f32[1,4,1,128]{3,2,1,0:T(1,128)}', space=vmem, size = 0x800, scoped, tag = 'scratch operand']
  #allocation3 [shape = 'f32[4,1,1]{2,1,0:T(1,128)}', space=vmem, size = 0x800, scoped, tag = 'scratch operand']
  #allocation4 [shape = 'f32[4,1,1]{2,1,0:T(1,128)}', space=vmem, size = 0x800, scoped, tag = 'scratch operand']
  #allocation5 [shape = 'f32[4,1,256]{2,1,0:T(1,128)}', space=vmem, size = 0x1000, scoped, tag = 'scratch operand']
  %s0 = inlined_call_operand.vmem [shape: f32[1,256], index: 0, kind: input, shape index: {}]
  %s1 = inlined_call_operand.hbm [shape: f32[4,128,256], index: 1, kind: input, shape index: {}]
  %s2 = inlined_call_operand.vmem [shape: f32[4,1,128], index: 2, kind: input, shape index: {}]
  %s3 = inlined_call_operand.vmem [shape: f32[4,1,256], index: 3, kind: output, shape index: {0}]
  %s4 = inlined_call_operand.hbm [shape: f32[4,1,128], index: 4, kind: output, shape index: {1}]
  %5 = xla_tuple %s3, %s4
  %s6 = sld [smem:[#allocation0]]
  $region42: #{average_self_attention.1} parent=0
    _
  %s8 = ssub.s32 1, %s6
  %s9 = scalar_select 0, %s8, %s6
  $region1: #{average_self_attention.1} parent=0
    #allocation6 [shape = 'u8[524288]{0}', space=vmem, size = 0x80000, scoped, tag = 'input window, operand 1, single buffered']
    #allocation7 [shape = 's32[1]{0}', space=sflag, size = 0x4, scoped, tag = 'scoped memory for average_self_attention.1']
    #allocation8 [shape = 's32[1]{0}', space=sflag, size = 0x4, scoped, tag = 'scoped memory for average_self_attention.1']
    #allocation9 [shape = 'u8[2048]{0}', space=vmem, size = 0x800, scoped, tag = 'output window, operand 1, single buffered']
    %10 = vsyncpa [#allocation7], 0
    %11 = vsyncpa [#allocation8], 0
    // Predicated region
    $region2: #{average_self_attention.1} parent=1 // pred_check
      _
    $region3: #{average_self_attention.1} parent=1 // pred_check_branch
      %13 = sbr.rel (0) target = $region5
    $region4: #{average_self_attention.1} parent=1 // pred_region
      _
    $region5: #{average_self_attention.1} parent=1 // pred_fallthru
      _
    // Predicated region
    $region6: #{average_self_attention.1} parent=1 // pred_check
      _
    $region7: #{average_self_attention.1} parent=1 // pred_check_branch
      %15 = sbr.rel (0) target = $region9
    $region8: #{average_self_attention.1} parent=1 // pred_region
      %s17 = ssub.s32 16384, 16384
      %18 = vsyncadd [#allocation7], %s17
      %s19 = sshll.u32 [#allocation6], 4
      %s20 = int_to_ptr.vmem [resolvable:$true] %s19
      %25 = dma.hbm_to_vmem [thread:$0]  %s1, 16384, %s20, [#allocation7], 256, 256, 16
    $region9: #{average_self_attention.1} parent=1 // pred_fallthru
      _
    // Predicated region
    $region10: #{average_self_attention.1} parent=1 // pred_check
      _
    $region11: #{average_self_attention.1} parent=1 // pred_check_branch
      %27 = sbr.rel (0) target = $region13
    $region12: #{average_self_attention.1} parent=1 // pred_region
      _
    $region13: #{average_self_attention.1} parent=1 // pred_fallthru
      _
    // Predicated region
    $region14: #{average_self_attention.1} parent=1 // pred_check
      _
    $region15: #{average_self_attention.1} parent=1 // pred_check_branch
      %29 = sbr.rel (0) target = $region17
    $region16: #{average_self_attention.1} parent=1 // pred_region
      %30 = dma.done [#allocation7], 16384
    $region17: #{average_self_attention.1} parent=1 // pred_fallthru
      _
    %p31 = scmp.eq.s32.totalorder 0, 0
    // Predicated region
    $region18: #{average_self_attention.1} parent=1 // pred_check
      %p32 = pneg %p31
    $region19: #{average_self_attention.1} parent=1 // pred_check_branch
      %34 = sbr.rel (%p32) target = $region21
    $region20: #{average_self_attention.1} parent=1 // pred_region
      %vm35 = vcmask 0
      %36 = vst.msk [vmem:[#allocation3] sm:$0x1] %vm35, -inf
      %37 = vst.msk [vmem:[#allocation3 + $0x1] sm:$0x1] %vm35, -inf
      %38 = vst.msk [vmem:[#allocation3 + $0x2] sm:$0x1] %vm35, -inf
      %39 = vst.msk [vmem:[#allocation3 + $0x3] sm:$0x1] %vm35, -inf
      %40 = vst.msk [vmem:[#allocation4] sm:$0x1] %vm35, 0.0
      %41 = vst.msk [vmem:[#allocation4 + $0x1] sm:$0x1] %vm35, 0.0
      %42 = vst.msk [vmem:[#allocation4 + $0x2] sm:$0x1] %vm35, 0.0
      %43 = vst.msk [vmem:[#allocation4 + $0x3] sm:$0x1] %vm35, 0.0
      %v44 = vlaneseq
      %vm45 = vcmp.ge.s32.totalorder %v44, 0
      %vm46 = vcmp.lt.s32.totalorder %v44, 256
      %vm47 = vmand %vm45, %vm46
      %48 = vst.msk [vmem:[#allocation5] sm:$0x3] %vm47, 0.0
      %49 = vst.msk [vmem:[#allocation5 + $0x2] sm:$0x3] %vm47, 0.0
      %50 = vst.msk [vmem:[#allocation5 + $0x4] sm:$0x3] %vm47, 0.0
      %51 = vst.msk [vmem:[#allocation5 + $0x6] sm:$0x3] %vm47, 0.0
    $region21: #{average_self_attention.1} parent=1 // pred_fallthru
      _
    %v52 = vld [vmem:[#allocation6] sm:$0xff]
    %v53 = vld [vmem:[#allocation6 + $0x8] sm:$0xff]
    %v54 = vld [vmem:[#allocation6 + $0x10] sm:$0xff]
    %v55 = vld [vmem:[#allocation6 + $0x18] sm:$0xff]
    %v56 = vld [vmem:[#allocation6 + $0x20] sm:$0xff]
    %v57 = vld [vmem:[#allocation6 + $0x28] sm:$0xff]
    %v58 = vld [vmem:[#allocation6 + $0x30] sm:$0xff]
    %v59 = vld [vmem:[#allocation6 + $0x38] sm:$0xff]
    %v60 = vld [vmem:[#allocation6 + $0x40] sm:$0xff]
    %v61 = vld [vmem:[#allocation6 + $0x48] sm:$0xff]
    %v62 = vld [vmem:[#allocation6 + $0x50] sm:$0xff]
    %v63 = vld [vmem:[#allocation6 + $0x58] sm:$0xff]
    %v64 = vld [vmem:[#allocation6 + $0x60] sm:$0xff]
    %v65 = vld [vmem:[#allocation6 + $0x68] sm:$0xff]
    %v66 = vld [vmem:[#allocation6 + $0x70] sm:$0xff]
    %v67 = vld [vmem:[#allocation6 + $0x78] sm:$0xff]
    %v68 = vld [vmem:[#allocation6 + $0x80] sm:$0xff]
    %v69 = vld [vmem:[#allocation6 + $0x88] sm:$0xff]
    %v70 = vld [vmem:[#allocation6 + $0x90] sm:$0xff]
    %v71 = vld [vmem:[#allocation6 + $0x98] sm:$0xff]
    %v72 = vld [vmem:[#allocation6 + $0xa0] sm:$0xff]
    %v73 = vld [vmem:[#allocation6 + $0xa8] sm:$0xff]
    %v74 = vld [vmem:[#allocation6 + $0xb0] sm:$0xff]
    %v75 = vld [vmem:[#allocation6 + $0xb8] sm:$0xff]
    %v76 = vld [vmem:[#allocation6 + $0xc0] sm:$0xff]
    %v77 = vld [vmem:[#allocation6 + $0xc8] sm:$0xff]
    %v78 = vld [vmem:[#allocation6 + $0xd0] sm:$0xff]
    %v79 = vld [vmem:[#allocation6 + $0xd8] sm:$0xff]
    %v80 = vld [vmem:[#allocation6 + $0xe0] sm:$0xff]
    %v81 = vld [vmem:[#allocation6 + $0xe8] sm:$0xff]
    %v82 = vld [vmem:[#allocation6 + $0xf0] sm:$0xff]
    %v83 = vld [vmem:[#allocation6 + $0xf8] sm:$0xff]
    %v84 = vld [vmem:[#allocation6 + $0x100] sm:$0xff]
    %v85 = vld [vmem:[#allocation6 + $0x108] sm:$0xff]
    %v86 = vld [vmem:[#allocation6 + $0x110] sm:$0xff]
    %v87 = vld [vmem:[#allocation6 + $0x118] sm:$0xff]
    %v88 = vld [vmem:[#allocation6 + $0x120] sm:$0xff]
    %v89 = vld [vmem:[#allocation6 + $0x128] sm:$0xff]
    %v90 = vld [vmem:[#allocation6 + $0x130] sm:$0xff]
    %v91 = vld [vmem:[#allocation6 + $0x138] sm:$0xff]
    %v92 = vld [vmem:[#allocation6 + $0x140] sm:$0xff]
    %v93 = vld [vmem:[#allocation6 + $0x148] sm:$0xff]
    %v94 = vld [vmem:[#allocation6 + $0x150] sm:$0xff]
    %v95 = vld [vmem:[#allocation6 + $0x158] sm:$0xff]
    %v96 = vld [vmem:[#allocation6 + $0x160] sm:$0xff]
    %v97 = vld [vmem:[#allocation6 + $0x168] sm:$0xff]
    %v98 = vld [vmem:[#allocation6 + $0x170] sm:$0xff]
    %v99 = vld [vmem:[#allocation6 + $0x178] sm:$0xff]
    %v100 = vld [vmem:[#allocation6 + $0x180] sm:$0xff]
    %v101 = vld [vmem:[#allocation6 + $0x188] sm:$0xff]
    %v102 = vld [vmem:[#allocation6 + $0x190] sm:$0xff]
    %v103 = vld [vmem:[#allocation6 + $0x198] sm:$0xff]
    %v104 = vld [vmem:[#allocation6 + $0x1a0] sm:$0xff]
    %v105 = vld [vmem:[#allocation6 + $0x1a8] sm:$0xff]
    %v106 = vld [vmem:[#allocation6 + $0x1b0] sm:$0xff]
    %v107 = vld [vmem:[#allocation6 + $0x1b8] sm:$0xff]
    %v108 = vld [vmem:[#allocation6 + $0x1c0] sm:$0xff]
    %v109 = vld [vmem:[#allocation6 + $0x1c8] sm:$0xff]
    %v110 = vld [vmem:[#allocation6 + $0x1d0] sm:$0xff]
    %v111 = vld [vmem:[#allocation6 + $0x1d8] sm:$0xff]
    %v112 = vld [vmem:[#allocation6 + $0x1e0] sm:$0xff]
    %v113 = vld [vmem:[#allocation6 + $0x1e8] sm:$0xff]
    %v114 = vld [vmem:[#allocation6 + $0x1f0] sm:$0xff]
    %v115 = vld [vmem:[#allocation6 + $0x1f8] sm:$0xff]
    %v116 = vld [vmem:[#allocation6 + $0x200] sm:$0xff]
    %v117 = vld [vmem:[#allocation6 + $0x208] sm:$0xff]
    %v118 = vld [vmem:[#allocation6 + $0x210] sm:$0xff]
    %v119 = vld [vmem:[#allocation6 + $0x218] sm:$0xff]
    %v120 = vld [vmem:[#allocation6 + $0x220] sm:$0xff]
    %v121 = vld [vmem:[#allocation6 + $0x228] sm:$0xff]
    %v122 = vld [vmem:[#allocation6 + $0x230] sm:$0xff]
    %v123 = vld [vmem:[#allocation6 + $0x238] sm:$0xff]
    %v124 = vld [vmem:[#allocation6 + $0x240] sm:$0xff]
    %v125 = vld [vmem:[#allocation6 + $0x248] sm:$0xff]
    %v126 = vld [vmem:[#allocation6 + $0x250] sm:$0xff]
    %v127 = vld [vmem:[#allocation6 + $0x258] sm:$0xff]
    %v128 = vld [vmem:[#allocation6 + $0x260] sm:$0xff]
    %v129 = vld [vmem:[#allocation6 + $0x268] sm:$0xff]
    %v130 = vld [vmem:[#allocation6 + $0x270] sm:$0xff]
    %v131 = vld [vmem:[#allocation6 + $0x278] sm:$0xff]
    %v132 = vld [vmem:[#allocation6 + $0x280] sm:$0xff]
    %v133 = vld [vmem:[#allocation6 + $0x288] sm:$0xff]
    %v134 = vld [vmem:[#allocation6 + $0x290] sm:$0xff]
    %v135 = vld [vmem:[#allocation6 + $0x298] sm:$0xff]
    %v136 = vld [vmem:[#allocation6 + $0x2a0] sm:$0xff]
    %v137 = vld [vmem:[#allocation6 + $0x2a8] sm:$0xff]
    %v138 = vld [vmem:[#allocation6 + $0x2b0] sm:$0xff]
    %v139 = vld [vmem:[#allocation6 + $0x2b8] sm:$0xff]
    %v140 = vld [vmem:[#allocation6 + $0x2c0] sm:$0xff]
    %v141 = vld [vmem:[#allocation6 + $0x2c8] sm:$0xff]
    %v142 = vld [vmem:[#allocation6 + $0x2d0] sm:$0xff]
    %v143 = vld [vmem:[#allocation6 + $0x2d8] sm:$0xff]
    %v144 = vld [vmem:[#allocation6 + $0x2e0] sm:$0xff]
    %v145 = vld [vmem:[#allocation6 + $0x2e8] sm:$0xff]
    %v146 = vld [vmem:[#allocation6 + $0x2f0] sm:$0xff]
    %v147 = vld [vmem:[#allocation6 + $0x2f8] sm:$0xff]
    %v148 = vld [vmem:[#allocation6 + $0x300] sm:$0xff]
    %v149 = vld [vmem:[#allocation6 + $0x308] sm:$0xff]
    %v150 = vld [vmem:[#allocation6 + $0x310] sm:$0xff]
    %v151 = vld [vmem:[#allocation6 + $0x318] sm:$0xff]
    %v152 = vld [vmem:[#allocation6 + $0x320] sm:$0xff]
    %v153 = vld [vmem:[#allocation6 + $0x328] sm:$0xff]
    %v154 = vld [vmem:[#allocation6 + $0x330] sm:$0xff]
    %v155 = vld [vmem:[#allocation6 + $0x338] sm:$0xff]
    %v156 = vld [vmem:[#allocation6 + $0x340] sm:$0xff]
    %v157 = vld [vmem:[#allocation6 + $0x348] sm:$0xff]
    %v158 = vld [vmem:[#allocation6 + $0x350] sm:$0xff]
    %v159 = vld [vmem:[#allocation6 + $0x358] sm:$0xff]
    %v160 = vld [vmem:[#allocation6 + $0x360] sm:$0xff]
    %v161 = vld [vmem:[#allocation6 + $0x368] sm:$0xff]
    %v162 = vld [vmem:[#allocation6 + $0x370] sm:$0xff]
    %v163 = vld [vmem:[#allocation6 + $0x378] sm:$0xff]
    %v164 = vld [vmem:[#allocation6 + $0x380] sm:$0xff]
    %v165 = vld [vmem:[#allocation6 + $0x388] sm:$0xff]
    %v166 = vld [vmem:[#allocation6 + $0x390] sm:$0xff]
    %v167 = vld [vmem:[#allocation6 + $0x398] sm:$0xff]
    %v168 = vld [vmem:[#allocation6 + $0x3a0] sm:$0xff]
    %v169 = vld [vmem:[#allocation6 + $0x3a8] sm:$0xff]
    %v170 = vld [vmem:[#allocation6 + $0x3b0] sm:$0xff]
    %v171 = vld [vmem:[#allocation6 + $0x3b8] sm:$0xff]
    %v172 = vld [vmem:[#allocation6 + $0x3c0] sm:$0xff]
    %v173 = vld [vmem:[#allocation6 + $0x3c8] sm:$0xff]
    %v174 = vld [vmem:[#allocation6 + $0x3d0] sm:$0xff]
    %v175 = vld [vmem:[#allocation6 + $0x3d8] sm:$0xff]
    %v176 = vld [vmem:[#allocation6 + $0x3e0] sm:$0xff]
    %v177 = vld [vmem:[#allocation6 + $0x3e8] sm:$0xff]
    %v178 = vld [vmem:[#allocation6 + $0x3f0] sm:$0xff]
    %v179 = vld [vmem:[#allocation6 + $0x3f8] sm:$0xff]
    %v180 = vld [vmem:[%s0] sm:$0x3]
    %v182 = vlaneseq
    %v183 = vshrl.u32 %v182, 7
    %v184 = vsub.s32 0, %v183
    %v185 = vrot.slane %v180, %v184
    %v186 = vlaneseq
    %v187 = vshrl.u32 %v186, 7
    %v188 = vsub.s32 1, %v187
    %v189 = vrot.slane %v180, %v188
    %v192 = vand.u32 %v53, 4294901760
    %193 = vmatprep.subr.mxu0 %v192
    %v194 = vand.u32 %v52, 4294901760
    %195 = vmatpush1.xpose.msra.mxu0 %v194
    %v196 = vand.u32 %v55, 4294901760
    %197 = vmatprep.subr.mxu0 %v196
    %v198 = vand.u32 %v54, 4294901760
    %199 = vmatpush1.xpose.msra.mxu0 %v198
    %v200 = vand.u32 %v57, 4294901760
    %201 = vmatprep.subr.mxu0 %v200
    %v202 = vand.u32 %v56, 4294901760
    %203 = vmatpush1.xpose.msra.mxu0 %v202
    %v204 = vand.u32 %v59, 4294901760
    %205 = vmatprep.subr.mxu0 %v204
    %v206 = vand.u32 %v58, 4294901760
    %207 = vmatpush1.xpose.msra.mxu0 %v206
    %v208 = vand.u32 %v61, 4294901760
    %209 = vmatprep.subr.mxu0 %v208
    %v210 = vand.u32 %v60, 4294901760
    %211 = vmatpush1.xpose.msra.mxu0 %v210
    %v212 = vand.u32 %v63, 4294901760
    %213 = vmatprep.subr.mxu0 %v212
    %v214 = vand.u32 %v62, 4294901760
    %215 = vmatpush1.xpose.msra.mxu0 %v214
    %v216 = vand.u32 %v65, 4294901760
    %217 = vmatprep.subr.mxu0 %v216
    %v218 = vand.u32 %v64, 4294901760
    %219 = vmatpush1.xpose.msra.mxu0 %v218
    %v220 = vand.u32 %v67, 4294901760
    %221 = vmatprep.subr.mxu0 %v220
    %v222 = vand.u32 %v66, 4294901760
    %223 = vmatpush1.xpose.msra.mxu0 %v222
    %v224 = vand.u32 %v69, 4294901760
    %225 = vmatprep.subr.mxu0 %v224
    %v226 = vand.u32 %v68, 4294901760
    %227 = vmatpush1.xpose.msra.mxu0 %v226
    %v228 = vand.u32 %v71, 4294901760
    %229 = vmatprep.subr.mxu0 %v228
    %v230 = vand.u32 %v70, 4294901760
    %231 = vmatpush1.xpose.msra.mxu0 %v230
    %v232 = vand.u32 %v73, 4294901760
    %233 = vmatprep.subr.mxu0 %v232
    %v234 = vand.u32 %v72, 4294901760
    %235 = vmatpush1.xpose.msra.mxu0 %v234
    %v236 = vand.u32 %v75, 4294901760
    %237 = vmatprep.subr.mxu0 %v236
    %v238 = vand.u32 %v74, 4294901760
    %239 = vmatpush1.xpose.msra.mxu0 %v238
    %v240 = vand.u32 %v77, 4294901760
    %241 = vmatprep.subr.mxu0 %v240
    %v242 = vand.u32 %v76, 4294901760
    %243 = vmatpush1.xpose.msra.mxu0 %v242
    %v244 = vand.u32 %v79, 4294901760
    %245 = vmatprep.subr.mxu0 %v244
    %v246 = vand.u32 %v78, 4294901760
    %247 = vmatpush1.xpose.msra.mxu0 %v246
    %v248 = vand.u32 %v81, 4294901760
    %249 = vmatprep.subr.mxu0 %v248
    %v250 = vand.u32 %v80, 4294901760
    %251 = vmatpush1.xpose.msra.mxu0 %v250
    %v252 = vand.u32 %v83, 4294901760
    %253 = vmatprep.subr.mxu0 %v252
    %v254 = vand.u32 %v82, 4294901760
    %255 = vmatpush1.xpose.msra.mxu0 %v254
    %256 = vmatprep.subr.mxu0 0.0
    %257 = vmatpush1.xpose.msra.mxu0 0.0
    %258 = vmatprep.subr.mxu0 0.0
    %259 = vmatpush1.xpose.msra.mxu0 0.0
    %260 = vmatprep.subr.mxu0 0.0
    %261 = vmatpush1.xpose.msra.mxu0 0.0
    %262 = vmatprep.subr.mxu0 0.0
    %263 = vmatpush1.xpose.msra.mxu0 0.0
    %264 = vmatprep.subr.mxu0 0.0
    %265 = vmatpush1.xpose.msra.mxu0 0.0
    %266 = vmatprep.subr.mxu0 0.0
    %267 = vmatpush1.xpose.msra.mxu0 0.0
    %268 = vmatprep.subr.mxu0 0.0
    %269 = vmatpush1.xpose.msra.mxu0 0.0
    %270 = vmatprep.subr.mxu0 0.0
    %271 = vmatpush1.xpose.msra.mxu0 0.0
    %272 = vmatprep.subr.mxu0 0.0
    %273 = vmatpush1.xpose.msra.mxu0 0.0
    %274 = vmatprep.subr.mxu0 0.0
    %275 = vmatpush1.xpose.msra.mxu0 0.0
    %276 = vmatprep.subr.mxu0 0.0
    %277 = vmatpush1.xpose.msra.mxu0 0.0
    %278 = vmatprep.subr.mxu0 0.0
    %279 = vmatpush1.xpose.msra.mxu0 0.0
    %280 = vmatprep.subr.mxu0 0.0
    %281 = vmatpush1.xpose.msra.mxu0 0.0
    %282 = vmatprep.subr.mxu0 0.0
    %283 = vmatpush1.xpose.msra.mxu0 0.0
    %284 = vmatprep.subr.mxu0 0.0
    %285 = vmatpush1.xpose.msra.mxu0 0.0
    %286 = vmatprep.subr.mxu0 0.0
    %287 = vmatpush1.xpose.msra.mxu0 0.0
    %v288 = vand.u32 %v189, 4294901760
    %v289 = vsub.f32 %v189, %v288
    %v290 = vand.u32 %v289, 4294901760
    %v291 = vsub.f32 %v289, %v290
    %v292 = vand.u32 %v291, 4294901760
    %293 = vmatprep.mubr.f32.mxu0 %v292
    %v294 = vand.u32 %v185, 4294901760
    %v295 = vsub.f32 %v185, %v294
    %v296 = vand.u32 %v295, 4294901760
    %v297 = vsub.f32 %v295, %v296
    %v298 = vand.u32 %v297, 4294901760
    %299 = vmatmul.mubr.f32.gmra.mrb[0].mxu0 %v298
    %v300 = vpop.f32.mrb[0].mxu0
    %v301 = vadd.f32 0.0, %v300
    %v302 = vpop.f32.mrb[0].mxu0
    %303 = vdwg.mxu0
    %v304 = vand.u32 %v53, 4294901760
    %v305 = vsub.f32 %v53, %v304
    %v306 = vand.u32 %v305, 4294901760
    %v307 = vsub.f32 %v305, %v306
    %v308 = vand.u32 %v307, 4294901760
    %309 = vmatprep.subr.mxu0 %v308
    %v310 = vand.u32 %v52, 4294901760
    %v311 = vsub.f32 %v52, %v310
    %v312 = vand.u32 %v311, 4294901760
    %v313 = vsub.f32 %v311, %v312
    %v314 = vand.u32 %v313, 4294901760
    %315 = vmatpush1.xpose.msra.mxu0 %v314
    %v316 = vand.u32 %v55, 4294901760
    %v317 = vsub.f32 %v55, %v316
    %v318 = vand.u32 %v317, 4294901760
    %v319 = vsub.f32 %v317, %v318
    %v320 = vand.u32 %v319, 4294901760
    %321 = vmatprep.subr.mxu0 %v320
    %v322 = vand.u32 %v54, 4294901760
    %v323 = vsub.f32 %v54, %v322
    %v324 = vand.u32 %v323, 4294901760
    %v325 = vsub.f32 %v323, %v324
    %v326 = vand.u32 %v325, 4294901760
    %327 = vmatpush1.xpose.msra.mxu0 %v326
    %v328 = vand.u32 %v57, 4294901760
    %v329 = vsub.f32 %v57, %v328
    %v330 = vand.u32 %v329, 4294901760
    %v331 = vsub.f32 %v329, %v330
    %v332 = vand.u32 %v331, 4294901760
    %333 = vmatprep.subr.mxu0 %v332
    %v334 = vand.u32 %v56, 4294901760
    %v335 = vsub.f32 %v56, %v334
    %v336 = vand.u32 %v335, 4294901760
    %v337 = vsub.f32 %v335, %v336
    %v338 = vand.u32 %v337, 4294901760
    %339 = vmatpush1.xpose.msra.mxu0 %v338
    %v340 = vand.u32 %v59, 4294901760
    %v341 = vsub.f32 %v59, %v340
    %v342 = vand.u32 %v341, 4294901760
    %v343 = vsub.f32 %v341, %v342
    %v344 = vand.u32 %v343, 4294901760
    %345 = vmatprep.subr.mxu0 %v344
    %v346 = vand.u32 %v58, 4294901760
    %v347 = vsub.f32 %v58, %v346
    %v348 = vand.u32 %v347, 4294901760
    %v349 = vsub.f32 %v347, %v348
    %v350 = vand.u32 %v349, 4294901760
    %351 = vmatpush1.xpose.msra.mxu0 %v350
    %v352 = vand.u32 %v61, 4294901760
    %v353 = vsub.f32 %v61, %v352
    %v354 = vand.u32 %v353, 4294901760
    %v355 = vsub.f32 %v353, %v354
    %v356 = vand.u32 %v355, 4294901760
    %357 = vmatprep.subr.mxu0 %v356
    %v358 = vand.u32 %v60, 4294901760
    %v359 = vsub.f32 %v60, %v358
    %v360 = vand.u32 %v359, 4294901760
    %v361 = vsub.f32 %v359, %v360
    %v362 = vand.u32 %v361, 4294901760
    %363 = vmatpush1.xpose.msra.mxu0 %v362
    %v364 = vand.u32 %v63, 4294901760
    %v365 = vsub.f32 %v63, %v364
    %v366 = vand.u32 %v365, 4294901760
    %v367 = vsub.f32 %v365, %v366
    %v368 = vand.u32 %v367, 4294901760
    %369 = vmatprep.subr.mxu0 %v368
    %v370 = vand.u32 %v62, 4294901760
    %v371 = vsub.f32 %v62, %v370
    %v372 = vand.u32 %v371, 4294901760
    %v373 = vsub.f32 %v371, %v372
    %v374 = vand.u32 %v373, 4294901760
    %375 = vmatpush1.xpose.msra.mxu0 %v374
    %v376 = vand.u32 %v65, 4294901760
    %v377 = vsub.f32 %v65, %v376
    %v378 = vand.u32 %v377, 4294901760
    %v379 = vsub.f32 %v377, %v378
    %v380 = vand.u32 %v379, 4294901760
    %381 = vmatprep.subr.mxu0 %v380
    %v382 = vand.u32 %v64, 4294901760
    %v383 = vsub.f32 %v64, %v382
    %v384 = vand.u32 %v383, 4294901760
    %v385 = vsub.f32 %v383, %v384
    %v386 = vand.u32 %v385, 4294901760
    %387 = vmatpush1.xpose.msra.mxu0 %v386
    %v388 = vand.u32 %v67, 4294901760
    %v389 = vsub.f32 %v67, %v388
    %v390 = vand.u32 %v389, 4294901760
    %v391 = vsub.f32 %v389, %v390
    %v392 = vand.u32 %v391, 4294901760
    %393 = vmatprep.subr.mxu0 %v392
    %v394 = vand.u32 %v66, 4294901760
    %v395 = vsub.f32 %v66, %v394
    %v396 = vand.u32 %v395, 4294901760
    %v397 = vsub.f32 %v395, %v396
    %v398 = vand.u32 %v397, 4294901760
    %399 = vmatpush1.xpose.msra.mxu0 %v398
    %v400 = vand.u32 %v69, 4294901760
    %v401 = vsub.f32 %v69, %v400
    %v402 = vand.u32 %v401, 4294901760
    %v403 = vsub.f32 %v401, %v402
    %v404 = vand.u32 %v403, 4294901760
    %405 = vmatprep.subr.mxu0 %v404
    %v406 = vand.u32 %v68, 4294901760
    %v407 = vsub.f32 %v68, %v406
    %v408 = vand.u32 %v407, 4294901760
    %v409 = vsub.f32 %v407, %v408
    %v410 = vand.u32 %v409, 4294901760
    %411 = vmatpush1.xpose.msra.mxu0 %v410
    %v412 = vand.u32 %v71, 4294901760
    %v413 = vsub.f32 %v71, %v412
    %v414 = vand.u32 %v413, 4294901760
    %v415 = vsub.f32 %v413, %v414
    %v416 = vand.u32 %v415, 4294901760
    %417 = vmatprep.subr.mxu0 %v416
    %v418 = vand.u32 %v70, 4294901760
    %v419 = vsub.f32 %v70, %v418
    %v420 = vand.u32 %v419, 4294901760
    %v421 = vsub.f32 %v419, %v420
    %v422 = vand.u32 %v421, 4294901760
    %423 = vmatpush1.xpose.msra.mxu0 %v422
    %v424 = vand.u32 %v73, 4294901760
    %v425 = vsub.f32 %v73, %v424
    %v426 = vand.u32 %v425, 4294901760
    %v427 = vsub.f32 %v425, %v426
    %v428 = vand.u32 %v427, 4294901760
    %429 = vmatprep.subr.mxu0 %v428
    %v430 = vand.u32 %v72, 4294901760
    %v431 = vsub.f32 %v72, %v430
    %v432 = vand.u32 %v431, 4294901760
    %v433 = vsub.f32 %v431, %v432
    %v434 = vand.u32 %v433, 4294901760
    %435 = vmatpush1.xpose.msra.mxu0 %v434
    %v436 = vand.u32 %v75, 4294901760
    %v437 = vsub.f32 %v75, %v436
    %v438 = vand.u32 %v437, 4294901760
    %v439 = vsub.f32 %v437, %v438
    %v440 = vand.u32 %v439, 4294901760
    %441 = vmatprep.subr.mxu0 %v440
    %v442 = vand.u32 %v74, 4294901760
    %v443 = vsub.f32 %v74, %v442
    %v444 = vand.u32 %v443, 4294901760
    %v445 = vsub.f32 %v443, %v444
    %v446 = vand.u32 %v445, 4294901760
    %447 = vmatpush1.xpose.msra.mxu0 %v446
    %v448 = vand.u32 %v77, 4294901760
    %v449 = vsub.f32 %v77, %v448
    %v450 = vand.u32 %v449, 4294901760
    %v451 = vsub.f32 %v449, %v450
    %v452 = vand.u32 %v451, 4294901760
    %453 = vmatprep.subr.mxu0 %v452
    %v454 = vand.u32 %v76, 4294901760
    %v455 = vsub.f32 %v76, %v454
    %v456 = vand.u32 %v455, 4294901760
    %v457 = vsub.f32 %v455, %v456
    %v458 = vand.u32 %v457, 4294901760
    %459 = vmatpush1.xpose.msra.mxu0 %v458
    %v460 = vand.u32 %v79, 4294901760
    %v461 = vsub.f32 %v79, %v460
    %v462 = vand.u32 %v461, 4294901760
    %v463 = vsub.f32 %v461, %v462
    %v464 = vand.u32 %v463, 4294901760
    %465 = vmatprep.subr.mxu0 %v464
    %v466 = vand.u32 %v78, 4294901760
    %v467 = vsub.f32 %v78, %v466
    %v468 = vand.u32 %v467, 4294901760
    %v469 = vsub.f32 %v467, %v468
    %v470 = vand.u32 %v469, 4294901760
    %471 = vmatpush1.xpose.msra.mxu0 %v470
    %v472 = vand.u32 %v81, 4294901760
    %v473 = vsub.f32 %v81, %v472
    %v474 = vand.u32 %v473, 4294901760
    %v475 = vsub.f32 %v473, %v474
    %v476 = vand.u32 %v475, 4294901760
    %477 = vmatprep.subr.mxu0 %v476
    %v478 = vand.u32 %v80, 4294901760
    %v479 = vsub.f32 %v80, %v478
    %v480 = vand.u32 %v479, 4294901760
    %v481 = vsub.f32 %v479, %v480
    %v482 = vand.u32 %v481, 4294901760
    %483 = vmatpush1.xpose.msra.mxu0 %v482
    %v484 = vand.u32 %v83, 4294901760
    %v485 = vsub.f32 %v83, %v484
    %v486 = vand.u32 %v485, 4294901760
    %v487 = vsub.f32 %v485, %v486
    %v488 = vand.u32 %v487, 4294901760
    %489 = vmatprep.subr.mxu0 %v488
    %v490 = vand.u32 %v82, 4294901760
    %v491 = vsub.f32 %v82, %v490
    %v492 = vand.u32 %v491, 4294901760
    %v493 = vsub.f32 %v491, %v492
    %v494 = vand.u32 %v493, 4294901760
    %495 = vmatpush1.xpose.msra.mxu0 %v494
    %496 = vmatprep.subr.mxu0 0.0
    %497 = vmatpush1.xpose.msra.mxu0 0.0
    %498 = vmatprep.subr.mxu0 0.0
    %499 = vmatpush1.xpose.msra.mxu0 0.0
    %500 = vmatprep.subr.mxu0 0.0
    %501 = vmatpush1.xpose.msra.mxu0 0.0
    %502 = vmatprep.subr.mxu0 0.0
    %503 = vmatpush1.xpose.msra.mxu0 0.0
    %504 = vmatprep.subr.mxu0 0.0
    %505 = vmatpush1.xpose.msra.mxu0 0.0
    %506 = vmatprep.subr.mxu0 0.0
    %507 = vmatpush1.xpose.msra.mxu0 0.0
    %508 = vmatprep.subr.mxu0 0.0
    %509 = vmatpush1.xpose.msra.mxu0 0.0
    %510 = vmatprep.subr.mxu0 0.0
    %511 = vmatpush1.xpose.msra.mxu0 0.0
    %512 = vmatprep.subr.mxu0 0.0
    %513 = vmatpush1.xpose.msra.mxu0 0.0
    %514 = vmatprep.subr.mxu0 0.0
    %515 = vmatpush1.xpose.msra.mxu0 0.0
    %516 = vmatprep.subr.mxu0 0.0
    %517 = vmatpush1.xpose.msra.mxu0 0.0
    %518 = vmatprep.subr.mxu0 0.0
    %519 = vmatpush1.xpose.msra.mxu0 0.0
    %520 = vmatprep.subr.mxu0 0.0
    %521 = vmatpush1.xpose.msra.mxu0 0.0
    %522 = vmatprep.subr.mxu0 0.0
    %523 = vmatpush1.xpose.msra.mxu0 0.0
    %524 = vmatprep.subr.mxu0 0.0
    %525 = vmatpush1.xpose.msra.mxu0 0.0
    %526 = vmatprep.subr.mxu0 0.0
    %527 = vmatpush1.xpose.msra.mxu0 0.0
    %v528 = vand.u32 %v189, 4294901760
    %529 = vmatprep.mubr.f32.mxu0 %v528
    %v530 = vand.u32 %v185, 4294901760
    %531 = vmatmul.mubr.f32.gmra.mrb[0].mxu0 %v530
    %v532 = vpop.f32.mrb[0].mxu0
    %v533 = vadd.f32 %v301, %v532
    %v534 = vpop.f32.mrb[0].mxu0
    %535 = vdwg.mxu0
    %v536 = vand.u32 %v53, 4294901760
    %v537 = vsub.f32 %v53, %v536
    %538 = vmatprep.subr.mxu0 %v537
    %v539 = vand.u32 %v52, 4294901760
    %v540 = vsub.f32 %v52, %v539
    %541 = vmatpush1.xpose.msra.mxu0 %v540
    %v542 = vand.u32 %v55, 4294901760
    %v543 = vsub.f32 %v55, %v542
    %544 = vmatprep.subr.mxu0 %v543
    %v545 = vand.u32 %v54, 4294901760
    %v546 = vsub.f32 %v54, %v545
    %547 = vmatpush1.xpose.msra.mxu0 %v546
    %v548 = vand.u32 %v57, 4294901760
    %v549 = vsub.f32 %v57, %v548
    %550 = vmatprep.subr.mxu0 %v549
    %v551 = vand.u32 %v56, 4294901760
    %v552 = vsub.f32 %v56, %v551
    %553 = vmatpush1.xpose.msra.mxu0 %v552
    %v554 = vand.u32 %v59, 4294901760
    %v555 = vsub.f32 %v59, %v554
    %556 = vmatprep.subr.mxu0 %v555
    %v557 = vand.u32 %v58, 4294901760
    %v558 = vsub.f32 %v58, %v557
    %559 = vmatpush1.xpose.msra.mxu0 %v558
    %v560 = vand.u32 %v61, 4294901760
    %v561 = vsub.f32 %v61, %v560
    %562 = vmatprep.subr.mxu0 %v561
    %v563 = vand.u32 %v60, 4294901760
    %v564 = vsub.f32 %v60, %v563
    %565 = vmatpush1.xpose.msra.mxu0 %v564
    %v566 = vand.u32 %v63, 4294901760
    %v567 = vsub.f32 %v63, %v566
    %568 = vmatprep.subr.mxu0 %v567
    %v569 = vand.u32 %v62, 4294901760
    %v570 = vsub.f32 %v62, %v569
    %571 = vmatpush1.xpose.msra.mxu0 %v570
    %v572 = vand.u32 %v65, 4294901760
    %v573 = vsub.f32 %v65, %v572
    %574 = vmatprep.subr.mxu0 %v573
    %v575 = vand.u32 %v64, 4294901760
    %v576 = vsub.f32 %v64, %v575
    %577 = vmatpush1.xpose.msra.mxu0 %v576
    %v578 = vand.u32 %v67, 4294901760
    %v579 = vsub.f32 %v67, %v578
    %580 = vmatprep.subr.mxu0 %v579
    %v581 = vand.u32 %v66, 4294901760
    %v582 = vsub.f32 %v66, %v581
    %583 = vmatpush1.xpose.msra.mxu0 %v582
    %v584 = vand.u32 %v69, 4294901760
    %v585 = vsub.f32 %v69, %v584
    %586 = vmatprep.subr.mxu0 %v585
    %v587 = vand.u32 %v68, 4294901760
    %v588 = vsub.f32 %v68, %v587
    %589 = vmatpush1.xpose.msra.mxu0 %v588
    %v590 = vand.u32 %v71, 4294901760
    %v591 = vsub.f32 %v71, %v590
    %592 = vmatprep.subr.mxu0 %v591
    %v593 = vand.u32 %v70, 4294901760
    %v594 = vsub.f32 %v70, %v593
    %595 = vmatpush1.xpose.msra.mxu0 %v594
    %v596 = vand.u32 %v73, 4294901760
    %v597 = vsub.f32 %v73, %v596
    %598 = vmatprep.subr.mxu0 %v597
    %v599 = vand.u32 %v72, 4294901760
    %v600 = vsub.f32 %v72, %v599
    %601 = vmatpush1.xpose.msra.mxu0 %v600
    %v602 = vand.u32 %v75, 4294901760
    %v603 = vsub.f32 %v75, %v602
    %604 = vmatprep.subr.mxu0 %v603
    %v605 = vand.u32 %v74, 4294901760
    %v606 = vsub.f32 %v74, %v605
    %607 = vmatpush1.xpose.msra.mxu0 %v606
    %v608 = vand.u32 %v77, 4294901760
    %v609 = vsub.f32 %v77, %v608
    %610 = vmatprep.subr.mxu0 %v609
    %v611 = vand.u32 %v76, 4294901760
    %v612 = vsub.f32 %v76, %v611
    %613 = vmatpush1.xpose.msra.mxu0 %v612
    %v614 = vand.u32 %v79, 4294901760
    %v615 = vsub.f32 %v79, %v614
    %616 = vmatprep.subr.mxu0 %v615
    %v617 = vand.u32 %v78, 4294901760
    %v618 = vsub.f32 %v78, %v617
    %619 = vmatpush1.xpose.msra.mxu0 %v618
    %v620 = vand.u32 %v81, 4294901760
    %v621 = vsub.f32 %v81, %v620
    %622 = vmatprep.subr.mxu0 %v621
    %v623 = vand.u32 %v80, 4294901760
    %v624 = vsub.f32 %v80, %v623
    %625 = vmatpush1.xpose.msra.mxu0 %v624
    %v626 = vand.u32 %v83, 4294901760
    %v627 = vsub.f32 %v83, %v626
    %628 = vmatprep.subr.mxu0 %v627
    %v629 = vand.u32 %v82, 4294901760
    %v630 = vsub.f32 %v82, %v629
    %631 = vmatpush1.xpose.msra.mxu0 %v630
    %632 = vmatprep.subr.mxu0 0.0
    %633 = vmatpush1.xpose.msra.mxu0 0.0
    %634 = vmatprep.subr.mxu0 0.0
    %635 = vmatpush1.xpose.msra.mxu0 0.0
    %636 = vmatprep.subr.mxu0 0.0
    %637 = vmatpush1.xpose.msra.mxu0 0.0
    %638 = vmatprep.subr.mxu0 0.0
    %639 = vmatpush1.xpose.msra.mxu0 0.0
    %640 = vmatprep.subr.mxu0 0.0
    %641 = vmatpush1.xpose.msra.mxu0 0.0
    %642 = vmatprep.subr.mxu0 0.0
    %643 = vmatpush1.xpose.msra.mxu0 0.0
    %644 = vmatprep.subr.mxu0 0.0
    %645 = vmatpush1.xpose.msra.mxu0 0.0
    %646 = vmatprep.subr.mxu0 0.0
    %647 = vmatpush1.xpose.msra.mxu0 0.0
    %648 = vmatprep.subr.mxu0 0.0
    %649 = vmatpush1.xpose.msra.mxu0 0.0
    %650 = vmatprep.subr.mxu0 0.0
    %651 = vmatpush1.xpose.msra.mxu0 0.0
    %652 = vmatprep.subr.mxu0 0.0
    %653 = vmatpush1.xpose.msra.mxu0 0.0
    %654 = vmatprep.subr.mxu0 0.0
    %655 = vmatpush1.xpose.msra.mxu0 0.0
    %656 = vmatprep.subr.mxu0 0.0
    %657 = vmatpush1.xpose.msra.mxu0 0.0
    %658 = vmatprep.subr.mxu0 0.0
    %659 = vmatpush1.xpose.msra.mxu0 0.0
    %660 = vmatprep.subr.mxu0 0.0
    %661 = vmatpush1.xpose.msra.mxu0 0.0
    %662 = vmatprep.subr.mxu0 0.0
    %663 = vmatpush1.xpose.msra.mxu0 0.0
    %v664 = vand.u32 %v189, 4294901760
    %v665 = vsub.f32 %v189, %v664
    %666 = vmatprep.mubr.f32.mxu0 %v665
    %v667 = vand.u32 %v185, 4294901760
    %v668 = vsub.f32 %v185, %v667
    %669 = vmatmul.mubr.f32.gmra.mrb[0].mxu0 %v668
    %v670 = vpop.f32.mrb[0].mxu0
    %v671 = vadd.f32 %v533, %v670
    %v672 = vpop.f32.mrb[0].mxu0
    %673 = vdwg.mxu0
    %v674 = vand.u32 %v53, 4294901760
    %675 = vmatprep.subr.mxu0 %v674
    %v676 = vand.u32 %v52, 4294901760
    %677 = vmatpush1.xpose.msra.mxu0 %v676
    %v678 = vand.u32 %v55, 4294901760
    %679 = vmatprep.subr.mxu0 %v678
    %v680 = vand.u32 %v54, 4294901760
    %681 = vmatpush1.xpose.msra.mxu0 %v680
    %v682 = vand.u32 %v57, 4294901760
    %683 = vmatprep.subr.mxu0 %v682
    %v684 = vand.u32 %v56, 4294901760
    %685 = vmatpush1.xpose.msra.mxu0 %v684
    %v686 = vand.u32 %v59, 4294901760
    %687 = vmatprep.subr.mxu0 %v686
    %v688 = vand.u32 %v58, 4294901760
    %689 = vmatpush1.xpose.msra.mxu0 %v688
    %v690 = vand.u32 %v61, 4294901760
    %691 = vmatprep.subr.mxu0 %v690
    %v692 = vand.u32 %v60, 4294901760
    %693 = vmatpush1.xpose.msra.mxu0 %v692
    %v694 = vand.u32 %v63, 4294901760
    %695 = vmatprep.subr.mxu0 %v694
    %v696 = vand.u32 %v62, 4294901760
    %697 = vmatpush1.xpose.msra.mxu0 %v696
    %v698 = vand.u32 %v65, 4294901760
    %699 = vmatprep.subr.mxu0 %v698
    %v700 = vand.u32 %v64, 4294901760
    %701 = vmatpush1.xpose.msra.mxu0 %v700
    %v702 = vand.u32 %v67, 4294901760
    %703 = vmatprep.subr.mxu0 %v702
    %v704 = vand.u32 %v66, 4294901760
    %705 = vmatpush1.xpose.msra.mxu0 %v704
    %v706 = vand.u32 %v69, 4294901760
    %707 = vmatprep.subr.mxu0 %v706
    %v708 = vand.u32 %v68, 4294901760
    %709 = vmatpush1.xpose.msra.mxu0 %v708
    %v710 = vand.u32 %v71, 4294901760
    %711 = vmatprep.subr.mxu0 %v710
    %v712 = vand.u32 %v70, 4294901760
    %713 = vmatpush1.xpose.msra.mxu0 %v712
    %v714 = vand.u32 %v73, 4294901760
    %715 = vmatprep.subr.mxu0 %v714
    %v716 = vand.u32 %v72, 4294901760
    %717 = vmatpush1.xpose.msra.mxu0 %v716
    %v718 = vand.u32 %v75, 4294901760
    %719 = vmatprep.subr.mxu0 %v718
    %v720 = vand.u32 %v74, 4294901760
    %721 = vmatpush1.xpose.msra.mxu0 %v720
    %v722 = vand.u32 %v77, 4294901760
    %723 = vmatprep.subr.mxu0 %v722
    %v724 = vand.u32 %v76, 4294901760
    %725 = vmatpush1.xpose.msra.mxu0 %v724
    %v726 = vand.u32 %v79, 4294901760
    %727 = vmatprep.subr.mxu0 %v726
    %v728 = vand.u32 %v78, 4294901760
    %729 = vmatpush1.xpose.msra.mxu0 %v728
    %v730 = vand.u32 %v81, 4294901760
    %731 = vmatprep.subr.mxu0 %v730
    %v732 = vand.u32 %v80, 4294901760
    %733 = vmatpush1.xpose.msra.mxu0 %v732
    %v734 = vand.u32 %v83, 4294901760
    %735 = vmatprep.subr.mxu0 %v734
    %v736 = vand.u32 %v82, 4294901760
    %737 = vmatpush1.xpose.msra.mxu0 %v736
    %738 = vmatprep.subr.mxu0 0.0
    %739 = vmatpush1.xpose.msra.mxu0 0.0
    %740 = vmatprep.subr.mxu0 0.0
    %741 = vmatpush1.xpose.msra.mxu0 0.0
    %742 = vmatprep.subr.mxu0 0.0
    %743 = vmatpush1.xpose.msra.mxu0 0.0
    %744 = vmatprep.subr.mxu0 0.0
    %745 = vmatpush1.xpose.msra.mxu0 0.0
    %746 = vmatprep.subr.mxu0 0.0
    %747 = vmatpush1.xpose.msra.mxu0 0.0
    %748 = vmatprep.subr.mxu0 0.0
    %749 = vmatpush1.xpose.msra.mxu0 0.0
    %750 = vmatprep.subr.mxu0 0.0
    %751 = vmatpush1.xpose.msra.mxu0 0.0
    %752 = vmatprep.subr.mxu0 0.0
    %753 = vmatpush1.xpose.msra.mxu0 0.0
    %754 = vmatprep.subr.mxu0 0.0
    %755 = vmatpush1.xpose.msra.mxu0 0.0
    %756 = vmatprep.subr.mxu0 0.0
    %757 = vmatpush1.xpose.msra.mxu0 0.0
    %758 = vmatprep.subr.mxu0 0.0
    %759 = vmatpush1.xpose.msra.mxu0 0.0
    %760 = vmatprep.subr.mxu0 0.0
    %761 = vmatpush1.xpose.msra.mxu0 0.0
    %762 = vmatprep.subr.mxu0 0.0
    %763 = vmatpush1.xpose.msra.mxu0 0.0
    %764 = vmatprep.subr.mxu0 0.0
    %765 = vmatpush1.xpose.msra.mxu0 0.0
    %766 = vmatprep.subr.mxu0 0.0
    %767 = vmatpush1.xpose.msra.mxu0 0.0
    %768 = vmatprep.subr.mxu0 0.0
    %769 = vmatpush1.xpose.msra.mxu0 0.0
    %v770 = vand.u32 %v189, 4294901760
    %v771 = vsub.f32 %v189, %v770
    %v772 = vand.u32 %v771, 4294901760
    %773 = vmatprep.mubr.f32.mxu0 %v772
    %v774 = vand.u32 %v185, 4294901760
    %v775 = vsub.f32 %v185, %v774
    %v776 = vand.u32 %v775, 4294901760
    %777 = vmatmul.mubr.f32.gmra.mrb[0].mxu0 %v776
    %v778 = vpop.f32.mrb[0].mxu0
    %v779 = vadd.f32 %v671, %v778
    %v780 = vpop.f32.mrb[0].mxu0
    %781 = vdwg.mxu0
    %v782 = vand.u32 %v53, 4294901760
    %v783 = vsub.f32 %v53, %v782
    %v784 = vand.u32 %v783, 4294901760
    %785 = vmatprep.subr.mxu0 %v784
    %v786 = vand.u32 %v52, 4294901760
    %v787 = vsub.f32 %v52, %v786
    %v788 = vand.u32 %v787, 4294901760
    %789 = vmatpush1.xpose.msra.mxu0 %v788
    %v790 = vand.u32 %v55, 4294901760
    %v791 = vsub.f32 %v55, %v790
    %v792 = vand.u32 %v791, 4294901760
    %793 = vmatprep.subr.mxu0 %v792
    %v794 = vand.u32 %v54, 4294901760
    %v795 = vsub.f32 %v54, %v794
    %v796 = vand.u32 %v795, 4294901760
    %797 = vmatpush1.xpose.msra.mxu0 %v796
    %v798 = vand.u32 %v57, 4294901760
    %v799 = vsub.f32 %v57, %v798
    %v800 = vand.u32 %v799, 4294901760
    %801 = vmatprep.subr.mxu0 %v800
    %v802 = vand.u32 %v56, 4294901760
    %v803 = vsub.f32 %v56, %v802
    %v804 = vand.u32 %v803, 4294901760
    %805 = vmatpush1.xpose.msra.mxu0 %v804
    %v806 = vand.u32 %v59, 4294901760
    %v807 = vsub.f32 %v59, %v806
    %v808 = vand.u32 %v807, 4294901760
    %809 = vmatprep.subr.mxu0 %v808
    %v810 = vand.u32 %v58, 4294901760
    %v811 = vsub.f32 %v58, %v810
    %v812 = vand.u32 %v811, 4294901760
    %813 = vmatpush1.xpose.msra.mxu0 %v812
    %v814 = vand.u32 %v61, 4294901760
    %v815 = vsub.f32 %v61, %v814
    %v816 = vand.u32 %v815, 4294901760
    %817 = vmatprep.subr.mxu0 %v816
    %v818 = vand.u32 %v60, 4294901760
    %v819 = vsub.f32 %v60, %v818
    %v820 = vand.u32 %v819, 4294901760
    %821 = vmatpush1.xpose.msra.mxu0 %v820
    %v822 = vand.u32 %v63, 4294901760
    %v823 = vsub.f32 %v63, %v822
    %v824 = vand.u32 %v823, 4294901760
    %825 = vmatprep.subr.mxu0 %v824
    %v826 = vand.u32 %v62, 4294901760
    %v827 = vsub.f32 %v62, %v826
    %v828 = vand.u32 %v827, 4294901760
    %829 = vmatpush1.xpose.msra.mxu0 %v828
    %v830 = vand.u32 %v65, 4294901760
    %v831 = vsub.f32 %v65, %v830
    %v832 = vand.u32 %v831, 4294901760
    %833 = vmatprep.subr.mxu0 %v832
    %v834 = vand.u32 %v64, 4294901760
    %v835 = vsub.f32 %v64, %v834
    %v836 = vand.u32 %v835, 4294901760
    %837 = vmatpush1.xpose.msra.mxu0 %v836
    %v838 = vand.u32 %v67, 4294901760
    %v839 = vsub.f32 %v67, %v838
    %v840 = vand.u32 %v839, 4294901760
    %841 = vmatprep.subr.mxu0 %v840
    %v842 = vand.u32 %v66, 4294901760
    %v843 = vsub.f32 %v66, %v842
    %v844 = vand.u32 %v843, 4294901760
    %845 = vmatpush1.xpose.msra.mxu0 %v844
    %v846 = vand.u32 %v69, 4294901760
    %v847 = vsub.f32 %v69, %v846
    %v848 = vand.u32 %v847, 4294901760
    %849 = vmatprep.subr.mxu0 %v848
    %v850 = vand.u32 %v68, 4294901760
    %v851 = vsub.f32 %v68, %v850
    %v852 = vand.u32 %v851, 4294901760
    %853 = vmatpush1.xpose.msra.mxu0 %v852
    %v854 = vand.u32 %v71, 4294901760
    %v855 = vsub.f32 %v71, %v854
    %v856 = vand.u32 %v855, 4294901760
    %857 = vmatprep.subr.mxu0 %v856
    %v858 = vand.u32 %v70, 4294901760
    %v859 = vsub.f32 %v70, %v858
    %v860 = vand.u32 %v859, 4294901760
    %861 = vmatpush1.xpose.msra.mxu0 %v860
    %v862 = vand.u32 %v73, 4294901760
    %v863 = vsub.f32 %v73, %v862
    %v864 = vand.u32 %v863, 4294901760
    %865 = vmatprep.subr.mxu0 %v864
    %v866 = vand.u32 %v72, 4294901760
    %v867 = vsub.f32 %v72, %v866
    %v868 = vand.u32 %v867, 4294901760
    %869 = vmatpush1.xpose.msra.mxu0 %v868
    %v870 = vand.u32 %v75, 4294901760
    %v871 = vsub.f32 %v75, %v870
    %v872 = vand.u32 %v871, 4294901760
    %873 = vmatprep.subr.mxu0 %v872
    %v874 = vand.u32 %v74, 4294901760
    %v875 = vsub.f32 %v74, %v874
    %v876 = vand.u32 %v875, 4294901760
    %877 = vmatpush1.xpose.msra.mxu0 %v876
    %v878 = vand.u32 %v77, 4294901760
    %v879 = vsub.f32 %v77, %v878
    %v880 = vand.u32 %v879, 4294901760
    %881 = vmatprep.subr.mxu0 %v880
    %v882 = vand.u32 %v76, 4294901760
    %v883 = vsub.f32 %v76, %v882
    %v884 = vand.u32 %v883, 4294901760
    %885 = vmatpush1.xpose.msra.mxu0 %v884
    %v886 = vand.u32 %v79, 4294901760
    %v887 = vsub.f32 %v79, %v886
    %v888 = vand.u32 %v887, 4294901760
    %889 = vmatprep.subr.mxu0 %v888
    %v890 = vand.u32 %v78, 4294901760
    %v891 = vsub.f32 %v78, %v890
    %v892 = vand.u32 %v891, 4294901760
    %893 = vmatpush1.xpose.msra.mxu0 %v892
    %v894 = vand.u32 %v81, 4294901760
    %v895 = vsub.f32 %v81, %v894
    %v896 = vand.u32 %v895, 4294901760
    %897 = vmatprep.subr.mxu0 %v896
    %v898 = vand.u32 %v80, 4294901760
    %v899 = vsub.f32 %v80, %v898
    %v900 = vand.u32 %v899, 4294901760
    %901 = vmatpush1.xpose.msra.mxu0 %v900
    %v902 = vand.u32 %v83, 4294901760
    %v903 = vsub.f32 %v83, %v902
    %v904 = vand.u32 %v903, 4294901760
    %905 = vmatprep.subr.mxu0 %v904
    %v906 = vand.u32 %v82, 4294901760
    %v907 = vsub.f32 %v82, %v906
    %v908 = vand.u32 %v907, 4294901760
    %909 = vmatpush1.xpose.msra.mxu0 %v908
    %910 = vmatprep.subr.mxu0 0.0
    %911 = vmatpush1.xpose.msra.mxu0 0.0
    %912 = vmatprep.subr.mxu0 0.0
    %913 = vmatpush1.xpose.msra.mxu0 0.0
    %914 = vmatprep.subr.mxu0 0.0
    %915 = vmatpush1.xpose.msra.mxu0 0.0
    %916 = vmatprep.subr.mxu0 0.0
    %917 = vmatpush1.xpose.msra.mxu0 0.0
    %918 = vmatprep.subr.mxu0 0.0
    %919 = vmatpush1.xpose.msra.mxu0 0.0
    %920 = vmatprep.subr.mxu0 0.0
    %921 = vmatpush1.xpose.msra.mxu0 0.0
    %922 = vmatprep.subr.mxu0 0.0
    %923 = vmatpush1.xpose.msra.mxu0 0.0
    %924 = vmatprep.subr.mxu0 0.0
    %925 = vmatpush1.xpose.msra.mxu0 0.0
    %926 = vmatprep.subr.mxu0 0.0
    %927 = vmatpush1.xpose.msra.mxu0 0.0
    %928 = vmatprep.subr.mxu0 0.0
    %929 = vmatpush1.xpose.msra.mxu0 0.0
    %930 = vmatprep.subr.mxu0 0.0
    %931 = vmatpush1.xpose.msra.mxu0 0.0
    %932 = vmatprep.subr.mxu0 0.0
    %933 = vmatpush1.xpose.msra.mxu0 0.0
    %934 = vmatprep.subr.mxu0 0.0
    %935 = vmatpush1.xpose.msra.mxu0 0.0
    %936 = vmatprep.subr.mxu0 0.0
    %937 = vmatpush1.xpose.msra.mxu0 0.0
    %938 = vmatprep.subr.mxu0 0.0
    %939 = vmatpush1.xpose.msra.mxu0 0.0
    %940 = vmatprep.subr.mxu0 0.0
    %941 = vmatpush1.xpose.msra.mxu0 0.0
    %v942 = vand.u32 %v189, 4294901760
    %943 = vmatprep.mubr.f32.mxu0 %v942
    %v944 = vand.u32 %v185, 4294901760
    %945 = vmatmul.mubr.f32.gmra.mrb[0].mxu0 %v944
    %v946 = vpop.f32.mrb[0].mxu0
    %v947 = vadd.f32 %v779, %v946
    %v948 = vpop.f32.mrb[0].mxu0
    %949 = vdwg.mxu0
    %v950 = vand.u32 %v53, 4294901760
    %951 = vmatprep.subr.mxu0 %v950
    %v952 = vand.u32 %v52, 4294901760
    %953 = vmatpush1.xpose.msra.mxu0 %v952
    %v954 = vand.u32 %v55, 4294901760
    %955 = vmatprep.subr.mxu0 %v954
    %v956 = vand.u32 %v54, 4294901760
    %957 = vmatpush1.xpose.msra.mxu0 %v956
    %v958 = vand.u32 %v57, 4294901760
    %959 = vmatprep.subr.mxu0 %v958
    %v960 = vand.u32 %v56, 4294901760
    %961 = vmatpush1.xpose.msra.mxu0 %v960
    %v962 = vand.u32 %v59, 4294901760
    %963 = vmatprep.subr.mxu0 %v962
    %v964 = vand.u32 %v58, 4294901760
    %965 = vmatpush1.xpose.msra.mxu0 %v964
    %v966 = vand.u32 %v61, 4294901760
    %967 = vmatprep.subr.mxu0 %v966
    %v968 = vand.u32 %v60, 4294901760
    %969 = vmatpush1.xpose.msra.mxu0 %v968
    %v970 = vand.u32 %v63, 4294901760
    %971 = vmatprep.subr.mxu0 %v970
    %v972 = vand.u32 %v62, 4294901760
    %973 = vmatpush1.xpose.msra.mxu0 %v972
    %v974 = vand.u32 %v65, 4294901760
    %975 = vmatprep.subr.mxu0 %v974
    %v976 = vand.u32 %v64, 4294901760
    %977 = vmatpush1.xpose.msra.mxu0 %v976
    %v978 = vand.u32 %v67, 4294901760
    %979 = vmatprep.subr.mxu0 %v978
    %v980 = vand.u32 %v66, 4294901760
    %981 = vmatpush1.xpose.msra.mxu0 %v980
    %v982 = vand.u32 %v69, 4294901760
    %983 = vmatprep.subr.mxu0 %v982
    %v984 = vand.u32 %v68, 4294901760
    %985 = vmatpush1.xpose.msra.mxu0 %v984
    %v986 = vand.u32 %v71, 4294901760
    %987 = vmatprep.subr.mxu0 %v986
    %v988 = vand.u32 %v70, 4294901760
    %989 = vmatpush1.xpose.msra.mxu0 %v988
    %v990 = vand.u32 %v73, 4294901760
    %991 = vmatprep.subr.mxu0 %v990
    %v992 = vand.u32 %v72, 4294901760
    %993 = vmatpush1.xpose.msra.mxu0 %v992
    %v994 = vand.u32 %v75, 4294901760
    %995 = vmatprep.subr.mxu0 %v994
    %v996 = vand.u32 %v74, 4294901760
    %997 = vmatpush1.xpose.msra.mxu0 %v996
    %v998 = vand.u32 %v77, 4294901760
    %999 = vmatprep.subr.mxu0 %v998
    %v1000 = vand.u32 %v76, 4294901760
    %1001 = vmatpush1.xpose.msra.mxu0 %v1000
    %v1002 = vand.u32 %v79, 4294901760
    %1003 = vmatprep.subr.mxu0 %v1002
    %v1004 = vand.u32 %v78, 4294901760
    %1005 = vmatpush1.xpose.msra.mxu0 %v1004
    %v1006 = vand.u32 %v81, 4294901760
    %1007 = vmatprep.subr.mxu0 %v1006
    %v1008 = vand.u32 %v80, 4294901760
    %1009 = vmatpush1.xpose.msra.mxu0 %v1008
    %v1010 = vand.u32 %v83, 4294901760
    %1011 = vmatprep.subr.mxu0 %v1010
    %v1012 = vand.u32 %v82, 4294901760
    %1013 = vmatpush1.xpose.msra.mxu0 %v1012
    %1014 = vmatprep.subr.mxu0 0.0
    %1015 = vmatpush1.xpose.msra.mxu0 0.0
    %1016 = vmatprep.subr.mxu0 0.0
    %1017 = vmatpush1.xpose.msra.mxu0 0.0
    %1018 = vmatprep.subr.mxu0 0.0
    %1019 = vmatpush1.xpose.msra.mxu0 0.0
    %1020 = vmatprep.subr.mxu0 0.0
    %1021 = vmatpush1.xpose.msra.mxu0 0.0
    %1022 = vmatprep.subr.mxu0 0.0
    %1023 = vmatpush1.xpose.msra.mxu0 0.0
    %1024 = vmatprep.subr.mxu0 0.0
    %1025 = vmatpush1.xpose.msra.mxu0 0.0
    %1026 = vmatprep.subr.mxu0 0.0
    %1027 = vmatpush1.xpose.msra.mxu0 0.0
    %1028 = vmatprep.subr.mxu0 0.0
    %1029 = vmatpush1.xpose.msra.mxu0 0.0
    %1030 = vmatprep.subr.mxu0 0.0
    %1031 = vmatpush1.xpose.msra.mxu0 0.0
    %1032 = vmatprep.subr.mxu0 0.0
    %1033 = vmatpush1.xpose.msra.mxu0 0.0
    %1034 = vmatprep.subr.mxu0 0.0
    %1035 = vmatpush1.xpose.msra.mxu0 0.0
    %1036 = vmatprep.subr.mxu0 0.0
    %1037 = vmatpush1.xpose.msra.mxu0 0.0
    %1038 = vmatprep.subr.mxu0 0.0
    %1039 = vmatpush1.xpose.msra.mxu0 0.0
    %1040 = vmatprep.subr.mxu0 0.0
    %1041 = vmatpush1.xpose.msra.mxu0 0.0
    %1042 = vmatprep.subr.mxu0 0.0
    %1043 = vmatpush1.xpose.msra.mxu0 0.0
    %1044 = vmatprep.subr.mxu0 0.0
    %1045 = vmatpush1.xpose.msra.mxu0 0.0
    %v1046 = vand.u32 %v189, 4294901760
    %1047 = vmatprep.mubr.f32.mxu0 %v1046
    %v1048 = vand.u32 %v185, 4294901760
    %1049 = vmatmul.mubr.f32.gmra.mrb[0].mxu0 %v1048
    %v1050 = vpop.f32.mrb[0].mxu0
    %v1051 = vadd.f32 %v947, %v1050
    %v1052 = vpop.f32.mrb[0].mxu0
    %1053 = vdwg.mxu0
    %v1054 = vand.u32 %v85, 4294901760
    %1055 = vmatprep.subr.mxu0 %v1054
    %v1056 = vand.u32 %v84, 4294901760
    %1057 = vmatpush1.xpose.msra.mxu0 %v1056
    %v1058 = vand.u32 %v87, 4294901760
    %1059 = vmatprep.subr.mxu0 %v1058
    %v1060 = vand.u32 %v86, 4294901760
    %1061 = vmatpush1.xpose.msra.mxu0 %v1060
    %v1062 = vand.u32 %v89, 4294901760
    %1063 = vmatprep.subr.mxu0 %v1062
    %v1064 = vand.u32 %v88, 4294901760
    %1065 = vmatpush1.xpose.msra.mxu0 %v1064
    %v1066 = vand.u32 %v91, 4294901760
    %1067 = vmatprep.subr.mxu0 %v1066
    %v1068 = vand.u32 %v90, 4294901760
    %1069 = vmatpush1.xpose.msra.mxu0 %v1068
    %v1070 = vand.u32 %v93, 4294901760
    %1071 = vmatprep.subr.mxu0 %v1070
    %v1072 = vand.u32 %v92, 4294901760
    %1073 = vmatpush1.xpose.msra.mxu0 %v1072
    %v1074 = vand.u32 %v95, 4294901760
    %1075 = vmatprep.subr.mxu0 %v1074
    %v1076 = vand.u32 %v94, 4294901760
    %1077 = vmatpush1.xpose.msra.mxu0 %v1076
    %v1078 = vand.u32 %v97, 4294901760
    %1079 = vmatprep.subr.mxu0 %v1078
    %v1080 = vand.u32 %v96, 4294901760
    %1081 = vmatpush1.xpose.msra.mxu0 %v1080
    %v1082 = vand.u32 %v99, 4294901760
    %1083 = vmatprep.subr.mxu0 %v1082
    %v1084 = vand.u32 %v98, 4294901760
    %1085 = vmatpush1.xpose.msra.mxu0 %v1084
    %v1086 = vand.u32 %v101, 4294901760
    %1087 = vmatprep.subr.mxu0 %v1086
    %v1088 = vand.u32 %v100, 4294901760
    %1089 = vmatpush1.xpose.msra.mxu0 %v1088
    %v1090 = vand.u32 %v103, 4294901760
    %1091 = vmatprep.subr.mxu0 %v1090
    %v1092 = vand.u32 %v102, 4294901760
    %1093 = vmatpush1.xpose.msra.mxu0 %v1092
    %v1094 = vand.u32 %v105, 4294901760
    %1095 = vmatprep.subr.mxu0 %v1094
    %v1096 = vand.u32 %v104, 4294901760
    %1097 = vmatpush1.xpose.msra.mxu0 %v1096
    %v1098 = vand.u32 %v107, 4294901760
    %1099 = vmatprep.subr.mxu0 %v1098
    %v1100 = vand.u32 %v106, 4294901760
    %1101 = vmatpush1.xpose.msra.mxu0 %v1100
    %v1102 = vand.u32 %v109, 4294901760
    %1103 = vmatprep.subr.mxu0 %v1102
    %v1104 = vand.u32 %v108, 4294901760
    %1105 = vmatpush1.xpose.msra.mxu0 %v1104
    %v1106 = vand.u32 %v111, 4294901760
    %1107 = vmatprep.subr.mxu0 %v1106
    %v1108 = vand.u32 %v110, 4294901760
    %1109 = vmatpush1.xpose.msra.mxu0 %v1108
    %v1110 = vand.u32 %v113, 4294901760
    %1111 = vmatprep.subr.mxu0 %v1110
    %v1112 = vand.u32 %v112, 4294901760
    %1113 = vmatpush1.xpose.msra.mxu0 %v1112
    %v1114 = vand.u32 %v115, 4294901760
    %1115 = vmatprep.subr.mxu0 %v1114
    %v1116 = vand.u32 %v114, 4294901760
    %1117 = vmatpush1.xpose.msra.mxu0 %v1116
    %1118 = vmatprep.subr.mxu0 0.0
    %1119 = vmatpush1.xpose.msra.mxu0 0.0
    %1120 = vmatprep.subr.mxu0 0.0
    %1121 = vmatpush1.xpose.msra.mxu0 0.0
    %1122 = vmatprep.subr.mxu0 0.0
    %1123 = vmatpush1.xpose.msra.mxu0 0.0
    %1124 = vmatprep.subr.mxu0 0.0
    %1125 = vmatpush1.xpose.msra.mxu0 0.0
    %1126 = vmatprep.subr.mxu0 0.0
    %1127 = vmatpush1.xpose.msra.mxu0 0.0
    %1128 = vmatprep.subr.mxu0 0.0
    %1129 = vmatpush1.xpose.msra.mxu0 0.0
    %1130 = vmatprep.subr.mxu0 0.0
    %1131 = vmatpush1.xpose.msra.mxu0 0.0
    %1132 = vmatprep.subr.mxu0 0.0
    %1133 = vmatpush1.xpose.msra.mxu0 0.0
    %1134 = vmatprep.subr.mxu0 0.0
    %1135 = vmatpush1.xpose.msra.mxu0 0.0
    %1136 = vmatprep.subr.mxu0 0.0
    %1137 = vmatpush1.xpose.msra.mxu0 0.0
    %1138 = vmatprep.subr.mxu0 0.0
    %1139 = vmatpush1.xpose.msra.mxu0 0.0
    %1140 = vmatprep.subr.mxu0 0.0
    %1141 = vmatpush1.xpose.msra.mxu0 0.0
    %1142 = vmatprep.subr.mxu0 0.0
    %1143 = vmatpush1.xpose.msra.mxu0 0.0
    %1144 = vmatprep.subr.mxu0 0.0
    %1145 = vmatpush1.xpose.msra.mxu0 0.0
    %1146 = vmatprep.subr.mxu0 0.0
    %1147 = vmatpush1.xpose.msra.mxu0 0.0
    %1148 = vmatprep.subr.mxu0 0.0
    %1149 = vmatpush1.xpose.msra.mxu0 0.0
    %v1150 = vand.u32 %v189, 4294901760
    %v1151 = vsub.f32 %v189, %v1150
    %v1152 = vand.u32 %v1151, 4294901760
    %v1153 = vsub.f32 %v1151, %v1152
    %v1154 = vand.u32 %v1153, 4294901760
    %1155 = vmatprep.mubr.f32.mxu0 %v1154
    %v1156 = vand.u32 %v185, 4294901760
    %v1157 = vsub.f32 %v185, %v1156
    %v1158 = vand.u32 %v1157, 4294901760
    %v1159 = vsub.f32 %v1157, %v1158
    %v1160 = vand.u32 %v1159, 4294901760
    %1161 = vmatmul.mubr.f32.gmra.mrb[0].mxu0 %v1160
    %v1162 = vpop.f32.mrb[0].mxu0
    %v1163 = vadd.f32 0.0, %v1162
    %v1164 = vpop.f32.mrb[0].mxu0
    %1165 = vdwg.mxu0
    %v1166 = vand.u32 %v85, 4294901760
    %v1167 = vsub.f32 %v85, %v1166
    %v1168 = vand.u32 %v1167, 4294901760
    %v1169 = vsub.f32 %v1167, %v1168
    %v1170 = vand.u32 %v1169, 4294901760
    %1171 = vmatprep.subr.mxu0 %v1170
    %v1172 = vand.u32 %v84, 4294901760
    %v1173 = vsub.f32 %v84, %v1172
    %v1174 = vand.u32 %v1173, 4294901760
    %v1175 = vsub.f32 %v1173, %v1174
    %v1176 = vand.u32 %v1175, 4294901760
    %1177 = vmatpush1.xpose.msra.mxu0 %v1176
    %v1178 = vand.u32 %v87, 4294901760
    %v1179 = vsub.f32 %v87, %v1178
    %v1180 = vand.u32 %v1179, 4294901760
    %v1181 = vsub.f32 %v1179, %v1180
    %v1182 = vand.u32 %v1181, 4294901760
    %1183 = vmatprep.subr.mxu0 %v1182
    %v1184 = vand.u32 %v86, 4294901760
    %v1185 = vsub.f32 %v86, %v1184
    %v1186 = vand.u32 %v1185, 4294901760
    %v1187 = vsub.f32 %v1185, %v1186
    %v1188 = vand.u32 %v1187, 4294901760
    %1189 = vmatpush1.xpose.msra.mxu0 %v1188
    %v1190 = vand.u32 %v89, 4294901760
    %v1191 = vsub.f32 %v89, %v1190
    %v1192 = vand.u32 %v1191, 4294901760
    %v1193 = vsub.f32 %v1191, %v1192
    %v1194 = vand.u32 %v1193, 4294901760
    %1195 = vmatprep.subr.mxu0 %v1194
    %v1196 = vand.u32 %v88, 4294901760
    %v1197 = vsub.f32 %v88, %v1196
    %v1198 = vand.u32 %v1197, 4294901760
    %v1199 = vsub.f32 %v1197, %v1198
    %v1200 = vand.u32 %v1199, 4294901760
    %1201 = vmatpush1.xpose.msra.mxu0 %v1200
    %v1202 = vand.u32 %v91, 4294901760
    %v1203 = vsub.f32 %v91, %v1202
    %v1204 = vand.u32 %v1203, 4294901760
    %v1205 = vsub.f32 %v1203, %v1204
    %v1206 = vand.u32 %v1205, 4294901760
    %1207 = vmatprep.subr.mxu0 %v1206
    %v1208 = vand.u32 %v90, 4294901760
    %v1209 = vsub.f32 %v90, %v1208
    %v1210 = vand.u32 %v1209, 4294901760
    %v1211 = vsub.f32 %v1209, %v1210
    %v1212 = vand.u32 %v1211, 4294901760
    %1213 = vmatpush1.xpose.msra.mxu0 %v1212
    %v1214 = vand.u32 %v93, 4294901760
    %v1215 = vsub.f32 %v93, %v1214
    %v1216 = vand.u32 %v1215, 4294901760
    %v1217 = vsub.f32 %v1215, %v1216
    %v1218 = vand.u32 %v1217, 4294901760
    %1219 = vmatprep.subr.mxu0 %v1218
    %v1220 = vand.u32 %v92, 4294901760
    %v1221 = vsub.f32 %v92, %v1220
    %v1222 = vand.u32 %v1221, 4294901760
    %v1223 = vsub.f32 %v1221, %v1222
    %v1224 = vand.u32 %v1223, 4294901760
    %1225 = vmatpush1.xpose.msra.mxu0 %v1224
    %v1226 = vand.u32 %v95, 4294901760
    %v1227 = vsub.f32 %v95, %v1226
    %v1228 = vand.u32 %v1227, 4294901760
    %v1229 = vsub.f32 %v1227, %v1228
    %v1230 = vand.u32 %v1229, 4294901760
    %1231 = vmatprep.subr.mxu0 %v1230
    %v1232 = vand.u32 %v94, 4294901760
    %v1233 = vsub.f32 %v94, %v1232
    %v1234 = vand.u32 %v1233, 4294901760
    %v1235 = vsub.f32 %v1233, %v1234
    %v1236 = vand.u32 %v1235, 4294901760
    %1237 = vmatpush1.xpose.msra.mxu0 %v1236
    %v1238 = vand.u32 %v97, 4294901760
    %v1239 = vsub.f32 %v97, %v1238
    %v1240 = vand.u32 %v1239, 4294901760
    %v1241 = vsub.f32 %v1239, %v1240
    %v1242 = vand.u32 %v1241, 4294901760
    %1243 = vmatprep.subr.mxu0 %v1242
    %v1244 = vand.u32 %v96, 4294901760
    %v1245 = vsub.f32 %v96, %v1244
    %v1246 = vand.u32 %v1245, 4294901760
    %v1247 = vsub.f32 %v1245, %v1246
    %v1248 = vand.u32 %v1247, 4294901760
    %1249 = vmatpush1.xpose.msra.mxu0 %v1248
    %v1250 = vand.u32 %v99, 4294901760
    %v1251 = vsub.f32 %v99, %v1250
    %v1252 = vand.u32 %v1251, 4294901760
    %v1253 = vsub.f32 %v1251, %v1252
    %v1254 = vand.u32 %v1253, 4294901760
    %1255 = vmatprep.subr.mxu0 %v1254
    %v1256 = vand.u32 %v98, 4294901760
    %v1257 = vsub.f32 %v98, %v1256
    %v1258 = vand.u32 %v1257, 4294901760
    %v1259 = vsub.f32 %v1257, %v1258
    %v1260 = vand.u32 %v1259, 4294901760
    %1261 = vmatpush1.xpose.msra.mxu0 %v1260
    %v1262 = vand.u32 %v101, 4294901760
    %v1263 = vsub.f32 %v101, %v1262
    %v1264 = vand.u32 %v1263, 4294901760
    %v1265 = vsub.f32 %v1263, %v1264
    %v1266 = vand.u32 %v1265, 4294901760
    %1267 = vmatprep.subr.mxu0 %v1266
    %v1268 = vand.u32 %v100, 4294901760
    %v1269 = vsub.f32 %v100, %v1268
    %v1270 = vand.u32 %v1269, 4294901760
    %v1271 = vsub.f32 %v1269, %v1270
    %v1272 = vand.u32 %v1271, 4294901760
    %1273 = vmatpush1.xpose.msra.mxu0 %v1272
    %v1274 = vand.u32 %v103, 4294901760
    %v1275 = vsub.f32 %v103, %v1274
    %v1276 = vand.u32 %v1275, 4294901760
    %v1277 = vsub.f32 %v1275, %v1276
    %v1278 = vand.u32 %v1277, 4294901760
    %1279 = vmatprep.subr.mxu0 %v1278
    %v1280 = vand.u32 %v102, 4294901760
    %v1281 = vsub.f32 %v102, %v1280
    %v1282 = vand.u32 %v1281, 4294901760
    %v1283 = vsub.f32 %v1281, %v1282
    %v1284 = vand.u32 %v1283, 4294901760
    %1285 = vmatpush1.xpose.msra.mxu0 %v1284
    %v1286 = vand.u32 %v105, 4294901760
    %v1287 = vsub.f32 %v105, %v1286
    %v1288 = vand.u32 %v1287, 4294901760
    %v1289 = vsub.f32 %v1287, %v1288
    %v1290 = vand.u32 %v1289, 4294901760
    %1291 = vmatprep.subr.mxu0 %v1290
    %v1292 = vand.u32 %v104, 4294901760
    %v1293 = vsub.f32 %v104, %v1292
    %v1294 = vand.u32 %v1293, 4294901760
    %v1295 = vsub.f32 %v1293, %v1294
    %v1296 = vand.u32 %v1295, 4294901760
    %1297 = vmatpush1.xpose.msra.mxu0 %v1296
    %v1298 = vand.u32 %v107, 4294901760
    %v1299 = vsub.f32 %v107, %v1298
    %v1300 = vand.u32 %v1299, 4294901760
    %v1301 = vsub.f32 %v1299, %v1300
    %v1302 = vand.u32 %v1301, 4294901760
    %1303 = vmatprep.subr.mxu0 %v1302
    %v1304 = vand.u32 %v106, 4294901760
    %v1305 = vsub.f32 %v106, %v1304
    %v1306 = vand.u32 %v1305, 4294901760
    %v1307 = vsub.f32 %v1305, %v1306
    %v1308 = vand.u32 %v1307, 4294901760
    %1309 = vmatpush1.xpose.msra.mxu0 %v1308
    %v1310 = vand.u32 %v109, 4294901760
    %v1311 = vsub.f32 %v109, %v1310
    %v1312 = vand.u32 %v1311, 4294901760
    %v1313 = vsub.f32 %v1311, %v1312
    %v1314 = vand.u32 %v1313, 4294901760
    %1315 = vmatprep.subr.mxu0 %v1314
    %v1316 = vand.u32 %v108, 4294901760
    %v1317 = vsub.f32 %v108, %v1316
    %v1318 = vand.u32 %v1317, 4294901760
    %v1319 = vsub.f32 %v1317, %v1318
    %v1320 = vand.u32 %v1319, 4294901760
    %1321 = vmatpush1.xpose.msra.mxu0 %v1320
    %v1322 = vand.u32 %v111, 4294901760
    %v1323 = vsub.f32 %v111, %v1322
    %v1324 = vand.u32 %v1323, 4294901760
    %v1325 = vsub.f32 %v1323, %v1324
    %v1326 = vand.u32 %v1325, 4294901760
    %1327 = vmatprep.subr.mxu0 %v1326
    %v1328 = vand.u32 %v110, 4294901760
    %v1329 = vsub.f32 %v110, %v1328
    %v1330 = vand.u32 %v1329, 4294901760
    %v1331 = vsub.f32 %v1329, %v1330
    %v1332 = vand.u32 %v1331, 4294901760
    %1333 = vmatpush1.xpose.msra.mxu0 %v1332
    %v1334 = vand.u32 %v113, 4294901760
    %v1335 = vsub.f32 %v113, %v1334
    %v1336 = vand.u32 %v1335, 4294901760
    %v1337 = vsub.f32 %v1335, %v1336
    %v1338 = vand.u32 %v1337, 4294901760
    %1339 = vmatprep.subr.mxu0 %v1338
    %v1340 = vand.u32 %v112, 4294901760
    %v1341 = vsub.f32 %v112, %v1340
    %v1342 = vand.u32 %v1341, 4294901760
    %v1343 = vsub.f32 %v1341, %v1342
    %v1344 = vand.u32 %v1343, 4294901760
    %1345 = vmatpush1.xpose.msra.mxu0 %v1344
    %v1346 = vand.u32 %v115, 4294901760
    %v1347 = vsub.f32 %v115, %v1346
    %v1348 = vand.u32 %v1347, 4294901760
    %v1349 = vsub.f32 %v1347, %v1348
    %v1350 = vand.u32 %v1349, 4294901760
    %1351 = vmatprep.subr.mxu0 %v1350
    %v1352 = vand.u32 %v114, 4294901760
    %v1353 = vsub.f32 %v114, %v1352
    %v1354 = vand.u32 %v1353, 4294901760
    %v1355 = vsub.f32 %v1353, %v1354
    %v1356 = vand.u32 %v1355, 4294901760
    %1357 = vmatpush1.xpose.msra.mxu0 %v1356
    %1358 = vmatprep.subr.mxu0 0.0
    %1359 = vmatpush1.xpose.msra.mxu0 0.0
    %1360 = vmatprep.subr.mxu0 0.0
    %1361 = vmatpush1.xpose.msra.mxu0 0.0
    %1362 = vmatprep.subr.mxu0 0.0
    %1363 = vmatpush1.xpose.msra.mxu0 0.0
    %1364 = vmatprep.subr.mxu0 0.0
    %1365 = vmatpush1.xpose.msra.mxu0 0.0
    %1366 = vmatprep.subr.mxu0 0.0
    %1367 = vmatpush1.xpose.msra.mxu0 0.0
    %1368 = vmatprep.subr.mxu0 0.0
    %1369 = vmatpush1.xpose.msra.mxu0 0.0
    %1370 = vmatprep.subr.mxu0 0.0
    %1371 = vmatpush1.xpose.msra.mxu0 0.0
    %1372 = vmatprep.subr.mxu0 0.0
    %1373 = vmatpush1.xpose.msra.mxu0 0.0
    %1374 = vmatprep.subr.mxu0 0.0
    %1375 = vmatpush1.xpose.msra.mxu0 0.0
    %1376 = vmatprep.subr.mxu0 0.0
    %1377 = vmatpush1.xpose.msra.mxu0 0.0
    %1378 = vmatprep.subr.mxu0 0.0
    %1379 = vmatpush1.xpose.msra.mxu0 0.0
    %1380 = vmatprep.subr.mxu0 0.0
    %1381 = vmatpush1.xpose.msra.mxu0 0.0
    %1382 = vmatprep.subr.mxu0 0.0
    %1383 = vmatpush1.xpose.msra.mxu0 0.0
    %1384 = vmatprep.subr.mxu0 0.0
    %1385 = vmatpush1.xpose.msra.mxu0 0.0
    %1386 = vmatprep.subr.mxu0 0.0
    %1387 = vmatpush1.xpose.msra.mxu0 0.0
    %1388 = vmatprep.subr.mxu0 0.0
    %1389 = vmatpush1.xpose.msra.mxu0 0.0
    %v1390 = vand.u32 %v189, 4294901760
    %1391 = vmatprep.mubr.f32.mxu0 %v1390
    %v1392 = vand.u32 %v185, 4294901760
    %1393 = vmatmul.mubr.f32.gmra.mrb[0].mxu0 %v1392
    %v1394 = vpop.f32.mrb[0].mxu0
    %v1395 = vadd.f32 %v1163, %v1394
    %v1396 = vpop.f32.mrb[0].mxu0
    %1397 = vdwg.mxu0
    %v1398 = vand.u32 %v85, 4294901760
    %v1399 = vsub.f32 %v85, %v1398
    %1400 = vmatprep.subr.mxu0 %v1399
    %v1401 = vand.u32 %v84, 4294901760
    %v1402 = vsub.f32 %v84, %v1401
    %1403 = vmatpush1.xpose.msra.mxu0 %v1402
    %v1404 = vand.u32 %v87, 4294901760
    %v1405 = vsub.f32 %v87, %v1404
    %1406 = vmatprep.subr.mxu0 %v1405
    %v1407 = vand.u32 %v86, 4294901760
    %v1408 = vsub.f32 %v86, %v1407
    %1409 = vmatpush1.xpose.msra.mxu0 %v1408
    %v1410 = vand.u32 %v89, 4294901760
    %v1411 = vsub.f32 %v89, %v1410
    %1412 = vmatprep.subr.mxu0 %v1411
    %v1413 = vand.u32 %v88, 4294901760
    %v1414 = vsub.f32 %v88, %v1413
    %1415 = vmatpush1.xpose.msra.mxu0 %v1414
    %v1416 = vand.u32 %v91, 4294901760
    %v1417 = vsub.f32 %v91, %v1416
    %1418 = vmatprep.subr.mxu0 %v1417
    %v1419 = vand.u32 %v90, 4294901760
    %v1420 = vsub.f32 %v90, %v1419
    %1421 = vmatpush1.xpose.msra.mxu0 %v1420
    %v1422 = vand.u32 %v93, 4294901760
    %v1423 = vsub.f32 %v93, %v1422
    %1424 = vmatprep.subr.mxu0 %v1423
    %v1425 = vand.u32 %v92, 4294901760
    %v1426 = vsub.f32 %v92, %v1425
    %1427 = vmatpush1.xpose.msra.mxu0 %v1426
    %v1428 = vand.u32 %v95, 4294901760
    %v1429 = vsub.f32 %v95, %v1428
    %1430 = vmatprep.subr.mxu0 %v1429
    %v1431 = vand.u32 %v94, 4294901760
    %v1432 = vsub.f32 %v94, %v1431
    %1433 = vmatpush1.xpose.msra.mxu0 %v1432
    %v1434 = vand.u32 %v97, 4294901760
    %v1435 = vsub.f32 %v97, %v1434
    %1436 = vmatprep.subr.mxu0 %v1435
    %v1437 = vand.u32 %v96, 4294901760
    %v1438 = vsub.f32 %v96, %v1437
    %1439 = vmatpush1.xpose.msra.mxu0 %v1438
    %v1440 = vand.u32 %v99, 4294901760
    %v1441 = vsub.f32 %v99, %v1440
    %1442 = vmatprep.subr.mxu0 %v1441
    %v1443 = vand.u32 %v98, 4294901760
    %v1444 = vsub.f32 %v98, %v1443
    %1445 = vmatpush1.xpose.msra.mxu0 %v1444
    %v1446 = vand.u32 %v101, 4294901760
    %v1447 = vsub.f32 %v101, %v1446
    %1448 = vmatprep.subr.mxu0 %v1447
    %v1449 = vand.u32 %v100, 4294901760
    %v1450 = vsub.f32 %v100, %v1449
    %1451 = vmatpush1.xpose.msra.mxu0 %v1450
    %v1452 = vand.u32 %v103, 4294901760
    %v1453 = vsub.f32 %v103, %v1452
    %1454 = vmatprep.subr.mxu0 %v1453
    %v1455 = vand.u32 %v102, 4294901760
    %v1456 = vsub.f32 %v102, %v1455
    %1457 = vmatpush1.xpose.msra.mxu0 %v1456
    %v1458 = vand.u32 %v105, 4294901760
    %v1459 = vsub.f32 %v105, %v1458
    %1460 = vmatprep.subr.mxu0 %v1459
    %v1461 = vand.u32 %v104, 4294901760
    %v1462 = vsub.f32 %v104, %v1461
    %1463 = vmatpush1.xpose.msra.mxu0 %v1462
    %v1464 = vand.u32 %v107, 4294901760
    %v1465 = vsub.f32 %v107, %v1464
    %1466 = vmatprep.subr.mxu0 %v1465
    %v1467 = vand.u32 %v106, 4294901760
    %v1468 = vsub.f32 %v106, %v1467
    %1469 = vmatpush1.xpose.msra.mxu0 %v1468
    %v1470 = vand.u32 %v109, 4294901760
    %v1471 = vsub.f32 %v109, %v1470
    %1472 = vmatprep.subr.mxu0 %v1471
    %v1473 = vand.u32 %v108, 4294901760
    %v1474 = vsub.f32 %v108, %v1473
    %1475 = vmatpush1.xpose.msra.mxu0 %v1474
    %v1476 = vand.u32 %v111, 4294901760
    %v1477 = vsub.f32 %v111, %v1476
    %1478 = vmatprep.subr.mxu0 %v1477
    %v1479 = vand.u32 %v110, 4294901760
    %v1480 = vsub.f32 %v110, %v1479
    %1481 = vmatpush1.xpose.msra.mxu0 %v1480
    %v1482 = vand.u32 %v113, 4294901760
    %v1483 = vsub.f32 %v113, %v1482
    %1484 = vmatprep.subr.mxu0 %v1483
    %v1485 = vand.u32 %v112, 4294901760
    %v1486 = vsub.f32 %v112, %v1485
    %1487 = vmatpush1.xpose.msra.mxu0 %v1486
    %v1488 = vand.u32 %v115, 4294901760
    %v1489 = vsub.f32 %v115, %v1488
    %1490 = vmatprep.subr.mxu0 %v1489
    %v1491 = vand.u32 %v114, 4294901760
    %v1492 = vsub.f32 %v114, %v1491
    %1493 = vmatpush1.xpose.msra.mxu0 %v1492
    %1494 = vmatprep.subr.mxu0 0.0
    %1495 = vmatpush1.xpose.msra.mxu0 0.0
    %1496 = vmatprep.subr.mxu0 0.0
    %1497 = vmatpush1.xpose.msra.mxu0 0.0
    %1498 = vmatprep.subr.mxu0 0.0
    %1499 = vmatpush1.xpose.msra.mxu0 0.0
    %1500 = vmatprep.subr.mxu0 0.0
    %1501 = vmatpush1.xpose.msra.mxu0 0.0
    %1502 = vmatprep.subr.mxu0 0.0
    %1503 = vmatpush1.xpose.msra.mxu0 0.0
    %1504 = vmatprep.subr.mxu0 0.0
    %1505 = vmatpush1.xpose.msra.mxu0 0.0
    %1506 = vmatprep.subr.mxu0 0.0
    %1507 = vmatpush1.xpose.msra.mxu0 0.0
    %1508 = vmatprep.subr.mxu0 0.0
    %1509 = vmatpush1.xpose.msra.mxu0 0.0
    %1510 = vmatprep.subr.mxu0 0.0
    %1511 = vmatpush1.xpose.msra.mxu0 0.0
    %1512 = vmatprep.subr.mxu0 0.0
    %1513 = vmatpush1.xpose.msra.mxu0 0.0
    %1514 = vmatprep.subr.mxu0 0.0
    %1515 = vmatpush1.xpose.msra.mxu0 0.0
    %1516 = vmatprep.subr.mxu0 0.0
    %1517 = vmatpush1.xpose.msra.mxu0 0.0
    %1518 = vmatprep.subr.mxu0 0.0
    %1519 = vmatpush1.xpose.msra.mxu0 0.0
    %1520 = vmatprep.subr.mxu0 0.0
    %1521 = vmatpush1.xpose.msra.mxu0 0.0
    %1522 = vmatprep.subr.mxu0 0.0
    %1523 = vmatpush1.xpose.msra.mxu0 0.0
    %1524 = vmatprep.subr.mxu0 0.0
    %1525 = vmatpush1.xpose.msra.mxu0 0.0
    %v1526 = vand.u32 %v189, 4294901760
    %v1527 = vsub.f32 %v189, %v1526
    %1528 = vmatprep.mubr.f32.mxu0 %v1527
    %v1529 = vand.u32 %v185, 4294901760
    %v1530 = vsub.f32 %v185, %v1529
    %1531 = vmatmul.mubr.f32.gmra.mrb[0].mxu0 %v1530
    %v1532 = vpop.f32.mrb[0].mxu0
    %v1533 = vadd.f32 %v1395, %v1532
    %v1534 = vpop.f32.mrb[0].mxu0
    %1535 = vdwg.mxu0
    %v1536 = vand.u32 %v85, 4294901760
    %1537 = vmatprep.subr.mxu0 %v1536
    %v1538 = vand.u32 %v84, 4294901760
    %1539 = vmatpush1.xpose.msra.mxu0 %v1538
    %v1540 = vand.u32 %v87, 4294901760
    %1541 = vmatprep.subr.mxu0 %v1540
    %v1542 = vand.u32 %v86, 4294901760
    %1543 = vmatpush1.xpose.msra.mxu0 %v1542
    %v1544 = vand.u32 %v89, 4294901760
    %1545 = vmatprep.subr.mxu0 %v1544
    %v1546 = vand.u32 %v88, 4294901760
    %1547 = vmatpush1.xpose.msra.mxu0 %v1546
    %v1548 = vand.u32 %v91, 4294901760
    %1549 = vmatprep.subr.mxu0 %v1548
    %v1550 = vand.u32 %v90, 4294901760
    %1551 = vmatpush1.xpose.msra.mxu0 %v1550
    %v1552 = vand.u32 %v93, 4294901760
    %1553 = vmatprep.subr.mxu0 %v1552
    %v1554 = vand.u32 %v92, 4294901760
    %1555 = vmatpush1.xpose.msra.mxu0 %v1554
    %v1556 = vand.u32 %v95, 4294901760
    %1557 = vmatprep.subr.mxu0 %v1556
    %v1558 = vand.u32 %v94, 4294901760
    %1559 = vmatpush1.xpose.msra.mxu0 %v1558
    %v1560 = vand.u32 %v97, 4294901760
    %1561 = vmatprep.subr.mxu0 %v1560
    %v1562 = vand.u32 %v96, 4294901760
    %1563 = vmatpush1.xpose.msra.mxu0 %v1562
    %v1564 = vand.u32 %v99, 4294901760
    %1565 = vmatprep.subr.mxu0 %v1564
    %v1566 = vand.u32 %v98, 4294901760
    %1567 = vmatpush1.xpose.msra.mxu0 %v1566
    %v1568 = vand.u32 %v101, 4294901760
    %1569 = vmatprep.subr.mxu0 %v1568
    %v1570 = vand.u32 %v100, 4294901760
    %1571 = vmatpush1.xpose.msra.mxu0 %v1570
    %v1572 = vand.u32 %v103, 4294901760
    %1573 = vmatprep.subr.mxu0 %v1572
    %v1574 = vand.u32 %v102, 4294901760
    %1575 = vmatpush1.xpose.msra.mxu0 %v1574
    %v1576 = vand.u32 %v105, 4294901760
    %1577 = vmatprep.subr.mxu0 %v1576
    %v1578 = vand.u32 %v104, 4294901760
    %1579 = vmatpush1.xpose.msra.mxu0 %v1578
    %v1580 = vand.u32 %v107, 4294901760
    %1581 = vmatprep.subr.mxu0 %v1580
    %v1582 = vand.u32 %v106, 4294901760
    %1583 = vmatpush1.xpose.msra.mxu0 %v1582
    %v1584 = vand.u32 %v109, 4294901760
    %1585 = vmatprep.subr.mxu0 %v1584
    %v1586 = vand.u32 %v108, 4294901760
    %1587 = vmatpush1.xpose.msra.mxu0 %v1586
    %v1588 = vand.u32 %v111, 4294901760
    %1589 = vmatprep.subr.mxu0 %v1588
    %v1590 = vand.u32 %v110, 4294901760
    %1591 = vmatpush1.xpose.msra.mxu0 %v1590
    %v1592 = vand.u32 %v113, 4294901760
    %1593 = vmatprep.subr.mxu0 %v1592
    %v1594 = vand.u32 %v112, 4294901760
    %1595 = vmatpush1.xpose.msra.mxu0 %v1594
    %v1596 = vand.u32 %v115, 4294901760
    %1597 = vmatprep.subr.mxu0 %v1596
    %v1598 = vand.u32 %v114, 4294901760
    %1599 = vmatpush1.xpose.msra.mxu0 %v1598
    %1600 = vmatprep.subr.mxu0 0.0
    %1601 = vmatpush1.xpose.msra.mxu0 0.0
    %1602 = vmatprep.subr.mxu0 0.0
    %1603 = vmatpush1.xpose.msra.mxu0 0.0
    %1604 = vmatprep.subr.mxu0 0.0
    %1605 = vmatpush1.xpose.msra.mxu0 0.0
    %1606 = vmatprep.subr.mxu0 0.0
    %1607 = vmatpush1.xpose.msra.mxu0 0.0
    %1608 = vmatprep.subr.mxu0 0.0
    %1609 = vmatpush1.xpose.msra.mxu0 0.0
    %1610 = vmatprep.subr.mxu0 0.0
    %1611 = vmatpush1.xpose.msra.mxu0 0.0
    %1612 = vmatprep.subr.mxu0 0.0
    %1613 = vmatpush1.xpose.msra.mxu0 0.0
    %1614 = vmatprep.subr.mxu0 0.0
    %1615 = vmatpush1.xpose.msra.mxu0 0.0
    %1616 = vmatprep.subr.mxu0 0.0
    %1617 = vmatpush1.xpose.msra.mxu0 0.0
    %1618 = vmatprep.subr.mxu0 0.0
    %1619 = vmatpush1.xpose.msra.mxu0 0.0
    %1620 = vmatprep.subr.mxu0 0.0
    %1621 = vmatpush1.xpose.msra.mxu0 0.0
    %1622 = vmatprep.subr.mxu0 0.0
    %1623 = vmatpush1.xpose.msra.mxu0 0.0
    %1624 = vmatprep.subr.mxu0 0.0
    %1625 = vmatpush1.xpose.msra.mxu0 0.0
    %1626 = vmatprep.subr.mxu0 0.0
    %1627 = vmatpush1.xpose.msra.mxu0 0.0
    %1628 = vmatprep.subr.mxu0 0.0
    %1629 = vmatpush1.xpose.msra.mxu0 0.0
    %1630 = vmatprep.subr.mxu0 0.0
    %1631 = vmatpush1.xpose.msra.mxu0 0.0
    %v1632 = vand.u32 %v189, 4294901760
    %v1633 = vsub.f32 %v189, %v1632
    %v1634 = vand.u32 %v1633, 4294901760
    %1635 = vmatprep.mubr.f32.mxu0 %v1634
    %v1636 = vand.u32 %v185, 4294901760
    %v1637 = vsub.f32 %v185, %v1636
    %v1638 = vand.u32 %v1637, 4294901760
    %1639 = vmatmul.mubr.f32.gmra.mrb[0].mxu0 %v1638
    %v1640 = vpop.f32.mrb[0].mxu0
    %v1641 = vadd.f32 %v1533, %v1640
    %v1642 = vpop.f32.mrb[0].mxu0
    %1643 = vdwg.mxu0
    %v1644 = vand.u32 %v85, 4294901760
    %v1645 = vsub.f32 %v85, %v1644
    %v1646 = vand.u32 %v1645, 4294901760
    %1647 = vmatprep.subr.mxu0 %v1646
    %v1648 = vand.u32 %v84, 4294901760
    %v1649 = vsub.f32 %v84, %v1648
    %v1650 = vand.u32 %v1649, 4294901760
    %1651 = vmatpush1.xpose.msra.mxu0 %v1650
    %v1652 = vand.u32 %v87, 4294901760
    %v1653 = vsub.f32 %v87, %v1652
    %v1654 = vand.u32 %v1653, 4294901760
    %1655 = vmatprep.subr.mxu0 %v1654
    %v1656 = vand.u32 %v86, 4294901760
    %v1657 = vsub.f32 %v86, %v1656
    %v1658 = vand.u32 %v1657, 4294901760
    %1659 = vmatpush1.xpose.msra.mxu0 %v1658
    %v1660 = vand.u32 %v89, 4294901760
    %v1661 = vsub.f32 %v89, %v1660
    %v1662 = vand.u32 %v1661, 4294901760
    %1663 = vmatprep.subr.mxu0 %v1662
    %v1664 = vand.u32 %v88, 4294901760
    %v1665 = vsub.f32 %v88, %v1664
    %v1666 = vand.u32 %v1665, 4294901760
    %1667 = vmatpush1.xpose.msra.mxu0 %v1666
    %v1668 = vand.u32 %v91, 4294901760
    %v1669 = vsub.f32 %v91, %v1668
    %v1670 = vand.u32 %v1669, 4294901760
    %1671 = vmatprep.subr.mxu0 %v1670
    %v1672 = vand.u32 %v90, 4294901760
    %v1673 = vsub.f32 %v90, %v1672
    %v1674 = vand.u32 %v1673, 4294901760
    %1675 = vmatpush1.xpose.msra.mxu0 %v1674
    %v1676 = vand.u32 %v93, 4294901760
    %v1677 = vsub.f32 %v93, %v1676
    %v1678 = vand.u32 %v1677, 4294901760
    %1679 = vmatprep.subr.mxu0 %v1678
    %v1680 = vand.u32 %v92, 4294901760
    %v1681 = vsub.f32 %v92, %v1680
    %v1682 = vand.u32 %v1681, 4294901760
    %1683 = vmatpush1.xpose.msra.mxu0 %v1682
    %v1684 = vand.u32 %v95, 4294901760
    %v1685 = vsub.f32 %v95, %v1684
    %v1686 = vand.u32 %v1685, 4294901760
    %1687 = vmatprep.subr.mxu0 %v1686
    %v1688 = vand.u32 %v94, 4294901760
    %v1689 = vsub.f32 %v94, %v1688
    %v1690 = vand.u32 %v1689, 4294901760
    %1691 = vmatpush1.xpose.msra.mxu0 %v1690
    %v1692 = vand.u32 %v97, 4294901760
    %v1693 = vsub.f32 %v97, %v1692
    %v1694 = vand.u32 %v1693, 4294901760
    %1695 = vmatprep.subr.mxu0 %v1694
    %v1696 = vand.u32 %v96, 4294901760
    %v1697 = vsub.f32 %v96, %v1696
    %v1698 = vand.u32 %v1697, 4294901760
    %1699 = vmatpush1.xpose.msra.mxu0 %v1698
    %v1700 = vand.u32 %v99, 4294901760
    %v1701 = vsub.f32 %v99, %v1700
    %v1702 = vand.u32 %v1701, 4294901760
    %1703 = vmatprep.subr.mxu0 %v1702
    %v1704 = vand.u32 %v98, 4294901760
    %v1705 = vsub.f32 %v98, %v1704
    %v1706 = vand.u32 %v1705, 4294901760
    %1707 = vmatpush1.xpose.msra.mxu0 %v1706
    %v1708 = vand.u32 %v101, 4294901760
    %v1709 = vsub.f32 %v101, %v1708
    %v1710 = vand.u32 %v1709, 4294901760
    %1711 = vmatprep.subr.mxu0 %v1710
    %v1712 = vand.u32 %v100, 4294901760
    %v1713 = vsub.f32 %v100, %v1712
    %v1714 = vand.u32 %v1713, 4294901760
    %1715 = vmatpush1.xpose.msra.mxu0 %v1714
    %v1716 = vand.u32 %v103, 4294901760
    %v1717 = vsub.f32 %v103, %v1716
    %v1718 = vand.u32 %v1717, 4294901760
    %1719 = vmatprep.subr.mxu0 %v1718
    %v1720 = vand.u32 %v102, 4294901760
    %v1721 = vsub.f32 %v102, %v1720
    %v1722 = vand.u32 %v1721, 4294901760
    %1723 = vmatpush1.xpose.msra.mxu0 %v1722
    %v1724 = vand.u32 %v105, 4294901760
    %v1725 = vsub.f32 %v105, %v1724
    %v1726 = vand.u32 %v1725, 4294901760
    %1727 = vmatprep.subr.mxu0 %v1726
    %v1728 = vand.u32 %v104, 4294901760
    %v1729 = vsub.f32 %v104, %v1728
    %v1730 = vand.u32 %v1729, 4294901760
    %1731 = vmatpush1.xpose.msra.mxu0 %v1730
    %v1732 = vand.u32 %v107, 4294901760
    %v1733 = vsub.f32 %v107, %v1732
    %v1734 = vand.u32 %v1733, 4294901760
    %1735 = vmatprep.subr.mxu0 %v1734
    %v1736 = vand.u32 %v106, 4294901760
    %v1737 = vsub.f32 %v106, %v1736
    %v1738 = vand.u32 %v1737, 4294901760
    %1739 = vmatpush1.xpose.msra.mxu0 %v1738
    %v1740 = vand.u32 %v109, 4294901760
    %v1741 = vsub.f32 %v109, %v1740
    %v1742 = vand.u32 %v1741, 4294901760
    %1743 = vmatprep.subr.mxu0 %v1742
    %v1744 = vand.u32 %v108, 4294901760
    %v1745 = vsub.f32 %v108, %v1744
    %v1746 = vand.u32 %v1745, 4294901760
    %1747 = vmatpush1.xpose.msra.mxu0 %v1746
    %v1748 = vand.u32 %v111, 4294901760
    %v1749 = vsub.f32 %v111, %v1748
    %v1750 = vand.u32 %v1749, 4294901760
    %1751 = vmatprep.subr.mxu0 %v1750
    %v1752 = vand.u32 %v110, 4294901760
    %v1753 = vsub.f32 %v110, %v1752
    %v1754 = vand.u32 %v1753, 4294901760
    %1755 = vmatpush1.xpose.msra.mxu0 %v1754
    %v1756 = vand.u32 %v113, 4294901760
    %v1757 = vsub.f32 %v113, %v1756
    %v1758 = vand.u32 %v1757, 4294901760
    %1759 = vmatprep.subr.mxu0 %v1758
    %v1760 = vand.u32 %v112, 4294901760
    %v1761 = vsub.f32 %v112, %v1760
    %v1762 = vand.u32 %v1761, 4294901760
    %1763 = vmatpush1.xpose.msra.mxu0 %v1762
    %v1764 = vand.u32 %v115, 4294901760
    %v1765 = vsub.f32 %v115, %v1764
    %v1766 = vand.u32 %v1765, 4294901760
    %1767 = vmatprep.subr.mxu0 %v1766
    %v1768 = vand.u32 %v114, 4294901760
    %v1769 = vsub.f32 %v114, %v1768
    %v1770 = vand.u32 %v1769, 4294901760
    %1771 = vmatpush1.xpose.msra.mxu0 %v1770
    %1772 = vmatprep.subr.mxu0 0.0
    %1773 = vmatpush1.xpose.msra.mxu0 0.0
    %1774 = vmatprep.subr.mxu0 0.0
    %1775 = vmatpush1.xpose.msra.mxu0 0.0
    %1776 = vmatprep.subr.mxu0 0.0
    %1777 = vmatpush1.xpose.msra.mxu0 0.0
    %1778 = vmatprep.subr.mxu0 0.0
    %1779 = vmatpush1.xpose.msra.mxu0 0.0
    %1780 = vmatprep.subr.mxu0 0.0
    %1781 = vmatpush1.xpose.msra.mxu0 0.0
    %1782 = vmatprep.subr.mxu0 0.0
    %1783 = vmatpush1.xpose.msra.mxu0 0.0
    %1784 = vmatprep.subr.mxu0 0.0
    %1785 = vmatpush1.xpose.msra.mxu0 0.0
    %1786 = vmatprep.subr.mxu0 0.0
    %1787 = vmatpush1.xpose.msra.mxu0 0.0
    %1788 = vmatprep.subr.mxu0 0.0
    %1789 = vmatpush1.xpose.msra.mxu0 0.0
    %1790 = vmatprep.subr.mxu0 0.0
    %1791 = vmatpush1.xpose.msra.mxu0 0.0
    %1792 = vmatprep.subr.mxu0 0.0
    %1793 = vmatpush1.xpose.msra.mxu0 0.0
    %1794 = vmatprep.subr.mxu0 0.0
    %1795 = vmatpush1.xpose.msra.mxu0 0.0
    %1796 = vmatprep.subr.mxu0 0.0
    %1797 = vmatpush1.xpose.msra.mxu0 0.0
    %1798 = vmatprep.subr.mxu0 0.0
    %1799 = vmatpush1.xpose.msra.mxu0 0.0
    %1800 = vmatprep.subr.mxu0 0.0
    %1801 = vmatpush1.xpose.msra.mxu0 0.0
    %1802 = vmatprep.subr.mxu0 0.0
    %1803 = vmatpush1.xpose.msra.mxu0 0.0
    %v1804 = vand.u32 %v189, 4294901760
    %1805 = vmatprep.mubr.f32.mxu0 %v1804
    %v1806 = vand.u32 %v185, 4294901760
    %1807 = vmatmul.mubr.f32.gmra.mrb[0].mxu0 %v1806
    %v1808 = vpop.f32.mrb[0].mxu0
    %v1809 = vadd.f32 %v1641, %v1808
    %v1810 = vpop.f32.mrb[0].mxu0
    %1811 = vdwg.mxu0
    %v1812 = vand.u32 %v85, 4294901760
    %1813 = vmatprep.subr.mxu0 %v1812
    %v1814 = vand.u32 %v84, 4294901760
    %1815 = vmatpush1.xpose.msra.mxu0 %v1814
    %v1816 = vand.u32 %v87, 4294901760
    %1817 = vmatprep.subr.mxu0 %v1816
    %v1818 = vand.u32 %v86, 4294901760
    %1819 = vmatpush1.xpose.msra.mxu0 %v1818
    %v1820 = vand.u32 %v89, 4294901760
    %1821 = vmatprep.subr.mxu0 %v1820
    %v1822 = vand.u32 %v88, 4294901760
    %1823 = vmatpush1.xpose.msra.mxu0 %v1822
    %v1824 = vand.u32 %v91, 4294901760
    %1825 = vmatprep.subr.mxu0 %v1824
    %v1826 = vand.u32 %v90, 4294901760
    %1827 = vmatpush1.xpose.msra.mxu0 %v1826
    %v1828 = vand.u32 %v93, 4294901760
    %1829 = vmatprep.subr.mxu0 %v1828
    %v1830 = vand.u32 %v92, 4294901760
    %1831 = vmatpush1.xpose.msra.mxu0 %v1830
    %v1832 = vand.u32 %v95, 4294901760
    %1833 = vmatprep.subr.mxu0 %v1832
    %v1834 = vand.u32 %v94, 4294901760
    %1835 = vmatpush1.xpose.msra.mxu0 %v1834
    %v1836 = vand.u32 %v97, 4294901760
    %1837 = vmatprep.subr.mxu0 %v1836
    %v1838 = vand.u32 %v96, 4294901760
    %1839 = vmatpush1.xpose.msra.mxu0 %v1838
    %v1840 = vand.u32 %v99, 4294901760
    %1841 = vmatprep.subr.mxu0 %v1840
    %v1842 = vand.u32 %v98, 4294901760
    %1843 = vmatpush1.xpose.msra.mxu0 %v1842
    %v1844 = vand.u32 %v101, 4294901760
    %1845 = vmatprep.subr.mxu0 %v1844
    %v1846 = vand.u32 %v100, 4294901760
    %1847 = vmatpush1.xpose.msra.mxu0 %v1846
    %v1848 = vand.u32 %v103, 4294901760
    %1849 = vmatprep.subr.mxu0 %v1848
    %v1850 = vand.u32 %v102, 4294901760
    %1851 = vmatpush1.xpose.msra.mxu0 %v1850
    %v1852 = vand.u32 %v105, 4294901760
    %1853 = vmatprep.subr.mxu0 %v1852
    %v1854 = vand.u32 %v104, 4294901760
    %1855 = vmatpush1.xpose.msra.mxu0 %v1854
    %v1856 = vand.u32 %v107, 4294901760
    %1857 = vmatprep.subr.mxu0 %v1856
    %v1858 = vand.u32 %v106, 4294901760
    %1859 = vmatpush1.xpose.msra.mxu0 %v1858
    %v1860 = vand.u32 %v109, 4294901760
    %1861 = vmatprep.subr.mxu0 %v1860
    %v1862 = vand.u32 %v108, 4294901760
    %1863 = vmatpush1.xpose.msra.mxu0 %v1862
    %v1864 = vand.u32 %v111, 4294901760
    %1865 = vmatprep.subr.mxu0 %v1864
    %v1866 = vand.u32 %v110, 4294901760
    %1867 = vmatpush1.xpose.msra.mxu0 %v1866
    %v1868 = vand.u32 %v113, 4294901760
    %1869 = vmatprep.subr.mxu0 %v1868
    %v1870 = vand.u32 %v112, 4294901760
    %1871 = vmatpush1.xpose.msra.mxu0 %v1870
    %v1872 = vand.u32 %v115, 4294901760
    %1873 = vmatprep.subr.mxu0 %v1872
    %v1874 = vand.u32 %v114, 4294901760
    %1875 = vmatpush1.xpose.msra.mxu0 %v1874
    %1876 = vmatprep.subr.mxu0 0.0
    %1877 = vmatpush1.xpose.msra.mxu0 0.0
    %1878 = vmatprep.subr.mxu0 0.0
    %1879 = vmatpush1.xpose.msra.mxu0 0.0
    %1880 = vmatprep.subr.mxu0 0.0
    %1881 = vmatpush1.xpose.msra.mxu0 0.0
    %1882 = vmatprep.subr.mxu0 0.0
    %1883 = vmatpush1.xpose.msra.mxu0 0.0
    %1884 = vmatprep.subr.mxu0 0.0
    %1885 = vmatpush1.xpose.msra.mxu0 0.0
    %1886 = vmatprep.subr.mxu0 0.0
    %1887 = vmatpush1.xpose.msra.mxu0 0.0
    %1888 = vmatprep.subr.mxu0 0.0
    %1889 = vmatpush1.xpose.msra.mxu0 0.0
    %1890 = vmatprep.subr.mxu0 0.0
    %1891 = vmatpush1.xpose.msra.mxu0 0.0
    %1892 = vmatprep.subr.mxu0 0.0
    %1893 = vmatpush1.xpose.msra.mxu0 0.0
    %1894 = vmatprep.subr.mxu0 0.0
    %1895 = vmatpush1.xpose.msra.mxu0 0.0
    %1896 = vmatprep.subr.mxu0 0.0
    %1897 = vmatpush1.xpose.msra.mxu0 0.0
    %1898 = vmatprep.subr.mxu0 0.0
    %1899 = vmatpush1.xpose.msra.mxu0 0.0
    %1900 = vmatprep.subr.mxu0 0.0
    %1901 = vmatpush1.xpose.msra.mxu0 0.0
    %1902 = vmatprep.subr.mxu0 0.0
    %1903 = vmatpush1.xpose.msra.mxu0 0.0
    %1904 = vmatprep.subr.mxu0 0.0
    %1905 = vmatpush1.xpose.msra.mxu0 0.0
    %1906 = vmatprep.subr.mxu0 0.0
    %1907 = vmatpush1.xpose.msra.mxu0 0.0
    %v1908 = vand.u32 %v189, 4294901760
    %1909 = vmatprep.mubr.f32.mxu0 %v1908
    %v1910 = vand.u32 %v185, 4294901760
    %1911 = vmatmul.mubr.f32.gmra.mrb[0].mxu0 %v1910
    %v1912 = vpop.f32.mrb[0].mxu0
    %v1913 = vadd.f32 %v1809, %v1912
    %v1914 = vpop.f32.mrb[0].mxu0
    %1915 = vdwg.mxu0
    %v1916 = vand.u32 %v117, 4294901760
    %1917 = vmatprep.subr.mxu0 %v1916
    %v1918 = vand.u32 %v116, 4294901760
    %1919 = vmatpush1.xpose.msra.mxu0 %v1918
    %v1920 = vand.u32 %v119, 4294901760
    %1921 = vmatprep.subr.mxu0 %v1920
    %v1922 = vand.u32 %v118, 4294901760
    %1923 = vmatpush1.xpose.msra.mxu0 %v1922
    %v1924 = vand.u32 %v121, 4294901760
    %1925 = vmatprep.subr.mxu0 %v1924
    %v1926 = vand.u32 %v120, 4294901760
    %1927 = vmatpush1.xpose.msra.mxu0 %v1926
    %v1928 = vand.u32 %v123, 4294901760
    %1929 = vmatprep.subr.mxu0 %v1928
    %v1930 = vand.u32 %v122, 4294901760
    %1931 = vmatpush1.xpose.msra.mxu0 %v1930
    %v1932 = vand.u32 %v125, 4294901760
    %1933 = vmatprep.subr.mxu0 %v1932
    %v1934 = vand.u32 %v124, 4294901760
    %1935 = vmatpush1.xpose.msra.mxu0 %v1934
    %v1936 = vand.u32 %v127, 4294901760
    %1937 = vmatprep.subr.mxu0 %v1936
    %v1938 = vand.u32 %v126, 4294901760
    %1939 = vmatpush1.xpose.msra.mxu0 %v1938
    %v1940 = vand.u32 %v129, 4294901760
    %1941 = vmatprep.subr.mxu0 %v1940
    %v1942 = vand.u32 %v128, 4294901760
    %1943 = vmatpush1.xpose.msra.mxu0 %v1942
    %v1944 = vand.u32 %v131, 4294901760
    %1945 = vmatprep.subr.mxu0 %v1944
    %v1946 = vand.u32 %v130, 4294901760
    %1947 = vmatpush1.xpose.msra.mxu0 %v1946
    %v1948 = vand.u32 %v133, 4294901760
    %1949 = vmatprep.subr.mxu0 %v1948
    %v1950 = vand.u32 %v132, 4294901760
    %1951 = vmatpush1.xpose.msra.mxu0 %v1950
    %v1952 = vand.u32 %v135, 4294901760
    %1953 = vmatprep.subr.mxu0 %v1952
    %v1954 = vand.u32 %v134, 4294901760
    %1955 = vmatpush1.xpose.msra.mxu0 %v1954
    %v1956 = vand.u32 %v137, 4294901760
    %1957 = vmatprep.subr.mxu0 %v1956
    %v1958 = vand.u32 %v136, 4294901760
    %1959 = vmatpush1.xpose.msra.mxu0 %v1958
    %v1960 = vand.u32 %v139, 4294901760
    %1961 = vmatprep.subr.mxu0 %v1960
    %v1962 = vand.u32 %v138, 4294901760
    %1963 = vmatpush1.xpose.msra.mxu0 %v1962
    %v1964 = vand.u32 %v141, 4294901760
    %1965 = vmatprep.subr.mxu0 %v1964
    %v1966 = vand.u32 %v140, 4294901760
    %1967 = vmatpush1.xpose.msra.mxu0 %v1966
    %v1968 = vand.u32 %v143, 4294901760
    %1969 = vmatprep.subr.mxu0 %v1968
    %v1970 = vand.u32 %v142, 4294901760
    %1971 = vmatpush1.xpose.msra.mxu0 %v1970
    %v1972 = vand.u32 %v145, 4294901760
    %1973 = vmatprep.subr.mxu0 %v1972
    %v1974 = vand.u32 %v144, 4294901760
    %1975 = vmatpush1.xpose.msra.mxu0 %v1974
    %v1976 = vand.u32 %v147, 4294901760
    %1977 = vmatprep.subr.mxu0 %v1976
    %v1978 = vand.u32 %v146, 4294901760
    %1979 = vmatpush1.xpose.msra.mxu0 %v1978
    %1980 = vmatprep.subr.mxu0 0.0
    %1981 = vmatpush1.xpose.msra.mxu0 0.0
    %1982 = vmatprep.subr.mxu0 0.0
    %1983 = vmatpush1.xpose.msra.mxu0 0.0
    %1984 = vmatprep.subr.mxu0 0.0
    %1985 = vmatpush1.xpose.msra.mxu0 0.0
    %1986 = vmatprep.subr.mxu0 0.0
    %1987 = vmatpush1.xpose.msra.mxu0 0.0
    %1988 = vmatprep.subr.mxu0 0.0
    %1989 = vmatpush1.xpose.msra.mxu0 0.0
    %1990 = vmatprep.subr.mxu0 0.0
    %1991 = vmatpush1.xpose.msra.mxu0 0.0
    %1992 = vmatprep.subr.mxu0 0.0
    %1993 = vmatpush1.xpose.msra.mxu0 0.0
    %1994 = vmatprep.subr.mxu0 0.0
    %1995 = vmatpush1.xpose.msra.mxu0 0.0
    %1996 = vmatprep.subr.mxu0 0.0
    %1997 = vmatpush1.xpose.msra.mxu0 0.0
    %1998 = vmatprep.subr.mxu0 0.0
    %1999 = vmatpush1.xpose.msra.mxu0 0.0
    %2000 = vmatprep.subr.mxu0 0.0
    %2001 = vmatpush1.xpose.msra.mxu0 0.0
    %2002 = vmatprep.subr.mxu0 0.0
    %2003 = vmatpush1.xpose.msra.mxu0 0.0
    %2004 = vmatprep.subr.mxu0 0.0
    %2005 = vmatpush1.xpose.msra.mxu0 0.0
    %2006 = vmatprep.subr.mxu0 0.0
    %2007 = vmatpush1.xpose.msra.mxu0 0.0
    %2008 = vmatprep.subr.mxu0 0.0
    %2009 = vmatpush1.xpose.msra.mxu0 0.0
    %2010 = vmatprep.subr.mxu0 0.0
    %2011 = vmatpush1.xpose.msra.mxu0 0.0
    %v2012 = vand.u32 %v189, 4294901760
    %v2013 = vsub.f32 %v189, %v2012
    %v2014 = vand.u32 %v2013, 4294901760
    %v2015 = vsub.f32 %v2013, %v2014
    %v2016 = vand.u32 %v2015, 4294901760
    %2017 = vmatprep.mubr.f32.mxu0 %v2016
    %v2018 = vand.u32 %v185, 4294901760
    %v2019 = vsub.f32 %v185, %v2018
    %v2020 = vand.u32 %v2019, 4294901760
    %v2021 = vsub.f32 %v2019, %v2020
    %v2022 = vand.u32 %v2021, 4294901760
    %2023 = vmatmul.mubr.f32.gmra.mrb[0].mxu0 %v2022
    %v2024 = vpop.f32.mrb[0].mxu0
    %v2025 = vadd.f32 0.0, %v2024
    %v2026 = vpop.f32.mrb[0].mxu0
    %2027 = vdwg.mxu0
    %v2028 = vand.u32 %v117, 4294901760
    %v2029 = vsub.f32 %v117, %v2028
    %v2030 = vand.u32 %v2029, 4294901760
    %v2031 = vsub.f32 %v2029, %v2030
    %v2032 = vand.u32 %v2031, 4294901760
    %2033 = vmatprep.subr.mxu0 %v2032
    %v2034 = vand.u32 %v116, 4294901760
    %v2035 = vsub.f32 %v116, %v2034
    %v2036 = vand.u32 %v2035, 4294901760
    %v2037 = vsub.f32 %v2035, %v2036
    %v2038 = vand.u32 %v2037, 4294901760
    %2039 = vmatpush1.xpose.msra.mxu0 %v2038
    %v2040 = vand.u32 %v119, 4294901760
    %v2041 = vsub.f32 %v119, %v2040
    %v2042 = vand.u32 %v2041, 4294901760
    %v2043 = vsub.f32 %v2041, %v2042
    %v2044 = vand.u32 %v2043, 4294901760
    %2045 = vmatprep.subr.mxu0 %v2044
    %v2046 = vand.u32 %v118, 4294901760
    %v2047 = vsub.f32 %v118, %v2046
    %v2048 = vand.u32 %v2047, 4294901760
    %v2049 = vsub.f32 %v2047, %v2048
    %v2050 = vand.u32 %v2049, 4294901760
    %2051 = vmatpush1.xpose.msra.mxu0 %v2050
    %v2052 = vand.u32 %v121, 4294901760
    %v2053 = vsub.f32 %v121, %v2052
    %v2054 = vand.u32 %v2053, 4294901760
    %v2055 = vsub.f32 %v2053, %v2054
    %v2056 = vand.u32 %v2055, 4294901760
    %2057 = vmatprep.subr.mxu0 %v2056
    %v2058 = vand.u32 %v120, 4294901760
    %v2059 = vsub.f32 %v120, %v2058
    %v2060 = vand.u32 %v2059, 4294901760
    %v2061 = vsub.f32 %v2059, %v2060
    %v2062 = vand.u32 %v2061, 4294901760
    %2063 = vmatpush1.xpose.msra.mxu0 %v2062
    %v2064 = vand.u32 %v123, 4294901760
    %v2065 = vsub.f32 %v123, %v2064
    %v2066 = vand.u32 %v2065, 4294901760
    %v2067 = vsub.f32 %v2065, %v2066
    %v2068 = vand.u32 %v2067, 4294901760
    %2069 = vmatprep.subr.mxu0 %v2068
    %v2070 = vand.u32 %v122, 4294901760
    %v2071 = vsub.f32 %v122, %v2070
    %v2072 = vand.u32 %v2071, 4294901760
    %v2073 = vsub.f32 %v2071, %v2072
    %v2074 = vand.u32 %v2073, 4294901760
    %2075 = vmatpush1.xpose.msra.mxu0 %v2074
    %v2076 = vand.u32 %v125, 4294901760
    %v2077 = vsub.f32 %v125, %v2076
    %v2078 = vand.u32 %v2077, 4294901760
    %v2079 = vsub.f32 %v2077, %v2078
    %v2080 = vand.u32 %v2079, 4294901760
    %2081 = vmatprep.subr.mxu0 %v2080
    %v2082 = vand.u32 %v124, 4294901760
    %v2083 = vsub.f32 %v124, %v2082
    %v2084 = vand.u32 %v2083, 4294901760
    %v2085 = vsub.f32 %v2083, %v2084
    %v2086 = vand.u32 %v2085, 4294901760
    %2087 = vmatpush1.xpose.msra.mxu0 %v2086
    %v2088 = vand.u32 %v127, 4294901760
    %v2089 = vsub.f32 %v127, %v2088
    %v2090 = vand.u32 %v2089, 4294901760
    %v2091 = vsub.f32 %v2089, %v2090
    %v2092 = vand.u32 %v2091, 4294901760
    %2093 = vmatprep.subr.mxu0 %v2092
    %v2094 = vand.u32 %v126, 4294901760
    %v2095 = vsub.f32 %v126, %v2094
    %v2096 = vand.u32 %v2095, 4294901760
    %v2097 = vsub.f32 %v2095, %v2096
    %v2098 = vand.u32 %v2097, 4294901760
    %2099 = vmatpush1.xpose.msra.mxu0 %v2098
    %v2100 = vand.u32 %v129, 4294901760
    %v2101 = vsub.f32 %v129, %v2100
    %v2102 = vand.u32 %v2101, 4294901760
    %v2103 = vsub.f32 %v2101, %v2102
    %v2104 = vand.u32 %v2103, 4294901760
    %2105 = vmatprep.subr.mxu0 %v2104
    %v2106 = vand.u32 %v128, 4294901760
    %v2107 = vsub.f32 %v128, %v2106
    %v2108 = vand.u32 %v2107, 4294901760
    %v2109 = vsub.f32 %v2107, %v2108
    %v2110 = vand.u32 %v2109, 4294901760
    %2111 = vmatpush1.xpose.msra.mxu0 %v2110
    %v2112 = vand.u32 %v131, 4294901760
    %v2113 = vsub.f32 %v131, %v2112
    %v2114 = vand.u32 %v2113, 4294901760
    %v2115 = vsub.f32 %v2113, %v2114
    %v2116 = vand.u32 %v2115, 4294901760
    %2117 = vmatprep.subr.mxu0 %v2116
    %v2118 = vand.u32 %v130, 4294901760
    %v2119 = vsub.f32 %v130, %v2118
    %v2120 = vand.u32 %v2119, 4294901760
    %v2121 = vsub.f32 %v2119, %v2120
    %v2122 = vand.u32 %v2121, 4294901760
    %2123 = vmatpush1.xpose.msra.mxu0 %v2122
    %v2124 = vand.u32 %v133, 4294901760
    %v2125 = vsub.f32 %v133, %v2124
    %v2126 = vand.u32 %v2125, 4294901760
    %v2127 = vsub.f32 %v2125, %v2126
    %v2128 = vand.u32 %v2127, 4294901760
    %2129 = vmatprep.subr.mxu0 %v2128
    %v2130 = vand.u32 %v132, 4294901760
    %v2131 = vsub.f32 %v132, %v2130
    %v2132 = vand.u32 %v2131, 4294901760
    %v2133 = vsub.f32 %v2131, %v2132
    %v2134 = vand.u32 %v2133, 4294901760
    %2135 = vmatpush1.xpose.msra.mxu0 %v2134
    %v2136 = vand.u32 %v135, 4294901760
    %v2137 = vsub.f32 %v135, %v2136
    %v2138 = vand.u32 %v2137, 4294901760
    %v2139 = vsub.f32 %v2137, %v2138
    %v2140 = vand.u32 %v2139, 4294901760
    %2141 = vmatprep.subr.mxu0 %v2140
    %v2142 = vand.u32 %v134, 4294901760
    %v2143 = vsub.f32 %v134, %v2142
    %v2144 = vand.u32 %v2143, 4294901760
    %v2145 = vsub.f32 %v2143, %v2144
    %v2146 = vand.u32 %v2145, 4294901760
    %2147 = vmatpush1.xpose.msra.mxu0 %v2146
    %v2148 = vand.u32 %v137, 4294901760
    %v2149 = vsub.f32 %v137, %v2148
    %v2150 = vand.u32 %v2149, 4294901760
    %v2151 = vsub.f32 %v2149, %v2150
    %v2152 = vand.u32 %v2151, 4294901760
    %2153 = vmatprep.subr.mxu0 %v2152
    %v2154 = vand.u32 %v136, 4294901760
    %v2155 = vsub.f32 %v136, %v2154
    %v2156 = vand.u32 %v2155, 4294901760
    %v2157 = vsub.f32 %v2155, %v2156
    %v2158 = vand.u32 %v2157, 4294901760
    %2159 = vmatpush1.xpose.msra.mxu0 %v2158
    %v2160 = vand.u32 %v139, 4294901760
    %v2161 = vsub.f32 %v139, %v2160
    %v2162 = vand.u32 %v2161, 4294901760
    %v2163 = vsub.f32 %v2161, %v2162
    %v2164 = vand.u32 %v2163, 4294901760
    %2165 = vmatprep.subr.mxu0 %v2164
    %v2166 = vand.u32 %v138, 4294901760
    %v2167 = vsub.f32 %v138, %v2166
    %v2168 = vand.u32 %v2167, 4294901760
    %v2169 = vsub.f32 %v2167, %v2168
    %v2170 = vand.u32 %v2169, 4294901760
    %2171 = vmatpush1.xpose.msra.mxu0 %v2170
    %v2172 = vand.u32 %v141, 4294901760
    %v2173 = vsub.f32 %v141, %v2172
    %v2174 = vand.u32 %v2173, 4294901760
    %v2175 = vsub.f32 %v2173, %v2174
    %v2176 = vand.u32 %v2175, 4294901760
    %2177 = vmatprep.subr.mxu0 %v2176
    %v2178 = vand.u32 %v140, 4294901760
    %v2179 = vsub.f32 %v140, %v2178
    %v2180 = vand.u32 %v2179, 4294901760
    %v2181 = vsub.f32 %v2179, %v2180
    %v2182 = vand.u32 %v2181, 4294901760
    %2183 = vmatpush1.xpose.msra.mxu0 %v2182
    %v2184 = vand.u32 %v143, 4294901760
    %v2185 = vsub.f32 %v143, %v2184
    %v2186 = vand.u32 %v2185, 4294901760
    %v2187 = vsub.f32 %v2185, %v2186
    %v2188 = vand.u32 %v2187, 4294901760
    %2189 = vmatprep.subr.mxu0 %v2188
    %v2190 = vand.u32 %v142, 4294901760
    %v2191 = vsub.f32 %v142, %v2190
    %v2192 = vand.u32 %v2191, 4294901760
    %v2193 = vsub.f32 %v2191, %v2192
    %v2194 = vand.u32 %v2193, 4294901760
    %2195 = vmatpush1.xpose.msra.mxu0 %v2194
    %v2196 = vand.u32 %v145, 4294901760
    %v2197 = vsub.f32 %v145, %v2196
    %v2198 = vand.u32 %v2197, 4294901760
    %v2199 = vsub.f32 %v2197, %v2198
    %v2200 = vand.u32 %v2199, 4294901760
    %2201 = vmatprep.subr.mxu0 %v2200
    %v2202 = vand.u32 %v144, 4294901760
    %v2203 = vsub.f32 %v144, %v2202
    %v2204 = vand.u32 %v2203, 4294901760
    %v2205 = vsub.f32 %v2203, %v2204
    %v2206 = vand.u32 %v2205, 4294901760
    %2207 = vmatpush1.xpose.msra.mxu0 %v2206
    %v2208 = vand.u32 %v147, 4294901760
    %v2209 = vsub.f32 %v147, %v2208
    %v2210 = vand.u32 %v2209, 4294901760
    %v2211 = vsub.f32 %v2209, %v2210
    %v2212 = vand.u32 %v2211, 4294901760
    %2213 = vmatprep.subr.mxu0 %v2212
    %v2214 = vand.u32 %v146, 4294901760
    %v2215 = vsub.f32 %v146, %v2214
    %v2216 = vand.u32 %v2215, 4294901760
    %v2217 = vsub.f32 %v2215, %v2216
    %v2218 = vand.u32 %v2217, 4294901760
    %2219 = vmatpush1.xpose.msra.mxu0 %v2218
    %2220 = vmatprep.subr.mxu0 0.0
    %2221 = vmatpush1.xpose.msra.mxu0 0.0
    %2222 = vmatprep.subr.mxu0 0.0
    %2223 = vmatpush1.xpose.msra.mxu0 0.0
    %2224 = vmatprep.subr.mxu0 0.0
    %2225 = vmatpush1.xpose.msra.mxu0 0.0
    %2226 = vmatprep.subr.mxu0 0.0
    %2227 = vmatpush1.xpose.msra.mxu0 0.0
    %2228 = vmatprep.subr.mxu0 0.0
    %2229 = vmatpush1.xpose.msra.mxu0 0.0
    %2230 = vmatprep.subr.mxu0 0.0
    %2231 = vmatpush1.xpose.msra.mxu0 0.0
    %2232 = vmatprep.subr.mxu0 0.0
    %2233 = vmatpush1.xpose.msra.mxu0 0.0
    %2234 = vmatprep.subr.mxu0 0.0
    %2235 = vmatpush1.xpose.msra.mxu0 0.0
    %2236 = vmatprep.subr.mxu0 0.0
    %2237 = vmatpush1.xpose.msra.mxu0 0.0
    %2238 = vmatprep.subr.mxu0 0.0
    %2239 = vmatpush1.xpose.msra.mxu0 0.0
    %2240 = vmatprep.subr.mxu0 0.0
    %2241 = vmatpush1.xpose.msra.mxu0 0.0
    %2242 = vmatprep.subr.mxu0 0.0
    %2243 = vmatpush1.xpose.msra.mxu0 0.0
    %2244 = vmatprep.subr.mxu0 0.0
    %2245 = vmatpush1.xpose.msra.mxu0 0.0
    %2246 = vmatprep.subr.mxu0 0.0
    %2247 = vmatpush1.xpose.msra.mxu0 0.0
    %2248 = vmatprep.subr.mxu0 0.0
    %2249 = vmatpush1.xpose.msra.mxu0 0.0
    %2250 = vmatprep.subr.mxu0 0.0
    %2251 = vmatpush1.xpose.msra.mxu0 0.0
    %v2252 = vand.u32 %v189, 4294901760
    %2253 = vmatprep.mubr.f32.mxu0 %v2252
    %v2254 = vand.u32 %v185, 4294901760
    %2255 = vmatmul.mubr.f32.gmra.mrb[0].mxu0 %v2254
    %v2256 = vpop.f32.mrb[0].mxu0
    %v2257 = vadd.f32 %v2025, %v2256
    %v2258 = vpop.f32.mrb[0].mxu0
    %2259 = vdwg.mxu0
    %v2260 = vand.u32 %v117, 4294901760
    %v2261 = vsub.f32 %v117, %v2260
    %2262 = vmatprep.subr.mxu0 %v2261
    %v2263 = vand.u32 %v116, 4294901760
    %v2264 = vsub.f32 %v116, %v2263
    %2265 = vmatpush1.xpose.msra.mxu0 %v2264
    %v2266 = vand.u32 %v119, 4294901760
    %v2267 = vsub.f32 %v119, %v2266
    %2268 = vmatprep.subr.mxu0 %v2267
    %v2269 = vand.u32 %v118, 4294901760
    %v2270 = vsub.f32 %v118, %v2269
    %2271 = vmatpush1.xpose.msra.mxu0 %v2270
    %v2272 = vand.u32 %v121, 4294901760
    %v2273 = vsub.f32 %v121, %v2272
    %2274 = vmatprep.subr.mxu0 %v2273
    %v2275 = vand.u32 %v120, 4294901760
    %v2276 = vsub.f32 %v120, %v2275
    %2277 = vmatpush1.xpose.msra.mxu0 %v2276
    %v2278 = vand.u32 %v123, 4294901760
    %v2279 = vsub.f32 %v123, %v2278
    %2280 = vmatprep.subr.mxu0 %v2279
    %v2281 = vand.u32 %v122, 4294901760
    %v2282 = vsub.f32 %v122, %v2281
    %2283 = vmatpush1.xpose.msra.mxu0 %v2282
    %v2284 = vand.u32 %v125, 4294901760
    %v2285 = vsub.f32 %v125, %v2284
    %2286 = vmatprep.subr.mxu0 %v2285
    %v2287 = vand.u32 %v124, 4294901760
    %v2288 = vsub.f32 %v124, %v2287
    %2289 = vmatpush1.xpose.msra.mxu0 %v2288
    %v2290 = vand.u32 %v127, 4294901760
    %v2291 = vsub.f32 %v127, %v2290
    %2292 = vmatprep.subr.mxu0 %v2291
    %v2293 = vand.u32 %v126, 4294901760
    %v2294 = vsub.f32 %v126, %v2293
    %2295 = vmatpush1.xpose.msra.mxu0 %v2294
    %v2296 = vand.u32 %v129, 4294901760
    %v2297 = vsub.f32 %v129, %v2296
    %2298 = vmatprep.subr.mxu0 %v2297
    %v2299 = vand.u32 %v128, 4294901760
    %v2300 = vsub.f32 %v128, %v2299
    %2301 = vmatpush1.xpose.msra.mxu0 %v2300
    %v2302 = vand.u32 %v131, 4294901760
    %v2303 = vsub.f32 %v131, %v2302
    %2304 = vmatprep.subr.mxu0 %v2303
    %v2305 = vand.u32 %v130, 4294901760
    %v2306 = vsub.f32 %v130, %v2305
    %2307 = vmatpush1.xpose.msra.mxu0 %v2306
    %v2308 = vand.u32 %v133, 4294901760
    %v2309 = vsub.f32 %v133, %v2308
    %2310 = vmatprep.subr.mxu0 %v2309
    %v2311 = vand.u32 %v132, 4294901760
    %v2312 = vsub.f32 %v132, %v2311
    %2313 = vmatpush1.xpose.msra.mxu0 %v2312
    %v2314 = vand.u32 %v135, 4294901760
    %v2315 = vsub.f32 %v135, %v2314
    %2316 = vmatprep.subr.mxu0 %v2315
    %v2317 = vand.u32 %v134, 4294901760
    %v2318 = vsub.f32 %v134, %v2317
    %2319 = vmatpush1.xpose.msra.mxu0 %v2318
    %v2320 = vand.u32 %v137, 4294901760
    %v2321 = vsub.f32 %v137, %v2320
    %2322 = vmatprep.subr.mxu0 %v2321
    %v2323 = vand.u32 %v136, 4294901760
    %v2324 = vsub.f32 %v136, %v2323
    %2325 = vmatpush1.xpose.msra.mxu0 %v2324
    %v2326 = vand.u32 %v139, 4294901760
    %v2327 = vsub.f32 %v139, %v2326
    %2328 = vmatprep.subr.mxu0 %v2327
    %v2329 = vand.u32 %v138, 4294901760
    %v2330 = vsub.f32 %v138, %v2329
    %2331 = vmatpush1.xpose.msra.mxu0 %v2330
    %v2332 = vand.u32 %v141, 4294901760
    %v2333 = vsub.f32 %v141, %v2332
    %2334 = vmatprep.subr.mxu0 %v2333
    %v2335 = vand.u32 %v140, 4294901760
    %v2336 = vsub.f32 %v140, %v2335
    %2337 = vmatpush1.xpose.msra.mxu0 %v2336
    %v2338 = vand.u32 %v143, 4294901760
    %v2339 = vsub.f32 %v143, %v2338
    %2340 = vmatprep.subr.mxu0 %v2339
    %v2341 = vand.u32 %v142, 4294901760
    %v2342 = vsub.f32 %v142, %v2341
    %2343 = vmatpush1.xpose.msra.mxu0 %v2342
    %v2344 = vand.u32 %v145, 4294901760
    %v2345 = vsub.f32 %v145, %v2344
    %2346 = vmatprep.subr.mxu0 %v2345
    %v2347 = vand.u32 %v144, 4294901760
    %v2348 = vsub.f32 %v144, %v2347
    %2349 = vmatpush1.xpose.msra.mxu0 %v2348
    %v2350 = vand.u32 %v147, 4294901760
    %v2351 = vsub.f32 %v147, %v2350
    %2352 = vmatprep.subr.mxu0 %v2351
    %v2353 = vand.u32 %v146, 4294901760
    %v2354 = vsub.f32 %v146, %v2353
    %2355 = vmatpush1.xpose.msra.mxu0 %v2354
    %2356 = vmatprep.subr.mxu0 0.0
    %2357 = vmatpush1.xpose.msra.mxu0 0.0
    %2358 = vmatprep.subr.mxu0 0.0
    %2359 = vmatpush1.xpose.msra.mxu0 0.0
    %2360 = vmatprep.subr.mxu0 0.0
    %2361 = vmatpush1.xpose.msra.mxu0 0.0
    %2362 = vmatprep.subr.mxu0 0.0
    %2363 = vmatpush1.xpose.msra.mxu0 0.0
    %2364 = vmatprep.subr.mxu0 0.0
    %2365 = vmatpush1.xpose.msra.mxu0 0.0
    %2366 = vmatprep.subr.mxu0 0.0
    %2367 = vmatpush1.xpose.msra.mxu0 0.0
    %2368 = vmatprep.subr.mxu0 0.0
    %2369 = vmatpush1.xpose.msra.mxu0 0.0
    %2370 = vmatprep.subr.mxu0 0.0
    %2371 = vmatpush1.xpose.msra.mxu0 0.0
    %2372 = vmatprep.subr.mxu0 0.0
    %2373 = vmatpush1.xpose.msra.mxu0 0.0
    %2374 = vmatprep.subr.mxu0 0.0
    %2375 = vmatpush1.xpose.msra.mxu0 0.0
    %2376 = vmatprep.subr.mxu0 0.0
    %2377 = vmatpush1.xpose.msra.mxu0 0.0
    %2378 = vmatprep.subr.mxu0 0.0
    %2379 = vmatpush1.xpose.msra.mxu0 0.0
    %2380 = vmatprep.subr.mxu0 0.0
    %2381 = vmatpush1.xpose.msra.mxu0 0.0
    %2382 = vmatprep.subr.mxu0 0.0
    %2383 = vmatpush1.xpose.msra.mxu0 0.0
    %2384 = vmatprep.subr.mxu0 0.0
    %2385 = vmatpush1.xpose.msra.mxu0 0.0
    %2386 = vmatprep.subr.mxu0 0.0
    %2387 = vmatpush1.xpose.msra.mxu0 0.0
    %v2388 = vand.u32 %v189, 4294901760
    %v2389 = vsub.f32 %v189, %v2388
    %2390 = vmatprep.mubr.f32.mxu0 %v2389
    %v2391 = vand.u32 %v185, 4294901760
    %v2392 = vsub.f32 %v185, %v2391
    %2393 = vmatmul.mubr.f32.gmra.mrb[0].mxu0 %v2392
    %v2394 = vpop.f32.mrb[0].mxu0
    %v2395 = vadd.f32 %v2257, %v2394
    %v2396 = vpop.f32.mrb[0].mxu0
    %2397 = vdwg.mxu0
    %v2398 = vand.u32 %v117, 4294901760
    %2399 = vmatprep.subr.mxu0 %v2398
    %v2400 = vand.u32 %v116, 4294901760
    %2401 = vmatpush1.xpose.msra.mxu0 %v2400
    %v2402 = vand.u32 %v119, 4294901760
    %2403 = vmatprep.subr.mxu0 %v2402
    %v2404 = vand.u32 %v118, 4294901760
    %2405 = vmatpush1.xpose.msra.mxu0 %v2404
    %v2406 = vand.u32 %v121, 4294901760
    %2407 = vmatprep.subr.mxu0 %v2406
    %v2408 = vand.u32 %v120, 4294901760
    %2409 = vmatpush1.xpose.msra.mxu0 %v2408
    %v2410 = vand.u32 %v123, 4294901760
    %2411 = vmatprep.subr.mxu0 %v2410
    %v2412 = vand.u32 %v122, 4294901760
    %2413 = vmatpush1.xpose.msra.mxu0 %v2412
    %v2414 = vand.u32 %v125, 4294901760
    %2415 = vmatprep.subr.mxu0 %v2414
    %v2416 = vand.u32 %v124, 4294901760
    %2417 = vmatpush1.xpose.msra.mxu0 %v2416
    %v2418 = vand.u32 %v127, 4294901760
    %2419 = vmatprep.subr.mxu0 %v2418
    %v2420 = vand.u32 %v126, 4294901760
    %2421 = vmatpush1.xpose.msra.mxu0 %v2420
    %v2422 = vand.u32 %v129, 4294901760
    %2423 = vmatprep.subr.mxu0 %v2422
    %v2424 = vand.u32 %v128, 4294901760
    %2425 = vmatpush1.xpose.msra.mxu0 %v2424
    %v2426 = vand.u32 %v131, 4294901760
    %2427 = vmatprep.subr.mxu0 %v2426
    %v2428 = vand.u32 %v130, 4294901760
    %2429 = vmatpush1.xpose.msra.mxu0 %v2428
    %v2430 = vand.u32 %v133, 4294901760
    %2431 = vmatprep.subr.mxu0 %v2430
    %v2432 = vand.u32 %v132, 4294901760
    %2433 = vmatpush1.xpose.msra.mxu0 %v2432
    %v2434 = vand.u32 %v135, 4294901760
    %2435 = vmatprep.subr.mxu0 %v2434
    %v2436 = vand.u32 %v134, 4294901760
    %2437 = vmatpush1.xpose.msra.mxu0 %v2436
    %v2438 = vand.u32 %v137, 4294901760
    %2439 = vmatprep.subr.mxu0 %v2438
    %v2440 = vand.u32 %v136, 4294901760
    %2441 = vmatpush1.xpose.msra.mxu0 %v2440
    %v2442 = vand.u32 %v139, 4294901760
    %2443 = vmatprep.subr.mxu0 %v2442
    %v2444 = vand.u32 %v138, 4294901760
    %2445 = vmatpush1.xpose.msra.mxu0 %v2444
    %v2446 = vand.u32 %v141, 4294901760
    %2447 = vmatprep.subr.mxu0 %v2446
    %v2448 = vand.u32 %v140, 4294901760
    %2449 = vmatpush1.xpose.msra.mxu0 %v2448
    %v2450 = vand.u32 %v143, 4294901760
    %2451 = vmatprep.subr.mxu0 %v2450
    %v2452 = vand.u32 %v142, 4294901760
    %2453 = vmatpush1.xpose.msra.mxu0 %v2452
    %v2454 = vand.u32 %v145, 4294901760
    %2455 = vmatprep.subr.mxu0 %v2454
    %v2456 = vand.u32 %v144, 4294901760
    %2457 = vmatpush1.xpose.msra.mxu0 %v2456
    %v2458 = vand.u32 %v147, 4294901760
    %2459 = vmatprep.subr.mxu0 %v2458
    %v2460 = vand.u32 %v146, 4294901760
    %2461 = vmatpush1.xpose.msra.mxu0 %v2460
    %2462 = vmatprep.subr.mxu0 0.0
    %2463 = vmatpush1.xpose.msra.mxu0 0.0
    %2464 = vmatprep.subr.mxu0 0.0
    %2465 = vmatpush1.xpose.msra.mxu0 0.0
    %2466 = vmatprep.subr.mxu0 0.0
    %2467 = vmatpush1.xpose.msra.mxu0 0.0
    %2468 = vmatprep.subr.mxu0 0.0
    %2469 = vmatpush1.xpose.msra.mxu0 0.0
    %2470 = vmatprep.subr.mxu0 0.0
    %2471 = vmatpush1.xpose.msra.mxu0 0.0
    %2472 = vmatprep.subr.mxu0 0.0
    %2473 = vmatpush1.xpose.msra.mxu0 0.0
    %2474 = vmatprep.subr.mxu0 0.0
    %2475 = vmatpush1.xpose.msra.mxu0 0.0
    %2476 = vmatprep.subr.mxu0 0.0
    %2477 = vmatpush1.xpose.msra.mxu0 0.0
    %2478 = vmatprep.subr.mxu0 0.0
    %2479 = vmatpush1.xpose.msra.mxu0 0.0
    %2480 = vmatprep.subr.mxu0 0.0
    %2481 = vmatpush1.xpose.msra.mxu0 0.0
    %2482 = vmatprep.subr.mxu0 0.0
    %2483 = vmatpush1.xpose.msra.mxu0 0.0
    %2484 = vmatprep.subr.mxu0 0.0
    %2485 = vmatpush1.xpose.msra.mxu0 0.0
    %2486 = vmatprep.subr.mxu0 0.0
    %2487 = vmatpush1.xpose.msra.mxu0 0.0
    %2488 = vmatprep.subr.mxu0 0.0
    %2489 = vmatpush1.xpose.msra.mxu0 0.0
    %2490 = vmatprep.subr.mxu0 0.0
    %2491 = vmatpush1.xpose.msra.mxu0 0.0
    %2492 = vmatprep.subr.mxu0 0.0
    %2493 = vmatpush1.xpose.msra.mxu0 0.0
    %v2494 = vand.u32 %v189, 4294901760
    %v2495 = vsub.f32 %v189, %v2494
    %v2496 = vand.u32 %v2495, 4294901760
    %2497 = vmatprep.mubr.f32.mxu0 %v2496
    %v2498 = vand.u32 %v185, 4294901760
    %v2499 = vsub.f32 %v185, %v2498
    %v2500 = vand.u32 %v2499, 4294901760
    %2501 = vmatmul.mubr.f32.gmra.mrb[0].mxu0 %v2500
    %v2502 = vpop.f32.mrb[0].mxu0
    %v2503 = vadd.f32 %v2395, %v2502
    %v2504 = vpop.f32.mrb[0].mxu0
    %2505 = vdwg.mxu0
    %v2506 = vand.u32 %v117, 4294901760
    %v2507 = vsub.f32 %v117, %v2506
    %v2508 = vand.u32 %v2507, 4294901760
    %2509 = vmatprep.subr.mxu0 %v2508
    %v2510 = vand.u32 %v116, 4294901760
    %v2511 = vsub.f32 %v116, %v2510
    %v2512 = vand.u32 %v2511, 4294901760
    %2513 = vmatpush1.xpose.msra.mxu0 %v2512
    %v2514 = vand.u32 %v119, 4294901760
    %v2515 = vsub.f32 %v119, %v2514
    %v2516 = vand.u32 %v2515, 4294901760
    %2517 = vmatprep.subr.mxu0 %v2516
    %v2518 = vand.u32 %v118, 4294901760
    %v2519 = vsub.f32 %v118, %v2518
    %v2520 = vand.u32 %v2519, 4294901760
    %2521 = vmatpush1.xpose.msra.mxu0 %v2520
    %v2522 = vand.u32 %v121, 4294901760
    %v2523 = vsub.f32 %v121, %v2522
    %v2524 = vand.u32 %v2523, 4294901760
    %2525 = vmatprep.subr.mxu0 %v2524
    %v2526 = vand.u32 %v120, 4294901760
    %v2527 = vsub.f32 %v120, %v2526
    %v2528 = vand.u32 %v2527, 4294901760
    %2529 = vmatpush1.xpose.msra.mxu0 %v2528
    %v2530 = vand.u32 %v123, 4294901760
    %v2531 = vsub.f32 %v123, %v2530
    %v2532 = vand.u32 %v2531, 4294901760
    %2533 = vmatprep.subr.mxu0 %v2532
    %v2534 = vand.u32 %v122, 4294901760
    %v2535 = vsub.f32 %v122, %v2534
    %v2536 = vand.u32 %v2535, 4294901760
    %2537 = vmatpush1.xpose.msra.mxu0 %v2536
    %v2538 = vand.u32 %v125, 4294901760
    %v2539 = vsub.f32 %v125, %v2538
    %v2540 = vand.u32 %v2539, 4294901760
    %2541 = vmatprep.subr.mxu0 %v2540
    %v2542 = vand.u32 %v124, 4294901760
    %v2543 = vsub.f32 %v124, %v2542
    %v2544 = vand.u32 %v2543, 4294901760
    %2545 = vmatpush1.xpose.msra.mxu0 %v2544
    %v2546 = vand.u32 %v127, 4294901760
    %v2547 = vsub.f32 %v127, %v2546
    %v2548 = vand.u32 %v2547, 4294901760
    %2549 = vmatprep.subr.mxu0 %v2548
    %v2550 = vand.u32 %v126, 4294901760
    %v2551 = vsub.f32 %v126, %v2550
    %v2552 = vand.u32 %v2551, 4294901760
    %2553 = vmatpush1.xpose.msra.mxu0 %v2552
    %v2554 = vand.u32 %v129, 4294901760
    %v2555 = vsub.f32 %v129, %v2554
    %v2556 = vand.u32 %v2555, 4294901760
    %2557 = vmatprep.subr.mxu0 %v2556
    %v2558 = vand.u32 %v128, 4294901760
    %v2559 = vsub.f32 %v128, %v2558
    %v2560 = vand.u32 %v2559, 4294901760
    %2561 = vmatpush1.xpose.msra.mxu0 %v2560
    %v2562 = vand.u32 %v131, 4294901760
    %v2563 = vsub.f32 %v131, %v2562
    %v2564 = vand.u32 %v2563, 4294901760
    %2565 = vmatprep.subr.mxu0 %v2564
    %v2566 = vand.u32 %v130, 4294901760
    %v2567 = vsub.f32 %v130, %v2566
    %v2568 = vand.u32 %v2567, 4294901760
    %2569 = vmatpush1.xpose.msra.mxu0 %v2568
    %v2570 = vand.u32 %v133, 4294901760
    %v2571 = vsub.f32 %v133, %v2570
    %v2572 = vand.u32 %v2571, 4294901760
    %2573 = vmatprep.subr.mxu0 %v2572
    %v2574 = vand.u32 %v132, 4294901760
    %v2575 = vsub.f32 %v132, %v2574
    %v2576 = vand.u32 %v2575, 4294901760
    %2577 = vmatpush1.xpose.msra.mxu0 %v2576
    %v2578 = vand.u32 %v135, 4294901760
    %v2579 = vsub.f32 %v135, %v2578
    %v2580 = vand.u32 %v2579, 4294901760
    %2581 = vmatprep.subr.mxu0 %v2580
    %v2582 = vand.u32 %v134, 4294901760
    %v2583 = vsub.f32 %v134, %v2582
    %v2584 = vand.u32 %v2583, 4294901760
    %2585 = vmatpush1.xpose.msra.mxu0 %v2584
    %v2586 = vand.u32 %v137, 4294901760
    %v2587 = vsub.f32 %v137, %v2586
    %v2588 = vand.u32 %v2587, 4294901760
    %2589 = vmatprep.subr.mxu0 %v2588
    %v2590 = vand.u32 %v136, 4294901760
    %v2591 = vsub.f32 %v136, %v2590
    %v2592 = vand.u32 %v2591, 4294901760
    %2593 = vmatpush1.xpose.msra.mxu0 %v2592
    %v2594 = vand.u32 %v139, 4294901760
    %v2595 = vsub.f32 %v139, %v2594
    %v2596 = vand.u32 %v2595, 4294901760
    %2597 = vmatprep.subr.mxu0 %v2596
    %v2598 = vand.u32 %v138, 4294901760
    %v2599 = vsub.f32 %v138, %v2598
    %v2600 = vand.u32 %v2599, 4294901760
    %2601 = vmatpush1.xpose.msra.mxu0 %v2600
    %v2602 = vand.u32 %v141, 4294901760
    %v2603 = vsub.f32 %v141, %v2602
    %v2604 = vand.u32 %v2603, 4294901760
    %2605 = vmatprep.subr.mxu0 %v2604
    %v2606 = vand.u32 %v140, 4294901760
    %v2607 = vsub.f32 %v140, %v2606
    %v2608 = vand.u32 %v2607, 4294901760
    %2609 = vmatpush1.xpose.msra.mxu0 %v2608
    %v2610 = vand.u32 %v143, 4294901760
    %v2611 = vsub.f32 %v143, %v2610
    %v2612 = vand.u32 %v2611, 4294901760
    %2613 = vmatprep.subr.mxu0 %v2612
    %v2614 = vand.u32 %v142, 4294901760
    %v2615 = vsub.f32 %v142, %v2614
    %v2616 = vand.u32 %v2615, 4294901760
    %2617 = vmatpush1.xpose.msra.mxu0 %v2616
    %v2618 = vand.u32 %v145, 4294901760
    %v2619 = vsub.f32 %v145, %v2618
    %v2620 = vand.u32 %v2619, 4294901760
    %2621 = vmatprep.subr.mxu0 %v2620
    %v2622 = vand.u32 %v144, 4294901760
    %v2623 = vsub.f32 %v144, %v2622
    %v2624 = vand.u32 %v2623, 4294901760
    %2625 = vmatpush1.xpose.msra.mxu0 %v2624
    %v2626 = vand.u32 %v147, 4294901760
    %v2627 = vsub.f32 %v147, %v2626
    %v2628 = vand.u32 %v2627, 4294901760
    %2629 = vmatprep.subr.mxu0 %v2628
    %v2630 = vand.u32 %v146, 4294901760
    %v2631 = vsub.f32 %v146, %v2630
    %v2632 = vand.u32 %v2631, 4294901760
    %2633 = vmatpush1.xpose.msra.mxu0 %v2632
    %2634 = vmatprep.subr.mxu0 0.0
    %2635 = vmatpush1.xpose.msra.mxu0 0.0
    %2636 = vmatprep.subr.mxu0 0.0
    %2637 = vmatpush1.xpose.msra.mxu0 0.0
    %2638 = vmatprep.subr.mxu0 0.0
    %2639 = vmatpush1.xpose.msra.mxu0 0.0
    %2640 = vmatprep.subr.mxu0 0.0
    %2641 = vmatpush1.xpose.msra.mxu0 0.0
    %2642 = vmatprep.subr.mxu0 0.0
    %2643 = vmatpush1.xpose.msra.mxu0 0.0
    %2644 = vmatprep.subr.mxu0 0.0
    %2645 = vmatpush1.xpose.msra.mxu0 0.0
    %2646 = vmatprep.subr.mxu0 0.0
    %2647 = vmatpush1.xpose.msra.mxu0 0.0
    %2648 = vmatprep.subr.mxu0 0.0
    %2649 = vmatpush1.xpose.msra.mxu0 0.0
    %2650 = vmatprep.subr.mxu0 0.0
    %2651 = vmatpush1.xpose.msra.mxu0 0.0
    %2652 = vmatprep.subr.mxu0 0.0
    %2653 = vmatpush1.xpose.msra.mxu0 0.0
    %2654 = vmatprep.subr.mxu0 0.0
    %2655 = vmatpush1.xpose.msra.mxu0 0.0
    %2656 = vmatprep.subr.mxu0 0.0
    %2657 = vmatpush1.xpose.msra.mxu0 0.0
    %2658 = vmatprep.subr.mxu0 0.0
    %2659 = vmatpush1.xpose.msra.mxu0 0.0
    %2660 = vmatprep.subr.mxu0 0.0
    %2661 = vmatpush1.xpose.msra.mxu0 0.0
    %2662 = vmatprep.subr.mxu0 0.0
    %2663 = vmatpush1.xpose.msra.mxu0 0.0
    %2664 = vmatprep.subr.mxu0 0.0
    %2665 = vmatpush1.xpose.msra.mxu0 0.0
    %v2666 = vand.u32 %v189, 4294901760
    %2667 = vmatprep.mubr.f32.mxu0 %v2666
    %v2668 = vand.u32 %v185, 4294901760
    %2669 = vmatmul.mubr.f32.gmra.mrb[0].mxu0 %v2668
    %v2670 = vpop.f32.mrb[0].mxu0
    %v2671 = vadd.f32 %v2503, %v2670
    %v2672 = vpop.f32.mrb[0].mxu0
    %2673 = vdwg.mxu0
    %v2674 = vand.u32 %v117, 4294901760
    %2675 = vmatprep.subr.mxu0 %v2674
    %v2676 = vand.u32 %v116, 4294901760
    %2677 = vmatpush1.xpose.msra.mxu0 %v2676
    %v2678 = vand.u32 %v119, 4294901760
    %2679 = vmatprep.subr.mxu0 %v2678
    %v2680 = vand.u32 %v118, 4294901760
    %2681 = vmatpush1.xpose.msra.mxu0 %v2680
    %v2682 = vand.u32 %v121, 4294901760
    %2683 = vmatprep.subr.mxu0 %v2682
    %v2684 = vand.u32 %v120, 4294901760
    %2685 = vmatpush1.xpose.msra.mxu0 %v2684
    %v2686 = vand.u32 %v123, 4294901760
    %2687 = vmatprep.subr.mxu0 %v2686
    %v2688 = vand.u32 %v122, 4294901760
    %2689 = vmatpush1.xpose.msra.mxu0 %v2688
    %v2690 = vand.u32 %v125, 4294901760
    %2691 = vmatprep.subr.mxu0 %v2690
    %v2692 = vand.u32 %v124, 4294901760
    %2693 = vmatpush1.xpose.msra.mxu0 %v2692
    %v2694 = vand.u32 %v127, 4294901760
    %2695 = vmatprep.subr.mxu0 %v2694
    %v2696 = vand.u32 %v126, 4294901760
    %2697 = vmatpush1.xpose.msra.mxu0 %v2696
    %v2698 = vand.u32 %v129, 4294901760
    %2699 = vmatprep.subr.mxu0 %v2698
    %v2700 = vand.u32 %v128, 4294901760
    %2701 = vmatpush1.xpose.msra.mxu0 %v2700
    %v2702 = vand.u32 %v131, 4294901760
    %2703 = vmatprep.subr.mxu0 %v2702
    %v2704 = vand.u32 %v130, 4294901760
    %2705 = vmatpush1.xpose.msra.mxu0 %v2704
    %v2706 = vand.u32 %v133, 4294901760
    %2707 = vmatprep.subr.mxu0 %v2706
    %v2708 = vand.u32 %v132, 4294901760
    %2709 = vmatpush1.xpose.msra.mxu0 %v2708
    %v2710 = vand.u32 %v135, 4294901760
    %2711 = vmatprep.subr.mxu0 %v2710
    %v2712 = vand.u32 %v134, 4294901760
    %2713 = vmatpush1.xpose.msra.mxu0 %v2712
    %v2714 = vand.u32 %v137, 4294901760
    %2715 = vmatprep.subr.mxu0 %v2714
    %v2716 = vand.u32 %v136, 4294901760
    %2717 = vmatpush1.xpose.msra.mxu0 %v2716
    %v2718 = vand.u32 %v139, 4294901760
    %2719 = vmatprep.subr.mxu0 %v2718
    %v2720 = vand.u32 %v138, 4294901760
    %2721 = vmatpush1.xpose.msra.mxu0 %v2720
    %v2722 = vand.u32 %v141, 4294901760
    %2723 = vmatprep.subr.mxu0 %v2722
    %v2724 = vand.u32 %v140, 4294901760
    %2725 = vmatpush1.xpose.msra.mxu0 %v2724
    %v2726 = vand.u32 %v143, 4294901760
    %2727 = vmatprep.subr.mxu0 %v2726
    %v2728 = vand.u32 %v142, 4294901760
    %2729 = vmatpush1.xpose.msra.mxu0 %v2728
    %v2730 = vand.u32 %v145, 4294901760
    %2731 = vmatprep.subr.mxu0 %v2730
    %v2732 = vand.u32 %v144, 4294901760
    %2733 = vmatpush1.xpose.msra.mxu0 %v2732
    %v2734 = vand.u32 %v147, 4294901760
    %2735 = vmatprep.subr.mxu0 %v2734
    %v2736 = vand.u32 %v146, 4294901760
    %2737 = vmatpush1.xpose.msra.mxu0 %v2736
    %2738 = vmatprep.subr.mxu0 0.0
    %2739 = vmatpush1.xpose.msra.mxu0 0.0
    %2740 = vmatprep.subr.mxu0 0.0
    %2741 = vmatpush1.xpose.msra.mxu0 0.0
    %2742 = vmatprep.subr.mxu0 0.0
    %2743 = vmatpush1.xpose.msra.mxu0 0.0
    %2744 = vmatprep.subr.mxu0 0.0
    %2745 = vmatpush1.xpose.msra.mxu0 0.0
    %2746 = vmatprep.subr.mxu0 0.0
    %2747 = vmatpush1.xpose.msra.mxu0 0.0
    %2748 = vmatprep.subr.mxu0 0.0
    %2749 = vmatpush1.xpose.msra.mxu0 0.0
    %2750 = vmatprep.subr.mxu0 0.0
    %2751 = vmatpush1.xpose.msra.mxu0 0.0
    %2752 = vmatprep.subr.mxu0 0.0
    %2753 = vmatpush1.xpose.msra.mxu0 0.0
    %2754 = vmatprep.subr.mxu0 0.0
    %2755 = vmatpush1.xpose.msra.mxu0 0.0
    %2756 = vmatprep.subr.mxu0 0.0
    %2757 = vmatpush1.xpose.msra.mxu0 0.0
    %2758 = vmatprep.subr.mxu0 0.0
    %2759 = vmatpush1.xpose.msra.mxu0 0.0
    %2760 = vmatprep.subr.mxu0 0.0
    %2761 = vmatpush1.xpose.msra.mxu0 0.0
    %2762 = vmatprep.subr.mxu0 0.0
    %2763 = vmatpush1.xpose.msra.mxu0 0.0
    %2764 = vmatprep.subr.mxu0 0.0
    %2765 = vmatpush1.xpose.msra.mxu0 0.0
    %2766 = vmatprep.subr.mxu0 0.0
    %2767 = vmatpush1.xpose.msra.mxu0 0.0
    %2768 = vmatprep.subr.mxu0 0.0
    %2769 = vmatpush1.xpose.msra.mxu0 0.0
    %v2770 = vand.u32 %v189, 4294901760
    %2771 = vmatprep.mubr.f32.mxu0 %v2770
    %v2772 = vand.u32 %v185, 4294901760
    %2773 = vmatmul.mubr.f32.gmra.mrb[0].mxu0 %v2772
    %v2774 = vpop.f32.mrb[0].mxu0
    %v2775 = vadd.f32 %v2671, %v2774
    %v2776 = vpop.f32.mrb[0].mxu0
    %2777 = vdwg.mxu0
    %v2778 = vand.u32 %v149, 4294901760
    %2779 = vmatprep.subr.mxu0 %v2778
    %v2780 = vand.u32 %v148, 4294901760
    %2781 = vmatpush1.xpose.msra.mxu0 %v2780
    %v2782 = vand.u32 %v151, 4294901760
    %2783 = vmatprep.subr.mxu0 %v2782
    %v2784 = vand.u32 %v150, 4294901760
    %2785 = vmatpush1.xpose.msra.mxu0 %v2784
    %v2786 = vand.u32 %v153, 4294901760
    %2787 = vmatprep.subr.mxu0 %v2786
    %v2788 = vand.u32 %v152, 4294901760
    %2789 = vmatpush1.xpose.msra.mxu0 %v2788
    %v2790 = vand.u32 %v155, 4294901760
    %2791 = vmatprep.subr.mxu0 %v2790
    %v2792 = vand.u32 %v154, 4294901760
    %2793 = vmatpush1.xpose.msra.mxu0 %v2792
    %v2794 = vand.u32 %v157, 4294901760
    %2795 = vmatprep.subr.mxu0 %v2794
    %v2796 = vand.u32 %v156, 4294901760
    %2797 = vmatpush1.xpose.msra.mxu0 %v2796
    %v2798 = vand.u32 %v159, 4294901760
    %2799 = vmatprep.subr.mxu0 %v2798
    %v2800 = vand.u32 %v158, 4294901760
    %2801 = vmatpush1.xpose.msra.mxu0 %v2800
    %v2802 = vand.u32 %v161, 4294901760
    %2803 = vmatprep.subr.mxu0 %v2802
    %v2804 = vand.u32 %v160, 4294901760
    %2805 = vmatpush1.xpose.msra.mxu0 %v2804
    %v2806 = vand.u32 %v163, 4294901760
    %2807 = vmatprep.subr.mxu0 %v2806
    %v2808 = vand.u32 %v162, 4294901760
    %2809 = vmatpush1.xpose.msra.mxu0 %v2808
    %v2810 = vand.u32 %v165, 4294901760
    %2811 = vmatprep.subr.mxu0 %v2810
    %v2812 = vand.u32 %v164, 4294901760
    %2813 = vmatpush1.xpose.msra.mxu0 %v2812
    %v2814 = vand.u32 %v167, 4294901760
    %2815 = vmatprep.subr.mxu0 %v2814
    %v2816 = vand.u32 %v166, 4294901760
    %2817 = vmatpush1.xpose.msra.mxu0 %v2816
    %v2818 = vand.u32 %v169, 4294901760
    %2819 = vmatprep.subr.mxu0 %v2818
    %v2820 = vand.u32 %v168, 4294901760
    %2821 = vmatpush1.xpose.msra.mxu0 %v2820
    %v2822 = vand.u32 %v171, 4294901760
    %2823 = vmatprep.subr.mxu0 %v2822
    %v2824 = vand.u32 %v170, 4294901760
    %2825 = vmatpush1.xpose.msra.mxu0 %v2824
    %v2826 = vand.u32 %v173, 4294901760
    %2827 = vmatprep.subr.mxu0 %v2826
    %v2828 = vand.u32 %v172, 4294901760
    %2829 = vmatpush1.xpose.msra.mxu0 %v2828
    %v2830 = vand.u32 %v175, 4294901760
    %2831 = vmatprep.subr.mxu0 %v2830
    %v2832 = vand.u32 %v174, 4294901760
    %2833 = vmatpush1.xpose.msra.mxu0 %v2832
    %v2834 = vand.u32 %v177, 4294901760
    %2835 = vmatprep.subr.mxu0 %v2834
    %v2836 = vand.u32 %v176, 4294901760
    %2837 = vmatpush1.xpose.msra.mxu0 %v2836
    %v2838 = vand.u32 %v179, 4294901760
    %2839 = vmatprep.subr.mxu0 %v2838
    %v2840 = vand.u32 %v178, 4294901760
    %2841 = vmatpush1.xpose.msra.mxu0 %v2840
    %2842 = vmatprep.subr.mxu0 0.0
    %2843 = vmatpush1.xpose.msra.mxu0 0.0
    %2844 = vmatprep.subr.mxu0 0.0
    %2845 = vmatpush1.xpose.msra.mxu0 0.0
    %2846 = vmatprep.subr.mxu0 0.0
    %2847 = vmatpush1.xpose.msra.mxu0 0.0
    %2848 = vmatprep.subr.mxu0 0.0
    %2849 = vmatpush1.xpose.msra.mxu0 0.0
    %2850 = vmatprep.subr.mxu0 0.0
    %2851 = vmatpush1.xpose.msra.mxu0 0.0
    %2852 = vmatprep.subr.mxu0 0.0
    %2853 = vmatpush1.xpose.msra.mxu0 0.0
    %2854 = vmatprep.subr.mxu0 0.0
    %2855 = vmatpush1.xpose.msra.mxu0 0.0
    %2856 = vmatprep.subr.mxu0 0.0
    %2857 = vmatpush1.xpose.msra.mxu0 0.0
    %2858 = vmatprep.subr.mxu0 0.0
    %2859 = vmatpush1.xpose.msra.mxu0 0.0
    %2860 = vmatprep.subr.mxu0 0.0
    %2861 = vmatpush1.xpose.msra.mxu0 0.0
    %2862 = vmatprep.subr.mxu0 0.0
    %2863 = vmatpush1.xpose.msra.mxu0 0.0
    %2864 = vmatprep.subr.mxu0 0.0
    %2865 = vmatpush1.xpose.msra.mxu0 0.0
    %2866 = vmatprep.subr.mxu0 0.0
    %2867 = vmatpush1.xpose.msra.mxu0 0.0
    %2868 = vmatprep.subr.mxu0 0.0
    %2869 = vmatpush1.xpose.msra.mxu0 0.0
    %2870 = vmatprep.subr.mxu0 0.0
    %2871 = vmatpush1.xpose.msra.mxu0 0.0
    %2872 = vmatprep.subr.mxu0 0.0
    %2873 = vmatpush1.xpose.msra.mxu0 0.0
    %v2874 = vand.u32 %v189, 4294901760
    %v2875 = vsub.f32 %v189, %v2874
    %v2876 = vand.u32 %v2875, 4294901760
    %v2877 = vsub.f32 %v2875, %v2876
    %v2878 = vand.u32 %v2877, 4294901760
    %2879 = vmatprep.mubr.f32.mxu0 %v2878
    %v2880 = vand.u32 %v185, 4294901760
    %v2881 = vsub.f32 %v185, %v2880
    %v2882 = vand.u32 %v2881, 4294901760
    %v2883 = vsub.f32 %v2881, %v2882
    %v2884 = vand.u32 %v2883, 4294901760
    %2885 = vmatmul.mubr.f32.gmra.mrb[0].mxu0 %v2884
    %v2886 = vpop.f32.mrb[0].mxu0
    %v2887 = vadd.f32 0.0, %v2886
    %v2888 = vpop.f32.mrb[0].mxu0
    %2889 = vdwg.mxu0
    %v2890 = vand.u32 %v149, 4294901760
    %v2891 = vsub.f32 %v149, %v2890
    %v2892 = vand.u32 %v2891, 4294901760
    %v2893 = vsub.f32 %v2891, %v2892
    %v2894 = vand.u32 %v2893, 4294901760
    %2895 = vmatprep.subr.mxu0 %v2894
    %v2896 = vand.u32 %v148, 4294901760
    %v2897 = vsub.f32 %v148, %v2896
    %v2898 = vand.u32 %v2897, 4294901760
    %v2899 = vsub.f32 %v2897, %v2898
    %v2900 = vand.u32 %v2899, 4294901760
    %2901 = vmatpush1.xpose.msra.mxu0 %v2900
    %v2902 = vand.u32 %v151, 4294901760
    %v2903 = vsub.f32 %v151, %v2902
    %v2904 = vand.u32 %v2903, 4294901760
    %v2905 = vsub.f32 %v2903, %v2904
    %v2906 = vand.u32 %v2905, 4294901760
    %2907 = vmatprep.subr.mxu0 %v2906
    %v2908 = vand.u32 %v150, 4294901760
    %v2909 = vsub.f32 %v150, %v2908
    %v2910 = vand.u32 %v2909, 4294901760
    %v2911 = vsub.f32 %v2909, %v2910
    %v2912 = vand.u32 %v2911, 4294901760
    %2913 = vmatpush1.xpose.msra.mxu0 %v2912
    %v2914 = vand.u32 %v153, 4294901760
    %v2915 = vsub.f32 %v153, %v2914
    %v2916 = vand.u32 %v2915, 4294901760
    %v2917 = vsub.f32 %v2915, %v2916
    %v2918 = vand.u32 %v2917, 4294901760
    %2919 = vmatprep.subr.mxu0 %v2918
    %v2920 = vand.u32 %v152, 4294901760
    %v2921 = vsub.f32 %v152, %v2920
    %v2922 = vand.u32 %v2921, 4294901760
    %v2923 = vsub.f32 %v2921, %v2922
    %v2924 = vand.u32 %v2923, 4294901760
    %2925 = vmatpush1.xpose.msra.mxu0 %v2924
    %v2926 = vand.u32 %v155, 4294901760
    %v2927 = vsub.f32 %v155, %v2926
    %v2928 = vand.u32 %v2927, 4294901760
    %v2929 = vsub.f32 %v2927, %v2928
    %v2930 = vand.u32 %v2929, 4294901760
    %2931 = vmatprep.subr.mxu0 %v2930
    %v2932 = vand.u32 %v154, 4294901760
    %v2933 = vsub.f32 %v154, %v2932
    %v2934 = vand.u32 %v2933, 4294901760
    %v2935 = vsub.f32 %v2933, %v2934
    %v2936 = vand.u32 %v2935, 4294901760
    %2937 = vmatpush1.xpose.msra.mxu0 %v2936
    %v2938 = vand.u32 %v157, 4294901760
    %v2939 = vsub.f32 %v157, %v2938
    %v2940 = vand.u32 %v2939, 4294901760
    %v2941 = vsub.f32 %v2939, %v2940
    %v2942 = vand.u32 %v2941, 4294901760
    %2943 = vmatprep.subr.mxu0 %v2942
    %v2944 = vand.u32 %v156, 4294901760
    %v2945 = vsub.f32 %v156, %v2944
    %v2946 = vand.u32 %v2945, 4294901760
    %v2947 = vsub.f32 %v2945, %v2946
    %v2948 = vand.u32 %v2947, 4294901760
    %2949 = vmatpush1.xpose.msra.mxu0 %v2948
    %v2950 = vand.u32 %v159, 4294901760
    %v2951 = vsub.f32 %v159, %v2950
    %v2952 = vand.u32 %v2951, 4294901760
    %v2953 = vsub.f32 %v2951, %v2952
    %v2954 = vand.u32 %v2953, 4294901760
    %2955 = vmatprep.subr.mxu0 %v2954
    %v2956 = vand.u32 %v158, 4294901760
    %v2957 = vsub.f32 %v158, %v2956
    %v2958 = vand.u32 %v2957, 4294901760
    %v2959 = vsub.f32 %v2957, %v2958
    %v2960 = vand.u32 %v2959, 4294901760
    %2961 = vmatpush1.xpose.msra.mxu0 %v2960
    %v2962 = vand.u32 %v161, 4294901760
    %v2963 = vsub.f32 %v161, %v2962
    %v2964 = vand.u32 %v2963, 4294901760
    %v2965 = vsub.f32 %v2963, %v2964
    %v2966 = vand.u32 %v2965, 4294901760
    %2967 = vmatprep.subr.mxu0 %v2966
    %v2968 = vand.u32 %v160, 4294901760
    %v2969 = vsub.f32 %v160, %v2968
    %v2970 = vand.u32 %v2969, 4294901760
    %v2971 = vsub.f32 %v2969, %v2970
    %v2972 = vand.u32 %v2971, 4294901760
    %2973 = vmatpush1.xpose.msra.mxu0 %v2972
    %v2974 = vand.u32 %v163, 4294901760
    %v2975 = vsub.f32 %v163, %v2974
    %v2976 = vand.u32 %v2975, 4294901760
    %v2977 = vsub.f32 %v2975, %v2976
    %v2978 = vand.u32 %v2977, 4294901760
    %2979 = vmatprep.subr.mxu0 %v2978
    %v2980 = vand.u32 %v162, 4294901760
    %v2981 = vsub.f32 %v162, %v2980
    %v2982 = vand.u32 %v2981, 4294901760
    %v2983 = vsub.f32 %v2981, %v2982
    %v2984 = vand.u32 %v2983, 4294901760
    %2985 = vmatpush1.xpose.msra.mxu0 %v2984
    %v2986 = vand.u32 %v165, 4294901760
    %v2987 = vsub.f32 %v165, %v2986
    %v2988 = vand.u32 %v2987, 4294901760
    %v2989 = vsub.f32 %v2987, %v2988
    %v2990 = vand.u32 %v2989, 4294901760
    %2991 = vmatprep.subr.mxu0 %v2990
    %v2992 = vand.u32 %v164, 4294901760
    %v2993 = vsub.f32 %v164, %v2992
    %v2994 = vand.u32 %v2993, 4294901760
    %v2995 = vsub.f32 %v2993, %v2994
    %v2996 = vand.u32 %v2995, 4294901760
    %2997 = vmatpush1.xpose.msra.mxu0 %v2996
    %v2998 = vand.u32 %v167, 4294901760
    %v2999 = vsub.f32 %v167, %v2998
    %v3000 = vand.u32 %v2999, 4294901760
    %v3001 = vsub.f32 %v2999, %v3000
    %v3002 = vand.u32 %v3001, 4294901760
    %3003 = vmatprep.subr.mxu0 %v3002
    %v3004 = vand.u32 %v166, 4294901760
    %v3005 = vsub.f32 %v166, %v3004
    %v3006 = vand.u32 %v3005, 4294901760
    %v3007 = vsub.f32 %v3005, %v3006
    %v3008 = vand.u32 %v3007, 4294901760
    %3009 = vmatpush1.xpose.msra.mxu0 %v3008
    %v3010 = vand.u32 %v169, 4294901760
    %v3011 = vsub.f32 %v169, %v3010
    %v3012 = vand.u32 %v3011, 4294901760
    %v3013 = vsub.f32 %v3011, %v3012
    %v3014 = vand.u32 %v3013, 4294901760
    %3015 = vmatprep.subr.mxu0 %v3014
    %v3016 = vand.u32 %v168, 4294901760
    %v3017 = vsub.f32 %v168, %v3016
    %v3018 = vand.u32 %v3017, 4294901760
    %v3019 = vsub.f32 %v3017, %v3018
    %v3020 = vand.u32 %v3019, 4294901760
    %3021 = vmatpush1.xpose.msra.mxu0 %v3020
    %v3022 = vand.u32 %v171, 4294901760
    %v3023 = vsub.f32 %v171, %v3022
    %v3024 = vand.u32 %v3023, 4294901760
    %v3025 = vsub.f32 %v3023, %v3024
    %v3026 = vand.u32 %v3025, 4294901760
    %3027 = vmatprep.subr.mxu0 %v3026
    %v3028 = vand.u32 %v170, 4294901760
    %v3029 = vsub.f32 %v170, %v3028
    %v3030 = vand.u32 %v3029, 4294901760
    %v3031 = vsub.f32 %v3029, %v3030
    %v3032 = vand.u32 %v3031, 4294901760
    %3033 = vmatpush1.xpose.msra.mxu0 %v3032
    %v3034 = vand.u32 %v173, 4294901760
    %v3035 = vsub.f32 %v173, %v3034
    %v3036 = vand.u32 %v3035, 4294901760
    %v3037 = vsub.f32 %v3035, %v3036
    %v3038 = vand.u32 %v3037, 4294901760
    %3039 = vmatprep.subr.mxu0 %v3038
    %v3040 = vand.u32 %v172, 4294901760
    %v3041 = vsub.f32 %v172, %v3040
    %v3042 = vand.u32 %v3041, 4294901760
    %v3043 = vsub.f32 %v3041, %v3042
    %v3044 = vand.u32 %v3043, 4294901760
    %3045 = vmatpush1.xpose.msra.mxu0 %v3044
    %v3046 = vand.u32 %v175, 4294901760
    %v3047 = vsub.f32 %v175, %v3046
    %v3048 = vand.u32 %v3047, 4294901760
    %v3049 = vsub.f32 %v3047, %v3048
    %v3050 = vand.u32 %v3049, 4294901760
    %3051 = vmatprep.subr.mxu0 %v3050
    %v3052 = vand.u32 %v174, 4294901760
    %v3053 = vsub.f32 %v174, %v3052
    %v3054 = vand.u32 %v3053, 4294901760
    %v3055 = vsub.f32 %v3053, %v3054
    %v3056 = vand.u32 %v3055, 4294901760
    %3057 = vmatpush1.xpose.msra.mxu0 %v3056
    %v3058 = vand.u32 %v177, 4294901760
    %v3059 = vsub.f32 %v177, %v3058
    %v3060 = vand.u32 %v3059, 4294901760
    %v3061 = vsub.f32 %v3059, %v3060
    %v3062 = vand.u32 %v3061, 4294901760
    %3063 = vmatprep.subr.mxu0 %v3062
    %v3064 = vand.u32 %v176, 4294901760
    %v3065 = vsub.f32 %v176, %v3064
    %v3066 = vand.u32 %v3065, 4294901760
    %v3067 = vsub.f32 %v3065, %v3066
    %v3068 = vand.u32 %v3067, 4294901760
    %3069 = vmatpush1.xpose.msra.mxu0 %v3068
    %v3070 = vand.u32 %v179, 4294901760
    %v3071 = vsub.f32 %v179, %v3070
    %v3072 = vand.u32 %v3071, 4294901760
    %v3073 = vsub.f32 %v3071, %v3072
    %v3074 = vand.u32 %v3073, 4294901760
    %3075 = vmatprep.subr.mxu0 %v3074
    %v3076 = vand.u32 %v178, 4294901760
    %v3077 = vsub.f32 %v178, %v3076
    %v3078 = vand.u32 %v3077, 4294901760
    %v3079 = vsub.f32 %v3077, %v3078
    %v3080 = vand.u32 %v3079, 4294901760
    %3081 = vmatpush1.xpose.msra.mxu0 %v3080
    %3082 = vmatprep.subr.mxu0 0.0
    %3083 = vmatpush1.xpose.msra.mxu0 0.0
    %3084 = vmatprep.subr.mxu0 0.0
    %3085 = vmatpush1.xpose.msra.mxu0 0.0
    %3086 = vmatprep.subr.mxu0 0.0
    %3087 = vmatpush1.xpose.msra.mxu0 0.0
    %3088 = vmatprep.subr.mxu0 0.0
    %3089 = vmatpush1.xpose.msra.mxu0 0.0
    %3090 = vmatprep.subr.mxu0 0.0
    %3091 = vmatpush1.xpose.msra.mxu0 0.0
    %3092 = vmatprep.subr.mxu0 0.0
    %3093 = vmatpush1.xpose.msra.mxu0 0.0
    %3094 = vmatprep.subr.mxu0 0.0
    %3095 = vmatpush1.xpose.msra.mxu0 0.0
    %3096 = vmatprep.subr.mxu0 0.0
    %3097 = vmatpush1.xpose.msra.mxu0 0.0
    %3098 = vmatprep.subr.mxu0 0.0
    %3099 = vmatpush1.xpose.msra.mxu0 0.0
    %3100 = vmatprep.subr.mxu0 0.0
    %3101 = vmatpush1.xpose.msra.mxu0 0.0
    %3102 = vmatprep.subr.mxu0 0.0
    %3103 = vmatpush1.xpose.msra.mxu0 0.0
    %3104 = vmatprep.subr.mxu0 0.0
    %3105 = vmatpush1.xpose.msra.mxu0 0.0
    %3106 = vmatprep.subr.mxu0 0.0
    %3107 = vmatpush1.xpose.msra.mxu0 0.0
    %3108 = vmatprep.subr.mxu0 0.0
    %3109 = vmatpush1.xpose.msra.mxu0 0.0
    %3110 = vmatprep.subr.mxu0 0.0
    %3111 = vmatpush1.xpose.msra.mxu0 0.0
    %3112 = vmatprep.subr.mxu0 0.0
    %3113 = vmatpush1.xpose.msra.mxu0 0.0
    %v3114 = vand.u32 %v189, 4294901760
    %3115 = vmatprep.mubr.f32.mxu0 %v3114
    %v3116 = vand.u32 %v185, 4294901760
    %3117 = vmatmul.mubr.f32.gmra.mrb[0].mxu0 %v3116
    %v3118 = vpop.f32.mrb[0].mxu0
    %v3119 = vadd.f32 %v2887, %v3118
    %v3120 = vpop.f32.mrb[0].mxu0
    %3121 = vdwg.mxu0
    %v3122 = vand.u32 %v149, 4294901760
    %v3123 = vsub.f32 %v149, %v3122
    %3124 = vmatprep.subr.mxu0 %v3123
    %v3125 = vand.u32 %v148, 4294901760
    %v3126 = vsub.f32 %v148, %v3125
    %3127 = vmatpush1.xpose.msra.mxu0 %v3126
    %v3128 = vand.u32 %v151, 4294901760
    %v3129 = vsub.f32 %v151, %v3128
    %3130 = vmatprep.subr.mxu0 %v3129
    %v3131 = vand.u32 %v150, 4294901760
    %v3132 = vsub.f32 %v150, %v3131
    %3133 = vmatpush1.xpose.msra.mxu0 %v3132
    %v3134 = vand.u32 %v153, 4294901760
    %v3135 = vsub.f32 %v153, %v3134
    %3136 = vmatprep.subr.mxu0 %v3135
    %v3137 = vand.u32 %v152, 4294901760
    %v3138 = vsub.f32 %v152, %v3137
    %3139 = vmatpush1.xpose.msra.mxu0 %v3138
    %v3140 = vand.u32 %v155, 4294901760
    %v3141 = vsub.f32 %v155, %v3140
    %3142 = vmatprep.subr.mxu0 %v3141
    %v3143 = vand.u32 %v154, 4294901760
    %v3144 = vsub.f32 %v154, %v3143
    %3145 = vmatpush1.xpose.msra.mxu0 %v3144
    %v3146 = vand.u32 %v157, 4294901760
    %v3147 = vsub.f32 %v157, %v3146
    %3148 = vmatprep.subr.mxu0 %v3147
    %v3149 = vand.u32 %v156, 4294901760
    %v3150 = vsub.f32 %v156, %v3149
    %3151 = vmatpush1.xpose.msra.mxu0 %v3150
    %v3152 = vand.u32 %v159, 4294901760
    %v3153 = vsub.f32 %v159, %v3152
    %3154 = vmatprep.subr.mxu0 %v3153
    %v3155 = vand.u32 %v158, 4294901760
    %v3156 = vsub.f32 %v158, %v3155
    %3157 = vmatpush1.xpose.msra.mxu0 %v3156
    %v3158 = vand.u32 %v161, 4294901760
    %v3159 = vsub.f32 %v161, %v3158
    %3160 = vmatprep.subr.mxu0 %v3159
    %v3161 = vand.u32 %v160, 4294901760
    %v3162 = vsub.f32 %v160, %v3161
    %3163 = vmatpush1.xpose.msra.mxu0 %v3162
    %v3164 = vand.u32 %v163, 4294901760
    %v3165 = vsub.f32 %v163, %v3164
    %3166 = vmatprep.subr.mxu0 %v3165
    %v3167 = vand.u32 %v162, 4294901760
    %v3168 = vsub.f32 %v162, %v3167
    %3169 = vmatpush1.xpose.msra.mxu0 %v3168
    %v3170 = vand.u32 %v165, 4294901760
    %v3171 = vsub.f32 %v165, %v3170
    %3172 = vmatprep.subr.mxu0 %v3171
    %v3173 = vand.u32 %v164, 4294901760
    %v3174 = vsub.f32 %v164, %v3173
    %3175 = vmatpush1.xpose.msra.mxu0 %v3174
    %v3176 = vand.u32 %v167, 4294901760
    %v3177 = vsub.f32 %v167, %v3176
    %3178 = vmatprep.subr.mxu0 %v3177
    %v3179 = vand.u32 %v166, 4294901760
    %v3180 = vsub.f32 %v166, %v3179
    %3181 = vmatpush1.xpose.msra.mxu0 %v3180
    %v3182 = vand.u32 %v169, 4294901760
    %v3183 = vsub.f32 %v169, %v3182
    %3184 = vmatprep.subr.mxu0 %v3183
    %v3185 = vand.u32 %v168, 4294901760
    %v3186 = vsub.f32 %v168, %v3185
    %3187 = vmatpush1.xpose.msra.mxu0 %v3186
    %v3188 = vand.u32 %v171, 4294901760
    %v3189 = vsub.f32 %v171, %v3188
    %3190 = vmatprep.subr.mxu0 %v3189
    %v3191 = vand.u32 %v170, 4294901760
    %v3192 = vsub.f32 %v170, %v3191
    %3193 = vmatpush1.xpose.msra.mxu0 %v3192
    %v3194 = vand.u32 %v173, 4294901760
    %v3195 = vsub.f32 %v173, %v3194
    %3196 = vmatprep.subr.mxu0 %v3195
    %v3197 = vand.u32 %v172, 4294901760
    %v3198 = vsub.f32 %v172, %v3197
    %3199 = vmatpush1.xpose.msra.mxu0 %v3198
    %v3200 = vand.u32 %v175, 4294901760
    %v3201 = vsub.f32 %v175, %v3200
    %3202 = vmatprep.subr.mxu0 %v3201
    %v3203 = vand.u32 %v174, 4294901760
    %v3204 = vsub.f32 %v174, %v3203
    %3205 = vmatpush1.xpose.msra.mxu0 %v3204
    %v3206 = vand.u32 %v177, 4294901760
    %v3207 = vsub.f32 %v177, %v3206
    %3208 = vmatprep.subr.mxu0 %v3207
    %v3209 = vand.u32 %v176, 4294901760
    %v3210 = vsub.f32 %v176, %v3209
    %3211 = vmatpush1.xpose.msra.mxu0 %v3210
    %v3212 = vand.u32 %v179, 4294901760
    %v3213 = vsub.f32 %v179, %v3212
    %3214 = vmatprep.subr.mxu0 %v3213
    %v3215 = vand.u32 %v178, 4294901760
    %v3216 = vsub.f32 %v178, %v3215
    %3217 = vmatpush1.xpose.msra.mxu0 %v3216
    %3218 = vmatprep.subr.mxu0 0.0
    %3219 = vmatpush1.xpose.msra.mxu0 0.0
    %3220 = vmatprep.subr.mxu0 0.0
    %3221 = vmatpush1.xpose.msra.mxu0 0.0
    %3222 = vmatprep.subr.mxu0 0.0
    %3223 = vmatpush1.xpose.msra.mxu0 0.0
    %3224 = vmatprep.subr.mxu0 0.0
    %3225 = vmatpush1.xpose.msra.mxu0 0.0
    %3226 = vmatprep.subr.mxu0 0.0
    %3227 = vmatpush1.xpose.msra.mxu0 0.0
    %3228 = vmatprep.subr.mxu0 0.0
    %3229 = vmatpush1.xpose.msra.mxu0 0.0
    %3230 = vmatprep.subr.mxu0 0.0
    %3231 = vmatpush1.xpose.msra.mxu0 0.0
    %3232 = vmatprep.subr.mxu0 0.0
    %3233 = vmatpush1.xpose.msra.mxu0 0.0
    %3234 = vmatprep.subr.mxu0 0.0
    %3235 = vmatpush1.xpose.msra.mxu0 0.0
    %3236 = vmatprep.subr.mxu0 0.0
    %3237 = vmatpush1.xpose.msra.mxu0 0.0
    %3238 = vmatprep.subr.mxu0 0.0
    %3239 = vmatpush1.xpose.msra.mxu0 0.0
    %3240 = vmatprep.subr.mxu0 0.0
    %3241 = vmatpush1.xpose.msra.mxu0 0.0
    %3242 = vmatprep.subr.mxu0 0.0
    %3243 = vmatpush1.xpose.msra.mxu0 0.0
    %3244 = vmatprep.subr.mxu0 0.0
    %3245 = vmatpush1.xpose.msra.mxu0 0.0
    %3246 = vmatprep.subr.mxu0 0.0
    %3247 = vmatpush1.xpose.msra.mxu0 0.0
    %3248 = vmatprep.subr.mxu0 0.0
    %3249 = vmatpush1.xpose.msra.mxu0 0.0
    %v3250 = vand.u32 %v189, 4294901760
    %v3251 = vsub.f32 %v189, %v3250
    %3252 = vmatprep.mubr.f32.mxu0 %v3251
    %v3253 = vand.u32 %v185, 4294901760
    %v3254 = vsub.f32 %v185, %v3253
    %3255 = vmatmul.mubr.f32.gmra.mrb[0].mxu0 %v3254
    %v3256 = vpop.f32.mrb[0].mxu0
    %v3257 = vadd.f32 %v3119, %v3256
    %v3258 = vpop.f32.mrb[0].mxu0
    %3259 = vdwg.mxu0
    %v3260 = vand.u32 %v149, 4294901760
    %3261 = vmatprep.subr.mxu0 %v3260
    %v3262 = vand.u32 %v148, 4294901760
    %3263 = vmatpush1.xpose.msra.mxu0 %v3262
    %v3264 = vand.u32 %v151, 4294901760
    %3265 = vmatprep.subr.mxu0 %v3264
    %v3266 = vand.u32 %v150, 4294901760
    %3267 = vmatpush1.xpose.msra.mxu0 %v3266
    %v3268 = vand.u32 %v153, 4294901760
    %3269 = vmatprep.subr.mxu0 %v3268
    %v3270 = vand.u32 %v152, 4294901760
    %3271 = vmatpush1.xpose.msra.mxu0 %v3270
    %v3272 = vand.u32 %v155, 4294901760
    %3273 = vmatprep.subr.mxu0 %v3272
    %v3274 = vand.u32 %v154, 4294901760
    %3275 = vmatpush1.xpose.msra.mxu0 %v3274
    %v3276 = vand.u32 %v157, 4294901760
    %3277 = vmatprep.subr.mxu0 %v3276
    %v3278 = vand.u32 %v156, 4294901760
    %3279 = vmatpush1.xpose.msra.mxu0 %v3278
    %v3280 = vand.u32 %v159, 4294901760
    %3281 = vmatprep.subr.mxu0 %v3280
    %v3282 = vand.u32 %v158, 4294901760
    %3283 = vmatpush1.xpose.msra.mxu0 %v3282
    %v3284 = vand.u32 %v161, 4294901760
    %3285 = vmatprep.subr.mxu0 %v3284
    %v3286 = vand.u32 %v160, 4294901760
    %3287 = vmatpush1.xpose.msra.mxu0 %v3286
    %v3288 = vand.u32 %v163, 4294901760
    %3289 = vmatprep.subr.mxu0 %v3288
    %v3290 = vand.u32 %v162, 4294901760
    %3291 = vmatpush1.xpose.msra.mxu0 %v3290
    %v3292 = vand.u32 %v165, 4294901760
    %3293 = vmatprep.subr.mxu0 %v3292
    %v3294 = vand.u32 %v164, 4294901760
    %3295 = vmatpush1.xpose.msra.mxu0 %v3294
    %v3296 = vand.u32 %v167, 4294901760
    %3297 = vmatprep.subr.mxu0 %v3296
    %v3298 = vand.u32 %v166, 4294901760
    %3299 = vmatpush1.xpose.msra.mxu0 %v3298
    %v3300 = vand.u32 %v169, 4294901760
    %3301 = vmatprep.subr.mxu0 %v3300
    %v3302 = vand.u32 %v168, 4294901760
    %3303 = vmatpush1.xpose.msra.mxu0 %v3302
    %v3304 = vand.u32 %v171, 4294901760
    %3305 = vmatprep.subr.mxu0 %v3304
    %v3306 = vand.u32 %v170, 4294901760
    %3307 = vmatpush1.xpose.msra.mxu0 %v3306
    %v3308 = vand.u32 %v173, 4294901760
    %3309 = vmatprep.subr.mxu0 %v3308
    %v3310 = vand.u32 %v172, 4294901760
    %3311 = vmatpush1.xpose.msra.mxu0 %v3310
    %v3312 = vand.u32 %v175, 4294901760
    %3313 = vmatprep.subr.mxu0 %v3312
    %v3314 = vand.u32 %v174, 4294901760
    %3315 = vmatpush1.xpose.msra.mxu0 %v3314
    %v3316 = vand.u32 %v177, 4294901760
    %3317 = vmatprep.subr.mxu0 %v3316
    %v3318 = vand.u32 %v176, 4294901760
    %3319 = vmatpush1.xpose.msra.mxu0 %v3318
    %v3320 = vand.u32 %v179, 4294901760
    %3321 = vmatprep.subr.mxu0 %v3320
    %v3322 = vand.u32 %v178, 4294901760
    %3323 = vmatpush1.xpose.msra.mxu0 %v3322
    %3324 = vmatprep.subr.mxu0 0.0
    %3325 = vmatpush1.xpose.msra.mxu0 0.0
    %3326 = vmatprep.subr.mxu0 0.0
    %3327 = vmatpush1.xpose.msra.mxu0 0.0
    %3328 = vmatprep.subr.mxu0 0.0
    %3329 = vmatpush1.xpose.msra.mxu0 0.0
    %3330 = vmatprep.subr.mxu0 0.0
    %3331 = vmatpush1.xpose.msra.mxu0 0.0
    %3332 = vmatprep.subr.mxu0 0.0
    %3333 = vmatpush1.xpose.msra.mxu0 0.0
    %3334 = vmatprep.subr.mxu0 0.0
    %3335 = vmatpush1.xpose.msra.mxu0 0.0
    %3336 = vmatprep.subr.mxu0 0.0
    %3337 = vmatpush1.xpose.msra.mxu0 0.0
    %3338 = vmatprep.subr.mxu0 0.0
    %3339 = vmatpush1.xpose.msra.mxu0 0.0
    %3340 = vmatprep.subr.mxu0 0.0
    %3341 = vmatpush1.xpose.msra.mxu0 0.0
    %3342 = vmatprep.subr.mxu0 0.0
    %3343 = vmatpush1.xpose.msra.mxu0 0.0
    %3344 = vmatprep.subr.mxu0 0.0
    %3345 = vmatpush1.xpose.msra.mxu0 0.0
    %3346 = vmatprep.subr.mxu0 0.0
    %3347 = vmatpush1.xpose.msra.mxu0 0.0
    %3348 = vmatprep.subr.mxu0 0.0
    %3349 = vmatpush1.xpose.msra.mxu0 0.0
    %3350 = vmatprep.subr.mxu0 0.0
    %3351 = vmatpush1.xpose.msra.mxu0 0.0
    %3352 = vmatprep.subr.mxu0 0.0
    %3353 = vmatpush1.xpose.msra.mxu0 0.0
    %3354 = vmatprep.subr.mxu0 0.0
    %3355 = vmatpush1.xpose.msra.mxu0 0.0
    %v3356 = vand.u32 %v189, 4294901760
    %v3357 = vsub.f32 %v189, %v3356
    %v3358 = vand.u32 %v3357, 4294901760
    %3359 = vmatprep.mubr.f32.mxu0 %v3358
    %v3360 = vand.u32 %v185, 4294901760
    %v3361 = vsub.f32 %v185, %v3360
    %v3362 = vand.u32 %v3361, 4294901760
    %3363 = vmatmul.mubr.f32.gmra.mrb[0].mxu0 %v3362
    %v3364 = vpop.f32.mrb[0].mxu0
    %v3365 = vadd.f32 %v3257, %v3364
    %v3366 = vpop.f32.mrb[0].mxu0
    %3367 = vdwg.mxu0
    %v3368 = vand.u32 %v149, 4294901760
    %v3369 = vsub.f32 %v149, %v3368
    %v3370 = vand.u32 %v3369, 4294901760
    %3371 = vmatprep.subr.mxu0 %v3370
    %v3372 = vand.u32 %v148, 4294901760
    %v3373 = vsub.f32 %v148, %v3372
    %v3374 = vand.u32 %v3373, 4294901760
    %3375 = vmatpush1.xpose.msra.mxu0 %v3374
    %v3376 = vand.u32 %v151, 4294901760
    %v3377 = vsub.f32 %v151, %v3376
    %v3378 = vand.u32 %v3377, 4294901760
    %3379 = vmatprep.subr.mxu0 %v3378
    %v3380 = vand.u32 %v150, 4294901760
    %v3381 = vsub.f32 %v150, %v3380
    %v3382 = vand.u32 %v3381, 4294901760
    %3383 = vmatpush1.xpose.msra.mxu0 %v3382
    %v3384 = vand.u32 %v153, 4294901760
    %v3385 = vsub.f32 %v153, %v3384
    %v3386 = vand.u32 %v3385, 4294901760
    %3387 = vmatprep.subr.mxu0 %v3386
    %v3388 = vand.u32 %v152, 4294901760
    %v3389 = vsub.f32 %v152, %v3388
    %v3390 = vand.u32 %v3389, 4294901760
    %3391 = vmatpush1.xpose.msra.mxu0 %v3390
    %v3392 = vand.u32 %v155, 4294901760
    %v3393 = vsub.f32 %v155, %v3392
    %v3394 = vand.u32 %v3393, 4294901760
    %3395 = vmatprep.subr.mxu0 %v3394
    %v3396 = vand.u32 %v154, 4294901760
    %v3397 = vsub.f32 %v154, %v3396
    %v3398 = vand.u32 %v3397, 4294901760
    %3399 = vmatpush1.xpose.msra.mxu0 %v3398
    %v3400 = vand.u32 %v157, 4294901760
    %v3401 = vsub.f32 %v157, %v3400
    %v3402 = vand.u32 %v3401, 4294901760
    %3403 = vmatprep.subr.mxu0 %v3402
    %v3404 = vand.u32 %v156, 4294901760
    %v3405 = vsub.f32 %v156, %v3404
    %v3406 = vand.u32 %v3405, 4294901760
    %3407 = vmatpush1.xpose.msra.mxu0 %v3406
    %v3408 = vand.u32 %v159, 4294901760
    %v3409 = vsub.f32 %v159, %v3408
    %v3410 = vand.u32 %v3409, 4294901760
    %3411 = vmatprep.subr.mxu0 %v3410
    %v3412 = vand.u32 %v158, 4294901760
    %v3413 = vsub.f32 %v158, %v3412
    %v3414 = vand.u32 %v3413, 4294901760
    %3415 = vmatpush1.xpose.msra.mxu0 %v3414
    %v3416 = vand.u32 %v161, 4294901760
    %v3417 = vsub.f32 %v161, %v3416
    %v3418 = vand.u32 %v3417, 4294901760
    %3419 = vmatprep.subr.mxu0 %v3418
    %v3420 = vand.u32 %v160, 4294901760
    %v3421 = vsub.f32 %v160, %v3420
    %v3422 = vand.u32 %v3421, 4294901760
    %3423 = vmatpush1.xpose.msra.mxu0 %v3422
    %v3424 = vand.u32 %v163, 4294901760
    %v3425 = vsub.f32 %v163, %v3424
    %v3426 = vand.u32 %v3425, 4294901760
    %3427 = vmatprep.subr.mxu0 %v3426
    %v3428 = vand.u32 %v162, 4294901760
    %v3429 = vsub.f32 %v162, %v3428
    %v3430 = vand.u32 %v3429, 4294901760
    %3431 = vmatpush1.xpose.msra.mxu0 %v3430
    %v3432 = vand.u32 %v165, 4294901760
    %v3433 = vsub.f32 %v165, %v3432
    %v3434 = vand.u32 %v3433, 4294901760
    %3435 = vmatprep.subr.mxu0 %v3434
    %v3436 = vand.u32 %v164, 4294901760
    %v3437 = vsub.f32 %v164, %v3436
    %v3438 = vand.u32 %v3437, 4294901760
    %3439 = vmatpush1.xpose.msra.mxu0 %v3438
    %v3440 = vand.u32 %v167, 4294901760
    %v3441 = vsub.f32 %v167, %v3440
    %v3442 = vand.u32 %v3441, 4294901760
    %3443 = vmatprep.subr.mxu0 %v3442
    %v3444 = vand.u32 %v166, 4294901760
    %v3445 = vsub.f32 %v166, %v3444
    %v3446 = vand.u32 %v3445, 4294901760
    %3447 = vmatpush1.xpose.msra.mxu0 %v3446
    %v3448 = vand.u32 %v169, 4294901760
    %v3449 = vsub.f32 %v169, %v3448
    %v3450 = vand.u32 %v3449, 4294901760
    %3451 = vmatprep.subr.mxu0 %v3450
    %v3452 = vand.u32 %v168, 4294901760
    %v3453 = vsub.f32 %v168, %v3452
    %v3454 = vand.u32 %v3453, 4294901760
    %3455 = vmatpush1.xpose.msra.mxu0 %v3454
    %v3456 = vand.u32 %v171, 4294901760
    %v3457 = vsub.f32 %v171, %v3456
    %v3458 = vand.u32 %v3457, 4294901760
    %3459 = vmatprep.subr.mxu0 %v3458
    %v3460 = vand.u32 %v170, 4294901760
    %v3461 = vsub.f32 %v170, %v3460
    %v3462 = vand.u32 %v3461, 4294901760
    %3463 = vmatpush1.xpose.msra.mxu0 %v3462
    %v3464 = vand.u32 %v173, 4294901760
    %v3465 = vsub.f32 %v173, %v3464
    %v3466 = vand.u32 %v3465, 4294901760
    %3467 = vmatprep.subr.mxu0 %v3466
    %v3468 = vand.u32 %v172, 4294901760
    %v3469 = vsub.f32 %v172, %v3468
    %v3470 = vand.u32 %v3469, 4294901760
    %3471 = vmatpush1.xpose.msra.mxu0 %v3470
    %v3472 = vand.u32 %v175, 4294901760
    %v3473 = vsub.f32 %v175, %v3472
    %v3474 = vand.u32 %v3473, 4294901760
    %3475 = vmatprep.subr.mxu0 %v3474
    %v3476 = vand.u32 %v174, 4294901760
    %v3477 = vsub.f32 %v174, %v3476
    %v3478 = vand.u32 %v3477, 4294901760
    %3479 = vmatpush1.xpose.msra.mxu0 %v3478
    %v3480 = vand.u32 %v177, 4294901760
    %v3481 = vsub.f32 %v177, %v3480
    %v3482 = vand.u32 %v3481, 4294901760
    %3483 = vmatprep.subr.mxu0 %v3482
    %v3484 = vand.u32 %v176, 4294901760
    %v3485 = vsub.f32 %v176, %v3484
    %v3486 = vand.u32 %v3485, 4294901760
    %3487 = vmatpush1.xpose.msra.mxu0 %v3486
    %v3488 = vand.u32 %v179, 4294901760
    %v3489 = vsub.f32 %v179, %v3488
    %v3490 = vand.u32 %v3489, 4294901760
    %3491 = vmatprep.subr.mxu0 %v3490
    %v3492 = vand.u32 %v178, 4294901760
    %v3493 = vsub.f32 %v178, %v3492
    %v3494 = vand.u32 %v3493, 4294901760
    %3495 = vmatpush1.xpose.msra.mxu0 %v3494
    %3496 = vmatprep.subr.mxu0 0.0
    %3497 = vmatpush1.xpose.msra.mxu0 0.0
    %3498 = vmatprep.subr.mxu0 0.0
    %3499 = vmatpush1.xpose.msra.mxu0 0.0
    %3500 = vmatprep.subr.mxu0 0.0
    %3501 = vmatpush1.xpose.msra.mxu0 0.0
    %3502 = vmatprep.subr.mxu0 0.0
    %3503 = vmatpush1.xpose.msra.mxu0 0.0
    %3504 = vmatprep.subr.mxu0 0.0
    %3505 = vmatpush1.xpose.msra.mxu0 0.0
    %3506 = vmatprep.subr.mxu0 0.0
    %3507 = vmatpush1.xpose.msra.mxu0 0.0
    %3508 = vmatprep.subr.mxu0 0.0
    %3509 = vmatpush1.xpose.msra.mxu0 0.0
    %3510 = vmatprep.subr.mxu0 0.0
    %3511 = vmatpush1.xpose.msra.mxu0 0.0
    %3512 = vmatprep.subr.mxu0 0.0
    %3513 = vmatpush1.xpose.msra.mxu0 0.0
    %3514 = vmatprep.subr.mxu0 0.0
    %3515 = vmatpush1.xpose.msra.mxu0 0.0
    %3516 = vmatprep.subr.mxu0 0.0
    %3517 = vmatpush1.xpose.msra.mxu0 0.0
    %3518 = vmatprep.subr.mxu0 0.0
    %3519 = vmatpush1.xpose.msra.mxu0 0.0
    %3520 = vmatprep.subr.mxu0 0.0
    %3521 = vmatpush1.xpose.msra.mxu0 0.0
    %3522 = vmatprep.subr.mxu0 0.0
    %3523 = vmatpush1.xpose.msra.mxu0 0.0
    %3524 = vmatprep.subr.mxu0 0.0
    %3525 = vmatpush1.xpose.msra.mxu0 0.0
    %3526 = vmatprep.subr.mxu0 0.0
    %3527 = vmatpush1.xpose.msra.mxu0 0.0
    %v3528 = vand.u32 %v189, 4294901760
    %3529 = vmatprep.mubr.f32.mxu0 %v3528
    %v3530 = vand.u32 %v185, 4294901760
    %3531 = vmatmul.mubr.f32.gmra.mrb[0].mxu0 %v3530
    %v3532 = vpop.f32.mrb[0].mxu0
    %v3533 = vadd.f32 %v3365, %v3532
    %v3534 = vpop.f32.mrb[0].mxu0
    %3535 = vdwg.mxu0
    %v3536 = vand.u32 %v149, 4294901760
    %3537 = vmatprep.subr.mxu0 %v3536
    %v3538 = vand.u32 %v148, 4294901760
    %3539 = vmatpush1.xpose.msra.mxu0 %v3538
    %v3540 = vand.u32 %v151, 4294901760
    %3541 = vmatprep.subr.mxu0 %v3540
    %v3542 = vand.u32 %v150, 4294901760
    %3543 = vmatpush1.xpose.msra.mxu0 %v3542
    %v3544 = vand.u32 %v153, 4294901760
    %3545 = vmatprep.subr.mxu0 %v3544
    %v3546 = vand.u32 %v152, 4294901760
    %3547 = vmatpush1.xpose.msra.mxu0 %v3546
    %v3548 = vand.u32 %v155, 4294901760
    %3549 = vmatprep.subr.mxu0 %v3548
    %v3550 = vand.u32 %v154, 4294901760
    %3551 = vmatpush1.xpose.msra.mxu0 %v3550
    %v3552 = vand.u32 %v157, 4294901760
    %3553 = vmatprep.subr.mxu0 %v3552
    %v3554 = vand.u32 %v156, 4294901760
    %3555 = vmatpush1.xpose.msra.mxu0 %v3554
    %v3556 = vand.u32 %v159, 4294901760
    %3557 = vmatprep.subr.mxu0 %v3556
    %v3558 = vand.u32 %v158, 4294901760
    %3559 = vmatpush1.xpose.msra.mxu0 %v3558
    %v3560 = vand.u32 %v161, 4294901760
    %3561 = vmatprep.subr.mxu0 %v3560
    %v3562 = vand.u32 %v160, 4294901760
    %3563 = vmatpush1.xpose.msra.mxu0 %v3562
    %v3564 = vand.u32 %v163, 4294901760
    %3565 = vmatprep.subr.mxu0 %v3564
    %v3566 = vand.u32 %v162, 4294901760
    %3567 = vmatpush1.xpose.msra.mxu0 %v3566
    %v3568 = vand.u32 %v165, 4294901760
    %3569 = vmatprep.subr.mxu0 %v3568
    %v3570 = vand.u32 %v164, 4294901760
    %3571 = vmatpush1.xpose.msra.mxu0 %v3570
    %v3572 = vand.u32 %v167, 4294901760
    %3573 = vmatprep.subr.mxu0 %v3572
    %v3574 = vand.u32 %v166, 4294901760
    %3575 = vmatpush1.xpose.msra.mxu0 %v3574
    %v3576 = vand.u32 %v169, 4294901760
    %3577 = vmatprep.subr.mxu0 %v3576
    %v3578 = vand.u32 %v168, 4294901760
    %3579 = vmatpush1.xpose.msra.mxu0 %v3578
    %v3580 = vand.u32 %v171, 4294901760
    %3581 = vmatprep.subr.mxu0 %v3580
    %v3582 = vand.u32 %v170, 4294901760
    %3583 = vmatpush1.xpose.msra.mxu0 %v3582
    %v3584 = vand.u32 %v173, 4294901760
    %3585 = vmatprep.subr.mxu0 %v3584
    %v3586 = vand.u32 %v172, 4294901760
    %3587 = vmatpush1.xpose.msra.mxu0 %v3586
    %v3588 = vand.u32 %v175, 4294901760
    %3589 = vmatprep.subr.mxu0 %v3588
    %v3590 = vand.u32 %v174, 4294901760
    %3591 = vmatpush1.xpose.msra.mxu0 %v3590
    %v3592 = vand.u32 %v177, 4294901760
    %3593 = vmatprep.subr.mxu0 %v3592
    %v3594 = vand.u32 %v176, 4294901760
    %3595 = vmatpush1.xpose.msra.mxu0 %v3594
    %v3596 = vand.u32 %v179, 4294901760
    %3597 = vmatprep.subr.mxu0 %v3596
    %v3598 = vand.u32 %v178, 4294901760
    %3599 = vmatpush1.xpose.msra.mxu0 %v3598
    %3600 = vmatprep.subr.mxu0 0.0
    %3601 = vmatpush1.xpose.msra.mxu0 0.0
    %3602 = vmatprep.subr.mxu0 0.0
    %3603 = vmatpush1.xpose.msra.mxu0 0.0
    %3604 = vmatprep.subr.mxu0 0.0
    %3605 = vmatpush1.xpose.msra.mxu0 0.0
    %3606 = vmatprep.subr.mxu0 0.0
    %3607 = vmatpush1.xpose.msra.mxu0 0.0
    %3608 = vmatprep.subr.mxu0 0.0
    %3609 = vmatpush1.xpose.msra.mxu0 0.0
    %3610 = vmatprep.subr.mxu0 0.0
    %3611 = vmatpush1.xpose.msra.mxu0 0.0
    %3612 = vmatprep.subr.mxu0 0.0
    %3613 = vmatpush1.xpose.msra.mxu0 0.0
    %3614 = vmatprep.subr.mxu0 0.0
    %3615 = vmatpush1.xpose.msra.mxu0 0.0
    %3616 = vmatprep.subr.mxu0 0.0
    %3617 = vmatpush1.xpose.msra.mxu0 0.0
    %3618 = vmatprep.subr.mxu0 0.0
    %3619 = vmatpush1.xpose.msra.mxu0 0.0
    %3620 = vmatprep.subr.mxu0 0.0
    %3621 = vmatpush1.xpose.msra.mxu0 0.0
    %3622 = vmatprep.subr.mxu0 0.0
    %3623 = vmatpush1.xpose.msra.mxu0 0.0
    %3624 = vmatprep.subr.mxu0 0.0
    %3625 = vmatpush1.xpose.msra.mxu0 0.0
    %3626 = vmatprep.subr.mxu0 0.0
    %3627 = vmatpush1.xpose.msra.mxu0 0.0
    %3628 = vmatprep.subr.mxu0 0.0
    %3629 = vmatpush1.xpose.msra.mxu0 0.0
    %3630 = vmatprep.subr.mxu0 0.0
    %3631 = vmatpush1.xpose.msra.mxu0 0.0
    %v3632 = vand.u32 %v189, 4294901760
    %3633 = vmatprep.mubr.f32.mxu0 %v3632
    %v3634 = vand.u32 %v185, 4294901760
    %3635 = vmatmul.mubr.f32.gmra.mrb[0].mxu0 %v3634
    %v3636 = vpop.f32.mrb[0].mxu0
    %v3637 = vadd.f32 %v3533, %v3636
    %v3638 = vpop.f32.mrb[0].mxu0
    %3639 = vdwg.mxu0
    %v3640 = vmul.f32 %v1051, 0.5
    %v3641 = vmul.f32 %v1913, 0.5
    %v3642 = vmul.f32 %v2775, 0.5
    %v3643 = vmul.f32 %v3637, 0.5
    %v3644 = vmul.f32 %v1051, 0.70710677
    %v3645 = vmul.f32 %v1913, 0.70710677
    %v3646 = vmul.f32 %v2775, 0.70710677
    %v3647 = vmul.f32 %v3637, 0.70710677
    %v3648 = verf.f32.pop %v3644
    %v3649 = verf.f32.pop %v3645
    %v3650 = verf.f32.pop %v3646
    %v3651 = verf.f32.pop %v3647
    %v3652 = vadd.f32 %v3648, 1.0
    %v3653 = vadd.f32 %v3649, 1.0
    %v3654 = vadd.f32 %v3650, 1.0
    %v3655 = vadd.f32 %v3651, 1.0
    %v3656 = vmul.f32 %v3640, %v3652
    %v3657 = vmul.f32 %v3641, %v3653
    %v3658 = vmul.f32 %v3642, %v3654
    %v3659 = vmul.f32 %v3643, %v3655
    %v3660 = vld [vmem:[%s2] sm:$0x1]
    %v3661 = vld [vmem:[%s2 + $0x1] sm:$0x1]
    %v3662 = vld [vmem:[%s2 + $0x2] sm:$0x1]
    %v3663 = vld [vmem:[%s2 + $0x3] sm:$0x1]
    %v3664 = vadd.f32 %v3656, %v3660
    %v3665 = vadd.f32 %v3657, %v3661
    %v3666 = vadd.f32 %v3658, %v3662
    %v3667 = vadd.f32 %v3659, %v3663
    %s3668 = smul.u32 0, 4
    %s3669 = scalar_lea.vmem [#allocation2], %s3668
    %3670 = vst [vmem:[%s3669] sm:$0x1] %v3664
    %3671 = vst [vmem:[%s3669 + $0x1] sm:$0x1] %v3665
    %3672 = vst [vmem:[%s3669 + $0x2] sm:$0x1] %v3666
    %3673 = vst [vmem:[%s3669 + $0x3] sm:$0x1] %v3667
    %v3674 = vld [vmem:[#allocation3] sm:$0x1]
    %v3675 = vld [vmem:[#allocation3 + $0x1] sm:$0x1]
    %v3676 = vld [vmem:[#allocation3 + $0x2] sm:$0x1]
    %v3677 = vld [vmem:[#allocation3 + $0x3] sm:$0x1]
    %vm3678 = vcmask 1040384
    %v3679 = vsel %vm3678, %v3664, -inf
    %3680 = vmax.xlane.f32.xlu0 %v3679
    %v3681 = vpop.xlane.xlu0 %3680
    %v3682 = vsel %vm3678, %v3665, -inf
    %3683 = vmax.xlane.f32.xlu0 %v3682
    %v3684 = vpop.xlane.xlu0 %3683
    %v3685 = vsel %vm3678, %v3666, -inf
    %3686 = vmax.xlane.f32.xlu0 %v3685
    %v3687 = vpop.xlane.xlu0 %3686
    %v3688 = vsel %vm3678, %v3667, -inf
    %3689 = vmax.xlane.f32.xlu0 %v3688
    %v3690 = vpop.xlane.xlu0 %3689
    %v3691 = vmax.f32 %v3674, %v3681
    %v3692 = vmax.f32 %v3675, %v3684
    %v3693 = vmax.f32 %v3676, %v3687
    %v3694 = vmax.f32 %v3677, %v3690
    %v3695 = vsub.f32 %v3674, %v3691
    %v3696 = vsub.f32 %v3675, %v3692
    %v3697 = vsub.f32 %v3676, %v3693
    %v3698 = vsub.f32 %v3677, %v3694
    %v3699 = vmul.f32 %v3695, 1.442695
    %v3700 = vpow.pop %v3699
    %v3701 = vmul.f32 %v3696, 1.442695
    %v3702 = vpow.pop %v3701
    %v3703 = vmul.f32 %v3697, 1.442695
    %v3704 = vpow.pop %v3703
    %v3705 = vmul.f32 %v3698, 1.442695
    %v3706 = vpow.pop %v3705
    %3708 = vset.pattern.permute.xlu0 0
    %3709 = vperm.xlu0 %3708, %v3691
    %v3710 = vpop.permute.xlu0 %3709
    %v3712 = vlaneseq
    %v3713 = vshrl.u32 %v3712, 7
    %v3714 = vsub.s32 0, %v3713
    %v3715 = vrot.slane %v3710, %v3714
    %3717 = vset.pattern.permute.xlu0 0
    %3718 = vperm.xlu0 %3717, %v3692
    %v3719 = vpop.permute.xlu0 %3718
    %v3721 = vlaneseq
    %v3722 = vshrl.u32 %v3721, 7
    %v3723 = vsub.s32 0, %v3722
    %v3724 = vrot.slane %v3719, %v3723
    %3726 = vset.pattern.permute.xlu0 0
    %3727 = vperm.xlu0 %3726, %v3693
    %v3728 = vpop.permute.xlu0 %3727
    %v3730 = vlaneseq
    %v3731 = vshrl.u32 %v3730, 7
    %v3732 = vsub.s32 0, %v3731
    %v3733 = vrot.slane %v3728, %v3732
    %3735 = vset.pattern.permute.xlu0 0
    %3736 = vperm.xlu0 %3735, %v3694
    %v3737 = vpop.permute.xlu0 %3736
    %v3739 = vlaneseq
    %v3740 = vshrl.u32 %v3739, 7
    %v3741 = vsub.s32 0, %v3740
    %v3742 = vrot.slane %v3737, %v3741
    %v3743 = vsub.f32 %v3664, %v3715
    %v3744 = vsub.f32 %v3665, %v3724
    %v3745 = vsub.f32 %v3666, %v3733
    %v3746 = vsub.f32 %v3667, %v3742
    %v3747 = vmul.f32 %v3743, 1.442695
    %v3748 = vpow.pop %v3747
    %v3749 = vmul.f32 %v3744, 1.442695
    %v3750 = vpow.pop %v3749
    %v3751 = vmul.f32 %v3745, 1.442695
    %v3752 = vpow.pop %v3751
    %v3753 = vmul.f32 %v3746, 1.442695
    %v3754 = vpow.pop %v3753
    %v3755 = vld [vmem:[#allocation4] sm:$0x1]
    %v3756 = vld [vmem:[#allocation4 + $0x1] sm:$0x1]
    %v3757 = vld [vmem:[#allocation4 + $0x2] sm:$0x1]
    %v3758 = vld [vmem:[#allocation4 + $0x3] sm:$0x1]
    %v3759 = vmul.f32 %v3700, %v3755
    %v3760 = vmul.f32 %v3702, %v3756
    %v3761 = vmul.f32 %v3704, %v3757
    %v3762 = vmul.f32 %v3706, %v3758
    %v3763 = vsel %vm3678, %v3748, 0.0
    %3764 = vadd.xlane.f32.xlu0 %v3763
    %v3765 = vpop.xlane.xlu0 %3764
    %v3766 = vsel %vm3678, %v3750, 0.0
    %3767 = vadd.xlane.f32.xlu0 %v3766
    %v3768 = vpop.xlane.xlu0 %3767
    %v3769 = vsel %vm3678, %v3752, 0.0
    %3770 = vadd.xlane.f32.xlu0 %v3769
    %v3771 = vpop.xlane.xlu0 %3770
    %v3772 = vsel %vm3678, %v3754, 0.0
    %3773 = vadd.xlane.f32.xlu0 %v3772
    %v3774 = vpop.xlane.xlu0 %3773
    %v3775 = vadd.f32 %v3759, %v3765
    %v3776 = vadd.f32 %v3760, %v3768
    %v3777 = vadd.f32 %v3761, %v3771
    %v3778 = vadd.f32 %v3762, %v3774
    %vm3779 = vcmask 0
    %3780 = vst.msk [vmem:[#allocation4] sm:$0x1] %vm3779, %v3775
    %3781 = vst.msk [vmem:[#allocation4 + $0x1] sm:$0x1] %vm3779, %v3776
    %3782 = vst.msk [vmem:[#allocation4 + $0x2] sm:$0x1] %vm3779, %v3777
    %3783 = vst.msk [vmem:[#allocation4 + $0x3] sm:$0x1] %vm3779, %v3778
    %v3784 = vand.u32 %v53, 4294901760
    %3785 = vmatprep.subr.mxu0 %v3784
    %v3786 = vand.u32 %v52, 4294901760
    %3787 = vmatpush1.msra.mxu0 %v3786
    %v3788 = vand.u32 %v55, 4294901760
    %3789 = vmatprep.subr.mxu0 %v3788
    %v3790 = vand.u32 %v54, 4294901760
    %3791 = vmatpush1.msra.mxu0 %v3790
    %v3792 = vand.u32 %v57, 4294901760
    %3793 = vmatprep.subr.mxu0 %v3792
    %v3794 = vand.u32 %v56, 4294901760
    %3795 = vmatpush1.msra.mxu0 %v3794
    %v3796 = vand.u32 %v59, 4294901760
    %3797 = vmatprep.subr.mxu0 %v3796
    %v3798 = vand.u32 %v58, 4294901760
    %3799 = vmatpush1.msra.mxu0 %v3798
    %v3800 = vand.u32 %v61, 4294901760
    %3801 = vmatprep.subr.mxu0 %v3800
    %v3802 = vand.u32 %v60, 4294901760
    %3803 = vmatpush1.msra.mxu0 %v3802
    %v3804 = vand.u32 %v63, 4294901760
    %3805 = vmatprep.subr.mxu0 %v3804
    %v3806 = vand.u32 %v62, 4294901760
    %3807 = vmatpush1.msra.mxu0 %v3806
    %v3808 = vand.u32 %v65, 4294901760
    %3809 = vmatprep.subr.mxu0 %v3808
    %v3810 = vand.u32 %v64, 4294901760
    %3811 = vmatpush1.msra.mxu0 %v3810
    %v3812 = vand.u32 %v67, 4294901760
    %3813 = vmatprep.subr.mxu0 %v3812
    %v3814 = vand.u32 %v66, 4294901760
    %3815 = vmatpush1.msra.mxu0 %v3814
    %v3816 = vand.u32 %v69, 4294901760
    %3817 = vmatprep.subr.mxu0 %v3816
    %v3818 = vand.u32 %v68, 4294901760
    %3819 = vmatpush1.msra.mxu0 %v3818
    %v3820 = vand.u32 %v71, 4294901760
    %3821 = vmatprep.subr.mxu0 %v3820
    %v3822 = vand.u32 %v70, 4294901760
    %3823 = vmatpush1.msra.mxu0 %v3822
    %v3824 = vand.u32 %v73, 4294901760
    %3825 = vmatprep.subr.mxu0 %v3824
    %v3826 = vand.u32 %v72, 4294901760
    %3827 = vmatpush1.msra.mxu0 %v3826
    %v3828 = vand.u32 %v75, 4294901760
    %3829 = vmatprep.subr.mxu0 %v3828
    %v3830 = vand.u32 %v74, 4294901760
    %3831 = vmatpush1.msra.mxu0 %v3830
    %v3832 = vand.u32 %v77, 4294901760
    %3833 = vmatprep.subr.mxu0 %v3832
    %v3834 = vand.u32 %v76, 4294901760
    %3835 = vmatpush1.msra.mxu0 %v3834
    %v3836 = vand.u32 %v79, 4294901760
    %3837 = vmatprep.subr.mxu0 %v3836
    %v3838 = vand.u32 %v78, 4294901760
    %3839 = vmatpush1.msra.mxu0 %v3838
    %v3840 = vand.u32 %v81, 4294901760
    %3841 = vmatprep.subr.mxu0 %v3840
    %v3842 = vand.u32 %v80, 4294901760
    %3843 = vmatpush1.msra.mxu0 %v3842
    %v3844 = vand.u32 %v83, 4294901760
    %3845 = vmatprep.subr.mxu0 %v3844
    %v3846 = vand.u32 %v82, 4294901760
    %3847 = vmatpush1.msra.mxu0 %v3846
    %3848 = vmatprep.subr.mxu0 0.0
    %3849 = vmatpush1.msra.mxu0 0.0
    %3850 = vmatprep.subr.mxu0 0.0
    %3851 = vmatpush1.msra.mxu0 0.0
    %3852 = vmatprep.subr.mxu0 0.0
    %3853 = vmatpush1.msra.mxu0 0.0
    %3854 = vmatprep.subr.mxu0 0.0
    %3855 = vmatpush1.msra.mxu0 0.0
    %3856 = vmatprep.subr.mxu0 0.0
    %3857 = vmatpush1.msra.mxu0 0.0
    %3858 = vmatprep.subr.mxu0 0.0
    %3859 = vmatpush1.msra.mxu0 0.0
    %3860 = vmatprep.subr.mxu0 0.0
    %3861 = vmatpush1.msra.mxu0 0.0
    %3862 = vmatprep.subr.mxu0 0.0
    %3863 = vmatpush1.msra.mxu0 0.0
    %3864 = vmatprep.subr.mxu0 0.0
    %3865 = vmatpush1.msra.mxu0 0.0
    %3866 = vmatprep.subr.mxu0 0.0
    %3867 = vmatpush1.msra.mxu0 0.0
    %3868 = vmatprep.subr.mxu0 0.0
    %3869 = vmatpush1.msra.mxu0 0.0
    %3870 = vmatprep.subr.mxu0 0.0
    %3871 = vmatpush1.msra.mxu0 0.0
    %3872 = vmatprep.subr.mxu0 0.0
    %3873 = vmatpush1.msra.mxu0 0.0
    %3874 = vmatprep.subr.mxu0 0.0
    %3875 = vmatpush1.msra.mxu0 0.0
    %3876 = vmatprep.subr.mxu0 0.0
    %3877 = vmatpush1.msra.mxu0 0.0
    %3878 = vmatprep.subr.mxu0 0.0
    %3879 = vmatpush1.msra.mxu0 0.0
    %3880 = vmatprep.mubr.f32.mxu0 0.0
    %v3881 = vand.u32 %v3748, 4294901760
    %v3882 = vsub.f32 %v3748, %v3881
    %v3883 = vand.u32 %v3882, 4294901760
    %v3884 = vsub.f32 %v3882, %v3883
    %v3885 = vand.u32 %v3884, 4294901760
    %3886 = vmatmul.mubr.f32.gmra.mrb[0].mxu0 %v3885
    %v3887 = vpop.f32.mrb[0].mxu0
    %v3888 = vadd.f32 0.0, %v3887
    %v3889 = vpop.f32.mrb[0].mxu0
    %v3890 = vadd.f32 0.0, %v3889
    %3891 = vdwg.mxu0
    %v3892 = vand.u32 %v53, 4294901760
    %v3893 = vsub.f32 %v53, %v3892
    %v3894 = vand.u32 %v3893, 4294901760
    %v3895 = vsub.f32 %v3893, %v3894
    %v3896 = vand.u32 %v3895, 4294901760
    %3897 = vmatprep.subr.mxu0 %v3896
    %v3898 = vand.u32 %v52, 4294901760
    %v3899 = vsub.f32 %v52, %v3898
    %v3900 = vand.u32 %v3899, 4294901760
    %v3901 = vsub.f32 %v3899, %v3900
    %v3902 = vand.u32 %v3901, 4294901760
    %3903 = vmatpush1.msra.mxu0 %v3902
    %v3904 = vand.u32 %v55, 4294901760
    %v3905 = vsub.f32 %v55, %v3904
    %v3906 = vand.u32 %v3905, 4294901760
    %v3907 = vsub.f32 %v3905, %v3906
    %v3908 = vand.u32 %v3907, 4294901760
    %3909 = vmatprep.subr.mxu0 %v3908
    %v3910 = vand.u32 %v54, 4294901760
    %v3911 = vsub.f32 %v54, %v3910
    %v3912 = vand.u32 %v3911, 4294901760
    %v3913 = vsub.f32 %v3911, %v3912
    %v3914 = vand.u32 %v3913, 4294901760
    %3915 = vmatpush1.msra.mxu0 %v3914
    %v3916 = vand.u32 %v57, 4294901760
    %v3917 = vsub.f32 %v57, %v3916
    %v3918 = vand.u32 %v3917, 4294901760
    %v3919 = vsub.f32 %v3917, %v3918
    %v3920 = vand.u32 %v3919, 4294901760
    %3921 = vmatprep.subr.mxu0 %v3920
    %v3922 = vand.u32 %v56, 4294901760
    %v3923 = vsub.f32 %v56, %v3922
    %v3924 = vand.u32 %v3923, 4294901760
    %v3925 = vsub.f32 %v3923, %v3924
    %v3926 = vand.u32 %v3925, 4294901760
    %3927 = vmatpush1.msra.mxu0 %v3926
    %v3928 = vand.u32 %v59, 4294901760
    %v3929 = vsub.f32 %v59, %v3928
    %v3930 = vand.u32 %v3929, 4294901760
    %v3931 = vsub.f32 %v3929, %v3930
    %v3932 = vand.u32 %v3931, 4294901760
    %3933 = vmatprep.subr.mxu0 %v3932
    %v3934 = vand.u32 %v58, 4294901760
    %v3935 = vsub.f32 %v58, %v3934
    %v3936 = vand.u32 %v3935, 4294901760
    %v3937 = vsub.f32 %v3935, %v3936
    %v3938 = vand.u32 %v3937, 4294901760
    %3939 = vmatpush1.msra.mxu0 %v3938
    %v3940 = vand.u32 %v61, 4294901760
    %v3941 = vsub.f32 %v61, %v3940
    %v3942 = vand.u32 %v3941, 4294901760
    %v3943 = vsub.f32 %v3941, %v3942
    %v3944 = vand.u32 %v3943, 4294901760
    %3945 = vmatprep.subr.mxu0 %v3944
    %v3946 = vand.u32 %v60, 4294901760
    %v3947 = vsub.f32 %v60, %v3946
    %v3948 = vand.u32 %v3947, 4294901760
    %v3949 = vsub.f32 %v3947, %v3948
    %v3950 = vand.u32 %v3949, 4294901760
    %3951 = vmatpush1.msra.mxu0 %v3950
    %v3952 = vand.u32 %v63, 4294901760
    %v3953 = vsub.f32 %v63, %v3952
    %v3954 = vand.u32 %v3953, 4294901760
    %v3955 = vsub.f32 %v3953, %v3954
    %v3956 = vand.u32 %v3955, 4294901760
    %3957 = vmatprep.subr.mxu0 %v3956
    %v3958 = vand.u32 %v62, 4294901760
    %v3959 = vsub.f32 %v62, %v3958
    %v3960 = vand.u32 %v3959, 4294901760
    %v3961 = vsub.f32 %v3959, %v3960
    %v3962 = vand.u32 %v3961, 4294901760
    %3963 = vmatpush1.msra.mxu0 %v3962
    %v3964 = vand.u32 %v65, 4294901760
    %v3965 = vsub.f32 %v65, %v3964
    %v3966 = vand.u32 %v3965, 4294901760
    %v3967 = vsub.f32 %v3965, %v3966
    %v3968 = vand.u32 %v3967, 4294901760
    %3969 = vmatprep.subr.mxu0 %v3968
    %v3970 = vand.u32 %v64, 4294901760
    %v3971 = vsub.f32 %v64, %v3970
    %v3972 = vand.u32 %v3971, 4294901760
    %v3973 = vsub.f32 %v3971, %v3972
    %v3974 = vand.u32 %v3973, 4294901760
    %3975 = vmatpush1.msra.mxu0 %v3974
    %v3976 = vand.u32 %v67, 4294901760
    %v3977 = vsub.f32 %v67, %v3976
    %v3978 = vand.u32 %v3977, 4294901760
    %v3979 = vsub.f32 %v3977, %v3978
    %v3980 = vand.u32 %v3979, 4294901760
    %3981 = vmatprep.subr.mxu0 %v3980
    %v3982 = vand.u32 %v66, 4294901760
    %v3983 = vsub.f32 %v66, %v3982
    %v3984 = vand.u32 %v3983, 4294901760
    %v3985 = vsub.f32 %v3983, %v3984
    %v3986 = vand.u32 %v3985, 4294901760
    %3987 = vmatpush1.msra.mxu0 %v3986
    %v3988 = vand.u32 %v69, 4294901760
    %v3989 = vsub.f32 %v69, %v3988
    %v3990 = vand.u32 %v3989, 4294901760
    %v3991 = vsub.f32 %v3989, %v3990
    %v3992 = vand.u32 %v3991, 4294901760
    %3993 = vmatprep.subr.mxu0 %v3992
    %v3994 = vand.u32 %v68, 4294901760
    %v3995 = vsub.f32 %v68, %v3994
    %v3996 = vand.u32 %v3995, 4294901760
    %v3997 = vsub.f32 %v3995, %v3996
    %v3998 = vand.u32 %v3997, 4294901760
    %3999 = vmatpush1.msra.mxu0 %v3998
    %v4000 = vand.u32 %v71, 4294901760
    %v4001 = vsub.f32 %v71, %v4000
    %v4002 = vand.u32 %v4001, 4294901760
    %v4003 = vsub.f32 %v4001, %v4002
    %v4004 = vand.u32 %v4003, 4294901760
    %4005 = vmatprep.subr.mxu0 %v4004
    %v4006 = vand.u32 %v70, 4294901760
    %v4007 = vsub.f32 %v70, %v4006
    %v4008 = vand.u32 %v4007, 4294901760
    %v4009 = vsub.f32 %v4007, %v4008
    %v4010 = vand.u32 %v4009, 4294901760
    %4011 = vmatpush1.msra.mxu0 %v4010
    %v4012 = vand.u32 %v73, 4294901760
    %v4013 = vsub.f32 %v73, %v4012
    %v4014 = vand.u32 %v4013, 4294901760
    %v4015 = vsub.f32 %v4013, %v4014
    %v4016 = vand.u32 %v4015, 4294901760
    %4017 = vmatprep.subr.mxu0 %v4016
    %v4018 = vand.u32 %v72, 4294901760
    %v4019 = vsub.f32 %v72, %v4018
    %v4020 = vand.u32 %v4019, 4294901760
    %v4021 = vsub.f32 %v4019, %v4020
    %v4022 = vand.u32 %v4021, 4294901760
    %4023 = vmatpush1.msra.mxu0 %v4022
    %v4024 = vand.u32 %v75, 4294901760
    %v4025 = vsub.f32 %v75, %v4024
    %v4026 = vand.u32 %v4025, 4294901760
    %v4027 = vsub.f32 %v4025, %v4026
    %v4028 = vand.u32 %v4027, 4294901760
    %4029 = vmatprep.subr.mxu0 %v4028
    %v4030 = vand.u32 %v74, 4294901760
    %v4031 = vsub.f32 %v74, %v4030
    %v4032 = vand.u32 %v4031, 4294901760
    %v4033 = vsub.f32 %v4031, %v4032
    %v4034 = vand.u32 %v4033, 4294901760
    %4035 = vmatpush1.msra.mxu0 %v4034
    %v4036 = vand.u32 %v77, 4294901760
    %v4037 = vsub.f32 %v77, %v4036
    %v4038 = vand.u32 %v4037, 4294901760
    %v4039 = vsub.f32 %v4037, %v4038
    %v4040 = vand.u32 %v4039, 4294901760
    %4041 = vmatprep.subr.mxu0 %v4040
    %v4042 = vand.u32 %v76, 4294901760
    %v4043 = vsub.f32 %v76, %v4042
    %v4044 = vand.u32 %v4043, 4294901760
    %v4045 = vsub.f32 %v4043, %v4044
    %v4046 = vand.u32 %v4045, 4294901760
    %4047 = vmatpush1.msra.mxu0 %v4046
    %v4048 = vand.u32 %v79, 4294901760
    %v4049 = vsub.f32 %v79, %v4048
    %v4050 = vand.u32 %v4049, 4294901760
    %v4051 = vsub.f32 %v4049, %v4050
    %v4052 = vand.u32 %v4051, 4294901760
    %4053 = vmatprep.subr.mxu0 %v4052
    %v4054 = vand.u32 %v78, 4294901760
    %v4055 = vsub.f32 %v78, %v4054
    %v4056 = vand.u32 %v4055, 4294901760
    %v4057 = vsub.f32 %v4055, %v4056
    %v4058 = vand.u32 %v4057, 4294901760
    %4059 = vmatpush1.msra.mxu0 %v4058
    %v4060 = vand.u32 %v81, 4294901760
    %v4061 = vsub.f32 %v81, %v4060
    %v4062 = vand.u32 %v4061, 4294901760
    %v4063 = vsub.f32 %v4061, %v4062
    %v4064 = vand.u32 %v4063, 4294901760
    %4065 = vmatprep.subr.mxu0 %v4064
    %v4066 = vand.u32 %v80, 4294901760
    %v4067 = vsub.f32 %v80, %v4066
    %v4068 = vand.u32 %v4067, 4294901760
    %v4069 = vsub.f32 %v4067, %v4068
    %v4070 = vand.u32 %v4069, 4294901760
    %4071 = vmatpush1.msra.mxu0 %v4070
    %v4072 = vand.u32 %v83, 4294901760
    %v4073 = vsub.f32 %v83, %v4072
    %v4074 = vand.u32 %v4073, 4294901760
    %v4075 = vsub.f32 %v4073, %v4074
    %v4076 = vand.u32 %v4075, 4294901760
    %4077 = vmatprep.subr.mxu0 %v4076
    %v4078 = vand.u32 %v82, 4294901760
    %v4079 = vsub.f32 %v82, %v4078
    %v4080 = vand.u32 %v4079, 4294901760
    %v4081 = vsub.f32 %v4079, %v4080
    %v4082 = vand.u32 %v4081, 4294901760
    %4083 = vmatpush1.msra.mxu0 %v4082
    %4084 = vmatprep.subr.mxu0 0.0
    %4085 = vmatpush1.msra.mxu0 0.0
    %4086 = vmatprep.subr.mxu0 0.0
    %4087 = vmatpush1.msra.mxu0 0.0
    %4088 = vmatprep.subr.mxu0 0.0
    %4089 = vmatpush1.msra.mxu0 0.0
    %4090 = vmatprep.subr.mxu0 0.0
    %4091 = vmatpush1.msra.mxu0 0.0
    %4092 = vmatprep.subr.mxu0 0.0
    %4093 = vmatpush1.msra.mxu0 0.0
    %4094 = vmatprep.subr.mxu0 0.0
    %4095 = vmatpush1.msra.mxu0 0.0
    %4096 = vmatprep.subr.mxu0 0.0
    %4097 = vmatpush1.msra.mxu0 0.0
    %4098 = vmatprep.subr.mxu0 0.0
    %4099 = vmatpush1.msra.mxu0 0.0
    %4100 = vmatprep.subr.mxu0 0.0
    %4101 = vmatpush1.msra.mxu0 0.0
    %4102 = vmatprep.subr.mxu0 0.0
    %4103 = vmatpush1.msra.mxu0 0.0
    %4104 = vmatprep.subr.mxu0 0.0
    %4105 = vmatpush1.msra.mxu0 0.0
    %4106 = vmatprep.subr.mxu0 0.0
    %4107 = vmatpush1.msra.mxu0 0.0
    %4108 = vmatprep.subr.mxu0 0.0
    %4109 = vmatpush1.msra.mxu0 0.0
    %4110 = vmatprep.subr.mxu0 0.0
    %4111 = vmatpush1.msra.mxu0 0.0
    %4112 = vmatprep.subr.mxu0 0.0
    %4113 = vmatpush1.msra.mxu0 0.0
    %4114 = vmatprep.subr.mxu0 0.0
    %4115 = vmatpush1.msra.mxu0 0.0
    %4116 = vmatprep.mubr.f32.mxu0 0.0
    %v4117 = vand.u32 %v3748, 4294901760
    %4118 = vmatmul.mubr.f32.gmra.mrb[0].mxu0 %v4117
    %v4119 = vpop.f32.mrb[0].mxu0
    %v4120 = vadd.f32 %v3888, %v4119
    %v4121 = vpop.f32.mrb[0].mxu0
    %v4122 = vadd.f32 %v3890, %v4121
    %4123 = vdwg.mxu0
    %v4124 = vand.u32 %v53, 4294901760
    %v4125 = vsub.f32 %v53, %v4124
    %4126 = vmatprep.subr.mxu0 %v4125
    %v4127 = vand.u32 %v52, 4294901760
    %v4128 = vsub.f32 %v52, %v4127
    %4129 = vmatpush1.msra.mxu0 %v4128
    %v4130 = vand.u32 %v55, 4294901760
    %v4131 = vsub.f32 %v55, %v4130
    %4132 = vmatprep.subr.mxu0 %v4131
    %v4133 = vand.u32 %v54, 4294901760
    %v4134 = vsub.f32 %v54, %v4133
    %4135 = vmatpush1.msra.mxu0 %v4134
    %v4136 = vand.u32 %v57, 4294901760
    %v4137 = vsub.f32 %v57, %v4136
    %4138 = vmatprep.subr.mxu0 %v4137
    %v4139 = vand.u32 %v56, 4294901760
    %v4140 = vsub.f32 %v56, %v4139
    %4141 = vmatpush1.msra.mxu0 %v4140
    %v4142 = vand.u32 %v59, 4294901760
    %v4143 = vsub.f32 %v59, %v4142
    %4144 = vmatprep.subr.mxu0 %v4143
    %v4145 = vand.u32 %v58, 4294901760
    %v4146 = vsub.f32 %v58, %v4145
    %4147 = vmatpush1.msra.mxu0 %v4146
    %v4148 = vand.u32 %v61, 4294901760
    %v4149 = vsub.f32 %v61, %v4148
    %4150 = vmatprep.subr.mxu0 %v4149
    %v4151 = vand.u32 %v60, 4294901760
    %v4152 = vsub.f32 %v60, %v4151
    %4153 = vmatpush1.msra.mxu0 %v4152
    %v4154 = vand.u32 %v63, 4294901760
    %v4155 = vsub.f32 %v63, %v4154
    %4156 = vmatprep.subr.mxu0 %v4155
    %v4157 = vand.u32 %v62, 4294901760
    %v4158 = vsub.f32 %v62, %v4157
    %4159 = vmatpush1.msra.mxu0 %v4158
    %v4160 = vand.u32 %v65, 4294901760
    %v4161 = vsub.f32 %v65, %v4160
    %4162 = vmatprep.subr.mxu0 %v4161
    %v4163 = vand.u32 %v64, 4294901760
    %v4164 = vsub.f32 %v64, %v4163
    %4165 = vmatpush1.msra.mxu0 %v4164
    %v4166 = vand.u32 %v67, 4294901760
    %v4167 = vsub.f32 %v67, %v4166
    %4168 = vmatprep.subr.mxu0 %v4167
    %v4169 = vand.u32 %v66, 4294901760
    %v4170 = vsub.f32 %v66, %v4169
    %4171 = vmatpush1.msra.mxu0 %v4170
    %v4172 = vand.u32 %v69, 4294901760
    %v4173 = vsub.f32 %v69, %v4172
    %4174 = vmatprep.subr.mxu0 %v4173
    %v4175 = vand.u32 %v68, 4294901760
    %v4176 = vsub.f32 %v68, %v4175
    %4177 = vmatpush1.msra.mxu0 %v4176
    %v4178 = vand.u32 %v71, 4294901760
    %v4179 = vsub.f32 %v71, %v4178
    %4180 = vmatprep.subr.mxu0 %v4179
    %v4181 = vand.u32 %v70, 4294901760
    %v4182 = vsub.f32 %v70, %v4181
    %4183 = vmatpush1.msra.mxu0 %v4182
    %v4184 = vand.u32 %v73, 4294901760
    %v4185 = vsub.f32 %v73, %v4184
    %4186 = vmatprep.subr.mxu0 %v4185
    %v4187 = vand.u32 %v72, 4294901760
    %v4188 = vsub.f32 %v72, %v4187
    %4189 = vmatpush1.msra.mxu0 %v4188
    %v4190 = vand.u32 %v75, 4294901760
    %v4191 = vsub.f32 %v75, %v4190
    %4192 = vmatprep.subr.mxu0 %v4191
    %v4193 = vand.u32 %v74, 4294901760
    %v4194 = vsub.f32 %v74, %v4193
    %4195 = vmatpush1.msra.mxu0 %v4194
    %v4196 = vand.u32 %v77, 4294901760
    %v4197 = vsub.f32 %v77, %v4196
    %4198 = vmatprep.subr.mxu0 %v4197
    %v4199 = vand.u32 %v76, 4294901760
    %v4200 = vsub.f32 %v76, %v4199
    %4201 = vmatpush1.msra.mxu0 %v4200
    %v4202 = vand.u32 %v79, 4294901760
    %v4203 = vsub.f32 %v79, %v4202
    %4204 = vmatprep.subr.mxu0 %v4203
    %v4205 = vand.u32 %v78, 4294901760
    %v4206 = vsub.f32 %v78, %v4205
    %4207 = vmatpush1.msra.mxu0 %v4206
    %v4208 = vand.u32 %v81, 4294901760
    %v4209 = vsub.f32 %v81, %v4208
    %4210 = vmatprep.subr.mxu0 %v4209
    %v4211 = vand.u32 %v80, 4294901760
    %v4212 = vsub.f32 %v80, %v4211
    %4213 = vmatpush1.msra.mxu0 %v4212
    %v4214 = vand.u32 %v83, 4294901760
    %v4215 = vsub.f32 %v83, %v4214
    %4216 = vmatprep.subr.mxu0 %v4215
    %v4217 = vand.u32 %v82, 4294901760
    %v4218 = vsub.f32 %v82, %v4217
    %4219 = vmatpush1.msra.mxu0 %v4218
    %4220 = vmatprep.subr.mxu0 0.0
    %4221 = vmatpush1.msra.mxu0 0.0
    %4222 = vmatprep.subr.mxu0 0.0
    %4223 = vmatpush1.msra.mxu0 0.0
    %4224 = vmatprep.subr.mxu0 0.0
    %4225 = vmatpush1.msra.mxu0 0.0
    %4226 = vmatprep.subr.mxu0 0.0
    %4227 = vmatpush1.msra.mxu0 0.0
    %4228 = vmatprep.subr.mxu0 0.0
    %4229 = vmatpush1.msra.mxu0 0.0
    %4230 = vmatprep.subr.mxu0 0.0
    %4231 = vmatpush1.msra.mxu0 0.0
    %4232 = vmatprep.subr.mxu0 0.0
    %4233 = vmatpush1.msra.mxu0 0.0
    %4234 = vmatprep.subr.mxu0 0.0
    %4235 = vmatpush1.msra.mxu0 0.0
    %4236 = vmatprep.subr.mxu0 0.0
    %4237 = vmatpush1.msra.mxu0 0.0
    %4238 = vmatprep.subr.mxu0 0.0
    %4239 = vmatpush1.msra.mxu0 0.0
    %4240 = vmatprep.subr.mxu0 0.0
    %4241 = vmatpush1.msra.mxu0 0.0
    %4242 = vmatprep.subr.mxu0 0.0
    %4243 = vmatpush1.msra.mxu0 0.0
    %4244 = vmatprep.subr.mxu0 0.0
    %4245 = vmatpush1.msra.mxu0 0.0
    %4246 = vmatprep.subr.mxu0 0.0
    %4247 = vmatpush1.msra.mxu0 0.0
    %4248 = vmatprep.subr.mxu0 0.0
    %4249 = vmatpush1.msra.mxu0 0.0
    %4250 = vmatprep.subr.mxu0 0.0
    %4251 = vmatpush1.msra.mxu0 0.0
    %4252 = vmatprep.mubr.f32.mxu0 0.0
    %v4253 = vand.u32 %v3748, 4294901760
    %v4254 = vsub.f32 %v3748, %v4253
    %4255 = vmatmul.mubr.f32.gmra.mrb[0].mxu0 %v4254
    %v4256 = vpop.f32.mrb[0].mxu0
    %v4257 = vadd.f32 %v4120, %v4256
    %v4258 = vpop.f32.mrb[0].mxu0
    %v4259 = vadd.f32 %v4122, %v4258
    %4260 = vdwg.mxu0
    %v4261 = vand.u32 %v53, 4294901760
    %4262 = vmatprep.subr.mxu0 %v4261
    %v4263 = vand.u32 %v52, 4294901760
    %4264 = vmatpush1.msra.mxu0 %v4263
    %v4265 = vand.u32 %v55, 4294901760
    %4266 = vmatprep.subr.mxu0 %v4265
    %v4267 = vand.u32 %v54, 4294901760
    %4268 = vmatpush1.msra.mxu0 %v4267
    %v4269 = vand.u32 %v57, 4294901760
    %4270 = vmatprep.subr.mxu0 %v4269
    %v4271 = vand.u32 %v56, 4294901760
    %4272 = vmatpush1.msra.mxu0 %v4271
    %v4273 = vand.u32 %v59, 4294901760
    %4274 = vmatprep.subr.mxu0 %v4273
    %v4275 = vand.u32 %v58, 4294901760
    %4276 = vmatpush1.msra.mxu0 %v4275
    %v4277 = vand.u32 %v61, 4294901760
    %4278 = vmatprep.subr.mxu0 %v4277
    %v4279 = vand.u32 %v60, 4294901760
    %4280 = vmatpush1.msra.mxu0 %v4279
    %v4281 = vand.u32 %v63, 4294901760
    %4282 = vmatprep.subr.mxu0 %v4281
    %v4283 = vand.u32 %v62, 4294901760
    %4284 = vmatpush1.msra.mxu0 %v4283
    %v4285 = vand.u32 %v65, 4294901760
    %4286 = vmatprep.subr.mxu0 %v4285
    %v4287 = vand.u32 %v64, 4294901760
    %4288 = vmatpush1.msra.mxu0 %v4287
    %v4289 = vand.u32 %v67, 4294901760
    %4290 = vmatprep.subr.mxu0 %v4289
    %v4291 = vand.u32 %v66, 4294901760
    %4292 = vmatpush1.msra.mxu0 %v4291
    %v4293 = vand.u32 %v69, 4294901760
    %4294 = vmatprep.subr.mxu0 %v4293
    %v4295 = vand.u32 %v68, 4294901760
    %4296 = vmatpush1.msra.mxu0 %v4295
    %v4297 = vand.u32 %v71, 4294901760
    %4298 = vmatprep.subr.mxu0 %v4297
    %v4299 = vand.u32 %v70, 4294901760
    %4300 = vmatpush1.msra.mxu0 %v4299
    %v4301 = vand.u32 %v73, 4294901760
    %4302 = vmatprep.subr.mxu0 %v4301
    %v4303 = vand.u32 %v72, 4294901760
    %4304 = vmatpush1.msra.mxu0 %v4303
    %v4305 = vand.u32 %v75, 4294901760
    %4306 = vmatprep.subr.mxu0 %v4305
    %v4307 = vand.u32 %v74, 4294901760
    %4308 = vmatpush1.msra.mxu0 %v4307
    %v4309 = vand.u32 %v77, 4294901760
    %4310 = vmatprep.subr.mxu0 %v4309
    %v4311 = vand.u32 %v76, 4294901760
    %4312 = vmatpush1.msra.mxu0 %v4311
    %v4313 = vand.u32 %v79, 4294901760
    %4314 = vmatprep.subr.mxu0 %v4313
    %v4315 = vand.u32 %v78, 4294901760
    %4316 = vmatpush1.msra.mxu0 %v4315
    %v4317 = vand.u32 %v81, 4294901760
    %4318 = vmatprep.subr.mxu0 %v4317
    %v4319 = vand.u32 %v80, 4294901760
    %4320 = vmatpush1.msra.mxu0 %v4319
    %v4321 = vand.u32 %v83, 4294901760
    %4322 = vmatprep.subr.mxu0 %v4321
    %v4323 = vand.u32 %v82, 4294901760
    %4324 = vmatpush1.msra.mxu0 %v4323
    %4325 = vmatprep.subr.mxu0 0.0
    %4326 = vmatpush1.msra.mxu0 0.0
    %4327 = vmatprep.subr.mxu0 0.0
    %4328 = vmatpush1.msra.mxu0 0.0
    %4329 = vmatprep.subr.mxu0 0.0
    %4330 = vmatpush1.msra.mxu0 0.0
    %4331 = vmatprep.subr.mxu0 0.0
    %4332 = vmatpush1.msra.mxu0 0.0
    %4333 = vmatprep.subr.mxu0 0.0
    %4334 = vmatpush1.msra.mxu0 0.0
    %4335 = vmatprep.subr.mxu0 0.0
    %4336 = vmatpush1.msra.mxu0 0.0
    %4337 = vmatprep.subr.mxu0 0.0
    %4338 = vmatpush1.msra.mxu0 0.0
    %4339 = vmatprep.subr.mxu0 0.0
    %4340 = vmatpush1.msra.mxu0 0.0
    %4341 = vmatprep.subr.mxu0 0.0
    %4342 = vmatpush1.msra.mxu0 0.0
    %4343 = vmatprep.subr.mxu0 0.0
    %4344 = vmatpush1.msra.mxu0 0.0
    %4345 = vmatprep.subr.mxu0 0.0
    %4346 = vmatpush1.msra.mxu0 0.0
    %4347 = vmatprep.subr.mxu0 0.0
    %4348 = vmatpush1.msra.mxu0 0.0
    %4349 = vmatprep.subr.mxu0 0.0
    %4350 = vmatpush1.msra.mxu0 0.0
    %4351 = vmatprep.subr.mxu0 0.0
    %4352 = vmatpush1.msra.mxu0 0.0
    %4353 = vmatprep.subr.mxu0 0.0
    %4354 = vmatpush1.msra.mxu0 0.0
    %4355 = vmatprep.subr.mxu0 0.0
    %4356 = vmatpush1.msra.mxu0 0.0
    %4357 = vmatprep.mubr.f32.mxu0 0.0
    %v4358 = vand.u32 %v3748, 4294901760
    %v4359 = vsub.f32 %v3748, %v4358
    %v4360 = vand.u32 %v4359, 4294901760
    %4361 = vmatmul.mubr.f32.gmra.mrb[0].mxu0 %v4360
    %v4362 = vpop.f32.mrb[0].mxu0
    %v4363 = vadd.f32 %v4257, %v4362
    %v4364 = vpop.f32.mrb[0].mxu0
    %v4365 = vadd.f32 %v4259, %v4364
    %4366 = vdwg.mxu0
    %v4367 = vand.u32 %v53, 4294901760
    %v4368 = vsub.f32 %v53, %v4367
    %v4369 = vand.u32 %v4368, 4294901760
    %4370 = vmatprep.subr.mxu0 %v4369
    %v4371 = vand.u32 %v52, 4294901760
    %v4372 = vsub.f32 %v52, %v4371
    %v4373 = vand.u32 %v4372, 4294901760
    %4374 = vmatpush1.msra.mxu0 %v4373
    %v4375 = vand.u32 %v55, 4294901760
    %v4376 = vsub.f32 %v55, %v4375
    %v4377 = vand.u32 %v4376, 4294901760
    %4378 = vmatprep.subr.mxu0 %v4377
    %v4379 = vand.u32 %v54, 4294901760
    %v4380 = vsub.f32 %v54, %v4379
    %v4381 = vand.u32 %v4380, 4294901760
    %4382 = vmatpush1.msra.mxu0 %v4381
    %v4383 = vand.u32 %v57, 4294901760
    %v4384 = vsub.f32 %v57, %v4383
    %v4385 = vand.u32 %v4384, 4294901760
    %4386 = vmatprep.subr.mxu0 %v4385
    %v4387 = vand.u32 %v56, 4294901760
    %v4388 = vsub.f32 %v56, %v4387
    %v4389 = vand.u32 %v4388, 4294901760
    %4390 = vmatpush1.msra.mxu0 %v4389
    %v4391 = vand.u32 %v59, 4294901760
    %v4392 = vsub.f32 %v59, %v4391
    %v4393 = vand.u32 %v4392, 4294901760
    %4394 = vmatprep.subr.mxu0 %v4393
    %v4395 = vand.u32 %v58, 4294901760
    %v4396 = vsub.f32 %v58, %v4395
    %v4397 = vand.u32 %v4396, 4294901760
    %4398 = vmatpush1.msra.mxu0 %v4397
    %v4399 = vand.u32 %v61, 4294901760
    %v4400 = vsub.f32 %v61, %v4399
    %v4401 = vand.u32 %v4400, 4294901760
    %4402 = vmatprep.subr.mxu0 %v4401
    %v4403 = vand.u32 %v60, 4294901760
    %v4404 = vsub.f32 %v60, %v4403
    %v4405 = vand.u32 %v4404, 4294901760
    %4406 = vmatpush1.msra.mxu0 %v4405
    %v4407 = vand.u32 %v63, 4294901760
    %v4408 = vsub.f32 %v63, %v4407
    %v4409 = vand.u32 %v4408, 4294901760
    %4410 = vmatprep.subr.mxu0 %v4409
    %v4411 = vand.u32 %v62, 4294901760
    %v4412 = vsub.f32 %v62, %v4411
    %v4413 = vand.u32 %v4412, 4294901760
    %4414 = vmatpush1.msra.mxu0 %v4413
    %v4415 = vand.u32 %v65, 4294901760
    %v4416 = vsub.f32 %v65, %v4415
    %v4417 = vand.u32 %v4416, 4294901760
    %4418 = vmatprep.subr.mxu0 %v4417
    %v4419 = vand.u32 %v64, 4294901760
    %v4420 = vsub.f32 %v64, %v4419
    %v4421 = vand.u32 %v4420, 4294901760
    %4422 = vmatpush1.msra.mxu0 %v4421
    %v4423 = vand.u32 %v67, 4294901760
    %v4424 = vsub.f32 %v67, %v4423
    %v4425 = vand.u32 %v4424, 4294901760
    %4426 = vmatprep.subr.mxu0 %v4425
    %v4427 = vand.u32 %v66, 4294901760
    %v4428 = vsub.f32 %v66, %v4427
    %v4429 = vand.u32 %v4428, 4294901760
    %4430 = vmatpush1.msra.mxu0 %v4429
    %v4431 = vand.u32 %v69, 4294901760
    %v4432 = vsub.f32 %v69, %v4431
    %v4433 = vand.u32 %v4432, 4294901760
    %4434 = vmatprep.subr.mxu0 %v4433
    %v4435 = vand.u32 %v68, 4294901760
    %v4436 = vsub.f32 %v68, %v4435
    %v4437 = vand.u32 %v4436, 4294901760
    %4438 = vmatpush1.msra.mxu0 %v4437
    %v4439 = vand.u32 %v71, 4294901760
    %v4440 = vsub.f32 %v71, %v4439
    %v4441 = vand.u32 %v4440, 4294901760
    %4442 = vmatprep.subr.mxu0 %v4441
    %v4443 = vand.u32 %v70, 4294901760
    %v4444 = vsub.f32 %v70, %v4443
    %v4445 = vand.u32 %v4444, 4294901760
    %4446 = vmatpush1.msra.mxu0 %v4445
    %v4447 = vand.u32 %v73, 4294901760
    %v4448 = vsub.f32 %v73, %v4447
    %v4449 = vand.u32 %v4448, 4294901760
    %4450 = vmatprep.subr.mxu0 %v4449
    %v4451 = vand.u32 %v72, 4294901760
    %v4452 = vsub.f32 %v72, %v4451
    %v4453 = vand.u32 %v4452, 4294901760
    %4454 = vmatpush1.msra.mxu0 %v4453
    %v4455 = vand.u32 %v75, 4294901760
    %v4456 = vsub.f32 %v75, %v4455
    %v4457 = vand.u32 %v4456, 4294901760
    %4458 = vmatprep.subr.mxu0 %v4457
    %v4459 = vand.u32 %v74, 4294901760
    %v4460 = vsub.f32 %v74, %v4459
    %v4461 = vand.u32 %v4460, 4294901760
    %4462 = vmatpush1.msra.mxu0 %v4461
    %v4463 = vand.u32 %v77, 4294901760
    %v4464 = vsub.f32 %v77, %v4463
    %v4465 = vand.u32 %v4464, 4294901760
    %4466 = vmatprep.subr.mxu0 %v4465
    %v4467 = vand.u32 %v76, 4294901760
    %v4468 = vsub.f32 %v76, %v4467
    %v4469 = vand.u32 %v4468, 4294901760
    %4470 = vmatpush1.msra.mxu0 %v4469
    %v4471 = vand.u32 %v79, 4294901760
    %v4472 = vsub.f32 %v79, %v4471
    %v4473 = vand.u32 %v4472, 4294901760
    %4474 = vmatprep.subr.mxu0 %v4473
    %v4475 = vand.u32 %v78, 4294901760
    %v4476 = vsub.f32 %v78, %v4475
    %v4477 = vand.u32 %v4476, 4294901760
    %4478 = vmatpush1.msra.mxu0 %v4477
    %v4479 = vand.u32 %v81, 4294901760
    %v4480 = vsub.f32 %v81, %v4479
    %v4481 = vand.u32 %v4480, 4294901760
    %4482 = vmatprep.subr.mxu0 %v4481
    %v4483 = vand.u32 %v80, 4294901760
    %v4484 = vsub.f32 %v80, %v4483
    %v4485 = vand.u32 %v4484, 4294901760
    %4486 = vmatpush1.msra.mxu0 %v4485
    %v4487 = vand.u32 %v83, 4294901760
    %v4488 = vsub.f32 %v83, %v4487
    %v4489 = vand.u32 %v4488, 4294901760
    %4490 = vmatprep.subr.mxu0 %v4489
    %v4491 = vand.u32 %v82, 4294901760
    %v4492 = vsub.f32 %v82, %v4491
    %v4493 = vand.u32 %v4492, 4294901760
    %4494 = vmatpush1.msra.mxu0 %v4493
    %4495 = vmatprep.subr.mxu0 0.0
    %4496 = vmatpush1.msra.mxu0 0.0
    %4497 = vmatprep.subr.mxu0 0.0
    %4498 = vmatpush1.msra.mxu0 0.0
    %4499 = vmatprep.subr.mxu0 0.0
    %4500 = vmatpush1.msra.mxu0 0.0
    %4501 = vmatprep.subr.mxu0 0.0
    %4502 = vmatpush1.msra.mxu0 0.0
    %4503 = vmatprep.subr.mxu0 0.0
    %4504 = vmatpush1.msra.mxu0 0.0
    %4505 = vmatprep.subr.mxu0 0.0
    %4506 = vmatpush1.msra.mxu0 0.0
    %4507 = vmatprep.subr.mxu0 0.0
    %4508 = vmatpush1.msra.mxu0 0.0
    %4509 = vmatprep.subr.mxu0 0.0
    %4510 = vmatpush1.msra.mxu0 0.0
    %4511 = vmatprep.subr.mxu0 0.0
    %4512 = vmatpush1.msra.mxu0 0.0
    %4513 = vmatprep.subr.mxu0 0.0
    %4514 = vmatpush1.msra.mxu0 0.0
    %4515 = vmatprep.subr.mxu0 0.0
    %4516 = vmatpush1.msra.mxu0 0.0
    %4517 = vmatprep.subr.mxu0 0.0
    %4518 = vmatpush1.msra.mxu0 0.0
    %4519 = vmatprep.subr.mxu0 0.0
    %4520 = vmatpush1.msra.mxu0 0.0
    %4521 = vmatprep.subr.mxu0 0.0
    %4522 = vmatpush1.msra.mxu0 0.0
    %4523 = vmatprep.subr.mxu0 0.0
    %4524 = vmatpush1.msra.mxu0 0.0
    %4525 = vmatprep.subr.mxu0 0.0
    %4526 = vmatpush1.msra.mxu0 0.0
    %4527 = vmatprep.mubr.f32.mxu0 0.0
    %v4528 = vand.u32 %v3748, 4294901760
    %4529 = vmatmul.mubr.f32.gmra.mrb[0].mxu0 %v4528
    %v4530 = vpop.f32.mrb[0].mxu0
    %v4531 = vadd.f32 %v4363, %v4530
    %v4532 = vpop.f32.mrb[0].mxu0
    %v4533 = vadd.f32 %v4365, %v4532
    %4534 = vdwg.mxu0
    %v4535 = vand.u32 %v53, 4294901760
    %4536 = vmatprep.subr.mxu0 %v4535
    %v4537 = vand.u32 %v52, 4294901760
    %4538 = vmatpush1.msra.mxu0 %v4537
    %v4539 = vand.u32 %v55, 4294901760
    %4540 = vmatprep.subr.mxu0 %v4539
    %v4541 = vand.u32 %v54, 4294901760
    %4542 = vmatpush1.msra.mxu0 %v4541
    %v4543 = vand.u32 %v57, 4294901760
    %4544 = vmatprep.subr.mxu0 %v4543
    %v4545 = vand.u32 %v56, 4294901760
    %4546 = vmatpush1.msra.mxu0 %v4545
    %v4547 = vand.u32 %v59, 4294901760
    %4548 = vmatprep.subr.mxu0 %v4547
    %v4549 = vand.u32 %v58, 4294901760
    %4550 = vmatpush1.msra.mxu0 %v4549
    %v4551 = vand.u32 %v61, 4294901760
    %4552 = vmatprep.subr.mxu0 %v4551
    %v4553 = vand.u32 %v60, 4294901760
    %4554 = vmatpush1.msra.mxu0 %v4553
    %v4555 = vand.u32 %v63, 4294901760
    %4556 = vmatprep.subr.mxu0 %v4555
    %v4557 = vand.u32 %v62, 4294901760
    %4558 = vmatpush1.msra.mxu0 %v4557
    %v4559 = vand.u32 %v65, 4294901760
    %4560 = vmatprep.subr.mxu0 %v4559
    %v4561 = vand.u32 %v64, 4294901760
    %4562 = vmatpush1.msra.mxu0 %v4561
    %v4563 = vand.u32 %v67, 4294901760
    %4564 = vmatprep.subr.mxu0 %v4563
    %v4565 = vand.u32 %v66, 4294901760
    %4566 = vmatpush1.msra.mxu0 %v4565
    %v4567 = vand.u32 %v69, 4294901760
    %4568 = vmatprep.subr.mxu0 %v4567
    %v4569 = vand.u32 %v68, 4294901760
    %4570 = vmatpush1.msra.mxu0 %v4569
    %v4571 = vand.u32 %v71, 4294901760
    %4572 = vmatprep.subr.mxu0 %v4571
    %v4573 = vand.u32 %v70, 4294901760
    %4574 = vmatpush1.msra.mxu0 %v4573
    %v4575 = vand.u32 %v73, 4294901760
    %4576 = vmatprep.subr.mxu0 %v4575
    %v4577 = vand.u32 %v72, 4294901760
    %4578 = vmatpush1.msra.mxu0 %v4577
    %v4579 = vand.u32 %v75, 4294901760
    %4580 = vmatprep.subr.mxu0 %v4579
    %v4581 = vand.u32 %v74, 4294901760
    %4582 = vmatpush1.msra.mxu0 %v4581
    %v4583 = vand.u32 %v77, 4294901760
    %4584 = vmatprep.subr.mxu0 %v4583
    %v4585 = vand.u32 %v76, 4294901760
    %4586 = vmatpush1.msra.mxu0 %v4585
    %v4587 = vand.u32 %v79, 4294901760
    %4588 = vmatprep.subr.mxu0 %v4587
    %v4589 = vand.u32 %v78, 4294901760
    %4590 = vmatpush1.msra.mxu0 %v4589
    %v4591 = vand.u32 %v81, 4294901760
    %4592 = vmatprep.subr.mxu0 %v4591
    %v4593 = vand.u32 %v80, 4294901760
    %4594 = vmatpush1.msra.mxu0 %v4593
    %v4595 = vand.u32 %v83, 4294901760
    %4596 = vmatprep.subr.mxu0 %v4595
    %v4597 = vand.u32 %v82, 4294901760
    %4598 = vmatpush1.msra.mxu0 %v4597
    %4599 = vmatprep.subr.mxu0 0.0
    %4600 = vmatpush1.msra.mxu0 0.0
    %4601 = vmatprep.subr.mxu0 0.0
    %4602 = vmatpush1.msra.mxu0 0.0
    %4603 = vmatprep.subr.mxu0 0.0
    %4604 = vmatpush1.msra.mxu0 0.0
    %4605 = vmatprep.subr.mxu0 0.0
    %4606 = vmatpush1.msra.mxu0 0.0
    %4607 = vmatprep.subr.mxu0 0.0
    %4608 = vmatpush1.msra.mxu0 0.0
    %4609 = vmatprep.subr.mxu0 0.0
    %4610 = vmatpush1.msra.mxu0 0.0
    %4611 = vmatprep.subr.mxu0 0.0
    %4612 = vmatpush1.msra.mxu0 0.0
    %4613 = vmatprep.subr.mxu0 0.0
    %4614 = vmatpush1.msra.mxu0 0.0
    %4615 = vmatprep.subr.mxu0 0.0
    %4616 = vmatpush1.msra.mxu0 0.0
    %4617 = vmatprep.subr.mxu0 0.0
    %4618 = vmatpush1.msra.mxu0 0.0
    %4619 = vmatprep.subr.mxu0 0.0
    %4620 = vmatpush1.msra.mxu0 0.0
    %4621 = vmatprep.subr.mxu0 0.0
    %4622 = vmatpush1.msra.mxu0 0.0
    %4623 = vmatprep.subr.mxu0 0.0
    %4624 = vmatpush1.msra.mxu0 0.0
    %4625 = vmatprep.subr.mxu0 0.0
    %4626 = vmatpush1.msra.mxu0 0.0
    %4627 = vmatprep.subr.mxu0 0.0
    %4628 = vmatpush1.msra.mxu0 0.0
    %4629 = vmatprep.subr.mxu0 0.0
    %4630 = vmatpush1.msra.mxu0 0.0
    %4631 = vmatprep.mubr.f32.mxu0 0.0
    %v4632 = vand.u32 %v3748, 4294901760
    %4633 = vmatmul.mubr.f32.gmra.mrb[0].mxu0 %v4632
    %v4634 = vpop.f32.mrb[0].mxu0
    %v4635 = vadd.f32 %v4531, %v4634
    %v4636 = vpop.f32.mrb[0].mxu0
    %v4637 = vadd.f32 %v4533, %v4636
    %4638 = vdwg.mxu0
    %v4639 = vand.u32 %v85, 4294901760
    %4640 = vmatprep.subr.mxu0 %v4639
    %v4641 = vand.u32 %v84, 4294901760
    %4642 = vmatpush1.msra.mxu0 %v4641
    %v4643 = vand.u32 %v87, 4294901760
    %4644 = vmatprep.subr.mxu0 %v4643
    %v4645 = vand.u32 %v86, 4294901760
    %4646 = vmatpush1.msra.mxu0 %v4645
    %v4647 = vand.u32 %v89, 4294901760
    %4648 = vmatprep.subr.mxu0 %v4647
    %v4649 = vand.u32 %v88, 4294901760
    %4650 = vmatpush1.msra.mxu0 %v4649
    %v4651 = vand.u32 %v91, 4294901760
    %4652 = vmatprep.subr.mxu0 %v4651
    %v4653 = vand.u32 %v90, 4294901760
    %4654 = vmatpush1.msra.mxu0 %v4653
    %v4655 = vand.u32 %v93, 4294901760
    %4656 = vmatprep.subr.mxu0 %v4655
    %v4657 = vand.u32 %v92, 4294901760
    %4658 = vmatpush1.msra.mxu0 %v4657
    %v4659 = vand.u32 %v95, 4294901760
    %4660 = vmatprep.subr.mxu0 %v4659
    %v4661 = vand.u32 %v94, 4294901760
    %4662 = vmatpush1.msra.mxu0 %v4661
    %v4663 = vand.u32 %v97, 4294901760
    %4664 = vmatprep.subr.mxu0 %v4663
    %v4665 = vand.u32 %v96, 4294901760
    %4666 = vmatpush1.msra.mxu0 %v4665
    %v4667 = vand.u32 %v99, 4294901760
    %4668 = vmatprep.subr.mxu0 %v4667
    %v4669 = vand.u32 %v98, 4294901760
    %4670 = vmatpush1.msra.mxu0 %v4669
    %v4671 = vand.u32 %v101, 4294901760
    %4672 = vmatprep.subr.mxu0 %v4671
    %v4673 = vand.u32 %v100, 4294901760
    %4674 = vmatpush1.msra.mxu0 %v4673
    %v4675 = vand.u32 %v103, 4294901760
    %4676 = vmatprep.subr.mxu0 %v4675
    %v4677 = vand.u32 %v102, 4294901760
    %4678 = vmatpush1.msra.mxu0 %v4677
    %v4679 = vand.u32 %v105, 4294901760
    %4680 = vmatprep.subr.mxu0 %v4679
    %v4681 = vand.u32 %v104, 4294901760
    %4682 = vmatpush1.msra.mxu0 %v4681
    %v4683 = vand.u32 %v107, 4294901760
    %4684 = vmatprep.subr.mxu0 %v4683
    %v4685 = vand.u32 %v106, 4294901760
    %4686 = vmatpush1.msra.mxu0 %v4685
    %v4687 = vand.u32 %v109, 4294901760
    %4688 = vmatprep.subr.mxu0 %v4687
    %v4689 = vand.u32 %v108, 4294901760
    %4690 = vmatpush1.msra.mxu0 %v4689
    %v4691 = vand.u32 %v111, 4294901760
    %4692 = vmatprep.subr.mxu0 %v4691
    %v4693 = vand.u32 %v110, 4294901760
    %4694 = vmatpush1.msra.mxu0 %v4693
    %v4695 = vand.u32 %v113, 4294901760
    %4696 = vmatprep.subr.mxu0 %v4695
    %v4697 = vand.u32 %v112, 4294901760
    %4698 = vmatpush1.msra.mxu0 %v4697
    %v4699 = vand.u32 %v115, 4294901760
    %4700 = vmatprep.subr.mxu0 %v4699
    %v4701 = vand.u32 %v114, 4294901760
    %4702 = vmatpush1.msra.mxu0 %v4701
    %4703 = vmatprep.subr.mxu0 0.0
    %4704 = vmatpush1.msra.mxu0 0.0
    %4705 = vmatprep.subr.mxu0 0.0
    %4706 = vmatpush1.msra.mxu0 0.0
    %4707 = vmatprep.subr.mxu0 0.0
    %4708 = vmatpush1.msra.mxu0 0.0
    %4709 = vmatprep.subr.mxu0 0.0
    %4710 = vmatpush1.msra.mxu0 0.0
    %4711 = vmatprep.subr.mxu0 0.0
    %4712 = vmatpush1.msra.mxu0 0.0
    %4713 = vmatprep.subr.mxu0 0.0
    %4714 = vmatpush1.msra.mxu0 0.0
    %4715 = vmatprep.subr.mxu0 0.0
    %4716 = vmatpush1.msra.mxu0 0.0
    %4717 = vmatprep.subr.mxu0 0.0
    %4718 = vmatpush1.msra.mxu0 0.0
    %4719 = vmatprep.subr.mxu0 0.0
    %4720 = vmatpush1.msra.mxu0 0.0
    %4721 = vmatprep.subr.mxu0 0.0
    %4722 = vmatpush1.msra.mxu0 0.0
    %4723 = vmatprep.subr.mxu0 0.0
    %4724 = vmatpush1.msra.mxu0 0.0
    %4725 = vmatprep.subr.mxu0 0.0
    %4726 = vmatpush1.msra.mxu0 0.0
    %4727 = vmatprep.subr.mxu0 0.0
    %4728 = vmatpush1.msra.mxu0 0.0
    %4729 = vmatprep.subr.mxu0 0.0
    %4730 = vmatpush1.msra.mxu0 0.0
    %4731 = vmatprep.subr.mxu0 0.0
    %4732 = vmatpush1.msra.mxu0 0.0
    %4733 = vmatprep.subr.mxu0 0.0
    %4734 = vmatpush1.msra.mxu0 0.0
    %4735 = vmatprep.mubr.f32.mxu0 0.0
    %v4736 = vand.u32 %v3750, 4294901760
    %v4737 = vsub.f32 %v3750, %v4736
    %v4738 = vand.u32 %v4737, 4294901760
    %v4739 = vsub.f32 %v4737, %v4738
    %v4740 = vand.u32 %v4739, 4294901760
    %4741 = vmatmul.mubr.f32.gmra.mrb[0].mxu0 %v4740
    %v4742 = vpop.f32.mrb[0].mxu0
    %v4743 = vadd.f32 0.0, %v4742
    %v4744 = vpop.f32.mrb[0].mxu0
    %v4745 = vadd.f32 0.0, %v4744
    %4746 = vdwg.mxu0
    %v4747 = vand.u32 %v85, 4294901760
    %v4748 = vsub.f32 %v85, %v4747
    %v4749 = vand.u32 %v4748, 4294901760
    %v4750 = vsub.f32 %v4748, %v4749
    %v4751 = vand.u32 %v4750, 4294901760
    %4752 = vmatprep.subr.mxu0 %v4751
    %v4753 = vand.u32 %v84, 4294901760
    %v4754 = vsub.f32 %v84, %v4753
    %v4755 = vand.u32 %v4754, 4294901760
    %v4756 = vsub.f32 %v4754, %v4755
    %v4757 = vand.u32 %v4756, 4294901760
    %4758 = vmatpush1.msra.mxu0 %v4757
    %v4759 = vand.u32 %v87, 4294901760
    %v4760 = vsub.f32 %v87, %v4759
    %v4761 = vand.u32 %v4760, 4294901760
    %v4762 = vsub.f32 %v4760, %v4761
    %v4763 = vand.u32 %v4762, 4294901760
    %4764 = vmatprep.subr.mxu0 %v4763
    %v4765 = vand.u32 %v86, 4294901760
    %v4766 = vsub.f32 %v86, %v4765
    %v4767 = vand.u32 %v4766, 4294901760
    %v4768 = vsub.f32 %v4766, %v4767
    %v4769 = vand.u32 %v4768, 4294901760
    %4770 = vmatpush1.msra.mxu0 %v4769
    %v4771 = vand.u32 %v89, 4294901760
    %v4772 = vsub.f32 %v89, %v4771
    %v4773 = vand.u32 %v4772, 4294901760
    %v4774 = vsub.f32 %v4772, %v4773
    %v4775 = vand.u32 %v4774, 4294901760
    %4776 = vmatprep.subr.mxu0 %v4775
    %v4777 = vand.u32 %v88, 4294901760
    %v4778 = vsub.f32 %v88, %v4777
    %v4779 = vand.u32 %v4778, 4294901760
    %v4780 = vsub.f32 %v4778, %v4779
    %v4781 = vand.u32 %v4780, 4294901760
    %4782 = vmatpush1.msra.mxu0 %v4781
    %v4783 = vand.u32 %v91, 4294901760
    %v4784 = vsub.f32 %v91, %v4783
    %v4785 = vand.u32 %v4784, 4294901760
    %v4786 = vsub.f32 %v4784, %v4785
    %v4787 = vand.u32 %v4786, 4294901760
    %4788 = vmatprep.subr.mxu0 %v4787
    %v4789 = vand.u32 %v90, 4294901760
    %v4790 = vsub.f32 %v90, %v4789
    %v4791 = vand.u32 %v4790, 4294901760
    %v4792 = vsub.f32 %v4790, %v4791
    %v4793 = vand.u32 %v4792, 4294901760
    %4794 = vmatpush1.msra.mxu0 %v4793
    %v4795 = vand.u32 %v93, 4294901760
    %v4796 = vsub.f32 %v93, %v4795
    %v4797 = vand.u32 %v4796, 4294901760
    %v4798 = vsub.f32 %v4796, %v4797
    %v4799 = vand.u32 %v4798, 4294901760
    %4800 = vmatprep.subr.mxu0 %v4799
    %v4801 = vand.u32 %v92, 4294901760
    %v4802 = vsub.f32 %v92, %v4801
    %v4803 = vand.u32 %v4802, 4294901760
    %v4804 = vsub.f32 %v4802, %v4803
    %v4805 = vand.u32 %v4804, 4294901760
    %4806 = vmatpush1.msra.mxu0 %v4805
    %v4807 = vand.u32 %v95, 4294901760
    %v4808 = vsub.f32 %v95, %v4807
    %v4809 = vand.u32 %v4808, 4294901760
    %v4810 = vsub.f32 %v4808, %v4809
    %v4811 = vand.u32 %v4810, 4294901760
    %4812 = vmatprep.subr.mxu0 %v4811
    %v4813 = vand.u32 %v94, 4294901760
    %v4814 = vsub.f32 %v94, %v4813
    %v4815 = vand.u32 %v4814, 4294901760
    %v4816 = vsub.f32 %v4814, %v4815
    %v4817 = vand.u32 %v4816, 4294901760
    %4818 = vmatpush1.msra.mxu0 %v4817
    %v4819 = vand.u32 %v97, 4294901760
    %v4820 = vsub.f32 %v97, %v4819
    %v4821 = vand.u32 %v4820, 4294901760
    %v4822 = vsub.f32 %v4820, %v4821
    %v4823 = vand.u32 %v4822, 4294901760
    %4824 = vmatprep.subr.mxu0 %v4823
    %v4825 = vand.u32 %v96, 4294901760
    %v4826 = vsub.f32 %v96, %v4825
    %v4827 = vand.u32 %v4826, 4294901760
    %v4828 = vsub.f32 %v4826, %v4827
    %v4829 = vand.u32 %v4828, 4294901760
    %4830 = vmatpush1.msra.mxu0 %v4829
    %v4831 = vand.u32 %v99, 4294901760
    %v4832 = vsub.f32 %v99, %v4831
    %v4833 = vand.u32 %v4832, 4294901760
    %v4834 = vsub.f32 %v4832, %v4833
    %v4835 = vand.u32 %v4834, 4294901760
    %4836 = vmatprep.subr.mxu0 %v4835
    %v4837 = vand.u32 %v98, 4294901760
    %v4838 = vsub.f32 %v98, %v4837
    %v4839 = vand.u32 %v4838, 4294901760
    %v4840 = vsub.f32 %v4838, %v4839
    %v4841 = vand.u32 %v4840, 4294901760
    %4842 = vmatpush1.msra.mxu0 %v4841
    %v4843 = vand.u32 %v101, 4294901760
    %v4844 = vsub.f32 %v101, %v4843
    %v4845 = vand.u32 %v4844, 4294901760
    %v4846 = vsub.f32 %v4844, %v4845
    %v4847 = vand.u32 %v4846, 4294901760
    %4848 = vmatprep.subr.mxu0 %v4847
    %v4849 = vand.u32 %v100, 4294901760
    %v4850 = vsub.f32 %v100, %v4849
    %v4851 = vand.u32 %v4850, 4294901760
    %v4852 = vsub.f32 %v4850, %v4851
    %v4853 = vand.u32 %v4852, 4294901760
    %4854 = vmatpush1.msra.mxu0 %v4853
    %v4855 = vand.u32 %v103, 4294901760
    %v4856 = vsub.f32 %v103, %v4855
    %v4857 = vand.u32 %v4856, 4294901760
    %v4858 = vsub.f32 %v4856, %v4857
    %v4859 = vand.u32 %v4858, 4294901760
    %4860 = vmatprep.subr.mxu0 %v4859
    %v4861 = vand.u32 %v102, 4294901760
    %v4862 = vsub.f32 %v102, %v4861
    %v4863 = vand.u32 %v4862, 4294901760
    %v4864 = vsub.f32 %v4862, %v4863
    %v4865 = vand.u32 %v4864, 4294901760
    %4866 = vmatpush1.msra.mxu0 %v4865
    %v4867 = vand.u32 %v105, 4294901760
    %v4868 = vsub.f32 %v105, %v4867
    %v4869 = vand.u32 %v4868, 4294901760
    %v4870 = vsub.f32 %v4868, %v4869
    %v4871 = vand.u32 %v4870, 4294901760
    %4872 = vmatprep.subr.mxu0 %v4871
    %v4873 = vand.u32 %v104, 4294901760
    %v4874 = vsub.f32 %v104, %v4873
    %v4875 = vand.u32 %v4874, 4294901760
    %v4876 = vsub.f32 %v4874, %v4875
    %v4877 = vand.u32 %v4876, 4294901760
    %4878 = vmatpush1.msra.mxu0 %v4877
    %v4879 = vand.u32 %v107, 4294901760
    %v4880 = vsub.f32 %v107, %v4879
    %v4881 = vand.u32 %v4880, 4294901760
    %v4882 = vsub.f32 %v4880, %v4881
    %v4883 = vand.u32 %v4882, 4294901760
    %4884 = vmatprep.subr.mxu0 %v4883
    %v4885 = vand.u32 %v106, 4294901760
    %v4886 = vsub.f32 %v106, %v4885
    %v4887 = vand.u32 %v4886, 4294901760
    %v4888 = vsub.f32 %v4886, %v4887
    %v4889 = vand.u32 %v4888, 4294901760
    %4890 = vmatpush1.msra.mxu0 %v4889
    %v4891 = vand.u32 %v109, 4294901760
    %v4892 = vsub.f32 %v109, %v4891
    %v4893 = vand.u32 %v4892, 4294901760
    %v4894 = vsub.f32 %v4892, %v4893
    %v4895 = vand.u32 %v4894, 4294901760
    %4896 = vmatprep.subr.mxu0 %v4895
    %v4897 = vand.u32 %v108, 4294901760
    %v4898 = vsub.f32 %v108, %v4897
    %v4899 = vand.u32 %v4898, 4294901760
    %v4900 = vsub.f32 %v4898, %v4899
    %v4901 = vand.u32 %v4900, 4294901760
    %4902 = vmatpush1.msra.mxu0 %v4901
    %v4903 = vand.u32 %v111, 4294901760
    %v4904 = vsub.f32 %v111, %v4903
    %v4905 = vand.u32 %v4904, 4294901760
    %v4906 = vsub.f32 %v4904, %v4905
    %v4907 = vand.u32 %v4906, 4294901760
    %4908 = vmatprep.subr.mxu0 %v4907
    %v4909 = vand.u32 %v110, 4294901760
    %v4910 = vsub.f32 %v110, %v4909
    %v4911 = vand.u32 %v4910, 4294901760
    %v4912 = vsub.f32 %v4910, %v4911
    %v4913 = vand.u32 %v4912, 4294901760
    %4914 = vmatpush1.msra.mxu0 %v4913
    %v4915 = vand.u32 %v113, 4294901760
    %v4916 = vsub.f32 %v113, %v4915
    %v4917 = vand.u32 %v4916, 4294901760
    %v4918 = vsub.f32 %v4916, %v4917
    %v4919 = vand.u32 %v4918, 4294901760
    %4920 = vmatprep.subr.mxu0 %v4919
    %v4921 = vand.u32 %v112, 4294901760
    %v4922 = vsub.f32 %v112, %v4921
    %v4923 = vand.u32 %v4922, 4294901760
    %v4924 = vsub.f32 %v4922, %v4923
    %v4925 = vand.u32 %v4924, 4294901760
    %4926 = vmatpush1.msra.mxu0 %v4925
    %v4927 = vand.u32 %v115, 4294901760
    %v4928 = vsub.f32 %v115, %v4927
    %v4929 = vand.u32 %v4928, 4294901760
    %v4930 = vsub.f32 %v4928, %v4929
    %v4931 = vand.u32 %v4930, 4294901760
    %4932 = vmatprep.subr.mxu0 %v4931
    %v4933 = vand.u32 %v114, 4294901760
    %v4934 = vsub.f32 %v114, %v4933
    %v4935 = vand.u32 %v4934, 4294901760
    %v4936 = vsub.f32 %v4934, %v4935
    %v4937 = vand.u32 %v4936, 4294901760
    %4938 = vmatpush1.msra.mxu0 %v4937
    %4939 = vmatprep.subr.mxu0 0.0
    %4940 = vmatpush1.msra.mxu0 0.0
    %4941 = vmatprep.subr.mxu0 0.0
    %4942 = vmatpush1.msra.mxu0 0.0
    %4943 = vmatprep.subr.mxu0 0.0
    %4944 = vmatpush1.msra.mxu0 0.0
    %4945 = vmatprep.subr.mxu0 0.0
    %4946 = vmatpush1.msra.mxu0 0.0
    %4947 = vmatprep.subr.mxu0 0.0
    %4948 = vmatpush1.msra.mxu0 0.0
    %4949 = vmatprep.subr.mxu0 0.0
    %4950 = vmatpush1.msra.mxu0 0.0
    %4951 = vmatprep.subr.mxu0 0.0
    %4952 = vmatpush1.msra.mxu0 0.0
    %4953 = vmatprep.subr.mxu0 0.0
    %4954 = vmatpush1.msra.mxu0 0.0
    %4955 = vmatprep.subr.mxu0 0.0
    %4956 = vmatpush1.msra.mxu0 0.0
    %4957 = vmatprep.subr.mxu0 0.0
    %4958 = vmatpush1.msra.mxu0 0.0
    %4959 = vmatprep.subr.mxu0 0.0
    %4960 = vmatpush1.msra.mxu0 0.0
    %4961 = vmatprep.subr.mxu0 0.0
    %4962 = vmatpush1.msra.mxu0 0.0
    %4963 = vmatprep.subr.mxu0 0.0
    %4964 = vmatpush1.msra.mxu0 0.0
    %4965 = vmatprep.subr.mxu0 0.0
    %4966 = vmatpush1.msra.mxu0 0.0
    %4967 = vmatprep.subr.mxu0 0.0
    %4968 = vmatpush1.msra.mxu0 0.0
    %4969 = vmatprep.subr.mxu0 0.0
    %4970 = vmatpush1.msra.mxu0 0.0
    %4971 = vmatprep.mubr.f32.mxu0 0.0
    %v4972 = vand.u32 %v3750, 4294901760
    %4973 = vmatmul.mubr.f32.gmra.mrb[0].mxu0 %v4972
    %v4974 = vpop.f32.mrb[0].mxu0
    %v4975 = vadd.f32 %v4743, %v4974
    %v4976 = vpop.f32.mrb[0].mxu0
    %v4977 = vadd.f32 %v4745, %v4976
    %4978 = vdwg.mxu0
    %v4979 = vand.u32 %v85, 4294901760
    %v4980 = vsub.f32 %v85, %v4979
    %4981 = vmatprep.subr.mxu0 %v4980
    %v4982 = vand.u32 %v84, 4294901760
    %v4983 = vsub.f32 %v84, %v4982
    %4984 = vmatpush1.msra.mxu0 %v4983
    %v4985 = vand.u32 %v87, 4294901760
    %v4986 = vsub.f32 %v87, %v4985
    %4987 = vmatprep.subr.mxu0 %v4986
    %v4988 = vand.u32 %v86, 4294901760
    %v4989 = vsub.f32 %v86, %v4988
    %4990 = vmatpush1.msra.mxu0 %v4989
    %v4991 = vand.u32 %v89, 4294901760
    %v4992 = vsub.f32 %v89, %v4991
    %4993 = vmatprep.subr.mxu0 %v4992
    %v4994 = vand.u32 %v88, 4294901760
    %v4995 = vsub.f32 %v88, %v4994
    %4996 = vmatpush1.msra.mxu0 %v4995
    %v4997 = vand.u32 %v91, 4294901760
    %v4998 = vsub.f32 %v91, %v4997
    %4999 = vmatprep.subr.mxu0 %v4998
    %v5000 = vand.u32 %v90, 4294901760
    %v5001 = vsub.f32 %v90, %v5000
    %5002 = vmatpush1.msra.mxu0 %v5001
    %v5003 = vand.u32 %v93, 4294901760
    %v5004 = vsub.f32 %v93, %v5003
    %5005 = vmatprep.subr.mxu0 %v5004
    %v5006 = vand.u32 %v92, 4294901760
    %v5007 = vsub.f32 %v92, %v5006
    %5008 = vmatpush1.msra.mxu0 %v5007
    %v5009 = vand.u32 %v95, 4294901760
    %v5010 = vsub.f32 %v95, %v5009
    %5011 = vmatprep.subr.mxu0 %v5010
    %v5012 = vand.u32 %v94, 4294901760
    %v5013 = vsub.f32 %v94, %v5012
    %5014 = vmatpush1.msra.mxu0 %v5013
    %v5015 = vand.u32 %v97, 4294901760
    %v5016 = vsub.f32 %v97, %v5015
    %5017 = vmatprep.subr.mxu0 %v5016
    %v5018 = vand.u32 %v96, 4294901760
    %v5019 = vsub.f32 %v96, %v5018
    %5020 = vmatpush1.msra.mxu0 %v5019
    %v5021 = vand.u32 %v99, 4294901760
    %v5022 = vsub.f32 %v99, %v5021
    %5023 = vmatprep.subr.mxu0 %v5022
    %v5024 = vand.u32 %v98, 4294901760
    %v5025 = vsub.f32 %v98, %v5024
    %5026 = vmatpush1.msra.mxu0 %v5025
    %v5027 = vand.u32 %v101, 4294901760
    %v5028 = vsub.f32 %v101, %v5027
    %5029 = vmatprep.subr.mxu0 %v5028
    %v5030 = vand.u32 %v100, 4294901760
    %v5031 = vsub.f32 %v100, %v5030
    %5032 = vmatpush1.msra.mxu0 %v5031
    %v5033 = vand.u32 %v103, 4294901760
    %v5034 = vsub.f32 %v103, %v5033
    %5035 = vmatprep.subr.mxu0 %v5034
    %v5036 = vand.u32 %v102, 4294901760
    %v5037 = vsub.f32 %v102, %v5036
    %5038 = vmatpush1.msra.mxu0 %v5037
    %v5039 = vand.u32 %v105, 4294901760
    %v5040 = vsub.f32 %v105, %v5039
    %5041 = vmatprep.subr.mxu0 %v5040
    %v5042 = vand.u32 %v104, 4294901760
    %v5043 = vsub.f32 %v104, %v5042
    %5044 = vmatpush1.msra.mxu0 %v5043
    %v5045 = vand.u32 %v107, 4294901760
    %v5046 = vsub.f32 %v107, %v5045
    %5047 = vmatprep.subr.mxu0 %v5046
    %v5048 = vand.u32 %v106, 4294901760
    %v5049 = vsub.f32 %v106, %v5048
    %5050 = vmatpush1.msra.mxu0 %v5049
    %v5051 = vand.u32 %v109, 4294901760
    %v5052 = vsub.f32 %v109, %v5051
    %5053 = vmatprep.subr.mxu0 %v5052
    %v5054 = vand.u32 %v108, 4294901760
    %v5055 = vsub.f32 %v108, %v5054
    %5056 = vmatpush1.msra.mxu0 %v5055
    %v5057 = vand.u32 %v111, 4294901760
    %v5058 = vsub.f32 %v111, %v5057
    %5059 = vmatprep.subr.mxu0 %v5058
    %v5060 = vand.u32 %v110, 4294901760
    %v5061 = vsub.f32 %v110, %v5060
    %5062 = vmatpush1.msra.mxu0 %v5061
    %v5063 = vand.u32 %v113, 4294901760
    %v5064 = vsub.f32 %v113, %v5063
    %5065 = vmatprep.subr.mxu0 %v5064
    %v5066 = vand.u32 %v112, 4294901760
    %v5067 = vsub.f32 %v112, %v5066
    %5068 = vmatpush1.msra.mxu0 %v5067
    %v5069 = vand.u32 %v115, 4294901760
    %v5070 = vsub.f32 %v115, %v5069
    %5071 = vmatprep.subr.mxu0 %v5070
    %v5072 = vand.u32 %v114, 4294901760
    %v5073 = vsub.f32 %v114, %v5072
    %5074 = vmatpush1.msra.mxu0 %v5073
    %5075 = vmatprep.subr.mxu0 0.0
    %5076 = vmatpush1.msra.mxu0 0.0
    %5077 = vmatprep.subr.mxu0 0.0
    %5078 = vmatpush1.msra.mxu0 0.0
    %5079 = vmatprep.subr.mxu0 0.0
    %5080 = vmatpush1.msra.mxu0 0.0
    %5081 = vmatprep.subr.mxu0 0.0
    %5082 = vmatpush1.msra.mxu0 0.0
    %5083 = vmatprep.subr.mxu0 0.0
    %5084 = vmatpush1.msra.mxu0 0.0
    %5085 = vmatprep.subr.mxu0 0.0
    %5086 = vmatpush1.msra.mxu0 0.0
    %5087 = vmatprep.subr.mxu0 0.0
    %5088 = vmatpush1.msra.mxu0 0.0
    %5089 = vmatprep.subr.mxu0 0.0
    %5090 = vmatpush1.msra.mxu0 0.0
    %5091 = vmatprep.subr.mxu0 0.0
    %5092 = vmatpush1.msra.mxu0 0.0
    %5093 = vmatprep.subr.mxu0 0.0
    %5094 = vmatpush1.msra.mxu0 0.0
    %5095 = vmatprep.subr.mxu0 0.0
    %5096 = vmatpush1.msra.mxu0 0.0
    %5097 = vmatprep.subr.mxu0 0.0
    %5098 = vmatpush1.msra.mxu0 0.0
    %5099 = vmatprep.subr.mxu0 0.0
    %5100 = vmatpush1.msra.mxu0 0.0
    %5101 = vmatprep.subr.mxu0 0.0
    %5102 = vmatpush1.msra.mxu0 0.0
    %5103 = vmatprep.subr.mxu0 0.0
    %5104 = vmatpush1.msra.mxu0 0.0
    %5105 = vmatprep.subr.mxu0 0.0
    %5106 = vmatpush1.msra.mxu0 0.0
    %5107 = vmatprep.mubr.f32.mxu0 0.0
    %v5108 = vand.u32 %v3750, 4294901760
    %v5109 = vsub.f32 %v3750, %v5108
    %5110 = vmatmul.mubr.f32.gmra.mrb[0].mxu0 %v5109
    %v5111 = vpop.f32.mrb[0].mxu0
    %v5112 = vadd.f32 %v4975, %v5111
    %v5113 = vpop.f32.mrb[0].mxu0
    %v5114 = vadd.f32 %v4977, %v5113
    %5115 = vdwg.mxu0
    %v5116 = vand.u32 %v85, 4294901760
    %5117 = vmatprep.subr.mxu0 %v5116
    %v5118 = vand.u32 %v84, 4294901760
    %5119 = vmatpush1.msra.mxu0 %v5118
    %v5120 = vand.u32 %v87, 4294901760
    %5121 = vmatprep.subr.mxu0 %v5120
    %v5122 = vand.u32 %v86, 4294901760
    %5123 = vmatpush1.msra.mxu0 %v5122
    %v5124 = vand.u32 %v89, 4294901760
    %5125 = vmatprep.subr.mxu0 %v5124
    %v5126 = vand.u32 %v88, 4294901760
    %5127 = vmatpush1.msra.mxu0 %v5126
    %v5128 = vand.u32 %v91, 4294901760
    %5129 = vmatprep.subr.mxu0 %v5128
    %v5130 = vand.u32 %v90, 4294901760
    %5131 = vmatpush1.msra.mxu0 %v5130
    %v5132 = vand.u32 %v93, 4294901760
    %5133 = vmatprep.subr.mxu0 %v5132
    %v5134 = vand.u32 %v92, 4294901760
    %5135 = vmatpush1.msra.mxu0 %v5134
    %v5136 = vand.u32 %v95, 4294901760
    %5137 = vmatprep.subr.mxu0 %v5136
    %v5138 = vand.u32 %v94, 4294901760
    %5139 = vmatpush1.msra.mxu0 %v5138
    %v5140 = vand.u32 %v97, 4294901760
    %5141 = vmatprep.subr.mxu0 %v5140
    %v5142 = vand.u32 %v96, 4294901760
    %5143 = vmatpush1.msra.mxu0 %v5142
    %v5144 = vand.u32 %v99, 4294901760
    %5145 = vmatprep.subr.mxu0 %v5144
    %v5146 = vand.u32 %v98, 4294901760
    %5147 = vmatpush1.msra.mxu0 %v5146
    %v5148 = vand.u32 %v101, 4294901760
    %5149 = vmatprep.subr.mxu0 %v5148
    %v5150 = vand.u32 %v100, 4294901760
    %5151 = vmatpush1.msra.mxu0 %v5150
    %v5152 = vand.u32 %v103, 4294901760
    %5153 = vmatprep.subr.mxu0 %v5152
    %v5154 = vand.u32 %v102, 4294901760
    %5155 = vmatpush1.msra.mxu0 %v5154
    %v5156 = vand.u32 %v105, 4294901760
    %5157 = vmatprep.subr.mxu0 %v5156
    %v5158 = vand.u32 %v104, 4294901760
    %5159 = vmatpush1.msra.mxu0 %v5158
    %v5160 = vand.u32 %v107, 4294901760
    %5161 = vmatprep.subr.mxu0 %v5160
    %v5162 = vand.u32 %v106, 4294901760
    %5163 = vmatpush1.msra.mxu0 %v5162
    %v5164 = vand.u32 %v109, 4294901760
    %5165 = vmatprep.subr.mxu0 %v5164
    %v5166 = vand.u32 %v108, 4294901760
    %5167 = vmatpush1.msra.mxu0 %v5166
    %v5168 = vand.u32 %v111, 4294901760
    %5169 = vmatprep.subr.mxu0 %v5168
    %v5170 = vand.u32 %v110, 4294901760
    %5171 = vmatpush1.msra.mxu0 %v5170
    %v5172 = vand.u32 %v113, 4294901760
    %5173 = vmatprep.subr.mxu0 %v5172
    %v5174 = vand.u32 %v112, 4294901760
    %5175 = vmatpush1.msra.mxu0 %v5174
    %v5176 = vand.u32 %v115, 4294901760
    %5177 = vmatprep.subr.mxu0 %v5176
    %v5178 = vand.u32 %v114, 4294901760
    %5179 = vmatpush1.msra.mxu0 %v5178
    %5180 = vmatprep.subr.mxu0 0.0
    %5181 = vmatpush1.msra.mxu0 0.0
    %5182 = vmatprep.subr.mxu0 0.0
    %5183 = vmatpush1.msra.mxu0 0.0
    %5184 = vmatprep.subr.mxu0 0.0
    %5185 = vmatpush1.msra.mxu0 0.0
    %5186 = vmatprep.subr.mxu0 0.0
    %5187 = vmatpush1.msra.mxu0 0.0
    %5188 = vmatprep.subr.mxu0 0.0
    %5189 = vmatpush1.msra.mxu0 0.0
    %5190 = vmatprep.subr.mxu0 0.0
    %5191 = vmatpush1.msra.mxu0 0.0
    %5192 = vmatprep.subr.mxu0 0.0
    %5193 = vmatpush1.msra.mxu0 0.0
    %5194 = vmatprep.subr.mxu0 0.0
    %5195 = vmatpush1.msra.mxu0 0.0
    %5196 = vmatprep.subr.mxu0 0.0
    %5197 = vmatpush1.msra.mxu0 0.0
    %5198 = vmatprep.subr.mxu0 0.0
    %5199 = vmatpush1.msra.mxu0 0.0
    %5200 = vmatprep.subr.mxu0 0.0
    %5201 = vmatpush1.msra.mxu0 0.0
    %5202 = vmatprep.subr.mxu0 0.0
    %5203 = vmatpush1.msra.mxu0 0.0
    %5204 = vmatprep.subr.mxu0 0.0
    %5205 = vmatpush1.msra.mxu0 0.0
    %5206 = vmatprep.subr.mxu0 0.0
    %5207 = vmatpush1.msra.mxu0 0.0
    %5208 = vmatprep.subr.mxu0 0.0
    %5209 = vmatpush1.msra.mxu0 0.0
    %5210 = vmatprep.subr.mxu0 0.0
    %5211 = vmatpush1.msra.mxu0 0.0
    %5212 = vmatprep.mubr.f32.mxu0 0.0
    %v5213 = vand.u32 %v3750, 4294901760
    %v5214 = vsub.f32 %v3750, %v5213
    %v5215 = vand.u32 %v5214, 4294901760
    %5216 = vmatmul.mubr.f32.gmra.mrb[0].mxu0 %v5215
    %v5217 = vpop.f32.mrb[0].mxu0
    %v5218 = vadd.f32 %v5112, %v5217
    %v5219 = vpop.f32.mrb[0].mxu0
    %v5220 = vadd.f32 %v5114, %v5219
    %5221 = vdwg.mxu0
    %v5222 = vand.u32 %v85, 4294901760
    %v5223 = vsub.f32 %v85, %v5222
    %v5224 = vand.u32 %v5223, 4294901760
    %5225 = vmatprep.subr.mxu0 %v5224
    %v5226 = vand.u32 %v84, 4294901760
    %v5227 = vsub.f32 %v84, %v5226
    %v5228 = vand.u32 %v5227, 4294901760
    %5229 = vmatpush1.msra.mxu0 %v5228
    %v5230 = vand.u32 %v87, 4294901760
    %v5231 = vsub.f32 %v87, %v5230
    %v5232 = vand.u32 %v5231, 4294901760
    %5233 = vmatprep.subr.mxu0 %v5232
    %v5234 = vand.u32 %v86, 4294901760
    %v5235 = vsub.f32 %v86, %v5234
    %v5236 = vand.u32 %v5235, 4294901760
    %5237 = vmatpush1.msra.mxu0 %v5236
    %v5238 = vand.u32 %v89, 4294901760
    %v5239 = vsub.f32 %v89, %v5238
    %v5240 = vand.u32 %v5239, 4294901760
    %5241 = vmatprep.subr.mxu0 %v5240
    %v5242 = vand.u32 %v88, 4294901760
    %v5243 = vsub.f32 %v88, %v5242
    %v5244 = vand.u32 %v5243, 4294901760
    %5245 = vmatpush1.msra.mxu0 %v5244
    %v5246 = vand.u32 %v91, 4294901760
    %v5247 = vsub.f32 %v91, %v5246
    %v5248 = vand.u32 %v5247, 4294901760
    %5249 = vmatprep.subr.mxu0 %v5248
    %v5250 = vand.u32 %v90, 4294901760
    %v5251 = vsub.f32 %v90, %v5250
    %v5252 = vand.u32 %v5251, 4294901760
    %5253 = vmatpush1.msra.mxu0 %v5252
    %v5254 = vand.u32 %v93, 4294901760
    %v5255 = vsub.f32 %v93, %v5254
    %v5256 = vand.u32 %v5255, 4294901760
    %5257 = vmatprep.subr.mxu0 %v5256
    %v5258 = vand.u32 %v92, 4294901760
    %v5259 = vsub.f32 %v92, %v5258
    %v5260 = vand.u32 %v5259, 4294901760
    %5261 = vmatpush1.msra.mxu0 %v5260
    %v5262 = vand.u32 %v95, 4294901760
    %v5263 = vsub.f32 %v95, %v5262
    %v5264 = vand.u32 %v5263, 4294901760
    %5265 = vmatprep.subr.mxu0 %v5264
    %v5266 = vand.u32 %v94, 4294901760
    %v5267 = vsub.f32 %v94, %v5266
    %v5268 = vand.u32 %v5267, 4294901760
    %5269 = vmatpush1.msra.mxu0 %v5268
    %v5270 = vand.u32 %v97, 4294901760
    %v5271 = vsub.f32 %v97, %v5270
    %v5272 = vand.u32 %v5271, 4294901760
    %5273 = vmatprep.subr.mxu0 %v5272
    %v5274 = vand.u32 %v96, 4294901760
    %v5275 = vsub.f32 %v96, %v5274
    %v5276 = vand.u32 %v5275, 4294901760
    %5277 = vmatpush1.msra.mxu0 %v5276
    %v5278 = vand.u32 %v99, 4294901760
    %v5279 = vsub.f32 %v99, %v5278
    %v5280 = vand.u32 %v5279, 4294901760
    %5281 = vmatprep.subr.mxu0 %v5280
    %v5282 = vand.u32 %v98, 4294901760
    %v5283 = vsub.f32 %v98, %v5282
    %v5284 = vand.u32 %v5283, 4294901760
    %5285 = vmatpush1.msra.mxu0 %v5284
    %v5286 = vand.u32 %v101, 4294901760
    %v5287 = vsub.f32 %v101, %v5286
    %v5288 = vand.u32 %v5287, 4294901760
    %5289 = vmatprep.subr.mxu0 %v5288
    %v5290 = vand.u32 %v100, 4294901760
    %v5291 = vsub.f32 %v100, %v5290
    %v5292 = vand.u32 %v5291, 4294901760
    %5293 = vmatpush1.msra.mxu0 %v5292
    %v5294 = vand.u32 %v103, 4294901760
    %v5295 = vsub.f32 %v103, %v5294
    %v5296 = vand.u32 %v5295, 4294901760
    %5297 = vmatprep.subr.mxu0 %v5296
    %v5298 = vand.u32 %v102, 4294901760
    %v5299 = vsub.f32 %v102, %v5298
    %v5300 = vand.u32 %v5299, 4294901760
    %5301 = vmatpush1.msra.mxu0 %v5300
    %v5302 = vand.u32 %v105, 4294901760
    %v5303 = vsub.f32 %v105, %v5302
    %v5304 = vand.u32 %v5303, 4294901760
    %5305 = vmatprep.subr.mxu0 %v5304
    %v5306 = vand.u32 %v104, 4294901760
    %v5307 = vsub.f32 %v104, %v5306
    %v5308 = vand.u32 %v5307, 4294901760
    %5309 = vmatpush1.msra.mxu0 %v5308
    %v5310 = vand.u32 %v107, 4294901760
    %v5311 = vsub.f32 %v107, %v5310
    %v5312 = vand.u32 %v5311, 4294901760
    %5313 = vmatprep.subr.mxu0 %v5312
    %v5314 = vand.u32 %v106, 4294901760
    %v5315 = vsub.f32 %v106, %v5314
    %v5316 = vand.u32 %v5315, 4294901760
    %5317 = vmatpush1.msra.mxu0 %v5316
    %v5318 = vand.u32 %v109, 4294901760
    %v5319 = vsub.f32 %v109, %v5318
    %v5320 = vand.u32 %v5319, 4294901760
    %5321 = vmatprep.subr.mxu0 %v5320
    %v5322 = vand.u32 %v108, 4294901760
    %v5323 = vsub.f32 %v108, %v5322
    %v5324 = vand.u32 %v5323, 4294901760
    %5325 = vmatpush1.msra.mxu0 %v5324
    %v5326 = vand.u32 %v111, 4294901760
    %v5327 = vsub.f32 %v111, %v5326
    %v5328 = vand.u32 %v5327, 4294901760
    %5329 = vmatprep.subr.mxu0 %v5328
    %v5330 = vand.u32 %v110, 4294901760
    %v5331 = vsub.f32 %v110, %v5330
    %v5332 = vand.u32 %v5331, 4294901760
    %5333 = vmatpush1.msra.mxu0 %v5332
    %v5334 = vand.u32 %v113, 4294901760
    %v5335 = vsub.f32 %v113, %v5334
    %v5336 = vand.u32 %v5335, 4294901760
    %5337 = vmatprep.subr.mxu0 %v5336
    %v5338 = vand.u32 %v112, 4294901760
    %v5339 = vsub.f32 %v112, %v5338
    %v5340 = vand.u32 %v5339, 4294901760
    %5341 = vmatpush1.msra.mxu0 %v5340
    %v5342 = vand.u32 %v115, 4294901760
    %v5343 = vsub.f32 %v115, %v5342
    %v5344 = vand.u32 %v5343, 4294901760
    %5345 = vmatprep.subr.mxu0 %v5344
    %v5346 = vand.u32 %v114, 4294901760
    %v5347 = vsub.f32 %v114, %v5346
    %v5348 = vand.u32 %v5347, 4294901760
    %5349 = vmatpush1.msra.mxu0 %v5348
    %5350 = vmatprep.subr.mxu0 0.0
    %5351 = vmatpush1.msra.mxu0 0.0
    %5352 = vmatprep.subr.mxu0 0.0
    %5353 = vmatpush1.msra.mxu0 0.0
    %5354 = vmatprep.subr.mxu0 0.0
    %5355 = vmatpush1.msra.mxu0 0.0
    %5356 = vmatprep.subr.mxu0 0.0
    %5357 = vmatpush1.msra.mxu0 0.0
    %5358 = vmatprep.subr.mxu0 0.0
    %5359 = vmatpush1.msra.mxu0 0.0
    %5360 = vmatprep.subr.mxu0 0.0
    %5361 = vmatpush1.msra.mxu0 0.0
    %5362 = vmatprep.subr.mxu0 0.0
    %5363 = vmatpush1.msra.mxu0 0.0
    %5364 = vmatprep.subr.mxu0 0.0
    %5365 = vmatpush1.msra.mxu0 0.0
    %5366 = vmatprep.subr.mxu0 0.0
    %5367 = vmatpush1.msra.mxu0 0.0
    %5368 = vmatprep.subr.mxu0 0.0
    %5369 = vmatpush1.msra.mxu0 0.0
    %5370 = vmatprep.subr.mxu0 0.0
    %5371 = vmatpush1.msra.mxu0 0.0
    %5372 = vmatprep.subr.mxu0 0.0
    %5373 = vmatpush1.msra.mxu0 0.0
    %5374 = vmatprep.subr.mxu0 0.0
    %5375 = vmatpush1.msra.mxu0 0.0
    %5376 = vmatprep.subr.mxu0 0.0
    %5377 = vmatpush1.msra.mxu0 0.0
    %5378 = vmatprep.subr.mxu0 0.0
    %5379 = vmatpush1.msra.mxu0 0.0
    %5380 = vmatprep.subr.mxu0 0.0
    %5381 = vmatpush1.msra.mxu0 0.0
    %5382 = vmatprep.mubr.f32.mxu0 0.0
    %v5383 = vand.u32 %v3750, 4294901760
    %5384 = vmatmul.mubr.f32.gmra.mrb[0].mxu0 %v5383
    %v5385 = vpop.f32.mrb[0].mxu0
    %v5386 = vadd.f32 %v5218, %v5385
    %v5387 = vpop.f32.mrb[0].mxu0
    %v5388 = vadd.f32 %v5220, %v5387
    %5389 = vdwg.mxu0
    %v5390 = vand.u32 %v85, 4294901760
    %5391 = vmatprep.subr.mxu0 %v5390
    %v5392 = vand.u32 %v84, 4294901760
    %5393 = vmatpush1.msra.mxu0 %v5392
    %v5394 = vand.u32 %v87, 4294901760
    %5395 = vmatprep.subr.mxu0 %v5394
    %v5396 = vand.u32 %v86, 4294901760
    %5397 = vmatpush1.msra.mxu0 %v5396
    %v5398 = vand.u32 %v89, 4294901760
    %5399 = vmatprep.subr.mxu0 %v5398
    %v5400 = vand.u32 %v88, 4294901760
    %5401 = vmatpush1.msra.mxu0 %v5400
    %v5402 = vand.u32 %v91, 4294901760
    %5403 = vmatprep.subr.mxu0 %v5402
    %v5404 = vand.u32 %v90, 4294901760
    %5405 = vmatpush1.msra.mxu0 %v5404
    %v5406 = vand.u32 %v93, 4294901760
    %5407 = vmatprep.subr.mxu0 %v5406
    %v5408 = vand.u32 %v92, 4294901760
    %5409 = vmatpush1.msra.mxu0 %v5408
    %v5410 = vand.u32 %v95, 4294901760
    %5411 = vmatprep.subr.mxu0 %v5410
    %v5412 = vand.u32 %v94, 4294901760
    %5413 = vmatpush1.msra.mxu0 %v5412
    %v5414 = vand.u32 %v97, 4294901760
    %5415 = vmatprep.subr.mxu0 %v5414
    %v5416 = vand.u32 %v96, 4294901760
    %5417 = vmatpush1.msra.mxu0 %v5416
    %v5418 = vand.u32 %v99, 4294901760
    %5419 = vmatprep.subr.mxu0 %v5418
    %v5420 = vand.u32 %v98, 4294901760
    %5421 = vmatpush1.msra.mxu0 %v5420
    %v5422 = vand.u32 %v101, 4294901760
    %5423 = vmatprep.subr.mxu0 %v5422
    %v5424 = vand.u32 %v100, 4294901760
    %5425 = vmatpush1.msra.mxu0 %v5424
    %v5426 = vand.u32 %v103, 4294901760
    %5427 = vmatprep.subr.mxu0 %v5426
    %v5428 = vand.u32 %v102, 4294901760
    %5429 = vmatpush1.msra.mxu0 %v5428
    %v5430 = vand.u32 %v105, 4294901760
    %5431 = vmatprep.subr.mxu0 %v5430
    %v5432 = vand.u32 %v104, 4294901760
    %5433 = vmatpush1.msra.mxu0 %v5432
    %v5434 = vand.u32 %v107, 4294901760
    %5435 = vmatprep.subr.mxu0 %v5434
    %v5436 = vand.u32 %v106, 4294901760
    %5437 = vmatpush1.msra.mxu0 %v5436
    %v5438 = vand.u32 %v109, 4294901760
    %5439 = vmatprep.subr.mxu0 %v5438
    %v5440 = vand.u32 %v108, 4294901760
    %5441 = vmatpush1.msra.mxu0 %v5440
    %v5442 = vand.u32 %v111, 4294901760
    %5443 = vmatprep.subr.mxu0 %v5442
    %v5444 = vand.u32 %v110, 4294901760
    %5445 = vmatpush1.msra.mxu0 %v5444
    %v5446 = vand.u32 %v113, 4294901760
    %5447 = vmatprep.subr.mxu0 %v5446
    %v5448 = vand.u32 %v112, 4294901760
    %5449 = vmatpush1.msra.mxu0 %v5448
    %v5450 = vand.u32 %v115, 4294901760
    %5451 = vmatprep.subr.mxu0 %v5450
    %v5452 = vand.u32 %v114, 4294901760
    %5453 = vmatpush1.msra.mxu0 %v5452
    %5454 = vmatprep.subr.mxu0 0.0
    %5455 = vmatpush1.msra.mxu0 0.0
    %5456 = vmatprep.subr.mxu0 0.0
    %5457 = vmatpush1.msra.mxu0 0.0
    %5458 = vmatprep.subr.mxu0 0.0
    %5459 = vmatpush1.msra.mxu0 0.0
    %5460 = vmatprep.subr.mxu0 0.0
    %5461 = vmatpush1.msra.mxu0 0.0
    %5462 = vmatprep.subr.mxu0 0.0
    %5463 = vmatpush1.msra.mxu0 0.0
    %5464 = vmatprep.subr.mxu0 0.0
    %5465 = vmatpush1.msra.mxu0 0.0
    %5466 = vmatprep.subr.mxu0 0.0
    %5467 = vmatpush1.msra.mxu0 0.0
    %5468 = vmatprep.subr.mxu0 0.0
    %5469 = vmatpush1.msra.mxu0 0.0
    %5470 = vmatprep.subr.mxu0 0.0
    %5471 = vmatpush1.msra.mxu0 0.0
    %5472 = vmatprep.subr.mxu0 0.0
    %5473 = vmatpush1.msra.mxu0 0.0
    %5474 = vmatprep.subr.mxu0 0.0
    %5475 = vmatpush1.msra.mxu0 0.0
    %5476 = vmatprep.subr.mxu0 0.0
    %5477 = vmatpush1.msra.mxu0 0.0
    %5478 = vmatprep.subr.mxu0 0.0
    %5479 = vmatpush1.msra.mxu0 0.0
    %5480 = vmatprep.subr.mxu0 0.0
    %5481 = vmatpush1.msra.mxu0 0.0
    %5482 = vmatprep.subr.mxu0 0.0
    %5483 = vmatpush1.msra.mxu0 0.0
    %5484 = vmatprep.subr.mxu0 0.0
    %5485 = vmatpush1.msra.mxu0 0.0
    %5486 = vmatprep.mubr.f32.mxu0 0.0
    %v5487 = vand.u32 %v3750, 4294901760
    %5488 = vmatmul.mubr.f32.gmra.mrb[0].mxu0 %v5487
    %v5489 = vpop.f32.mrb[0].mxu0
    %v5490 = vadd.f32 %v5386, %v5489
    %v5491 = vpop.f32.mrb[0].mxu0
    %v5492 = vadd.f32 %v5388, %v5491
    %5493 = vdwg.mxu0
    %v5494 = vand.u32 %v117, 4294901760
    %5495 = vmatprep.subr.mxu0 %v5494
    %v5496 = vand.u32 %v116, 4294901760
    %5497 = vmatpush1.msra.mxu0 %v5496
    %v5498 = vand.u32 %v119, 4294901760
    %5499 = vmatprep.subr.mxu0 %v5498
    %v5500 = vand.u32 %v118, 4294901760
    %5501 = vmatpush1.msra.mxu0 %v5500
    %v5502 = vand.u32 %v121, 4294901760
    %5503 = vmatprep.subr.mxu0 %v5502
    %v5504 = vand.u32 %v120, 4294901760
    %5505 = vmatpush1.msra.mxu0 %v5504
    %v5506 = vand.u32 %v123, 4294901760
    %5507 = vmatprep.subr.mxu0 %v5506
    %v5508 = vand.u32 %v122, 4294901760
    %5509 = vmatpush1.msra.mxu0 %v5508
    %v5510 = vand.u32 %v125, 4294901760
    %5511 = vmatprep.subr.mxu0 %v5510
    %v5512 = vand.u32 %v124, 4294901760
    %5513 = vmatpush1.msra.mxu0 %v5512
    %v5514 = vand.u32 %v127, 4294901760
    %5515 = vmatprep.subr.mxu0 %v5514
    %v5516 = vand.u32 %v126, 4294901760
    %5517 = vmatpush1.msra.mxu0 %v5516
    %v5518 = vand.u32 %v129, 4294901760
    %5519 = vmatprep.subr.mxu0 %v5518
    %v5520 = vand.u32 %v128, 4294901760
    %5521 = vmatpush1.msra.mxu0 %v5520
    %v5522 = vand.u32 %v131, 4294901760
    %5523 = vmatprep.subr.mxu0 %v5522
    %v5524 = vand.u32 %v130, 4294901760
    %5525 = vmatpush1.msra.mxu0 %v5524
    %v5526 = vand.u32 %v133, 4294901760
    %5527 = vmatprep.subr.mxu0 %v5526
    %v5528 = vand.u32 %v132, 4294901760
    %5529 = vmatpush1.msra.mxu0 %v5528
    %v5530 = vand.u32 %v135, 4294901760
    %5531 = vmatprep.subr.mxu0 %v5530
    %v5532 = vand.u32 %v134, 4294901760
    %5533 = vmatpush1.msra.mxu0 %v5532
    %v5534 = vand.u32 %v137, 4294901760
    %5535 = vmatprep.subr.mxu0 %v5534
    %v5536 = vand.u32 %v136, 4294901760
    %5537 = vmatpush1.msra.mxu0 %v5536
    %v5538 = vand.u32 %v139, 4294901760
    %5539 = vmatprep.subr.mxu0 %v5538
    %v5540 = vand.u32 %v138, 4294901760
    %5541 = vmatpush1.msra.mxu0 %v5540
    %v5542 = vand.u32 %v141, 4294901760
    %5543 = vmatprep.subr.mxu0 %v5542
    %v5544 = vand.u32 %v140, 4294901760
    %5545 = vmatpush1.msra.mxu0 %v5544
    %v5546 = vand.u32 %v143, 4294901760
    %5547 = vmatprep.subr.mxu0 %v5546
    %v5548 = vand.u32 %v142, 4294901760
    %5549 = vmatpush1.msra.mxu0 %v5548
    %v5550 = vand.u32 %v145, 4294901760
    %5551 = vmatprep.subr.mxu0 %v5550
    %v5552 = vand.u32 %v144, 4294901760
    %5553 = vmatpush1.msra.mxu0 %v5552
    %v5554 = vand.u32 %v147, 4294901760
    %5555 = vmatprep.subr.mxu0 %v5554
    %v5556 = vand.u32 %v146, 4294901760
    %5557 = vmatpush1.msra.mxu0 %v5556
    %5558 = vmatprep.subr.mxu0 0.0
    %5559 = vmatpush1.msra.mxu0 0.0
    %5560 = vmatprep.subr.mxu0 0.0
    %5561 = vmatpush1.msra.mxu0 0.0
    %5562 = vmatprep.subr.mxu0 0.0
    %5563 = vmatpush1.msra.mxu0 0.0
    %5564 = vmatprep.subr.mxu0 0.0
    %5565 = vmatpush1.msra.mxu0 0.0
    %5566 = vmatprep.subr.mxu0 0.0
    %5567 = vmatpush1.msra.mxu0 0.0
    %5568 = vmatprep.subr.mxu0 0.0
    %5569 = vmatpush1.msra.mxu0 0.0
    %5570 = vmatprep.subr.mxu0 0.0
    %5571 = vmatpush1.msra.mxu0 0.0
    %5572 = vmatprep.subr.mxu0 0.0
    %5573 = vmatpush1.msra.mxu0 0.0
    %5574 = vmatprep.subr.mxu0 0.0
    %5575 = vmatpush1.msra.mxu0 0.0
    %5576 = vmatprep.subr.mxu0 0.0
    %5577 = vmatpush1.msra.mxu0 0.0
    %5578 = vmatprep.subr.mxu0 0.0
    %5579 = vmatpush1.msra.mxu0 0.0
    %5580 = vmatprep.subr.mxu0 0.0
    %5581 = vmatpush1.msra.mxu0 0.0
    %5582 = vmatprep.subr.mxu0 0.0
    %5583 = vmatpush1.msra.mxu0 0.0
    %5584 = vmatprep.subr.mxu0 0.0
    %5585 = vmatpush1.msra.mxu0 0.0
    %5586 = vmatprep.subr.mxu0 0.0
    %5587 = vmatpush1.msra.mxu0 0.0
    %5588 = vmatprep.subr.mxu0 0.0
    %5589 = vmatpush1.msra.mxu0 0.0
    %5590 = vmatprep.mubr.f32.mxu0 0.0
    %v5591 = vand.u32 %v3752, 4294901760
    %v5592 = vsub.f32 %v3752, %v5591
    %v5593 = vand.u32 %v5592, 4294901760
    %v5594 = vsub.f32 %v5592, %v5593
    %v5595 = vand.u32 %v5594, 4294901760
    %5596 = vmatmul.mubr.f32.gmra.mrb[0].mxu0 %v5595
    %v5597 = vpop.f32.mrb[0].mxu0
    %v5598 = vadd.f32 0.0, %v5597
    %v5599 = vpop.f32.mrb[0].mxu0
    %v5600 = vadd.f32 0.0, %v5599
    %5601 = vdwg.mxu0
    %v5602 = vand.u32 %v117, 4294901760
    %v5603 = vsub.f32 %v117, %v5602
    %v5604 = vand.u32 %v5603, 4294901760
    %v5605 = vsub.f32 %v5603, %v5604
    %v5606 = vand.u32 %v5605, 4294901760
    %5607 = vmatprep.subr.mxu0 %v5606
    %v5608 = vand.u32 %v116, 4294901760
    %v5609 = vsub.f32 %v116, %v5608
    %v5610 = vand.u32 %v5609, 4294901760
    %v5611 = vsub.f32 %v5609, %v5610
    %v5612 = vand.u32 %v5611, 4294901760
    %5613 = vmatpush1.msra.mxu0 %v5612
    %v5614 = vand.u32 %v119, 4294901760
    %v5615 = vsub.f32 %v119, %v5614
    %v5616 = vand.u32 %v5615, 4294901760
    %v5617 = vsub.f32 %v5615, %v5616
    %v5618 = vand.u32 %v5617, 4294901760
    %5619 = vmatprep.subr.mxu0 %v5618
    %v5620 = vand.u32 %v118, 4294901760
    %v5621 = vsub.f32 %v118, %v5620
    %v5622 = vand.u32 %v5621, 4294901760
    %v5623 = vsub.f32 %v5621, %v5622
    %v5624 = vand.u32 %v5623, 4294901760
    %5625 = vmatpush1.msra.mxu0 %v5624
    %v5626 = vand.u32 %v121, 4294901760
    %v5627 = vsub.f32 %v121, %v5626
    %v5628 = vand.u32 %v5627, 4294901760
    %v5629 = vsub.f32 %v5627, %v5628
    %v5630 = vand.u32 %v5629, 4294901760
    %5631 = vmatprep.subr.mxu0 %v5630
    %v5632 = vand.u32 %v120, 4294901760
    %v5633 = vsub.f32 %v120, %v5632
    %v5634 = vand.u32 %v5633, 4294901760
    %v5635 = vsub.f32 %v5633, %v5634
    %v5636 = vand.u32 %v5635, 4294901760
    %5637 = vmatpush1.msra.mxu0 %v5636
    %v5638 = vand.u32 %v123, 4294901760
    %v5639 = vsub.f32 %v123, %v5638
    %v5640 = vand.u32 %v5639, 4294901760
    %v5641 = vsub.f32 %v5639, %v5640
    %v5642 = vand.u32 %v5641, 4294901760
    %5643 = vmatprep.subr.mxu0 %v5642
    %v5644 = vand.u32 %v122, 4294901760
    %v5645 = vsub.f32 %v122, %v5644
    %v5646 = vand.u32 %v5645, 4294901760
    %v5647 = vsub.f32 %v5645, %v5646
    %v5648 = vand.u32 %v5647, 4294901760
    %5649 = vmatpush1.msra.mxu0 %v5648
    %v5650 = vand.u32 %v125, 4294901760
    %v5651 = vsub.f32 %v125, %v5650
    %v5652 = vand.u32 %v5651, 4294901760
    %v5653 = vsub.f32 %v5651, %v5652
    %v5654 = vand.u32 %v5653, 4294901760
    %5655 = vmatprep.subr.mxu0 %v5654
    %v5656 = vand.u32 %v124, 4294901760
    %v5657 = vsub.f32 %v124, %v5656
    %v5658 = vand.u32 %v5657, 4294901760
    %v5659 = vsub.f32 %v5657, %v5658
    %v5660 = vand.u32 %v5659, 4294901760
    %5661 = vmatpush1.msra.mxu0 %v5660
    %v5662 = vand.u32 %v127, 4294901760
    %v5663 = vsub.f32 %v127, %v5662
    %v5664 = vand.u32 %v5663, 4294901760
    %v5665 = vsub.f32 %v5663, %v5664
    %v5666 = vand.u32 %v5665, 4294901760
    %5667 = vmatprep.subr.mxu0 %v5666
    %v5668 = vand.u32 %v126, 4294901760
    %v5669 = vsub.f32 %v126, %v5668
    %v5670 = vand.u32 %v5669, 4294901760
    %v5671 = vsub.f32 %v5669, %v5670
    %v5672 = vand.u32 %v5671, 4294901760
    %5673 = vmatpush1.msra.mxu0 %v5672
    %v5674 = vand.u32 %v129, 4294901760
    %v5675 = vsub.f32 %v129, %v5674
    %v5676 = vand.u32 %v5675, 4294901760
    %v5677 = vsub.f32 %v5675, %v5676
    %v5678 = vand.u32 %v5677, 4294901760
    %5679 = vmatprep.subr.mxu0 %v5678
    %v5680 = vand.u32 %v128, 4294901760
    %v5681 = vsub.f32 %v128, %v5680
    %v5682 = vand.u32 %v5681, 4294901760
    %v5683 = vsub.f32 %v5681, %v5682
    %v5684 = vand.u32 %v5683, 4294901760
    %5685 = vmatpush1.msra.mxu0 %v5684
    %v5686 = vand.u32 %v131, 4294901760
    %v5687 = vsub.f32 %v131, %v5686
    %v5688 = vand.u32 %v5687, 4294901760
    %v5689 = vsub.f32 %v5687, %v5688
    %v5690 = vand.u32 %v5689, 4294901760
    %5691 = vmatprep.subr.mxu0 %v5690
    %v5692 = vand.u32 %v130, 4294901760
    %v5693 = vsub.f32 %v130, %v5692
    %v5694 = vand.u32 %v5693, 4294901760
    %v5695 = vsub.f32 %v5693, %v5694
    %v5696 = vand.u32 %v5695, 4294901760
    %5697 = vmatpush1.msra.mxu0 %v5696
    %v5698 = vand.u32 %v133, 4294901760
    %v5699 = vsub.f32 %v133, %v5698
    %v5700 = vand.u32 %v5699, 4294901760
    %v5701 = vsub.f32 %v5699, %v5700
    %v5702 = vand.u32 %v5701, 4294901760
    %5703 = vmatprep.subr.mxu0 %v5702
    %v5704 = vand.u32 %v132, 4294901760
    %v5705 = vsub.f32 %v132, %v5704
    %v5706 = vand.u32 %v5705, 4294901760
    %v5707 = vsub.f32 %v5705, %v5706
    %v5708 = vand.u32 %v5707, 4294901760
    %5709 = vmatpush1.msra.mxu0 %v5708
    %v5710 = vand.u32 %v135, 4294901760
    %v5711 = vsub.f32 %v135, %v5710
    %v5712 = vand.u32 %v5711, 4294901760
    %v5713 = vsub.f32 %v5711, %v5712
    %v5714 = vand.u32 %v5713, 4294901760
    %5715 = vmatprep.subr.mxu0 %v5714
    %v5716 = vand.u32 %v134, 4294901760
    %v5717 = vsub.f32 %v134, %v5716
    %v5718 = vand.u32 %v5717, 4294901760
    %v5719 = vsub.f32 %v5717, %v5718
    %v5720 = vand.u32 %v5719, 4294901760
    %5721 = vmatpush1.msra.mxu0 %v5720
    %v5722 = vand.u32 %v137, 4294901760
    %v5723 = vsub.f32 %v137, %v5722
    %v5724 = vand.u32 %v5723, 4294901760
    %v5725 = vsub.f32 %v5723, %v5724
    %v5726 = vand.u32 %v5725, 4294901760
    %5727 = vmatprep.subr.mxu0 %v5726
    %v5728 = vand.u32 %v136, 4294901760
    %v5729 = vsub.f32 %v136, %v5728
    %v5730 = vand.u32 %v5729, 4294901760
    %v5731 = vsub.f32 %v5729, %v5730
    %v5732 = vand.u32 %v5731, 4294901760
    %5733 = vmatpush1.msra.mxu0 %v5732
    %v5734 = vand.u32 %v139, 4294901760
    %v5735 = vsub.f32 %v139, %v5734
    %v5736 = vand.u32 %v5735, 4294901760
    %v5737 = vsub.f32 %v5735, %v5736
    %v5738 = vand.u32 %v5737, 4294901760
    %5739 = vmatprep.subr.mxu0 %v5738
    %v5740 = vand.u32 %v138, 4294901760
    %v5741 = vsub.f32 %v138, %v5740
    %v5742 = vand.u32 %v5741, 4294901760
    %v5743 = vsub.f32 %v5741, %v5742
    %v5744 = vand.u32 %v5743, 4294901760
    %5745 = vmatpush1.msra.mxu0 %v5744
    %v5746 = vand.u32 %v141, 4294901760
    %v5747 = vsub.f32 %v141, %v5746
    %v5748 = vand.u32 %v5747, 4294901760
    %v5749 = vsub.f32 %v5747, %v5748
    %v5750 = vand.u32 %v5749, 4294901760
    %5751 = vmatprep.subr.mxu0 %v5750
    %v5752 = vand.u32 %v140, 4294901760
    %v5753 = vsub.f32 %v140, %v5752
    %v5754 = vand.u32 %v5753, 4294901760
    %v5755 = vsub.f32 %v5753, %v5754
    %v5756 = vand.u32 %v5755, 4294901760
    %5757 = vmatpush1.msra.mxu0 %v5756
    %v5758 = vand.u32 %v143, 4294901760
    %v5759 = vsub.f32 %v143, %v5758
    %v5760 = vand.u32 %v5759, 4294901760
    %v5761 = vsub.f32 %v5759, %v5760
    %v5762 = vand.u32 %v5761, 4294901760
    %5763 = vmatprep.subr.mxu0 %v5762
    %v5764 = vand.u32 %v142, 4294901760
    %v5765 = vsub.f32 %v142, %v5764
    %v5766 = vand.u32 %v5765, 4294901760
    %v5767 = vsub.f32 %v5765, %v5766
    %v5768 = vand.u32 %v5767, 4294901760
    %5769 = vmatpush1.msra.mxu0 %v5768
    %v5770 = vand.u32 %v145, 4294901760
    %v5771 = vsub.f32 %v145, %v5770
    %v5772 = vand.u32 %v5771, 4294901760
    %v5773 = vsub.f32 %v5771, %v5772
    %v5774 = vand.u32 %v5773, 4294901760
    %5775 = vmatprep.subr.mxu0 %v5774
    %v5776 = vand.u32 %v144, 4294901760
    %v5777 = vsub.f32 %v144, %v5776
    %v5778 = vand.u32 %v5777, 4294901760
    %v5779 = vsub.f32 %v5777, %v5778
    %v5780 = vand.u32 %v5779, 4294901760
    %5781 = vmatpush1.msra.mxu0 %v5780
    %v5782 = vand.u32 %v147, 4294901760
    %v5783 = vsub.f32 %v147, %v5782
    %v5784 = vand.u32 %v5783, 4294901760
    %v5785 = vsub.f32 %v5783, %v5784
    %v5786 = vand.u32 %v5785, 4294901760
    %5787 = vmatprep.subr.mxu0 %v5786
    %v5788 = vand.u32 %v146, 4294901760
    %v5789 = vsub.f32 %v146, %v5788
    %v5790 = vand.u32 %v5789, 4294901760
    %v5791 = vsub.f32 %v5789, %v5790
    %v5792 = vand.u32 %v5791, 4294901760
    %5793 = vmatpush1.msra.mxu0 %v5792
    %5794 = vmatprep.subr.mxu0 0.0
    %5795 = vmatpush1.msra.mxu0 0.0
    %5796 = vmatprep.subr.mxu0 0.0
    %5797 = vmatpush1.msra.mxu0 0.0
    %5798 = vmatprep.subr.mxu0 0.0
    %5799 = vmatpush1.msra.mxu0 0.0
    %5800 = vmatprep.subr.mxu0 0.0
    %5801 = vmatpush1.msra.mxu0 0.0
    %5802 = vmatprep.subr.mxu0 0.0
    %5803 = vmatpush1.msra.mxu0 0.0
    %5804 = vmatprep.subr.mxu0 0.0
    %5805 = vmatpush1.msra.mxu0 0.0
    %5806 = vmatprep.subr.mxu0 0.0
    %5807 = vmatpush1.msra.mxu0 0.0
    %5808 = vmatprep.subr.mxu0 0.0
    %5809 = vmatpush1.msra.mxu0 0.0
    %5810 = vmatprep.subr.mxu0 0.0
    %5811 = vmatpush1.msra.mxu0 0.0
    %5812 = vmatprep.subr.mxu0 0.0
    %5813 = vmatpush1.msra.mxu0 0.0
    %5814 = vmatprep.subr.mxu0 0.0
    %5815 = vmatpush1.msra.mxu0 0.0
    %5816 = vmatprep.subr.mxu0 0.0
    %5817 = vmatpush1.msra.mxu0 0.0
    %5818 = vmatprep.subr.mxu0 0.0
    %5819 = vmatpush1.msra.mxu0 0.0
    %5820 = vmatprep.subr.mxu0 0.0
    %5821 = vmatpush1.msra.mxu0 0.0
    %5822 = vmatprep.subr.mxu0 0.0
    %5823 = vmatpush1.msra.mxu0 0.0
    %5824 = vmatprep.subr.mxu0 0.0
    %5825 = vmatpush1.msra.mxu0 0.0
    %5826 = vmatprep.mubr.f32.mxu0 0.0
    %v5827 = vand.u32 %v3752, 4294901760
    %5828 = vmatmul.mubr.f32.gmra.mrb[0].mxu0 %v5827
    %v5829 = vpop.f32.mrb[0].mxu0
    %v5830 = vadd.f32 %v5598, %v5829
    %v5831 = vpop.f32.mrb[0].mxu0
    %v5832 = vadd.f32 %v5600, %v5831
    %5833 = vdwg.mxu0
    %v5834 = vand.u32 %v117, 4294901760
    %v5835 = vsub.f32 %v117, %v5834
    %5836 = vmatprep.subr.mxu0 %v5835
    %v5837 = vand.u32 %v116, 4294901760
    %v5838 = vsub.f32 %v116, %v5837
    %5839 = vmatpush1.msra.mxu0 %v5838
    %v5840 = vand.u32 %v119, 4294901760
    %v5841 = vsub.f32 %v119, %v5840
    %5842 = vmatprep.subr.mxu0 %v5841
    %v5843 = vand.u32 %v118, 4294901760
    %v5844 = vsub.f32 %v118, %v5843
    %5845 = vmatpush1.msra.mxu0 %v5844
    %v5846 = vand.u32 %v121, 4294901760
    %v5847 = vsub.f32 %v121, %v5846
    %5848 = vmatprep.subr.mxu0 %v5847
    %v5849 = vand.u32 %v120, 4294901760
    %v5850 = vsub.f32 %v120, %v5849
    %5851 = vmatpush1.msra.mxu0 %v5850
    %v5852 = vand.u32 %v123, 4294901760
    %v5853 = vsub.f32 %v123, %v5852
    %5854 = vmatprep.subr.mxu0 %v5853
    %v5855 = vand.u32 %v122, 4294901760
    %v5856 = vsub.f32 %v122, %v5855
    %5857 = vmatpush1.msra.mxu0 %v5856
    %v5858 = vand.u32 %v125, 4294901760
    %v5859 = vsub.f32 %v125, %v5858
    %5860 = vmatprep.subr.mxu0 %v5859
    %v5861 = vand.u32 %v124, 4294901760
    %v5862 = vsub.f32 %v124, %v5861
    %5863 = vmatpush1.msra.mxu0 %v5862
    %v5864 = vand.u32 %v127, 4294901760
    %v5865 = vsub.f32 %v127, %v5864
    %5866 = vmatprep.subr.mxu0 %v5865
    %v5867 = vand.u32 %v126, 4294901760
    %v5868 = vsub.f32 %v126, %v5867
    %5869 = vmatpush1.msra.mxu0 %v5868
    %v5870 = vand.u32 %v129, 4294901760
    %v5871 = vsub.f32 %v129, %v5870
    %5872 = vmatprep.subr.mxu0 %v5871
    %v5873 = vand.u32 %v128, 4294901760
    %v5874 = vsub.f32 %v128, %v5873
    %5875 = vmatpush1.msra.mxu0 %v5874
    %v5876 = vand.u32 %v131, 4294901760
    %v5877 = vsub.f32 %v131, %v5876
    %5878 = vmatprep.subr.mxu0 %v5877
    %v5879 = vand.u32 %v130, 4294901760
    %v5880 = vsub.f32 %v130, %v5879
    %5881 = vmatpush1.msra.mxu0 %v5880
    %v5882 = vand.u32 %v133, 4294901760
    %v5883 = vsub.f32 %v133, %v5882
    %5884 = vmatprep.subr.mxu0 %v5883
    %v5885 = vand.u32 %v132, 4294901760
    %v5886 = vsub.f32 %v132, %v5885
    %5887 = vmatpush1.msra.mxu0 %v5886
    %v5888 = vand.u32 %v135, 4294901760
    %v5889 = vsub.f32 %v135, %v5888
    %5890 = vmatprep.subr.mxu0 %v5889
    %v5891 = vand.u32 %v134, 4294901760
    %v5892 = vsub.f32 %v134, %v5891
    %5893 = vmatpush1.msra.mxu0 %v5892
    %v5894 = vand.u32 %v137, 4294901760
    %v5895 = vsub.f32 %v137, %v5894
    %5896 = vmatprep.subr.mxu0 %v5895
    %v5897 = vand.u32 %v136, 4294901760
    %v5898 = vsub.f32 %v136, %v5897
    %5899 = vmatpush1.msra.mxu0 %v5898
    %v5900 = vand.u32 %v139, 4294901760
    %v5901 = vsub.f32 %v139, %v5900
    %5902 = vmatprep.subr.mxu0 %v5901
    %v5903 = vand.u32 %v138, 4294901760
    %v5904 = vsub.f32 %v138, %v5903
    %5905 = vmatpush1.msra.mxu0 %v5904
    %v5906 = vand.u32 %v141, 4294901760
    %v5907 = vsub.f32 %v141, %v5906
    %5908 = vmatprep.subr.mxu0 %v5907
    %v5909 = vand.u32 %v140, 4294901760
    %v5910 = vsub.f32 %v140, %v5909
    %5911 = vmatpush1.msra.mxu0 %v5910
    %v5912 = vand.u32 %v143, 4294901760
    %v5913 = vsub.f32 %v143, %v5912
    %5914 = vmatprep.subr.mxu0 %v5913
    %v5915 = vand.u32 %v142, 4294901760
    %v5916 = vsub.f32 %v142, %v5915
    %5917 = vmatpush1.msra.mxu0 %v5916
    %v5918 = vand.u32 %v145, 4294901760
    %v5919 = vsub.f32 %v145, %v5918
    %5920 = vmatprep.subr.mxu0 %v5919
    %v5921 = vand.u32 %v144, 4294901760
    %v5922 = vsub.f32 %v144, %v5921
    %5923 = vmatpush1.msra.mxu0 %v5922
    %v5924 = vand.u32 %v147, 4294901760
    %v5925 = vsub.f32 %v147, %v5924
    %5926 = vmatprep.subr.mxu0 %v5925
    %v5927 = vand.u32 %v146, 4294901760
    %v5928 = vsub.f32 %v146, %v5927
    %5929 = vmatpush1.msra.mxu0 %v5928
    %5930 = vmatprep.subr.mxu0 0.0
    %5931 = vmatpush1.msra.mxu0 0.0
    %5932 = vmatprep.subr.mxu0 0.0
    %5933 = vmatpush1.msra.mxu0 0.0
    %5934 = vmatprep.subr.mxu0 0.0
    %5935 = vmatpush1.msra.mxu0 0.0
    %5936 = vmatprep.subr.mxu0 0.0
    %5937 = vmatpush1.msra.mxu0 0.0
    %5938 = vmatprep.subr.mxu0 0.0
    %5939 = vmatpush1.msra.mxu0 0.0
    %5940 = vmatprep.subr.mxu0 0.0
    %5941 = vmatpush1.msra.mxu0 0.0
    %5942 = vmatprep.subr.mxu0 0.0
    %5943 = vmatpush1.msra.mxu0 0.0
    %5944 = vmatprep.subr.mxu0 0.0
    %5945 = vmatpush1.msra.mxu0 0.0
    %5946 = vmatprep.subr.mxu0 0.0
    %5947 = vmatpush1.msra.mxu0 0.0
    %5948 = vmatprep.subr.mxu0 0.0
    %5949 = vmatpush1.msra.mxu0 0.0
    %5950 = vmatprep.subr.mxu0 0.0
    %5951 = vmatpush1.msra.mxu0 0.0
    %5952 = vmatprep.subr.mxu0 0.0
    %5953 = vmatpush1.msra.mxu0 0.0
    %5954 = vmatprep.subr.mxu0 0.0
    %5955 = vmatpush1.msra.mxu0 0.0
    %5956 = vmatprep.subr.mxu0 0.0
    %5957 = vmatpush1.msra.mxu0 0.0
    %5958 = vmatprep.subr.mxu0 0.0
    %5959 = vmatpush1.msra.mxu0 0.0
    %5960 = vmatprep.subr.mxu0 0.0
    %5961 = vmatpush1.msra.mxu0 0.0
    %5962 = vmatprep.mubr.f32.mxu0 0.0
    %v5963 = vand.u32 %v3752, 4294901760
    %v5964 = vsub.f32 %v3752, %v5963
    %5965 = vmatmul.mubr.f32.gmra.mrb[0].mxu0 %v5964
    %v5966 = vpop.f32.mrb[0].mxu0
    %v5967 = vadd.f32 %v5830, %v5966
    %v5968 = vpop.f32.mrb[0].mxu0
    %v5969 = vadd.f32 %v5832, %v5968
    %5970 = vdwg.mxu0
    %v5971 = vand.u32 %v117, 4294901760
    %5972 = vmatprep.subr.mxu0 %v5971
    %v5973 = vand.u32 %v116, 4294901760
    %5974 = vmatpush1.msra.mxu0 %v5973
    %v5975 = vand.u32 %v119, 4294901760
    %5976 = vmatprep.subr.mxu0 %v5975
    %v5977 = vand.u32 %v118, 4294901760
    %5978 = vmatpush1.msra.mxu0 %v5977
    %v5979 = vand.u32 %v121, 4294901760
    %5980 = vmatprep.subr.mxu0 %v5979
    %v5981 = vand.u32 %v120, 4294901760
    %5982 = vmatpush1.msra.mxu0 %v5981
    %v5983 = vand.u32 %v123, 4294901760
    %5984 = vmatprep.subr.mxu0 %v5983
    %v5985 = vand.u32 %v122, 4294901760
    %5986 = vmatpush1.msra.mxu0 %v5985
    %v5987 = vand.u32 %v125, 4294901760
    %5988 = vmatprep.subr.mxu0 %v5987
    %v5989 = vand.u32 %v124, 4294901760
    %5990 = vmatpush1.msra.mxu0 %v5989
    %v5991 = vand.u32 %v127, 4294901760
    %5992 = vmatprep.subr.mxu0 %v5991
    %v5993 = vand.u32 %v126, 4294901760
    %5994 = vmatpush1.msra.mxu0 %v5993
    %v5995 = vand.u32 %v129, 4294901760
    %5996 = vmatprep.subr.mxu0 %v5995
    %v5997 = vand.u32 %v128, 4294901760
    %5998 = vmatpush1.msra.mxu0 %v5997
    %v5999 = vand.u32 %v131, 4294901760
    %6000 = vmatprep.subr.mxu0 %v5999
    %v6001 = vand.u32 %v130, 4294901760
    %6002 = vmatpush1.msra.mxu0 %v6001
    %v6003 = vand.u32 %v133, 4294901760
    %6004 = vmatprep.subr.mxu0 %v6003
    %v6005 = vand.u32 %v132, 4294901760
    %6006 = vmatpush1.msra.mxu0 %v6005
    %v6007 = vand.u32 %v135, 4294901760
    %6008 = vmatprep.subr.mxu0 %v6007
    %v6009 = vand.u32 %v134, 4294901760
    %6010 = vmatpush1.msra.mxu0 %v6009
    %v6011 = vand.u32 %v137, 4294901760
    %6012 = vmatprep.subr.mxu0 %v6011
    %v6013 = vand.u32 %v136, 4294901760
    %6014 = vmatpush1.msra.mxu0 %v6013
    %v6015 = vand.u32 %v139, 4294901760
    %6016 = vmatprep.subr.mxu0 %v6015
    %v6017 = vand.u32 %v138, 4294901760
    %6018 = vmatpush1.msra.mxu0 %v6017
    %v6019 = vand.u32 %v141, 4294901760
    %6020 = vmatprep.subr.mxu0 %v6019
    %v6021 = vand.u32 %v140, 4294901760
    %6022 = vmatpush1.msra.mxu0 %v6021
    %v6023 = vand.u32 %v143, 4294901760
    %6024 = vmatprep.subr.mxu0 %v6023
    %v6025 = vand.u32 %v142, 4294901760
    %6026 = vmatpush1.msra.mxu0 %v6025
    %v6027 = vand.u32 %v145, 4294901760
    %6028 = vmatprep.subr.mxu0 %v6027
    %v6029 = vand.u32 %v144, 4294901760
    %6030 = vmatpush1.msra.mxu0 %v6029
    %v6031 = vand.u32 %v147, 4294901760
    %6032 = vmatprep.subr.mxu0 %v6031
    %v6033 = vand.u32 %v146, 4294901760
    %6034 = vmatpush1.msra.mxu0 %v6033
    %6035 = vmatprep.subr.mxu0 0.0
    %6036 = vmatpush1.msra.mxu0 0.0
    %6037 = vmatprep.subr.mxu0 0.0
    %6038 = vmatpush1.msra.mxu0 0.0
    %6039 = vmatprep.subr.mxu0 0.0
    %6040 = vmatpush1.msra.mxu0 0.0
    %6041 = vmatprep.subr.mxu0 0.0
    %6042 = vmatpush1.msra.mxu0 0.0
    %6043 = vmatprep.subr.mxu0 0.0
    %6044 = vmatpush1.msra.mxu0 0.0
    %6045 = vmatprep.subr.mxu0 0.0
    %6046 = vmatpush1.msra.mxu0 0.0
    %6047 = vmatprep.subr.mxu0 0.0
    %6048 = vmatpush1.msra.mxu0 0.0
    %6049 = vmatprep.subr.mxu0 0.0
    %6050 = vmatpush1.msra.mxu0 0.0
    %6051 = vmatprep.subr.mxu0 0.0
    %6052 = vmatpush1.msra.mxu0 0.0
    %6053 = vmatprep.subr.mxu0 0.0
    %6054 = vmatpush1.msra.mxu0 0.0
    %6055 = vmatprep.subr.mxu0 0.0
    %6056 = vmatpush1.msra.mxu0 0.0
    %6057 = vmatprep.subr.mxu0 0.0
    %6058 = vmatpush1.msra.mxu0 0.0
    %6059 = vmatprep.subr.mxu0 0.0
    %6060 = vmatpush1.msra.mxu0 0.0
    %6061 = vmatprep.subr.mxu0 0.0
    %6062 = vmatpush1.msra.mxu0 0.0
    %6063 = vmatprep.subr.mxu0 0.0
    %6064 = vmatpush1.msra.mxu0 0.0
    %6065 = vmatprep.subr.mxu0 0.0
    %6066 = vmatpush1.msra.mxu0 0.0
    %6067 = vmatprep.mubr.f32.mxu0 0.0
    %v6068 = vand.u32 %v3752, 4294901760
    %v6069 = vsub.f32 %v3752, %v6068
    %v6070 = vand.u32 %v6069, 4294901760
    %6071 = vmatmul.mubr.f32.gmra.mrb[0].mxu0 %v6070
    %v6072 = vpop.f32.mrb[0].mxu0
    %v6073 = vadd.f32 %v5967, %v6072
    %v6074 = vpop.f32.mrb[0].mxu0
    %v6075 = vadd.f32 %v5969, %v6074
    %6076 = vdwg.mxu0
    %v6077 = vand.u32 %v117, 4294901760
    %v6078 = vsub.f32 %v117, %v6077
    %v6079 = vand.u32 %v6078, 4294901760
    %6080 = vmatprep.subr.mxu0 %v6079
    %v6081 = vand.u32 %v116, 4294901760
    %v6082 = vsub.f32 %v116, %v6081
    %v6083 = vand.u32 %v6082, 4294901760
    %6084 = vmatpush1.msra.mxu0 %v6083
    %v6085 = vand.u32 %v119, 4294901760
    %v6086 = vsub.f32 %v119, %v6085
    %v6087 = vand.u32 %v6086, 4294901760
    %6088 = vmatprep.subr.mxu0 %v6087
    %v6089 = vand.u32 %v118, 4294901760
    %v6090 = vsub.f32 %v118, %v6089
    %v6091 = vand.u32 %v6090, 4294901760
    %6092 = vmatpush1.msra.mxu0 %v6091
    %v6093 = vand.u32 %v121, 4294901760
    %v6094 = vsub.f32 %v121, %v6093
    %v6095 = vand.u32 %v6094, 4294901760
    %6096 = vmatprep.subr.mxu0 %v6095
    %v6097 = vand.u32 %v120, 4294901760
    %v6098 = vsub.f32 %v120, %v6097
    %v6099 = vand.u32 %v6098, 4294901760
    %6100 = vmatpush1.msra.mxu0 %v6099
    %v6101 = vand.u32 %v123, 4294901760
    %v6102 = vsub.f32 %v123, %v6101
    %v6103 = vand.u32 %v6102, 4294901760
    %6104 = vmatprep.subr.mxu0 %v6103
    %v6105 = vand.u32 %v122, 4294901760
    %v6106 = vsub.f32 %v122, %v6105
    %v6107 = vand.u32 %v6106, 4294901760
    %6108 = vmatpush1.msra.mxu0 %v6107
    %v6109 = vand.u32 %v125, 4294901760
    %v6110 = vsub.f32 %v125, %v6109
    %v6111 = vand.u32 %v6110, 4294901760
    %6112 = vmatprep.subr.mxu0 %v6111
    %v6113 = vand.u32 %v124, 4294901760
    %v6114 = vsub.f32 %v124, %v6113
    %v6115 = vand.u32 %v6114, 4294901760
    %6116 = vmatpush1.msra.mxu0 %v6115
    %v6117 = vand.u32 %v127, 4294901760
    %v6118 = vsub.f32 %v127, %v6117
    %v6119 = vand.u32 %v6118, 4294901760
    %6120 = vmatprep.subr.mxu0 %v6119
    %v6121 = vand.u32 %v126, 4294901760
    %v6122 = vsub.f32 %v126, %v6121
    %v6123 = vand.u32 %v6122, 4294901760
    %6124 = vmatpush1.msra.mxu0 %v6123
    %v6125 = vand.u32 %v129, 4294901760
    %v6126 = vsub.f32 %v129, %v6125
    %v6127 = vand.u32 %v6126, 4294901760
    %6128 = vmatprep.subr.mxu0 %v6127
    %v6129 = vand.u32 %v128, 4294901760
    %v6130 = vsub.f32 %v128, %v6129
    %v6131 = vand.u32 %v6130, 4294901760
    %6132 = vmatpush1.msra.mxu0 %v6131
    %v6133 = vand.u32 %v131, 4294901760
    %v6134 = vsub.f32 %v131, %v6133
    %v6135 = vand.u32 %v6134, 4294901760
    %6136 = vmatprep.subr.mxu0 %v6135
    %v6137 = vand.u32 %v130, 4294901760
    %v6138 = vsub.f32 %v130, %v6137
    %v6139 = vand.u32 %v6138, 4294901760
    %6140 = vmatpush1.msra.mxu0 %v6139
    %v6141 = vand.u32 %v133, 4294901760
    %v6142 = vsub.f32 %v133, %v6141
    %v6143 = vand.u32 %v6142, 4294901760
    %6144 = vmatprep.subr.mxu0 %v6143
    %v6145 = vand.u32 %v132, 4294901760
    %v6146 = vsub.f32 %v132, %v6145
    %v6147 = vand.u32 %v6146, 4294901760
    %6148 = vmatpush1.msra.mxu0 %v6147
    %v6149 = vand.u32 %v135, 4294901760
    %v6150 = vsub.f32 %v135, %v6149
    %v6151 = vand.u32 %v6150, 4294901760
    %6152 = vmatprep.subr.mxu0 %v6151
    %v6153 = vand.u32 %v134, 4294901760
    %v6154 = vsub.f32 %v134, %v6153
    %v6155 = vand.u32 %v6154, 4294901760
    %6156 = vmatpush1.msra.mxu0 %v6155
    %v6157 = vand.u32 %v137, 4294901760
    %v6158 = vsub.f32 %v137, %v6157
    %v6159 = vand.u32 %v6158, 4294901760
    %6160 = vmatprep.subr.mxu0 %v6159
    %v6161 = vand.u32 %v136, 4294901760
    %v6162 = vsub.f32 %v136, %v6161
    %v6163 = vand.u32 %v6162, 4294901760
    %6164 = vmatpush1.msra.mxu0 %v6163
    %v6165 = vand.u32 %v139, 4294901760
    %v6166 = vsub.f32 %v139, %v6165
    %v6167 = vand.u32 %v6166, 4294901760
    %6168 = vmatprep.subr.mxu0 %v6167
    %v6169 = vand.u32 %v138, 4294901760
    %v6170 = vsub.f32 %v138, %v6169
    %v6171 = vand.u32 %v6170, 4294901760
    %6172 = vmatpush1.msra.mxu0 %v6171
    %v6173 = vand.u32 %v141, 4294901760
    %v6174 = vsub.f32 %v141, %v6173
    %v6175 = vand.u32 %v6174, 4294901760
    %6176 = vmatprep.subr.mxu0 %v6175
    %v6177 = vand.u32 %v140, 4294901760
    %v6178 = vsub.f32 %v140, %v6177
    %v6179 = vand.u32 %v6178, 4294901760
    %6180 = vmatpush1.msra.mxu0 %v6179
    %v6181 = vand.u32 %v143, 4294901760
    %v6182 = vsub.f32 %v143, %v6181
    %v6183 = vand.u32 %v6182, 4294901760
    %6184 = vmatprep.subr.mxu0 %v6183
    %v6185 = vand.u32 %v142, 4294901760
    %v6186 = vsub.f32 %v142, %v6185
    %v6187 = vand.u32 %v6186, 4294901760
    %6188 = vmatpush1.msra.mxu0 %v6187
    %v6189 = vand.u32 %v145, 4294901760
    %v6190 = vsub.f32 %v145, %v6189
    %v6191 = vand.u32 %v6190, 4294901760
    %6192 = vmatprep.subr.mxu0 %v6191
    %v6193 = vand.u32 %v144, 4294901760
    %v6194 = vsub.f32 %v144, %v6193
    %v6195 = vand.u32 %v6194, 4294901760
    %6196 = vmatpush1.msra.mxu0 %v6195
    %v6197 = vand.u32 %v147, 4294901760
    %v6198 = vsub.f32 %v147, %v6197
    %v6199 = vand.u32 %v6198, 4294901760
    %6200 = vmatprep.subr.mxu0 %v6199
    %v6201 = vand.u32 %v146, 4294901760
    %v6202 = vsub.f32 %v146, %v6201
    %v6203 = vand.u32 %v6202, 4294901760
    %6204 = vmatpush1.msra.mxu0 %v6203
    %6205 = vmatprep.subr.mxu0 0.0
    %6206 = vmatpush1.msra.mxu0 0.0
    %6207 = vmatprep.subr.mxu0 0.0
    %6208 = vmatpush1.msra.mxu0 0.0
    %6209 = vmatprep.subr.mxu0 0.0
    %6210 = vmatpush1.msra.mxu0 0.0
    %6211 = vmatprep.subr.mxu0 0.0
    %6212 = vmatpush1.msra.mxu0 0.0
    %6213 = vmatprep.subr.mxu0 0.0
    %6214 = vmatpush1.msra.mxu0 0.0
    %6215 = vmatprep.subr.mxu0 0.0
    %6216 = vmatpush1.msra.mxu0 0.0
    %6217 = vmatprep.subr.mxu0 0.0
    %6218 = vmatpush1.msra.mxu0 0.0
    %6219 = vmatprep.subr.mxu0 0.0
    %6220 = vmatpush1.msra.mxu0 0.0
    %6221 = vmatprep.subr.mxu0 0.0
    %6222 = vmatpush1.msra.mxu0 0.0
    %6223 = vmatprep.subr.mxu0 0.0
    %6224 = vmatpush1.msra.mxu0 0.0
    %6225 = vmatprep.subr.mxu0 0.0
    %6226 = vmatpush1.msra.mxu0 0.0
    %6227 = vmatprep.subr.mxu0 0.0
    %6228 = vmatpush1.msra.mxu0 0.0
    %6229 = vmatprep.subr.mxu0 0.0
    %6230 = vmatpush1.msra.mxu0 0.0
    %6231 = vmatprep.subr.mxu0 0.0
    %6232 = vmatpush1.msra.mxu0 0.0
    %6233 = vmatprep.subr.mxu0 0.0
    %6234 = vmatpush1.msra.mxu0 0.0
    %6235 = vmatprep.subr.mxu0 0.0
    %6236 = vmatpush1.msra.mxu0 0.0
    %6237 = vmatprep.mubr.f32.mxu0 0.0
    %v6238 = vand.u32 %v3752, 4294901760
    %6239 = vmatmul.mubr.f32.gmra.mrb[0].mxu0 %v6238
    %v6240 = vpop.f32.mrb[0].mxu0
    %v6241 = vadd.f32 %v6073, %v6240
    %v6242 = vpop.f32.mrb[0].mxu0
    %v6243 = vadd.f32 %v6075, %v6242
    %6244 = vdwg.mxu0
    %v6245 = vand.u32 %v117, 4294901760
    %6246 = vmatprep.subr.mxu0 %v6245
    %v6247 = vand.u32 %v116, 4294901760
    %6248 = vmatpush1.msra.mxu0 %v6247
    %v6249 = vand.u32 %v119, 4294901760
    %6250 = vmatprep.subr.mxu0 %v6249
    %v6251 = vand.u32 %v118, 4294901760
    %6252 = vmatpush1.msra.mxu0 %v6251
    %v6253 = vand.u32 %v121, 4294901760
    %6254 = vmatprep.subr.mxu0 %v6253
    %v6255 = vand.u32 %v120, 4294901760
    %6256 = vmatpush1.msra.mxu0 %v6255
    %v6257 = vand.u32 %v123, 4294901760
    %6258 = vmatprep.subr.mxu0 %v6257
    %v6259 = vand.u32 %v122, 4294901760
    %6260 = vmatpush1.msra.mxu0 %v6259
    %v6261 = vand.u32 %v125, 4294901760
    %6262 = vmatprep.subr.mxu0 %v6261
    %v6263 = vand.u32 %v124, 4294901760
    %6264 = vmatpush1.msra.mxu0 %v6263
    %v6265 = vand.u32 %v127, 4294901760
    %6266 = vmatprep.subr.mxu0 %v6265
    %v6267 = vand.u32 %v126, 4294901760
    %6268 = vmatpush1.msra.mxu0 %v6267
    %v6269 = vand.u32 %v129, 4294901760
    %6270 = vmatprep.subr.mxu0 %v6269
    %v6271 = vand.u32 %v128, 4294901760
    %6272 = vmatpush1.msra.mxu0 %v6271
    %v6273 = vand.u32 %v131, 4294901760
    %6274 = vmatprep.subr.mxu0 %v6273
    %v6275 = vand.u32 %v130, 4294901760
    %6276 = vmatpush1.msra.mxu0 %v6275
    %v6277 = vand.u32 %v133, 4294901760
    %6278 = vmatprep.subr.mxu0 %v6277
    %v6279 = vand.u32 %v132, 4294901760
    %6280 = vmatpush1.msra.mxu0 %v6279
    %v6281 = vand.u32 %v135, 4294901760
    %6282 = vmatprep.subr.mxu0 %v6281
    %v6283 = vand.u32 %v134, 4294901760
    %6284 = vmatpush1.msra.mxu0 %v6283
    %v6285 = vand.u32 %v137, 4294901760
    %6286 = vmatprep.subr.mxu0 %v6285
    %v6287 = vand.u32 %v136, 4294901760
    %6288 = vmatpush1.msra.mxu0 %v6287
    %v6289 = vand.u32 %v139, 4294901760
    %6290 = vmatprep.subr.mxu0 %v6289
    %v6291 = vand.u32 %v138, 4294901760
    %6292 = vmatpush1.msra.mxu0 %v6291
    %v6293 = vand.u32 %v141, 4294901760
    %6294 = vmatprep.subr.mxu0 %v6293
    %v6295 = vand.u32 %v140, 4294901760
    %6296 = vmatpush1.msra.mxu0 %v6295
    %v6297 = vand.u32 %v143, 4294901760
    %6298 = vmatprep.subr.mxu0 %v6297
    %v6299 = vand.u32 %v142, 4294901760
    %6300 = vmatpush1.msra.mxu0 %v6299
    %v6301 = vand.u32 %v145, 4294901760
    %6302 = vmatprep.subr.mxu0 %v6301
    %v6303 = vand.u32 %v144, 4294901760
    %6304 = vmatpush1.msra.mxu0 %v6303
    %v6305 = vand.u32 %v147, 4294901760
    %6306 = vmatprep.subr.mxu0 %v6305
    %v6307 = vand.u32 %v146, 4294901760
    %6308 = vmatpush1.msra.mxu0 %v6307
    %6309 = vmatprep.subr.mxu0 0.0
    %6310 = vmatpush1.msra.mxu0 0.0
    %6311 = vmatprep.subr.mxu0 0.0
    %6312 = vmatpush1.msra.mxu0 0.0
    %6313 = vmatprep.subr.mxu0 0.0
    %6314 = vmatpush1.msra.mxu0 0.0
    %6315 = vmatprep.subr.mxu0 0.0
    %6316 = vmatpush1.msra.mxu0 0.0
    %6317 = vmatprep.subr.mxu0 0.0
    %6318 = vmatpush1.msra.mxu0 0.0
    %6319 = vmatprep.subr.mxu0 0.0
    %6320 = vmatpush1.msra.mxu0 0.0
    %6321 = vmatprep.subr.mxu0 0.0
    %6322 = vmatpush1.msra.mxu0 0.0
    %6323 = vmatprep.subr.mxu0 0.0
    %6324 = vmatpush1.msra.mxu0 0.0
    %6325 = vmatprep.subr.mxu0 0.0
    %6326 = vmatpush1.msra.mxu0 0.0
    %6327 = vmatprep.subr.mxu0 0.0
    %6328 = vmatpush1.msra.mxu0 0.0
    %6329 = vmatprep.subr.mxu0 0.0
    %6330 = vmatpush1.msra.mxu0 0.0
    %6331 = vmatprep.subr.mxu0 0.0
    %6332 = vmatpush1.msra.mxu0 0.0
    %6333 = vmatprep.subr.mxu0 0.0
    %6334 = vmatpush1.msra.mxu0 0.0
    %6335 = vmatprep.subr.mxu0 0.0
    %6336 = vmatpush1.msra.mxu0 0.0
    %6337 = vmatprep.subr.mxu0 0.0
    %6338 = vmatpush1.msra.mxu0 0.0
    %6339 = vmatprep.subr.mxu0 0.0
    %6340 = vmatpush1.msra.mxu0 0.0
    %6341 = vmatprep.mubr.f32.mxu0 0.0
    %v6342 = vand.u32 %v3752, 4294901760
    %6343 = vmatmul.mubr.f32.gmra.mrb[0].mxu0 %v6342
    %v6344 = vpop.f32.mrb[0].mxu0
    %v6345 = vadd.f32 %v6241, %v6344
    %v6346 = vpop.f32.mrb[0].mxu0
    %v6347 = vadd.f32 %v6243, %v6346
    %6348 = vdwg.mxu0
    %v6349 = vand.u32 %v149, 4294901760
    %6350 = vmatprep.subr.mxu0 %v6349
    %v6351 = vand.u32 %v148, 4294901760
    %6352 = vmatpush1.msra.mxu0 %v6351
    %v6353 = vand.u32 %v151, 4294901760
    %6354 = vmatprep.subr.mxu0 %v6353
    %v6355 = vand.u32 %v150, 4294901760
    %6356 = vmatpush1.msra.mxu0 %v6355
    %v6357 = vand.u32 %v153, 4294901760
    %6358 = vmatprep.subr.mxu0 %v6357
    %v6359 = vand.u32 %v152, 4294901760
    %6360 = vmatpush1.msra.mxu0 %v6359
    %v6361 = vand.u32 %v155, 4294901760
    %6362 = vmatprep.subr.mxu0 %v6361
    %v6363 = vand.u32 %v154, 4294901760
    %6364 = vmatpush1.msra.mxu0 %v6363
    %v6365 = vand.u32 %v157, 4294901760
    %6366 = vmatprep.subr.mxu0 %v6365
    %v6367 = vand.u32 %v156, 4294901760
    %6368 = vmatpush1.msra.mxu0 %v6367
    %v6369 = vand.u32 %v159, 4294901760
    %6370 = vmatprep.subr.mxu0 %v6369
    %v6371 = vand.u32 %v158, 4294901760
    %6372 = vmatpush1.msra.mxu0 %v6371
    %v6373 = vand.u32 %v161, 4294901760
    %6374 = vmatprep.subr.mxu0 %v6373
    %v6375 = vand.u32 %v160, 4294901760
    %6376 = vmatpush1.msra.mxu0 %v6375
    %v6377 = vand.u32 %v163, 4294901760
    %6378 = vmatprep.subr.mxu0 %v6377
    %v6379 = vand.u32 %v162, 4294901760
    %6380 = vmatpush1.msra.mxu0 %v6379
    %v6381 = vand.u32 %v165, 4294901760
    %6382 = vmatprep.subr.mxu0 %v6381
    %v6383 = vand.u32 %v164, 4294901760
    %6384 = vmatpush1.msra.mxu0 %v6383
    %v6385 = vand.u32 %v167, 4294901760
    %6386 = vmatprep.subr.mxu0 %v6385
    %v6387 = vand.u32 %v166, 4294901760
    %6388 = vmatpush1.msra.mxu0 %v6387
    %v6389 = vand.u32 %v169, 4294901760
    %6390 = vmatprep.subr.mxu0 %v6389
    %v6391 = vand.u32 %v168, 4294901760
    %6392 = vmatpush1.msra.mxu0 %v6391
    %v6393 = vand.u32 %v171, 4294901760
    %6394 = vmatprep.subr.mxu0 %v6393
    %v6395 = vand.u32 %v170, 4294901760
    %6396 = vmatpush1.msra.mxu0 %v6395
    %v6397 = vand.u32 %v173, 4294901760
    %6398 = vmatprep.subr.mxu0 %v6397
    %v6399 = vand.u32 %v172, 4294901760
    %6400 = vmatpush1.msra.mxu0 %v6399
    %v6401 = vand.u32 %v175, 4294901760
    %6402 = vmatprep.subr.mxu0 %v6401
    %v6403 = vand.u32 %v174, 4294901760
    %6404 = vmatpush1.msra.mxu0 %v6403
    %v6405 = vand.u32 %v177, 4294901760
    %6406 = vmatprep.subr.mxu0 %v6405
    %v6407 = vand.u32 %v176, 4294901760
    %6408 = vmatpush1.msra.mxu0 %v6407
    %v6409 = vand.u32 %v179, 4294901760
    %6410 = vmatprep.subr.mxu0 %v6409
    %v6411 = vand.u32 %v178, 4294901760
    %6412 = vmatpush1.msra.mxu0 %v6411
    %6413 = vmatprep.subr.mxu0 0.0
    %6414 = vmatpush1.msra.mxu0 0.0
    %6415 = vmatprep.subr.mxu0 0.0
    %6416 = vmatpush1.msra.mxu0 0.0
    %6417 = vmatprep.subr.mxu0 0.0
    %6418 = vmatpush1.msra.mxu0 0.0
    %6419 = vmatprep.subr.mxu0 0.0
    %6420 = vmatpush1.msra.mxu0 0.0
    %6421 = vmatprep.subr.mxu0 0.0
    %6422 = vmatpush1.msra.mxu0 0.0
    %6423 = vmatprep.subr.mxu0 0.0
    %6424 = vmatpush1.msra.mxu0 0.0
    %6425 = vmatprep.subr.mxu0 0.0
    %6426 = vmatpush1.msra.mxu0 0.0
    %6427 = vmatprep.subr.mxu0 0.0
    %6428 = vmatpush1.msra.mxu0 0.0
    %6429 = vmatprep.subr.mxu0 0.0
    %6430 = vmatpush1.msra.mxu0 0.0
    %6431 = vmatprep.subr.mxu0 0.0
    %6432 = vmatpush1.msra.mxu0 0.0
    %6433 = vmatprep.subr.mxu0 0.0
    %6434 = vmatpush1.msra.mxu0 0.0
    %6435 = vmatprep.subr.mxu0 0.0
    %6436 = vmatpush1.msra.mxu0 0.0
    %6437 = vmatprep.subr.mxu0 0.0
    %6438 = vmatpush1.msra.mxu0 0.0
    %6439 = vmatprep.subr.mxu0 0.0
    %6440 = vmatpush1.msra.mxu0 0.0
    %6441 = vmatprep.subr.mxu0 0.0
    %6442 = vmatpush1.msra.mxu0 0.0
    %6443 = vmatprep.subr.mxu0 0.0
    %6444 = vmatpush1.msra.mxu0 0.0
    %6445 = vmatprep.mubr.f32.mxu0 0.0
    %v6446 = vand.u32 %v3754, 4294901760
    %v6447 = vsub.f32 %v3754, %v6446
    %v6448 = vand.u32 %v6447, 4294901760
    %v6449 = vsub.f32 %v6447, %v6448
    %v6450 = vand.u32 %v6449, 4294901760
    %6451 = vmatmul.mubr.f32.gmra.mrb[0].mxu0 %v6450
    %v6452 = vpop.f32.mrb[0].mxu0
    %v6453 = vadd.f32 0.0, %v6452
    %v6454 = vpop.f32.mrb[0].mxu0
    %v6455 = vadd.f32 0.0, %v6454
    %6456 = vdwg.mxu0
    %v6457 = vand.u32 %v149, 4294901760
    %v6458 = vsub.f32 %v149, %v6457
    %v6459 = vand.u32 %v6458, 4294901760
    %v6460 = vsub.f32 %v6458, %v6459
    %v6461 = vand.u32 %v6460, 4294901760
    %6462 = vmatprep.subr.mxu0 %v6461
    %v6463 = vand.u32 %v148, 4294901760
    %v6464 = vsub.f32 %v148, %v6463
    %v6465 = vand.u32 %v6464, 4294901760
    %v6466 = vsub.f32 %v6464, %v6465
    %v6467 = vand.u32 %v6466, 4294901760
    %6468 = vmatpush1.msra.mxu0 %v6467
    %v6469 = vand.u32 %v151, 4294901760
    %v6470 = vsub.f32 %v151, %v6469
    %v6471 = vand.u32 %v6470, 4294901760
    %v6472 = vsub.f32 %v6470, %v6471
    %v6473 = vand.u32 %v6472, 4294901760
    %6474 = vmatprep.subr.mxu0 %v6473
    %v6475 = vand.u32 %v150, 4294901760
    %v6476 = vsub.f32 %v150, %v6475
    %v6477 = vand.u32 %v6476, 4294901760
    %v6478 = vsub.f32 %v6476, %v6477
    %v6479 = vand.u32 %v6478, 4294901760
    %6480 = vmatpush1.msra.mxu0 %v6479
    %v6481 = vand.u32 %v153, 4294901760
    %v6482 = vsub.f32 %v153, %v6481
    %v6483 = vand.u32 %v6482, 4294901760
    %v6484 = vsub.f32 %v6482, %v6483
    %v6485 = vand.u32 %v6484, 4294901760
    %6486 = vmatprep.subr.mxu0 %v6485
    %v6487 = vand.u32 %v152, 4294901760
    %v6488 = vsub.f32 %v152, %v6487
    %v6489 = vand.u32 %v6488, 4294901760
    %v6490 = vsub.f32 %v6488, %v6489
    %v6491 = vand.u32 %v6490, 4294901760
    %6492 = vmatpush1.msra.mxu0 %v6491
    %v6493 = vand.u32 %v155, 4294901760
    %v6494 = vsub.f32 %v155, %v6493
    %v6495 = vand.u32 %v6494, 4294901760
    %v6496 = vsub.f32 %v6494, %v6495
    %v6497 = vand.u32 %v6496, 4294901760
    %6498 = vmatprep.subr.mxu0 %v6497
    %v6499 = vand.u32 %v154, 4294901760
    %v6500 = vsub.f32 %v154, %v6499
    %v6501 = vand.u32 %v6500, 4294901760
    %v6502 = vsub.f32 %v6500, %v6501
    %v6503 = vand.u32 %v6502, 4294901760
    %6504 = vmatpush1.msra.mxu0 %v6503
    %v6505 = vand.u32 %v157, 4294901760
    %v6506 = vsub.f32 %v157, %v6505
    %v6507 = vand.u32 %v6506, 4294901760
    %v6508 = vsub.f32 %v6506, %v6507
    %v6509 = vand.u32 %v6508, 4294901760
    %6510 = vmatprep.subr.mxu0 %v6509
    %v6511 = vand.u32 %v156, 4294901760
    %v6512 = vsub.f32 %v156, %v6511
    %v6513 = vand.u32 %v6512, 4294901760
    %v6514 = vsub.f32 %v6512, %v6513
    %v6515 = vand.u32 %v6514, 4294901760
    %6516 = vmatpush1.msra.mxu0 %v6515
    %v6517 = vand.u32 %v159, 4294901760
    %v6518 = vsub.f32 %v159, %v6517
    %v6519 = vand.u32 %v6518, 4294901760
    %v6520 = vsub.f32 %v6518, %v6519
    %v6521 = vand.u32 %v6520, 4294901760
    %6522 = vmatprep.subr.mxu0 %v6521
    %v6523 = vand.u32 %v158, 4294901760
    %v6524 = vsub.f32 %v158, %v6523
    %v6525 = vand.u32 %v6524, 4294901760
    %v6526 = vsub.f32 %v6524, %v6525
    %v6527 = vand.u32 %v6526, 4294901760
    %6528 = vmatpush1.msra.mxu0 %v6527
    %v6529 = vand.u32 %v161, 4294901760
    %v6530 = vsub.f32 %v161, %v6529
    %v6531 = vand.u32 %v6530, 4294901760
    %v6532 = vsub.f32 %v6530, %v6531
    %v6533 = vand.u32 %v6532, 4294901760
    %6534 = vmatprep.subr.mxu0 %v6533
    %v6535 = vand.u32 %v160, 4294901760
    %v6536 = vsub.f32 %v160, %v6535
    %v6537 = vand.u32 %v6536, 4294901760
    %v6538 = vsub.f32 %v6536, %v6537
    %v6539 = vand.u32 %v6538, 4294901760
    %6540 = vmatpush1.msra.mxu0 %v6539
    %v6541 = vand.u32 %v163, 4294901760
    %v6542 = vsub.f32 %v163, %v6541
    %v6543 = vand.u32 %v6542, 4294901760
    %v6544 = vsub.f32 %v6542, %v6543
    %v6545 = vand.u32 %v6544, 4294901760
    %6546 = vmatprep.subr.mxu0 %v6545
    %v6547 = vand.u32 %v162, 4294901760
    %v6548 = vsub.f32 %v162, %v6547
    %v6549 = vand.u32 %v6548, 4294901760
    %v6550 = vsub.f32 %v6548, %v6549
    %v6551 = vand.u32 %v6550, 4294901760
    %6552 = vmatpush1.msra.mxu0 %v6551
    %v6553 = vand.u32 %v165, 4294901760
    %v6554 = vsub.f32 %v165, %v6553
    %v6555 = vand.u32 %v6554, 4294901760
    %v6556 = vsub.f32 %v6554, %v6555
    %v6557 = vand.u32 %v6556, 4294901760
    %6558 = vmatprep.subr.mxu0 %v6557
    %v6559 = vand.u32 %v164, 4294901760
    %v6560 = vsub.f32 %v164, %v6559
    %v6561 = vand.u32 %v6560, 4294901760
    %v6562 = vsub.f32 %v6560, %v6561
    %v6563 = vand.u32 %v6562, 4294901760
    %6564 = vmatpush1.msra.mxu0 %v6563
    %v6565 = vand.u32 %v167, 4294901760
    %v6566 = vsub.f32 %v167, %v6565
    %v6567 = vand.u32 %v6566, 4294901760
    %v6568 = vsub.f32 %v6566, %v6567
    %v6569 = vand.u32 %v6568, 4294901760
    %6570 = vmatprep.subr.mxu0 %v6569
    %v6571 = vand.u32 %v166, 4294901760
    %v6572 = vsub.f32 %v166, %v6571
    %v6573 = vand.u32 %v6572, 4294901760
    %v6574 = vsub.f32 %v6572, %v6573
    %v6575 = vand.u32 %v6574, 4294901760
    %6576 = vmatpush1.msra.mxu0 %v6575
    %v6577 = vand.u32 %v169, 4294901760
    %v6578 = vsub.f32 %v169, %v6577
    %v6579 = vand.u32 %v6578, 4294901760
    %v6580 = vsub.f32 %v6578, %v6579
    %v6581 = vand.u32 %v6580, 4294901760
    %6582 = vmatprep.subr.mxu0 %v6581
    %v6583 = vand.u32 %v168, 4294901760
    %v6584 = vsub.f32 %v168, %v6583
    %v6585 = vand.u32 %v6584, 4294901760
    %v6586 = vsub.f32 %v6584, %v6585
    %v6587 = vand.u32 %v6586, 4294901760
    %6588 = vmatpush1.msra.mxu0 %v6587
    %v6589 = vand.u32 %v171, 4294901760
    %v6590 = vsub.f32 %v171, %v6589
    %v6591 = vand.u32 %v6590, 4294901760
    %v6592 = vsub.f32 %v6590, %v6591
    %v6593 = vand.u32 %v6592, 4294901760
    %6594 = vmatprep.subr.mxu0 %v6593
    %v6595 = vand.u32 %v170, 4294901760
    %v6596 = vsub.f32 %v170, %v6595
    %v6597 = vand.u32 %v6596, 4294901760
    %v6598 = vsub.f32 %v6596, %v6597
    %v6599 = vand.u32 %v6598, 4294901760
    %6600 = vmatpush1.msra.mxu0 %v6599
    %v6601 = vand.u32 %v173, 4294901760
    %v6602 = vsub.f32 %v173, %v6601
    %v6603 = vand.u32 %v6602, 4294901760
    %v6604 = vsub.f32 %v6602, %v6603
    %v6605 = vand.u32 %v6604, 4294901760
    %6606 = vmatprep.subr.mxu0 %v6605
    %v6607 = vand.u32 %v172, 4294901760
    %v6608 = vsub.f32 %v172, %v6607
    %v6609 = vand.u32 %v6608, 4294901760
    %v6610 = vsub.f32 %v6608, %v6609
    %v6611 = vand.u32 %v6610, 4294901760
    %6612 = vmatpush1.msra.mxu0 %v6611
    %v6613 = vand.u32 %v175, 4294901760
    %v6614 = vsub.f32 %v175, %v6613
    %v6615 = vand.u32 %v6614, 4294901760
    %v6616 = vsub.f32 %v6614, %v6615
    %v6617 = vand.u32 %v6616, 4294901760
    %6618 = vmatprep.subr.mxu0 %v6617
    %v6619 = vand.u32 %v174, 4294901760
    %v6620 = vsub.f32 %v174, %v6619
    %v6621 = vand.u32 %v6620, 4294901760
    %v6622 = vsub.f32 %v6620, %v6621
    %v6623 = vand.u32 %v6622, 4294901760
    %6624 = vmatpush1.msra.mxu0 %v6623
    %v6625 = vand.u32 %v177, 4294901760
    %v6626 = vsub.f32 %v177, %v6625
    %v6627 = vand.u32 %v6626, 4294901760
    %v6628 = vsub.f32 %v6626, %v6627
    %v6629 = vand.u32 %v6628, 4294901760
    %6630 = vmatprep.subr.mxu0 %v6629
    %v6631 = vand.u32 %v176, 4294901760
    %v6632 = vsub.f32 %v176, %v6631
    %v6633 = vand.u32 %v6632, 4294901760
    %v6634 = vsub.f32 %v6632, %v6633
    %v6635 = vand.u32 %v6634, 4294901760
    %6636 = vmatpush1.msra.mxu0 %v6635
    %v6637 = vand.u32 %v179, 4294901760
    %v6638 = vsub.f32 %v179, %v6637
    %v6639 = vand.u32 %v6638, 4294901760
    %v6640 = vsub.f32 %v6638, %v6639
    %v6641 = vand.u32 %v6640, 4294901760
    %6642 = vmatprep.subr.mxu0 %v6641
    %v6643 = vand.u32 %v178, 4294901760
    %v6644 = vsub.f32 %v178, %v6643
    %v6645 = vand.u32 %v6644, 4294901760
    %v6646 = vsub.f32 %v6644, %v6645
    %v6647 = vand.u32 %v6646, 4294901760
    %6648 = vmatpush1.msra.mxu0 %v6647
    %6649 = vmatprep.subr.mxu0 0.0
    %6650 = vmatpush1.msra.mxu0 0.0
    %6651 = vmatprep.subr.mxu0 0.0
    %6652 = vmatpush1.msra.mxu0 0.0
    %6653 = vmatprep.subr.mxu0 0.0
    %6654 = vmatpush1.msra.mxu0 0.0
    %6655 = vmatprep.subr.mxu0 0.0
    %6656 = vmatpush1.msra.mxu0 0.0
    %6657 = vmatprep.subr.mxu0 0.0
    %6658 = vmatpush1.msra.mxu0 0.0
    %6659 = vmatprep.subr.mxu0 0.0
    %6660 = vmatpush1.msra.mxu0 0.0
    %6661 = vmatprep.subr.mxu0 0.0
    %6662 = vmatpush1.msra.mxu0 0.0
    %6663 = vmatprep.subr.mxu0 0.0
    %6664 = vmatpush1.msra.mxu0 0.0
    %6665 = vmatprep.subr.mxu0 0.0
    %6666 = vmatpush1.msra.mxu0 0.0
    %6667 = vmatprep.subr.mxu0 0.0
    %6668 = vmatpush1.msra.mxu0 0.0
    %6669 = vmatprep.subr.mxu0 0.0
    %6670 = vmatpush1.msra.mxu0 0.0
    %6671 = vmatprep.subr.mxu0 0.0
    %6672 = vmatpush1.msra.mxu0 0.0
    %6673 = vmatprep.subr.mxu0 0.0
    %6674 = vmatpush1.msra.mxu0 0.0
    %6675 = vmatprep.subr.mxu0 0.0
    %6676 = vmatpush1.msra.mxu0 0.0
    %6677 = vmatprep.subr.mxu0 0.0
    %6678 = vmatpush1.msra.mxu0 0.0
    %6679 = vmatprep.subr.mxu0 0.0
    %6680 = vmatpush1.msra.mxu0 0.0
    %6681 = vmatprep.mubr.f32.mxu0 0.0
    %v6682 = vand.u32 %v3754, 4294901760
    %6683 = vmatmul.mubr.f32.gmra.mrb[0].mxu0 %v6682
    %v6684 = vpop.f32.mrb[0].mxu0
    %v6685 = vadd.f32 %v6453, %v6684
    %v6686 = vpop.f32.mrb[0].mxu0
    %v6687 = vadd.f32 %v6455, %v6686
    %6688 = vdwg.mxu0
    %v6689 = vand.u32 %v149, 4294901760
    %v6690 = vsub.f32 %v149, %v6689
    %6691 = vmatprep.subr.mxu0 %v6690
    %v6692 = vand.u32 %v148, 4294901760
    %v6693 = vsub.f32 %v148, %v6692
    %6694 = vmatpush1.msra.mxu0 %v6693
    %v6695 = vand.u32 %v151, 4294901760
    %v6696 = vsub.f32 %v151, %v6695
    %6697 = vmatprep.subr.mxu0 %v6696
    %v6698 = vand.u32 %v150, 4294901760
    %v6699 = vsub.f32 %v150, %v6698
    %6700 = vmatpush1.msra.mxu0 %v6699
    %v6701 = vand.u32 %v153, 4294901760
    %v6702 = vsub.f32 %v153, %v6701
    %6703 = vmatprep.subr.mxu0 %v6702
    %v6704 = vand.u32 %v152, 4294901760
    %v6705 = vsub.f32 %v152, %v6704
    %6706 = vmatpush1.msra.mxu0 %v6705
    %v6707 = vand.u32 %v155, 4294901760
    %v6708 = vsub.f32 %v155, %v6707
    %6709 = vmatprep.subr.mxu0 %v6708
    %v6710 = vand.u32 %v154, 4294901760
    %v6711 = vsub.f32 %v154, %v6710
    %6712 = vmatpush1.msra.mxu0 %v6711
    %v6713 = vand.u32 %v157, 4294901760
    %v6714 = vsub.f32 %v157, %v6713
    %6715 = vmatprep.subr.mxu0 %v6714
    %v6716 = vand.u32 %v156, 4294901760
    %v6717 = vsub.f32 %v156, %v6716
    %6718 = vmatpush1.msra.mxu0 %v6717
    %v6719 = vand.u32 %v159, 4294901760
    %v6720 = vsub.f32 %v159, %v6719
    %6721 = vmatprep.subr.mxu0 %v6720
    %v6722 = vand.u32 %v158, 4294901760
    %v6723 = vsub.f32 %v158, %v6722
    %6724 = vmatpush1.msra.mxu0 %v6723
    %v6725 = vand.u32 %v161, 4294901760
    %v6726 = vsub.f32 %v161, %v6725
    %6727 = vmatprep.subr.mxu0 %v6726
    %v6728 = vand.u32 %v160, 4294901760
    %v6729 = vsub.f32 %v160, %v6728
    %6730 = vmatpush1.msra.mxu0 %v6729
    %v6731 = vand.u32 %v163, 4294901760
    %v6732 = vsub.f32 %v163, %v6731
    %6733 = vmatprep.subr.mxu0 %v6732
    %v6734 = vand.u32 %v162, 4294901760
    %v6735 = vsub.f32 %v162, %v6734
    %6736 = vmatpush1.msra.mxu0 %v6735
    %v6737 = vand.u32 %v165, 4294901760
    %v6738 = vsub.f32 %v165, %v6737
    %6739 = vmatprep.subr.mxu0 %v6738
    %v6740 = vand.u32 %v164, 4294901760
    %v6741 = vsub.f32 %v164, %v6740
    %6742 = vmatpush1.msra.mxu0 %v6741
    %v6743 = vand.u32 %v167, 4294901760
    %v6744 = vsub.f32 %v167, %v6743
    %6745 = vmatprep.subr.mxu0 %v6744
    %v6746 = vand.u32 %v166, 4294901760
    %v6747 = vsub.f32 %v166, %v6746
    %6748 = vmatpush1.msra.mxu0 %v6747
    %v6749 = vand.u32 %v169, 4294901760
    %v6750 = vsub.f32 %v169, %v6749
    %6751 = vmatprep.subr.mxu0 %v6750
    %v6752 = vand.u32 %v168, 4294901760
    %v6753 = vsub.f32 %v168, %v6752
    %6754 = vmatpush1.msra.mxu0 %v6753
    %v6755 = vand.u32 %v171, 4294901760
    %v6756 = vsub.f32 %v171, %v6755
    %6757 = vmatprep.subr.mxu0 %v6756
    %v6758 = vand.u32 %v170, 4294901760
    %v6759 = vsub.f32 %v170, %v6758
    %6760 = vmatpush1.msra.mxu0 %v6759
    %v6761 = vand.u32 %v173, 4294901760
    %v6762 = vsub.f32 %v173, %v6761
    %6763 = vmatprep.subr.mxu0 %v6762
    %v6764 = vand.u32 %v172, 4294901760
    %v6765 = vsub.f32 %v172, %v6764
    %6766 = vmatpush1.msra.mxu0 %v6765
    %v6767 = vand.u32 %v175, 4294901760
    %v6768 = vsub.f32 %v175, %v6767
    %6769 = vmatprep.subr.mxu0 %v6768
    %v6770 = vand.u32 %v174, 4294901760
    %v6771 = vsub.f32 %v174, %v6770
    %6772 = vmatpush1.msra.mxu0 %v6771
    %v6773 = vand.u32 %v177, 4294901760
    %v6774 = vsub.f32 %v177, %v6773
    %6775 = vmatprep.subr.mxu0 %v6774
    %v6776 = vand.u32 %v176, 4294901760
    %v6777 = vsub.f32 %v176, %v6776
    %6778 = vmatpush1.msra.mxu0 %v6777
    %v6779 = vand.u32 %v179, 4294901760
    %v6780 = vsub.f32 %v179, %v6779
    %6781 = vmatprep.subr.mxu0 %v6780
    %v6782 = vand.u32 %v178, 4294901760
    %v6783 = vsub.f32 %v178, %v6782
    %6784 = vmatpush1.msra.mxu0 %v6783
    %6785 = vmatprep.subr.mxu0 0.0
    %6786 = vmatpush1.msra.mxu0 0.0
    %6787 = vmatprep.subr.mxu0 0.0
    %6788 = vmatpush1.msra.mxu0 0.0
    %6789 = vmatprep.subr.mxu0 0.0
    %6790 = vmatpush1.msra.mxu0 0.0
    %6791 = vmatprep.subr.mxu0 0.0
    %6792 = vmatpush1.msra.mxu0 0.0
    %6793 = vmatprep.subr.mxu0 0.0
    %6794 = vmatpush1.msra.mxu0 0.0
    %6795 = vmatprep.subr.mxu0 0.0
    %6796 = vmatpush1.msra.mxu0 0.0
    %6797 = vmatprep.subr.mxu0 0.0
    %6798 = vmatpush1.msra.mxu0 0.0
    %6799 = vmatprep.subr.mxu0 0.0
    %6800 = vmatpush1.msra.mxu0 0.0
    %6801 = vmatprep.subr.mxu0 0.0
    %6802 = vmatpush1.msra.mxu0 0.0
    %6803 = vmatprep.subr.mxu0 0.0
    %6804 = vmatpush1.msra.mxu0 0.0
    %6805 = vmatprep.subr.mxu0 0.0
    %6806 = vmatpush1.msra.mxu0 0.0
    %6807 = vmatprep.subr.mxu0 0.0
    %6808 = vmatpush1.msra.mxu0 0.0
    %6809 = vmatprep.subr.mxu0 0.0
    %6810 = vmatpush1.msra.mxu0 0.0
    %6811 = vmatprep.subr.mxu0 0.0
    %6812 = vmatpush1.msra.mxu0 0.0
    %6813 = vmatprep.subr.mxu0 0.0
    %6814 = vmatpush1.msra.mxu0 0.0
    %6815 = vmatprep.subr.mxu0 0.0
    %6816 = vmatpush1.msra.mxu0 0.0
    %6817 = vmatprep.mubr.f32.mxu0 0.0
    %v6818 = vand.u32 %v3754, 4294901760
    %v6819 = vsub.f32 %v3754, %v6818
    %6820 = vmatmul.mubr.f32.gmra.mrb[0].mxu0 %v6819
    %v6821 = vpop.f32.mrb[0].mxu0
    %v6822 = vadd.f32 %v6685, %v6821
    %v6823 = vpop.f32.mrb[0].mxu0
    %v6824 = vadd.f32 %v6687, %v6823
    %6825 = vdwg.mxu0
    %v6826 = vand.u32 %v149, 4294901760
    %6827 = vmatprep.subr.mxu0 %v6826
    %v6828 = vand.u32 %v148, 4294901760
    %6829 = vmatpush1.msra.mxu0 %v6828
    %v6830 = vand.u32 %v151, 4294901760
    %6831 = vmatprep.subr.mxu0 %v6830
    %v6832 = vand.u32 %v150, 4294901760
    %6833 = vmatpush1.msra.mxu0 %v6832
    %v6834 = vand.u32 %v153, 4294901760
    %6835 = vmatprep.subr.mxu0 %v6834
    %v6836 = vand.u32 %v152, 4294901760
    %6837 = vmatpush1.msra.mxu0 %v6836
    %v6838 = vand.u32 %v155, 4294901760
    %6839 = vmatprep.subr.mxu0 %v6838
    %v6840 = vand.u32 %v154, 4294901760
    %6841 = vmatpush1.msra.mxu0 %v6840
    %v6842 = vand.u32 %v157, 4294901760
    %6843 = vmatprep.subr.mxu0 %v6842
    %v6844 = vand.u32 %v156, 4294901760
    %6845 = vmatpush1.msra.mxu0 %v6844
    %v6846 = vand.u32 %v159, 4294901760
    %6847 = vmatprep.subr.mxu0 %v6846
    %v6848 = vand.u32 %v158, 4294901760
    %6849 = vmatpush1.msra.mxu0 %v6848
    %v6850 = vand.u32 %v161, 4294901760
    %6851 = vmatprep.subr.mxu0 %v6850
    %v6852 = vand.u32 %v160, 4294901760
    %6853 = vmatpush1.msra.mxu0 %v6852
    %v6854 = vand.u32 %v163, 4294901760
    %6855 = vmatprep.subr.mxu0 %v6854
    %v6856 = vand.u32 %v162, 4294901760
    %6857 = vmatpush1.msra.mxu0 %v6856
    %v6858 = vand.u32 %v165, 4294901760
    %6859 = vmatprep.subr.mxu0 %v6858
    %v6860 = vand.u32 %v164, 4294901760
    %6861 = vmatpush1.msra.mxu0 %v6860
    %v6862 = vand.u32 %v167, 4294901760
    %6863 = vmatprep.subr.mxu0 %v6862
    %v6864 = vand.u32 %v166, 4294901760
    %6865 = vmatpush1.msra.mxu0 %v6864
    %v6866 = vand.u32 %v169, 4294901760
    %6867 = vmatprep.subr.mxu0 %v6866
    %v6868 = vand.u32 %v168, 4294901760
    %6869 = vmatpush1.msra.mxu0 %v6868
    %v6870 = vand.u32 %v171, 4294901760
    %6871 = vmatprep.subr.mxu0 %v6870
    %v6872 = vand.u32 %v170, 4294901760
    %6873 = vmatpush1.msra.mxu0 %v6872
    %v6874 = vand.u32 %v173, 4294901760
    %6875 = vmatprep.subr.mxu0 %v6874
    %v6876 = vand.u32 %v172, 4294901760
    %6877 = vmatpush1.msra.mxu0 %v6876
    %v6878 = vand.u32 %v175, 4294901760
    %6879 = vmatprep.subr.mxu0 %v6878
    %v6880 = vand.u32 %v174, 4294901760
    %6881 = vmatpush1.msra.mxu0 %v6880
    %v6882 = vand.u32 %v177, 4294901760
    %6883 = vmatprep.subr.mxu0 %v6882
    %v6884 = vand.u32 %v176, 4294901760
    %6885 = vmatpush1.msra.mxu0 %v6884
    %v6886 = vand.u32 %v179, 4294901760
    %6887 = vmatprep.subr.mxu0 %v6886
    %v6888 = vand.u32 %v178, 4294901760
    %6889 = vmatpush1.msra.mxu0 %v6888
    %6890 = vmatprep.subr.mxu0 0.0
    %6891 = vmatpush1.msra.mxu0 0.0
    %6892 = vmatprep.subr.mxu0 0.0
    %6893 = vmatpush1.msra.mxu0 0.0
    %6894 = vmatprep.subr.mxu0 0.0
    %6895 = vmatpush1.msra.mxu0 0.0
    %6896 = vmatprep.subr.mxu0 0.0
    %6897 = vmatpush1.msra.mxu0 0.0
    %6898 = vmatprep.subr.mxu0 0.0
    %6899 = vmatpush1.msra.mxu0 0.0
    %6900 = vmatprep.subr.mxu0 0.0
    %6901 = vmatpush1.msra.mxu0 0.0
    %6902 = vmatprep.subr.mxu0 0.0
    %6903 = vmatpush1.msra.mxu0 0.0
    %6904 = vmatprep.subr.mxu0 0.0
    %6905 = vmatpush1.msra.mxu0 0.0
    %6906 = vmatprep.subr.mxu0 0.0
    %6907 = vmatpush1.msra.mxu0 0.0
    %6908 = vmatprep.subr.mxu0 0.0
    %6909 = vmatpush1.msra.mxu0 0.0
    %6910 = vmatprep.subr.mxu0 0.0
    %6911 = vmatpush1.msra.mxu0 0.0
    %6912 = vmatprep.subr.mxu0 0.0
    %6913 = vmatpush1.msra.mxu0 0.0
    %6914 = vmatprep.subr.mxu0 0.0
    %6915 = vmatpush1.msra.mxu0 0.0
    %6916 = vmatprep.subr.mxu0 0.0
    %6917 = vmatpush1.msra.mxu0 0.0
    %6918 = vmatprep.subr.mxu0 0.0
    %6919 = vmatpush1.msra.mxu0 0.0
    %6920 = vmatprep.subr.mxu0 0.0
    %6921 = vmatpush1.msra.mxu0 0.0
    %6922 = vmatprep.mubr.f32.mxu0 0.0
    %v6923 = vand.u32 %v3754, 4294901760
    %v6924 = vsub.f32 %v3754, %v6923
    %v6925 = vand.u32 %v6924, 4294901760
    %6926 = vmatmul.mubr.f32.gmra.mrb[0].mxu0 %v6925
    %v6927 = vpop.f32.mrb[0].mxu0
    %v6928 = vadd.f32 %v6822, %v6927
    %v6929 = vpop.f32.mrb[0].mxu0
    %v6930 = vadd.f32 %v6824, %v6929
    %6931 = vdwg.mxu0
    %v6932 = vand.u32 %v149, 4294901760
    %v6933 = vsub.f32 %v149, %v6932
    %v6934 = vand.u32 %v6933, 4294901760
    %6935 = vmatprep.subr.mxu0 %v6934
    %v6936 = vand.u32 %v148, 4294901760
    %v6937 = vsub.f32 %v148, %v6936
    %v6938 = vand.u32 %v6937, 4294901760
    %6939 = vmatpush1.msra.mxu0 %v6938
    %v6940 = vand.u32 %v151, 4294901760
    %v6941 = vsub.f32 %v151, %v6940
    %v6942 = vand.u32 %v6941, 4294901760
    %6943 = vmatprep.subr.mxu0 %v6942
    %v6944 = vand.u32 %v150, 4294901760
    %v6945 = vsub.f32 %v150, %v6944
    %v6946 = vand.u32 %v6945, 4294901760
    %6947 = vmatpush1.msra.mxu0 %v6946
    %v6948 = vand.u32 %v153, 4294901760
    %v6949 = vsub.f32 %v153, %v6948
    %v6950 = vand.u32 %v6949, 4294901760
    %6951 = vmatprep.subr.mxu0 %v6950
    %v6952 = vand.u32 %v152, 4294901760
    %v6953 = vsub.f32 %v152, %v6952
    %v6954 = vand.u32 %v6953, 4294901760
    %6955 = vmatpush1.msra.mxu0 %v6954
    %v6956 = vand.u32 %v155, 4294901760
    %v6957 = vsub.f32 %v155, %v6956
    %v6958 = vand.u32 %v6957, 4294901760
    %6959 = vmatprep.subr.mxu0 %v6958
    %v6960 = vand.u32 %v154, 4294901760
    %v6961 = vsub.f32 %v154, %v6960
    %v6962 = vand.u32 %v6961, 4294901760
    %6963 = vmatpush1.msra.mxu0 %v6962
    %v6964 = vand.u32 %v157, 4294901760
    %v6965 = vsub.f32 %v157, %v6964
    %v6966 = vand.u32 %v6965, 4294901760
    %6967 = vmatprep.subr.mxu0 %v6966
    %v6968 = vand.u32 %v156, 4294901760
    %v6969 = vsub.f32 %v156, %v6968
    %v6970 = vand.u32 %v6969, 4294901760
    %6971 = vmatpush1.msra.mxu0 %v6970
    %v6972 = vand.u32 %v159, 4294901760
    %v6973 = vsub.f32 %v159, %v6972
    %v6974 = vand.u32 %v6973, 4294901760
    %6975 = vmatprep.subr.mxu0 %v6974
    %v6976 = vand.u32 %v158, 4294901760
    %v6977 = vsub.f32 %v158, %v6976
    %v6978 = vand.u32 %v6977, 4294901760
    %6979 = vmatpush1.msra.mxu0 %v6978
    %v6980 = vand.u32 %v161, 4294901760
    %v6981 = vsub.f32 %v161, %v6980
    %v6982 = vand.u32 %v6981, 4294901760
    %6983 = vmatprep.subr.mxu0 %v6982
    %v6984 = vand.u32 %v160, 4294901760
    %v6985 = vsub.f32 %v160, %v6984
    %v6986 = vand.u32 %v6985, 4294901760
    %6987 = vmatpush1.msra.mxu0 %v6986
    %v6988 = vand.u32 %v163, 4294901760
    %v6989 = vsub.f32 %v163, %v6988
    %v6990 = vand.u32 %v6989, 4294901760
    %6991 = vmatprep.subr.mxu0 %v6990
    %v6992 = vand.u32 %v162, 4294901760
    %v6993 = vsub.f32 %v162, %v6992
    %v6994 = vand.u32 %v6993, 4294901760
    %6995 = vmatpush1.msra.mxu0 %v6994
    %v6996 = vand.u32 %v165, 4294901760
    %v6997 = vsub.f32 %v165, %v6996
    %v6998 = vand.u32 %v6997, 4294901760
    %6999 = vmatprep.subr.mxu0 %v6998
    %v7000 = vand.u32 %v164, 4294901760
    %v7001 = vsub.f32 %v164, %v7000
    %v7002 = vand.u32 %v7001, 4294901760
    %7003 = vmatpush1.msra.mxu0 %v7002
    %v7004 = vand.u32 %v167, 4294901760
    %v7005 = vsub.f32 %v167, %v7004
    %v7006 = vand.u32 %v7005, 4294901760
    %7007 = vmatprep.subr.mxu0 %v7006
    %v7008 = vand.u32 %v166, 4294901760
    %v7009 = vsub.f32 %v166, %v7008
    %v7010 = vand.u32 %v7009, 4294901760
    %7011 = vmatpush1.msra.mxu0 %v7010
    %v7012 = vand.u32 %v169, 4294901760
    %v7013 = vsub.f32 %v169, %v7012
    %v7014 = vand.u32 %v7013, 4294901760
    %7015 = vmatprep.subr.mxu0 %v7014
    %v7016 = vand.u32 %v168, 4294901760
    %v7017 = vsub.f32 %v168, %v7016
    %v7018 = vand.u32 %v7017, 4294901760
    %7019 = vmatpush1.msra.mxu0 %v7018
    %v7020 = vand.u32 %v171, 4294901760
    %v7021 = vsub.f32 %v171, %v7020
    %v7022 = vand.u32 %v7021, 4294901760
    %7023 = vmatprep.subr.mxu0 %v7022
    %v7024 = vand.u32 %v170, 4294901760
    %v7025 = vsub.f32 %v170, %v7024
    %v7026 = vand.u32 %v7025, 4294901760
    %7027 = vmatpush1.msra.mxu0 %v7026
    %v7028 = vand.u32 %v173, 4294901760
    %v7029 = vsub.f32 %v173, %v7028
    %v7030 = vand.u32 %v7029, 4294901760
    %7031 = vmatprep.subr.mxu0 %v7030
    %v7032 = vand.u32 %v172, 4294901760
    %v7033 = vsub.f32 %v172, %v7032
    %v7034 = vand.u32 %v7033, 4294901760
    %7035 = vmatpush1.msra.mxu0 %v7034
    %v7036 = vand.u32 %v175, 4294901760
    %v7037 = vsub.f32 %v175, %v7036
    %v7038 = vand.u32 %v7037, 4294901760
    %7039 = vmatprep.subr.mxu0 %v7038
    %v7040 = vand.u32 %v174, 4294901760
    %v7041 = vsub.f32 %v174, %v7040
    %v7042 = vand.u32 %v7041, 4294901760
    %7043 = vmatpush1.msra.mxu0 %v7042
    %v7044 = vand.u32 %v177, 4294901760
    %v7045 = vsub.f32 %v177, %v7044
    %v7046 = vand.u32 %v7045, 4294901760
    %7047 = vmatprep.subr.mxu0 %v7046
    %v7048 = vand.u32 %v176, 4294901760
    %v7049 = vsub.f32 %v176, %v7048
    %v7050 = vand.u32 %v7049, 4294901760
    %7051 = vmatpush1.msra.mxu0 %v7050
    %v7052 = vand.u32 %v179, 4294901760
    %v7053 = vsub.f32 %v179, %v7052
    %v7054 = vand.u32 %v7053, 4294901760
    %7055 = vmatprep.subr.mxu0 %v7054
    %v7056 = vand.u32 %v178, 4294901760
    %v7057 = vsub.f32 %v178, %v7056
    %v7058 = vand.u32 %v7057, 4294901760
    %7059 = vmatpush1.msra.mxu0 %v7058
    %7060 = vmatprep.subr.mxu0 0.0
    %7061 = vmatpush1.msra.mxu0 0.0
    %7062 = vmatprep.subr.mxu0 0.0
    %7063 = vmatpush1.msra.mxu0 0.0
    %7064 = vmatprep.subr.mxu0 0.0
    %7065 = vmatpush1.msra.mxu0 0.0
    %7066 = vmatprep.subr.mxu0 0.0
    %7067 = vmatpush1.msra.mxu0 0.0
    %7068 = vmatprep.subr.mxu0 0.0
    %7069 = vmatpush1.msra.mxu0 0.0
    %7070 = vmatprep.subr.mxu0 0.0
    %7071 = vmatpush1.msra.mxu0 0.0
    %7072 = vmatprep.subr.mxu0 0.0
    %7073 = vmatpush1.msra.mxu0 0.0
    %7074 = vmatprep.subr.mxu0 0.0
    %7075 = vmatpush1.msra.mxu0 0.0
    %7076 = vmatprep.subr.mxu0 0.0
    %7077 = vmatpush1.msra.mxu0 0.0
    %7078 = vmatprep.subr.mxu0 0.0
    %7079 = vmatpush1.msra.mxu0 0.0
    %7080 = vmatprep.subr.mxu0 0.0
    %7081 = vmatpush1.msra.mxu0 0.0
    %7082 = vmatprep.subr.mxu0 0.0
    %7083 = vmatpush1.msra.mxu0 0.0
    %7084 = vmatprep.subr.mxu0 0.0
    %7085 = vmatpush1.msra.mxu0 0.0
    %7086 = vmatprep.subr.mxu0 0.0
    %7087 = vmatpush1.msra.mxu0 0.0
    %7088 = vmatprep.subr.mxu0 0.0
    %7089 = vmatpush1.msra.mxu0 0.0
    %7090 = vmatprep.subr.mxu0 0.0
    %7091 = vmatpush1.msra.mxu0 0.0
    %7092 = vmatprep.mubr.f32.mxu0 0.0
    %v7093 = vand.u32 %v3754, 4294901760
    %7094 = vmatmul.mubr.f32.gmra.mrb[0].mxu0 %v7093
    %v7095 = vpop.f32.mrb[0].mxu0
    %v7096 = vadd.f32 %v6928, %v7095
    %v7097 = vpop.f32.mrb[0].mxu0
    %v7098 = vadd.f32 %v6930, %v7097
    %7099 = vdwg.mxu0
    %v7100 = vand.u32 %v149, 4294901760
    %7101 = vmatprep.subr.mxu0 %v7100
    %v7102 = vand.u32 %v148, 4294901760
    %7103 = vmatpush1.msra.mxu0 %v7102
    %v7104 = vand.u32 %v151, 4294901760
    %7105 = vmatprep.subr.mxu0 %v7104
    %v7106 = vand.u32 %v150, 4294901760
    %7107 = vmatpush1.msra.mxu0 %v7106
    %v7108 = vand.u32 %v153, 4294901760
    %7109 = vmatprep.subr.mxu0 %v7108
    %v7110 = vand.u32 %v152, 4294901760
    %7111 = vmatpush1.msra.mxu0 %v7110
    %v7112 = vand.u32 %v155, 4294901760
    %7113 = vmatprep.subr.mxu0 %v7112
    %v7114 = vand.u32 %v154, 4294901760
    %7115 = vmatpush1.msra.mxu0 %v7114
    %v7116 = vand.u32 %v157, 4294901760
    %7117 = vmatprep.subr.mxu0 %v7116
    %v7118 = vand.u32 %v156, 4294901760
    %7119 = vmatpush1.msra.mxu0 %v7118
    %v7120 = vand.u32 %v159, 4294901760
    %7121 = vmatprep.subr.mxu0 %v7120
    %v7122 = vand.u32 %v158, 4294901760
    %7123 = vmatpush1.msra.mxu0 %v7122
    %v7124 = vand.u32 %v161, 4294901760
    %7125 = vmatprep.subr.mxu0 %v7124
    %v7126 = vand.u32 %v160, 4294901760
    %7127 = vmatpush1.msra.mxu0 %v7126
    %v7128 = vand.u32 %v163, 4294901760
    %7129 = vmatprep.subr.mxu0 %v7128
    %v7130 = vand.u32 %v162, 4294901760
    %7131 = vmatpush1.msra.mxu0 %v7130
    %v7132 = vand.u32 %v165, 4294901760
    %7133 = vmatprep.subr.mxu0 %v7132
    %v7134 = vand.u32 %v164, 4294901760
    %7135 = vmatpush1.msra.mxu0 %v7134
    %v7136 = vand.u32 %v167, 4294901760
    %7137 = vmatprep.subr.mxu0 %v7136
    %v7138 = vand.u32 %v166, 4294901760
    %7139 = vmatpush1.msra.mxu0 %v7138
    %v7140 = vand.u32 %v169, 4294901760
    %7141 = vmatprep.subr.mxu0 %v7140
    %v7142 = vand.u32 %v168, 4294901760
    %7143 = vmatpush1.msra.mxu0 %v7142
    %v7144 = vand.u32 %v171, 4294901760
    %7145 = vmatprep.subr.mxu0 %v7144
    %v7146 = vand.u32 %v170, 4294901760
    %7147 = vmatpush1.msra.mxu0 %v7146
    %v7148 = vand.u32 %v173, 4294901760
    %7149 = vmatprep.subr.mxu0 %v7148
    %v7150 = vand.u32 %v172, 4294901760
    %7151 = vmatpush1.msra.mxu0 %v7150
    %v7152 = vand.u32 %v175, 4294901760
    %7153 = vmatprep.subr.mxu0 %v7152
    %v7154 = vand.u32 %v174, 4294901760
    %7155 = vmatpush1.msra.mxu0 %v7154
    %v7156 = vand.u32 %v177, 4294901760
    %7157 = vmatprep.subr.mxu0 %v7156
    %v7158 = vand.u32 %v176, 4294901760
    %7159 = vmatpush1.msra.mxu0 %v7158
    %v7160 = vand.u32 %v179, 4294901760
    %7161 = vmatprep.subr.mxu0 %v7160
    %v7162 = vand.u32 %v178, 4294901760
    %7163 = vmatpush1.msra.mxu0 %v7162
    %7164 = vmatprep.subr.mxu0 0.0
    %7165 = vmatpush1.msra.mxu0 0.0
    %7166 = vmatprep.subr.mxu0 0.0
    %7167 = vmatpush1.msra.mxu0 0.0
    %7168 = vmatprep.subr.mxu0 0.0
    %7169 = vmatpush1.msra.mxu0 0.0
    %7170 = vmatprep.subr.mxu0 0.0
    %7171 = vmatpush1.msra.mxu0 0.0
    %7172 = vmatprep.subr.mxu0 0.0
    %7173 = vmatpush1.msra.mxu0 0.0
    %7174 = vmatprep.subr.mxu0 0.0
    %7175 = vmatpush1.msra.mxu0 0.0
    %7176 = vmatprep.subr.mxu0 0.0
    %7177 = vmatpush1.msra.mxu0 0.0
    %7178 = vmatprep.subr.mxu0 0.0
    %7179 = vmatpush1.msra.mxu0 0.0
    %7180 = vmatprep.subr.mxu0 0.0
    %7181 = vmatpush1.msra.mxu0 0.0
    %7182 = vmatprep.subr.mxu0 0.0
    %7183 = vmatpush1.msra.mxu0 0.0
    %7184 = vmatprep.subr.mxu0 0.0
    %7185 = vmatpush1.msra.mxu0 0.0
    %7186 = vmatprep.subr.mxu0 0.0
    %7187 = vmatpush1.msra.mxu0 0.0
    %7188 = vmatprep.subr.mxu0 0.0
    %7189 = vmatpush1.msra.mxu0 0.0
    %7190 = vmatprep.subr.mxu0 0.0
    %7191 = vmatpush1.msra.mxu0 0.0
    %7192 = vmatprep.subr.mxu0 0.0
    %7193 = vmatpush1.msra.mxu0 0.0
    %7194 = vmatprep.subr.mxu0 0.0
    %7195 = vmatpush1.msra.mxu0 0.0
    %7196 = vmatprep.mubr.f32.mxu0 0.0
    %v7197 = vand.u32 %v3754, 4294901760
    %7198 = vmatmul.mubr.f32.gmra.mrb[0].mxu0 %v7197
    %v7199 = vpop.f32.mrb[0].mxu0
    %v7200 = vadd.f32 %v7096, %v7199
    %v7201 = vpop.f32.mrb[0].mxu0
    %v7202 = vadd.f32 %v7098, %v7201
    %7203 = vdwg.mxu0
    %v7204 = vld [vmem:[#allocation5] sm:$0x3]
    %v7205 = vld [vmem:[#allocation5 + $0x2] sm:$0x3]
    %v7206 = vld [vmem:[#allocation5 + $0x4] sm:$0x3]
    %v7207 = vld [vmem:[#allocation5 + $0x6] sm:$0x3]
    %7209 = vset.pattern.permute.xlu0 0
    %7210 = vperm.xlu0 %7209, %v3700
    %v7211 = vpop.permute.xlu0 %7210
    %v7213 = vlaneseq
    %v7214 = vshrl.u32 %v7213, 7
    %v7215 = vsub.s32 0, %v7214
    %v7216 = vrot.slane %v7211, %v7215
    %7218 = vset.pattern.permute.xlu0 0
    %7219 = vperm.xlu0 %7218, %v3702
    %v7220 = vpop.permute.xlu0 %7219
    %v7222 = vlaneseq
    %v7223 = vshrl.u32 %v7222, 7
    %v7224 = vsub.s32 0, %v7223
    %v7225 = vrot.slane %v7220, %v7224
    %7227 = vset.pattern.permute.xlu0 0
    %7228 = vperm.xlu0 %7227, %v3704
    %v7229 = vpop.permute.xlu0 %7228
    %v7231 = vlaneseq
    %v7232 = vshrl.u32 %v7231, 7
    %v7233 = vsub.s32 0, %v7232
    %v7234 = vrot.slane %v7229, %v7233
    %7236 = vset.pattern.permute.xlu0 0
    %7237 = vperm.xlu0 %7236, %v3706
    %v7238 = vpop.permute.xlu0 %7237
    %v7240 = vlaneseq
    %v7241 = vshrl.u32 %v7240, 7
    %v7242 = vsub.s32 0, %v7241
    %v7243 = vrot.slane %v7238, %v7242
    %v7244 = vmul.f32 %v7216, %v7204
    %v7245 = vmul.f32 %v7225, %v7205
    %v7246 = vmul.f32 %v7234, %v7206
    %v7247 = vmul.f32 %v7243, %v7207
    %v7256 = vcombine.low %v4635, %v4637
    %v7258 = vunpack.c.l.s4 1966171168
    %v7259 = vunpack.c.0.s8 %v7258
    %v7260 = vlaneseq
    %v7261 = vshrl.u32 %v7260, 7
    %v7262 = vsub.s32 %v7259, %v7261
    %v7263 = vrot.slane %v7256, %v7262
    %v7265 = vunpack.c.l.s4 1966171168
    %v7266 = vunpack.c.0.s8 %v7265
    %v7267 = vlaneseq
    %v7268 = vshrl.u32 %v7267, 7
    %v7269 = vsub.s32 %v7266, %v7268
    %v7270 = vrot.slane %v7263, %v7269
    %v7271 = vcombine.low %v5490, %v5492
    %v7273 = vunpack.c.l.s4 1966171168
    %v7274 = vunpack.c.0.s8 %v7273
    %v7275 = vlaneseq
    %v7276 = vshrl.u32 %v7275, 7
    %v7277 = vsub.s32 %v7274, %v7276
    %v7278 = vrot.slane %v7271, %v7277
    %v7280 = vunpack.c.l.s4 1966171168
    %v7281 = vunpack.c.0.s8 %v7280
    %v7282 = vlaneseq
    %v7283 = vshrl.u32 %v7282, 7
    %v7284 = vsub.s32 %v7281, %v7283
    %v7285 = vrot.slane %v7278, %v7284
    %v7286 = vcombine.low %v6345, %v6347
    %v7288 = vunpack.c.l.s4 1966171168
    %v7289 = vunpack.c.0.s8 %v7288
    %v7290 = vlaneseq
    %v7291 = vshrl.u32 %v7290, 7
    %v7292 = vsub.s32 %v7289, %v7291
    %v7293 = vrot.slane %v7286, %v7292
    %v7295 = vunpack.c.l.s4 1966171168
    %v7296 = vunpack.c.0.s8 %v7295
    %v7297 = vlaneseq
    %v7298 = vshrl.u32 %v7297, 7
    %v7299 = vsub.s32 %v7296, %v7298
    %v7300 = vrot.slane %v7293, %v7299
    %v7301 = vcombine.low %v7200, %v7202
    %v7303 = vunpack.c.l.s4 1966171168
    %v7304 = vunpack.c.0.s8 %v7303
    %v7305 = vlaneseq
    %v7306 = vshrl.u32 %v7305, 7
    %v7307 = vsub.s32 %v7304, %v7306
    %v7308 = vrot.slane %v7301, %v7307
    %v7310 = vunpack.c.l.s4 1966171168
    %v7311 = vunpack.c.0.s8 %v7310
    %v7312 = vlaneseq
    %v7313 = vshrl.u32 %v7312, 7
    %v7314 = vsub.s32 %v7311, %v7313
    %v7315 = vrot.slane %v7308, %v7314
    %v7320 = vadd.f32 %v7244, %v7270
    %v7321 = vadd.f32 %v7245, %v7285
    %v7322 = vadd.f32 %v7246, %v7300
    %v7323 = vadd.f32 %v7247, %v7315
    %v7324 = vlaneseq
    %vm7325 = vcmp.ge.s32.totalorder %v7324, 0
    %vm7326 = vcmp.lt.s32.totalorder %v7324, 256
    %vm7327 = vmand %vm7325, %vm7326
    %7328 = vst.msk [vmem:[#allocation5] sm:$0x3] %vm7327, %v7320
    %7329 = vst.msk [vmem:[#allocation5 + $0x2] sm:$0x3] %vm7327, %v7321
    %7330 = vst.msk [vmem:[#allocation5 + $0x4] sm:$0x3] %vm7327, %v7322
    %7331 = vst.msk [vmem:[#allocation5 + $0x6] sm:$0x3] %vm7327, %v7323
    %7332 = vst.msk [vmem:[#allocation3] sm:$0x1] %vm3779, %v3691
    %7333 = vst.msk [vmem:[#allocation3 + $0x1] sm:$0x1] %vm3779, %v3692
    %7334 = vst.msk [vmem:[#allocation3 + $0x2] sm:$0x1] %vm3779, %v3693
    %7335 = vst.msk [vmem:[#allocation3 + $0x3] sm:$0x1] %vm3779, %v3694
    // Predicated region
    $region22: #{average_self_attention.1} parent=1 // pred_check
      %p7336 = pneg %p31
    $region23: #{average_self_attention.1} parent=1 // pred_check_branch
      %7338 = sbr.rel (%p7336) target = $region25
    $region24: #{average_self_attention.1} parent=1 // pred_region
      %v7339 = vld [vmem:[#allocation4] sm:$0x1]
      %v7340 = vld [vmem:[#allocation4 + $0x1] sm:$0x1]
      %v7341 = vld [vmem:[#allocation4 + $0x2] sm:$0x1]
      %v7342 = vld [vmem:[#allocation4 + $0x3] sm:$0x1]
      %v7343 = vrcp.pop %v7339
      %v7344 = vmul.f32 1.0, %v7343
      %v7345 = vrcp.pop %v7340
      %v7346 = vmul.f32 1.0, %v7345
      %v7347 = vrcp.pop %v7341
      %v7348 = vmul.f32 1.0, %v7347
      %v7349 = vrcp.pop %v7342
      %v7350 = vmul.f32 1.0, %v7349
      %v7351 = vld [vmem:[#allocation3] sm:$0x1]
      %v7352 = vld [vmem:[#allocation3 + $0x1] sm:$0x1]
      %v7353 = vld [vmem:[#allocation3 + $0x2] sm:$0x1]
      %v7354 = vld [vmem:[#allocation3 + $0x3] sm:$0x1]
      %v7355 = vld [vmem:[#allocation2] sm:$0x1]
      %v7356 = vld [vmem:[#allocation2 + $0x1] sm:$0x1]
      %v7357 = vld [vmem:[#allocation2 + $0x2] sm:$0x1]
      %v7358 = vld [vmem:[#allocation2 + $0x3] sm:$0x1]
      %7360 = vset.pattern.permute.xlu0 0
      %7361 = vperm.xlu0 %7360, %v7351
      %v7362 = vpop.permute.xlu0 %7361
      %v7364 = vlaneseq
      %v7365 = vshrl.u32 %v7364, 7
      %v7366 = vsub.s32 0, %v7365
      %v7367 = vrot.slane %v7362, %v7366
      %7369 = vset.pattern.permute.xlu0 0
      %7370 = vperm.xlu0 %7369, %v7352
      %v7371 = vpop.permute.xlu0 %7370
      %v7373 = vlaneseq
      %v7374 = vshrl.u32 %v7373, 7
      %v7375 = vsub.s32 0, %v7374
      %v7376 = vrot.slane %v7371, %v7375
      %7378 = vset.pattern.permute.xlu0 0
      %7379 = vperm.xlu0 %7378, %v7353
      %v7380 = vpop.permute.xlu0 %7379
      %v7382 = vlaneseq
      %v7383 = vshrl.u32 %v7382, 7
      %v7384 = vsub.s32 0, %v7383
      %v7385 = vrot.slane %v7380, %v7384
      %7387 = vset.pattern.permute.xlu0 0
      %7388 = vperm.xlu0 %7387, %v7354
      %v7389 = vpop.permute.xlu0 %7388
      %v7391 = vlaneseq
      %v7392 = vshrl.u32 %v7391, 7
      %v7393 = vsub.s32 0, %v7392
      %v7394 = vrot.slane %v7389, %v7393
      %v7395 = vsub.f32 %v7355, %v7367
      %v7396 = vsub.f32 %v7356, %v7376
      %v7397 = vsub.f32 %v7357, %v7385
      %v7398 = vsub.f32 %v7358, %v7394
      %v7399 = vmul.f32 %v7395, 1.442695
      %v7400 = vpow.pop %v7399
      %v7401 = vmul.f32 %v7396, 1.442695
      %v7402 = vpow.pop %v7401
      %v7403 = vmul.f32 %v7397, 1.442695
      %v7404 = vpow.pop %v7403
      %v7405 = vmul.f32 %v7398, 1.442695
      %v7406 = vpow.pop %v7405
      %7408 = vset.pattern.permute.xlu0 0
      %7409 = vperm.xlu0 %7408, %v7344
      %v7410 = vpop.permute.xlu0 %7409
      %v7412 = vlaneseq
      %v7413 = vshrl.u32 %v7412, 7
      %v7414 = vsub.s32 0, %v7413
      %v7415 = vrot.slane %v7410, %v7414
      %7417 = vset.pattern.permute.xlu0 0
      %7418 = vperm.xlu0 %7417, %v7346
      %v7419 = vpop.permute.xlu0 %7418
      %v7421 = vlaneseq
      %v7422 = vshrl.u32 %v7421, 7
      %v7423 = vsub.s32 0, %v7422
      %v7424 = vrot.slane %v7419, %v7423
      %7426 = vset.pattern.permute.xlu0 0
      %7427 = vperm.xlu0 %7426, %v7348
      %v7428 = vpop.permute.xlu0 %7427
      %v7430 = vlaneseq
      %v7431 = vshrl.u32 %v7430, 7
      %v7432 = vsub.s32 0, %v7431
      %v7433 = vrot.slane %v7428, %v7432
      %7435 = vset.pattern.permute.xlu0 0
      %7436 = vperm.xlu0 %7435, %v7350
      %v7437 = vpop.permute.xlu0 %7436
      %v7439 = vlaneseq
      %v7440 = vshrl.u32 %v7439, 7
      %v7441 = vsub.s32 0, %v7440
      %v7442 = vrot.slane %v7437, %v7441
      %v7443 = vmul.f32 %v7400, %v7415
      %v7444 = vmul.f32 %v7402, %v7424
      %v7445 = vmul.f32 %v7404, %v7433
      %v7446 = vmul.f32 %v7406, %v7442
      %7447 = vst [vmem:[#allocation9] sm:$0x1] %v7443
      %7448 = vst [vmem:[#allocation9 + $0x1] sm:$0x1] %v7444
      %7449 = vst [vmem:[#allocation9 + $0x2] sm:$0x1] %v7445
      %7450 = vst [vmem:[#allocation9 + $0x3] sm:$0x1] %v7446
      %v7451 = vld [vmem:[#allocation5] sm:$0x3]
      %v7452 = vld [vmem:[#allocation5 + $0x2] sm:$0x3]
      %v7453 = vld [vmem:[#allocation5 + $0x4] sm:$0x3]
      %v7454 = vld [vmem:[#allocation5 + $0x6] sm:$0x3]
      %v7455 = vmul.f32 %v7451, %v7415
      %v7456 = vmul.f32 %v7452, %v7424
      %v7457 = vmul.f32 %v7453, %v7433
      %v7458 = vmul.f32 %v7454, %v7442
      %7459 = vst.msk [vmem:[%s3] sm:$0x3] %vm7327, %v7455
      %7460 = vst.msk [vmem:[%s3 + $0x2] sm:$0x3] %vm7327, %v7456
      %7461 = vst.msk [vmem:[%s3 + $0x4] sm:$0x3] %vm7327, %v7457
      %7462 = vst.msk [vmem:[%s3 + $0x6] sm:$0x3] %vm7327, %v7458
    $region25: #{average_self_attention.1} parent=1 // pred_fallthru
      _
    // Predicated region
    $region26: #{average_self_attention.1} parent=1 // pred_check
      _
    $region27: #{average_self_attention.1} parent=1 // pred_check_branch
      %7464 = sbr.rel (0) target = $region29
    $region28: #{average_self_attention.1} parent=1 // pred_region
      _
    $region29: #{average_self_attention.1} parent=1 // pred_fallthru
      _
    // Predicated region
    $region30: #{average_self_attention.1} parent=1 // pred_check
      _
    $region31: #{average_self_attention.1} parent=1 // pred_check_branch
      %7466 = sbr.rel (0) target = $region33
    $region32: #{average_self_attention.1} parent=1 // pred_region
      %s7468 = ssub.s32 64, 64
      %7469 = vsyncadd [#allocation8], %s7468
      %s7470 = sshll.u32 [#allocation9], 4
      %s7471 = int_to_ptr.vmem [resolvable:$true] %s7470
      %7476 = dma.vmem_to_hbm [thread:$0]  %s7471, 64, %s4, [#allocation8], 16, 16, 1
    $region33: #{average_self_attention.1} parent=1 // pred_fallthru
      _
    // Predicated region
    $region34: #{average_self_attention.1} parent=1 // pred_check
      _
    $region35: #{average_self_attention.1} parent=1 // pred_check_branch
      %7478 = sbr.rel (0) target = $region37
    $region36: #{average_self_attention.1} parent=1 // pred_region
      _
    $region37: #{average_self_attention.1} parent=1 // pred_fallthru
      _
    // Predicated region
    $region38: #{average_self_attention.1} parent=1 // pred_check
      _
    $region39: #{average_self_attention.1} parent=1 // pred_check_branch
      %7480 = sbr.rel (0) target = $region41
    $region40: #{average_self_attention.1} parent=1 // pred_region
      %7481 = dma.done [#allocation8], 64
    $region41: #{average_self_attention.1} parent=1 // pred_fallthru
      _
    %7482 = vsyncpa [#allocation7], 1
    %7483 = vsyncpa [#allocation8], 1

</llo_original>
